<compile_context>
chip_gen: v7x
topology: tpu7x:2x2x1
jax: 0.10.0
libtpu: 0.0.40
codegen_flags: <defaults>
</compile_context>

<pallas_src>
import jax
import jax.numpy as jnp
from jax import lax
from jax.experimental import pallas as pl
from jax.experimental.pallas import tpu as pltpu

# ----------------------------------------------------------------------------
# Model hyper-parameters (DRJModel_FusionMMD defaults)
# ----------------------------------------------------------------------------
INPUT_SIZE = 768        # BERT [CLS] feature dim / text_linear hidden
OUT_SIZE = 300          # out_size
NUM_LABEL = 2
IMG_FEAT = 2048         # ResNet-50 pooled feature dim
IMG_HID = 1024          # img_linear hidden dim
NUM_CLASSES = 1000      # instance_discriminator (resnet50.fc) output

# lane-padded (multiple of 128) / sublane-padded sizes
OUT_PAD = 384           # 300 -> 384
CLS_PAD = 1024          # 1000 -> 1024  (== IMG_HID so kernel A tiles uniformly)
LABEL_PAD = 128         # 2 -> 128
LN_EPS = 1e-5

_VMEM = pl.BlockSpec(memory_space=pltpu.MemorySpace.VMEM)


def _round_up(x, m):
    return (x + m - 1) // m * m


# ----------------------------------------------------------------------------
# Kernel A: merged [instance_discriminator.fc | img_linear[0]] matmul
#           x:(Bp,2048) @ W:(2048, 2048 bf16) + b, N-tiled over 2 blocks of 1024
#           block 0 -> instance-cls logits (no act), block 1 -> img hidden (ReLU)
# ----------------------------------------------------------------------------
def _img_cls_matmul_kernel(x_ref, w_ref, b_ref, o_ref):
    j = pl.program_id(0)
    x = x_ref[...].astype(jnp.bfloat16)
    y = jnp.dot(x, w_ref[...], preferred_element_type=jnp.float32) + b_ref[...]

    @pl.when(j == 0)
    def _():
        o_ref[...] = y                      # instance-cls logits: no activation

    @pl.when(j > 0)
    def _():
        o_ref[...] = jnp.maximum(y, 0.0)    # img_linear first layer: ReLU


def _run_img_cls_matmul(imgs_p, w_big, b_big, b_pad):
    return pl.pallas_call(
        _img_cls_matmul_kernel,
        out_shape=jax.ShapeDtypeStruct((b_pad, CLS_PAD + IMG_HID), jnp.float32),
        grid=(2,),
        in_specs=[
            pl.BlockSpec((b_pad, IMG_FEAT), lambda j: (0, 0)),
            pl.BlockSpec((IMG_FEAT, IMG_HID), lambda j: (0, j)),
            pl.BlockSpec((1, IMG_HID), lambda j: (0, j)),
        ],
        out_specs=pl.BlockSpec((b_pad, IMG_HID), lambda j: (0, j)),
        compiler_params=pltpu.CompilerParams(
            dimension_semantics=("parallel",)),   # both TCs on v7x
    )(imgs_p, w_big, b_big)


# ----------------------------------------------------------------------------
# Kernel B: fused text MLP + img second Linear/LayerNorm/ReLU + cls_layer + head
# ----------------------------------------------------------------------------
def _fused_heads_kernel(texts_ref, h1_ref,
                        tw1_ref, tb1_ref, tw2_ref, tb2_ref, tg_ref, tbl_ref,
                        iw2_ref, ib2_ref, ig_ref, ibl_ref,
                        fwt_ref, fwi_ref, fb_ref,
                        hw_ref, hb_ref,
                        f_ref, y_ref):
    def ln_relu(x, g, b):
        # LayerNorm over the first OUT_SIZE lanes (padding lanes hold zeros),
        # biased variance and eps=1e-5 (matches nn.LayerNorm), then ReLU.
        s = jnp.sum(x, axis=-1, keepdims=True)
        s2 = jnp.sum(x * x, axis=-1, keepdims=True)
        mean = s / OUT_SIZE
        var = jnp.maximum(s2 / OUT_SIZE - mean * mean, 0.0)
        y = (x - mean) * lax.rsqrt(var + LN_EPS)
        # gamma/beta are zero in padding lanes, so padded lanes stay exactly 0.
        return jnp.maximum(y * g + b, 0.0)

    # ---- text_linear: Linear(768,768) ReLU Linear(768,300) LN(300) ReLU ----
    th = jnp.dot(texts_ref[...].astype(jnp.bfloat16), tw1_ref[...],
                 preferred_element_type=jnp.float32) + tb1_ref[...]
    th = jnp.maximum(th, 0.0)
    tpre = jnp.dot(th.astype(jnp.bfloat16), tw2_ref[...],
                   preferred_element_type=jnp.float32) + tb2_ref[...]
    t_out = ln_relu(tpre, tg_ref[...], tbl_ref[...])            # (Bp, 384)

    # ---- img_linear second half (h1 already ReLU'd in kernel A) ----
    ipre = jnp.dot(h1_ref[...].astype(jnp.bfloat16), iw2_ref[...],
                   preferred_element_type=jnp.float32) + ib2_ref[...]
    i_out = ln_relu(ipre, ig_ref[...], ibl_ref[...])            # (Bp, 384)

    # ---- cls_layer(concat([texts, imgs], dim=1)) via split weights ----
    f = (jnp.dot(t_out.astype(jnp.bfloat16), fwt_ref[...],
                 preferred_element_type=jnp.float32)
         + jnp.dot(i_out.astype(jnp.bfloat16), fwi_ref[...],
                   preferred_element_type=jnp.float32)
         + fb_ref[...])                                         # (Bp, 384)

    # ---- head ----
    y = jnp.dot(f.astype(jnp.bfloat16), hw_ref[...],
                preferred_element_type=jnp.float32) + hb_ref[...]

    f_ref[...] = f
    y_ref[...] = y


def _run_fused_heads(texts_p, h1, params, b_pad):
    return pl.pallas_call(
        _fused_heads_kernel,
        out_shape=(jax.ShapeDtypeStruct((b_pad, OUT_PAD), jnp.float32),
                   jax.ShapeDtypeStruct((b_pad, LABEL_PAD), jnp.float32)),
        in_specs=[_VMEM] * 17,
        out_specs=(_VMEM, _VMEM),
    )(texts_p, h1,
      params["tw1"], params["tb1"], params["tw2"], params["tb2"],
      params["tg"], params["tbl"],
      params["iw2"], params["ib2"], params["ig"], params["ibl"],
      params["fwt"], params["fwi"], params["fb"],
      params["hw"], params["hb"])


# ----------------------------------------------------------------------------
# Parameter construction (deterministic, synthetic, pre-padded for the kernels)
# ----------------------------------------------------------------------------
def _pad2(w, rows, cols):
    return jnp.pad(w, ((0, rows - w.shape[0]), (0, cols - w.shape[1])))


def _pad1(v, n):
    return jnp.pad(v, (0, n - v.shape[0]))


def init_params(key):
    ks = jax.random.split(key, 8)
    f32 = jnp.float32

    # Encoder.text_linear
    tw1 = 0.02 * jax.random.normal(ks[0], (INPUT_SIZE, INPUT_SIZE), f32)
    tb1 = jnp.zeros((INPUT_SIZE,), f32)
    tw2 = 0.02 * jax.random.normal(ks[1], (INPUT_SIZE, OUT_SIZE), f32)
    tb2 = jnp.zeros((OUT_SIZE,), f32)
    tg, tbl = jnp.ones((OUT_SIZE,), f32), jnp.zeros((OUT_SIZE,), f32)

    # Encoder.img_linear
    iw1 = 0.02 * jax.random.normal(ks[2], (IMG_FEAT, IMG_HID), f32)
    ib1 = jnp.zeros((IMG_HID,), f32)
    iw2 = 0.02 * jax.random.normal(ks[3], (IMG_HID, OUT_SIZE), f32)
    ib2 = jnp.zeros((OUT_SIZE,), f32)
    ig, ibl = jnp.ones((OUT_SIZE,), f32), jnp.zeros((OUT_SIZE,), f32)

    # instance_discriminator final fc (resnet50.fc: 2048 -> 1000)
    cw = 0.02 * jax.random.normal(ks[4], (IMG_FEAT, NUM_CLASSES), f32)
    cb = jnp.zeros((NUM_CLASSES,), f32)

    # DRJ cls_layer (600 -> 300) and head (300 -> 2)
    fw = 0.05 * jax.random.normal(ks[5], (2 * OUT_SIZE, OUT_SIZE), f32)
    fb = jnp.zeros((OUT_SIZE,), f32)
    hw = 0.05 * jax.random.normal(ks[6], (OUT_SIZE, NUM_LABEL), f32)
    hb = jnp.zeros((NUM_LABEL,), f32)

    p = {}
    # merged [instance_fc | img_linear1] weight (bf16) + bias
    big_w = jnp.concatenate([_pad2(cw, IMG_FEAT, CLS_PAD), iw1], axis=1)
    p["big_w"] = big_w.astype(jnp.bfloat16)                          # (2048, 2048)
    p["big_b"] = jnp.concatenate([_pad1(cb, CLS_PAD), ib1]).reshape(1, -1)

    p["tw1"] = tw1.astype(jnp.bfloat16)                              # (768, 768)
    p["tb1"] = tb1.reshape(1, -1)
    p["tw2"] = _pad2(tw2, INPUT_SIZE, OUT_PAD).astype(jnp.bfloat16)  # (768, 384)
    p["tb2"] = _pad1(tb2, OUT_PAD).reshape(1, -1)
    p["tg"] = _pad1(tg, OUT_PAD).reshape(1, -1)
    p["tbl"] = _pad1(tbl, OUT_PAD).reshape(1, -1)

    p["iw2"] = _pad2(iw2, IMG_HID, OUT_PAD).astype(jnp.bfloat16)     # (1024, 384)
    p["ib2"] = _pad1(ib2, OUT_PAD).reshape(1, -1)
    p["ig"] = _pad1(ig, OUT_PAD).reshape(1, -1)
    p["ibl"] = _pad1(ibl, OUT_PAD).reshape(1, -1)

    # fusion weight split into text / img halves (avoids in-kernel concat);
    # stored bf16 to halve kernel-B weight DMA (f32 accumulation in-kernel).
    p["fwt"] = _pad2(fw[:OUT_SIZE], OUT_PAD, OUT_PAD).astype(jnp.bfloat16)   # (384, 384)
    p["fwi"] = _pad2(fw[OUT_SIZE:], OUT_PAD, OUT_PAD).astype(jnp.bfloat16)   # (384, 384)
    p["fb"] = _pad1(fb, OUT_PAD).reshape(1, -1)
    p["hw"] = _pad2(hw, OUT_PAD, LABEL_PAD).astype(jnp.bfloat16)             # (384, 128)
    p["hb"] = _pad1(hb, LABEL_PAD).reshape(1, -1)
    return p


# ----------------------------------------------------------------------------
# Forward pass (glue in JAX, compute in two Pallas kernels)
# ----------------------------------------------------------------------------
def drj_forward(params, text_feats, img_feats):
    """text_feats: (B, 768) BERT [CLS] features; img_feats: (B, 2048) pooled ResNet features."""
    B = text_feats.shape[0]
    b_pad = max(8, _round_up(B, 8))                   # sublane-friendly batch
    texts_p = jnp.pad(text_feats, ((0, b_pad - B), (0, 0)))
    imgs_p = jnp.pad(img_feats, ((0, b_pad - B), (0, 0)))

    # Kernel A: instance_discriminator.fc and img_linear[0] in one MXU pass.
    big = _run_img_cls_matmul(imgs_p, params["big_w"], params["big_b"], b_pad)
    instance_cls_pad = big[:, :CLS_PAD]               # (b_pad, 1024), real 1000
    h1 = big[:, CLS_PAD:]                             # (b_pad, 1024) ReLU hidden

    # Kernel B: text MLP + img second Linear/LN/ReLU + cls_layer + head, fused.
    f_pad, y_pad = _run_fused_heads(texts_p, h1, params, b_pad)

    f = f_pad[:B, :OUT_SIZE]                          # (B, 300)
    train_y = y_pad[:B, :NUM_LABEL]                   # (B, 2)
    instance_cls = instance_cls_pad[:B, :NUM_CLASSES]  # (B, 1000)
    return f, train_y, instance_cls


# ----------------------------------------------------------------------------
# Main
# ----------------------------------------------------------------------------
if __name__ == "__main__":
    B = 2
    key = jax.random.PRNGKey(0)
    k_txt, k_img, k_par = jax.random.split(key, 3)

    # pre-extracted backbone features (stand-ins for BERT / ResNet-50 outputs)
    text_feats = jax.random.normal(k_txt, (B, INPUT_SIZE), jnp.float32)
    img_feats = jax.random.normal(k_img, (B, IMG_FEAT), jnp.float32)
    params = init_params(k_par)

    fwd = jax.jit(drj_forward)
    f, train_y, instance_cls = fwd(params, text_feats, img_feats)
    jax.block_until_ready((f, train_y, instance_cls))

    assert f.shape == (B, OUT_SIZE)
    assert train_y.shape == (B, NUM_LABEL)
    assert instance_cls.shape == (B, NUM_CLASSES)
    assert bool(jnp.all(jnp.isfinite(f)))
    assert bool(jnp.all(jnp.isfinite(train_y)))
    assert bool(jnp.all(jnp.isfinite(instance_cls)))

    print("KERNEL_OK")
</pallas_src>

<mosaic_0001>
module attributes {stable_mosaic.version = 11 : i64} {
  func.func @_img_cls_matmul_kernel(%arg0: i32, %arg1: memref<8x2048xf32, #tpu.memory_space<vmem>>, %arg2: memref<2048x1024xbf16, #tpu.memory_space<vmem>>, %arg3: memref<1x1024xf32, #tpu.memory_space<vmem>>, %arg4: memref<8x1024xf32, #tpu.memory_space<vmem>>) attributes {dimension_semantics = [#tpu.dimension_semantics<parallel>], iteration_bounds = array<i64: 2>, scalar_prefetch = 0 : i64, scratch_operands = 0 : i64, tpu.core_type = #tpu.core_type<tc>, window_params = [{pipeline_mode = #tpu.pipeline_mode<synchronous>, transform_indices = @transform_0, window_bounds = array<i64: 8, 2048>}, {transform_indices = @transform_1, window_bounds = array<i64: 2048, 1024>}, {transform_indices = @transform_2, window_bounds = array<i64: 1, 1024>}, {transform_indices = @transform_3, window_bounds = array<i64: 8, 1024>}]} {
    %c0 = arith.constant 0 : index
    %c0_0 = arith.constant 0 : index
    %0 = vector.load %arg1[%c0, %c0_0] : memref<8x2048xf32, #tpu.memory_space<vmem>>, vector<8x2048xf32>
    %1 = arith.truncf %0 : vector<8x2048xf32> to vector<8x2048xbf16>
    %c0_1 = arith.constant 0 : index
    %c0_2 = arith.constant 0 : index
    %2 = vector.load %arg2[%c0_1, %c0_2] : memref<2048x1024xbf16, #tpu.memory_space<vmem>>, vector<2048x1024xbf16>
    %cst = arith.constant dense<0.000000e+00> : vector<8x1024xf32>
    %3 = tpu.matmul %1, %2, %cst {dimension_numbers = #tpu.dot_dimension_numbers<[1], [0], [0], [1], [0, 0, 1, 1], [], []>} : vector<8x2048xbf16>, vector<2048x1024xbf16>, vector<8x1024xf32> -> vector<8x1024xf32>
    %c0_3 = arith.constant 0 : index
    %c0_4 = arith.constant 0 : index
    %4 = vector.load %arg3[%c0_3, %c0_4] : memref<1x1024xf32, #tpu.memory_space<vmem>>, vector<1x1024xf32>
    %5 = vector.broadcast %4 : vector<1x1024xf32> to vector<8x1024xf32>
    %6 = arith.addf %3, %5 : vector<8x1024xf32>
    %c0_i32 = arith.constant 0 : i32
    %7 = arith.cmpi eq, %arg0, %c0_i32 : i32
    %8 = arith.extui %7 : i1 to i32
    %c0_i32_5 = arith.constant 0 : i32
    %9 = arith.cmpi ne, %8, %c0_i32_5 : i32
    scf.if %9 {
      %c0_8 = arith.constant 0 : index
      %c0_9 = arith.constant 0 : index
      %13 = vector.load %arg4[%c0_8, %c0_9] : memref<8x1024xf32, #tpu.memory_space<vmem>>, vector<8x1024xf32>
      tpu.vector_store %arg4[%c0_8, %c0_9], %6 {strides = array<i32>} : memref<8x1024xf32, #tpu.memory_space<vmem>>, vector<8x1024xf32>,
    } else {
    }
    %c0_i32_6 = arith.constant 0 : i32
    %10 = arith.cmpi sgt, %arg0, %c0_i32_6 : i32
    %11 = arith.extui %10 : i1 to i32
    %c0_i32_7 = arith.constant 0 : i32
    %12 = arith.cmpi ne, %11, %c0_i32_7 : i32
    scf.if %12 {
      %cst_8 = arith.constant 0.000000e+00 : f32
      %13 = vector.broadcast %cst_8 : f32 to vector<8x1024xf32>
      %14 = arith.maximumf %6, %13 : vector<8x1024xf32>
      %c0_9 = arith.constant 0 : index
      %c0_10 = arith.constant 0 : index
      %15 = vector.load %arg4[%c0_9, %c0_10] : memref<8x1024xf32, #tpu.memory_space<vmem>>, vector<8x1024xf32>
      tpu.vector_store %arg4[%c0_9, %c0_10], %14 {strides = array<i32>} : memref<8x1024xf32, #tpu.memory_space<vmem>>, vector<8x1024xf32>,
    } else {
    }
    return
  }
  func.func @transform_0(%arg0: i32) -> (i32, i32) {
    %c0_i32 = arith.constant 0 : i32
    %c0_i32_0 = arith.constant 0 : i32
    %c0_i32_1 = arith.constant 0 : i32
    return %c0_i32, %c0_i32_0 : i32, i32
  }
  func.func @transform_1(%arg0: i32) -> (i32, i32) {
    %c0_i32 = arith.constant 0 : i32
    %c0_i32_0 = arith.constant 0 : i32
    return %c0_i32, %arg0 : i32, i32
  }
  func.func @transform_2(%arg0: i32) -> (i32, i32) {
    %c0_i32 = arith.constant 0 : i32
    %c0_i32_0 = arith.constant 0 : i32
    return %c0_i32, %arg0 : i32, i32
  }
  func.func @transform_3(%arg0: i32) -> (i32, i32) {
    %c0_i32 = arith.constant 0 : i32
    %c0_i32_0 = arith.constant 0 : i32
    return %c0_i32, %arg0 : i32, i32
  }
}

module attributes {stable_mosaic.version = 11 : i64} {
  func.func @_fused_heads_kernel(%arg0: memref<8x768xf32, #tpu.memory_space<vmem>>, %arg1: memref<8x1024xf32, #tpu.memory_space<vmem>>, %arg2: memref<768x768xbf16, #tpu.memory_space<vmem>>, %arg3: memref<1x768xf32, #tpu.memory_space<vmem>>, %arg4: memref<768x384xbf16, #tpu.memory_space<vmem>>, %arg5: memref<1x384xf32, #tpu.memory_space<vmem>>, %arg6: memref<1x384xf32, #tpu.memory_space<vmem>>, %arg7: memref<1x384xf32, #tpu.memory_space<vmem>>, %arg8: memref<1024x384xbf16, #tpu.memory_space<vmem>>, %arg9: memref<1x384xf32, #tpu.memory_space<vmem>>, %arg10: memref<1x384xf32, #tpu.memory_space<vmem>>, %arg11: memref<1x384xf32, #tpu.memory_space<vmem>>, %arg12: memref<384x384xbf16, #tpu.memory_space<vmem>>, %arg13: memref<384x384xbf16, #tpu.memory_space<vmem>>, %arg14: memref<1x384xf32, #tpu.memory_space<vmem>>, %arg15: memref<384x128xbf16, #tpu.memory_space<vmem>>, %arg16: memref<1x128xf32, #tpu.memory_space<vmem>>, %arg17: memref<8x384xf32, #tpu.memory_space<vmem>>, %arg18: memref<8x128xf32, #tpu.memory_space<vmem>>) attributes {dimension_semantics = [], scalar_prefetch = 0 : i64, scratch_operands = 0 : i64, tpu.core_type = #tpu.core_type<tc>} {
    %c0 = arith.constant 0 : index
    %c0_0 = arith.constant 0 : index
    %0 = vector.load %arg0[%c0, %c0_0] : memref<8x768xf32, #tpu.memory_space<vmem>>, vector<8x768xf32>
    %1 = arith.truncf %0 : vector<8x768xf32> to vector<8x768xbf16>
    %c0_1 = arith.constant 0 : index
    %c0_2 = arith.constant 0 : index
    %2 = vector.load %arg2[%c0_1, %c0_2] : memref<768x768xbf16, #tpu.memory_space<vmem>>, vector<768x768xbf16>
    %cst = arith.constant dense<0.000000e+00> : vector<8x768xf32>
    %3 = tpu.matmul %1, %2, %cst {dimension_numbers = #tpu.dot_dimension_numbers<[1], [0], [0], [1], [0, 0, 1, 1], [], []>} : vector<8x768xbf16>, vector<768x768xbf16>, vector<8x768xf32> -> vector<8x768xf32>
    %c0_3 = arith.constant 0 : index
    %c0_4 = arith.constant 0 : index
    %4 = vector.load %arg3[%c0_3, %c0_4] : memref<1x768xf32, #tpu.memory_space<vmem>>, vector<1x768xf32>
    %5 = vector.broadcast %4 : vector<1x768xf32> to vector<8x768xf32>
    %6 = arith.addf %3, %5 : vector<8x768xf32>
    %cst_5 = arith.constant 0.000000e+00 : f32
    %7 = vector.broadcast %cst_5 : f32 to vector<8x768xf32>
    %8 = arith.maximumf %6, %7 : vector<8x768xf32>
    %9 = arith.truncf %8 : vector<8x768xf32> to vector<8x768xbf16>
    %c0_6 = arith.constant 0 : index
    %c0_7 = arith.constant 0 : index
    %10 = vector.load %arg4[%c0_6, %c0_7] : memref<768x384xbf16, #tpu.memory_space<vmem>>, vector<768x384xbf16>
    %cst_8 = arith.constant dense<0.000000e+00> : vector<8x384xf32>
    %11 = tpu.matmul %9, %10, %cst_8 {dimension_numbers = #tpu.dot_dimension_numbers<[1], [0], [0], [1], [0, 0, 1, 1], [], []>} : vector<8x768xbf16>, vector<768x384xbf16>, vector<8x384xf32> -> vector<8x384xf32>
    %c0_9 = arith.constant 0 : index
    %c0_10 = arith.constant 0 : index
    %12 = vector.load %arg5[%c0_9, %c0_10] : memref<1x384xf32, #tpu.memory_space<vmem>>, vector<1x384xf32>
    %13 = vector.broadcast %12 : vector<1x384xf32> to vector<8x384xf32>
    %14 = arith.addf %11, %13 : vector<8x384xf32>
    %c0_11 = arith.constant 0 : index
    %c0_12 = arith.constant 0 : index
    %15 = vector.load %arg6[%c0_11, %c0_12] : memref<1x384xf32, #tpu.memory_space<vmem>>, vector<1x384xf32>
    %c0_13 = arith.constant 0 : index
    %c0_14 = arith.constant 0 : index
    %16 = vector.load %arg7[%c0_13, %c0_14] : memref<1x384xf32, #tpu.memory_space<vmem>>, vector<1x384xf32>
    %cst_15 = arith.constant dense<0.000000e+00> : vector<8xf32>
    %17 = vector.multi_reduction <add>, %14, %cst_15 [1] : vector<8x384xf32> to vector<8xf32>
    %18 = vector.shape_cast %17 : vector<8xf32> to vector<8x1xf32>
    %19 = arith.mulf %14, %14 : vector<8x384xf32>
    %cst_16 = arith.constant dense<0.000000e+00> : vector<8xf32>
    %20 = vector.multi_reduction <add>, %19, %cst_16 [1] : vector<8x384xf32> to vector<8xf32>
    %21 = vector.shape_cast %20 : vector<8xf32> to vector<8x1xf32>
    %cst_17 = arith.constant 3.000000e+02 : f32
    %22 = vector.broadcast %cst_17 : f32 to vector<8x1xf32>
    %23 = arith.divf %18, %22 : vector<8x1xf32>
    %cst_18 = arith.constant 3.000000e+02 : f32
    %24 = vector.broadcast %cst_18 : f32 to vector<8x1xf32>
    %25 = arith.divf %21, %24 : vector<8x1xf32>
    %26 = arith.mulf %23, %23 : vector<8x1xf32>
    %27 = arith.subf %25, %26 : vector<8x1xf32>
    %cst_19 = arith.constant 0.000000e+00 : f32
    %28 = vector.broadcast %cst_19 : f32 to vector<8x1xf32>
    %29 = arith.maximumf %27, %28 : vector<8x1xf32>
    %30 = vector.broadcast %23 : vector<8x1xf32> to vector<8x384xf32>
    %31 = arith.subf %14, %30 : vector<8x384xf32>
    %cst_20 = arith.constant 9.99999974E-6 : f32
    %32 = vector.broadcast %cst_20 : f32 to vector<8x1xf32>
    %33 = arith.addf %29, %32 : vector<8x1xf32>
    %34 = math.rsqrt %33 : vector<8x1xf32>
    %35 = vector.broadcast %34 : vector<8x1xf32> to vector<8x384xf32>
    %36 = arith.mulf %31, %35 : vector<8x384xf32>
    %37 = vector.broadcast %15 : vector<1x384xf32> to vector<8x384xf32>
    %38 = arith.mulf %36, %37 : vector<8x384xf32>
    %39 = vector.broadcast %16 : vector<1x384xf32> to vector<8x384xf32>
    %40 = arith.addf %38, %39 : vector<8x384xf32>
    %cst_21 = arith.constant 0.000000e+00 : f32
    %41 = vector.broadcast %cst_21 : f32 to vector<8x384xf32>
    %42 = arith.maximumf %40, %41 : vector<8x384xf32>
    %c0_22 = arith.constant 0 : index
    %c0_23 = arith.constant 0 : index
    %43 = vector.load %arg1[%c0_22, %c0_23] : memref<8x1024xf32, #tpu.memory_space<vmem>>, vector<8x1024xf32>
    %44 = arith.truncf %43 : vector<8x1024xf32> to vector<8x1024xbf16>
    %c0_24 = arith.constant 0 : index
    %c0_25 = arith.constant 0 : index
    %45 = vector.load %arg8[%c0_24, %c0_25] : memref<1024x384xbf16, #tpu.memory_space<vmem>>, vector<1024x384xbf16>
    %cst_26 = arith.constant dense<0.000000e+00> : vector<8x384xf32>
    %46 = tpu.matmul %44, %45, %cst_26 {dimension_numbers = #tpu.dot_dimension_numbers<[1], [0], [0], [1], [0, 0, 1, 1], [], []>} : vector<8x1024xbf16>, vector<1024x384xbf16>, vector<8x384xf32> -> vector<8x384xf32>
    %c0_27 = arith.constant 0 : index
    %c0_28 = arith.constant 0 : index
    %47 = vector.load %arg9[%c0_27, %c0_28] : memref<1x384xf32, #tpu.memory_space<vmem>>, vector<1x384xf32>
    %48 = vector.broadcast %47 : vector<1x384xf32> to vector<8x384xf32>
    %49 = arith.addf %46, %48 : vector<8x384xf32>
    %c0_29 = arith.constant 0 : index
    %c0_30 = arith.constant 0 : index
    %50 = vector.load %arg10[%c0_29, %c0_30] : memref<1x384xf32, #tpu.memory_space<vmem>>, vector<1x384xf32>
    %c0_31 = arith.constant 0 : index
    %c0_32 = arith.constant 0 : index
    %51 = vector.load %arg11[%c0_31, %c0_32] : memref<1x384xf32, #tpu.memory_space<vmem>>, vector<1x384xf32>
    %cst_33 = arith.constant dense<0.000000e+00> : vector<8xf32>
    %52 = vector.multi_reduction <add>, %49, %cst_33 [1] : vector<8x384xf32> to vector<8xf32>
    %53 = vector.shape_cast %52 : vector<8xf32> to vector<8x1xf32>
    %54 = arith.mulf %49, %49 : vector<8x384xf32>
    %cst_34 = arith.constant dense<0.000000e+00> : vector<8xf32>
    %55 = vector.multi_reduction <add>, %54, %cst_34 [1] : vector<8x384xf32> to vector<8xf32>
    %56 = vector.shape_cast %55 : vector<8xf32> to vector<8x1xf32>
    %cst_35 = arith.constant 3.000000e+02 : f32
    %57 = vector.broadcast %cst_35 : f32 to vector<8x1xf32>
    %58 = arith.divf %53, %57 : vector<8x1xf32>
    %cst_36 = arith.constant 3.000000e+02 : f32
    %59 = vector.broadcast %cst_36 : f32 to vector<8x1xf32>
    %60 = arith.divf %56, %59 : vector<8x1xf32>
    %61 = arith.mulf %58, %58 : vector<8x1xf32>
    %62 = arith.subf %60, %61 : vector<8x1xf32>
    %cst_37 = arith.constant 0.000000e+00 : f32
    %63 = vector.broadcast %cst_37 : f32 to vector<8x1xf32>
    %64 = arith.maximumf %62, %63 : vector<8x1xf32>
    %65 = vector.broadcast %58 : vector<8x1xf32> to vector<8x384xf32>
    %66 = arith.subf %49, %65 : vector<8x384xf32>
    %cst_38 = arith.constant 9.99999974E-6 : f32
    %67 = vector.broadcast %cst_38 : f32 to vector<8x1xf32>
    %68 = arith.addf %64, %67 : vector<8x1xf32>
    %69 = math.rsqrt %68 : vector<8x1xf32>
    %70 = vector.broadcast %69 : vector<8x1xf32> to vector<8x384xf32>
    %71 = arith.mulf %66, %70 : vector<8x384xf32>
    %72 = vector.broadcast %50 : vector<1x384xf32> to vector<8x384xf32>
    %73 = arith.mulf %71, %72 : vector<8x384xf32>
    %74 = vector.broadcast %51 : vector<1x384xf32> to vector<8x384xf32>
    %75 = arith.addf %73, %74 : vector<8x384xf32>
    %cst_39 = arith.constant 0.000000e+00 : f32
    %76 = vector.broadcast %cst_39 : f32 to vector<8x384xf32>
    %77 = arith.maximumf %75, %76 : vector<8x384xf32>
    %78 = arith.truncf %42 : vector<8x384xf32> to vector<8x384xbf16>
    %c0_40 = arith.constant 0 : index
    %c0_41 = arith.constant 0 : index
    %79 = vector.load %arg12[%c0_40, %c0_41] : memref<384x384xbf16, #tpu.memory_space<vmem>>, vector<384x384xbf16>
    %cst_42 = arith.constant dense<0.000000e+00> : vector<8x384xf32>
    %80 = tpu.matmul %78, %79, %cst_42 {dimension_numbers = #tpu.dot_dimension_numbers<[1], [0], [0], [1], [0, 0, 1, 1], [], []>} : vector<8x384xbf16>, vector<384x384xbf16>, vector<8x384xf32> -> vector<8x384xf32>
    %81 = arith.truncf %77 : vector<8x384xf32> to vector<8x384xbf16>
    %c0_43 = arith.constant 0 : index
    %c0_44 = arith.constant 0 : index
    %82 = vector.load %arg13[%c0_43, %c0_44] : memref<384x384xbf16, #tpu.memory_space<vmem>>, vector<384x384xbf16>
    %cst_45 = arith.constant dense<0.000000e+00> : vector<8x384xf32>
    %83 = tpu.matmul %81, %82, %cst_45 {dimension_numbers = #tpu.dot_dimension_numbers<[1], [0], [0], [1], [0, 0, 1, 1], [], []>} : vector<8x384xbf16>, vector<384x384xbf16>, vector<8x384xf32> -> vector<8x384xf32>
    %84 = arith.addf %80, %83 : vector<8x384xf32>
    %c0_46 = arith.constant 0 : index
    %c0_47 = arith.constant 0 : index
    %85 = vector.load %arg14[%c0_46, %c0_47] : memref<1x384xf32, #tpu.memory_space<vmem>>, vector<1x384xf32>
    %86 = vector.broadcast %85 : vector<1x384xf32> to vector<8x384xf32>
    %87 = arith.addf %84, %86 : vector<8x384xf32>
    %88 = arith.truncf %87 : vector<8x384xf32> to vector<8x384xbf16>
    %c0_48 = arith.constant 0 : index
    %c0_49 = arith.constant 0 : index
    %89 = vector.load %arg15[%c0_48, %c0_49] : memref<384x128xbf16, #tpu.memory_space<vmem>>, vector<384x128xbf16>
    %cst_50 = arith.constant dense<0.000000e+00> : vector<8x128xf32>
    %90 = tpu.matmul %88, %89, %cst_50 {dimension_numbers = #tpu.dot_dimension_numbers<[1], [0], [0], [1], [0, 0, 1, 1], [], []>} : vector<8x384xbf16>, vector<384x128xbf16>, vector<8x128xf32> -> vector<8x128xf32>
    %c0_51 = arith.constant 0 : index
    %c0_52 = arith.constant 0 : index
    %91 = vector.load %arg16[%c0_51, %c0_52] : memref<1x128xf32, #tpu.memory_space<vmem>>, vector<1x128xf32>
    %92 = vector.broadcast %91 : vector<1x128xf32> to vector<8x128xf32>
    %93 = arith.addf %90, %92 : vector<8x128xf32>
    %c0_53 = arith.constant 0 : index
    %c0_54 = arith.constant 0 : index
    %94 = vector.load %arg17[%c0_53, %c0_54] : memref<8x384xf32, #tpu.memory_space<vmem>>, vector<8x384xf32>
    tpu.vector_store %arg17[%c0_53, %c0_54], %87 {strides = array<i32>} : memref<8x384xf32, #tpu.memory_space<vmem>>, vector<8x384xf32>,
    %c0_55 = arith.constant 0 : index
    %c0_56 = arith.constant 0 : index
    %95 = vector.load %arg18[%c0_55, %c0_56] : memref<8x128xf32, #tpu.memory_space<vmem>>, vector<8x128xf32>
    tpu.vector_store %arg18[%c0_55, %c0_56], %93 {strides = array<i32>} : memref<8x128xf32, #tpu.memory_space<vmem>>, vector<8x128xf32>,
    return
  }
}

</mosaic_0001>

<llo_original>
// kernel: drj_forward.3
$region0: #{drj_forward.3}
  #allocation0 [shape = 'u32[]', space=smem, size = 0x4, offset = 0x4, fixed_abs, tag = 'smem constant byte address 0x4 - core index']
  #allocation1 [shape = 'u32[144,128]{1,0:T(1,128)}', space=vmem, size = 0x12000, scoped, tag = 'internal scratch']
  %s0 = inlined_call_operand.vmem [shape: f32[8,768], index: 0, kind: input, shape index: {}]
  %s1 = inlined_call_operand.vmem [shape: f32[8,1024], index: 1, kind: input, shape index: {}]
  %s2 = inlined_call_operand.vmem [shape: bf16[768,768], index: 2, kind: input, shape index: {}]
  %s3 = inlined_call_operand.vmem [shape: f32[1,768], index: 3, kind: input, shape index: {}]
  %s4 = inlined_call_operand.vmem [shape: bf16[768,384], index: 4, kind: input, shape index: {}]
  %s5 = inlined_call_operand.vmem [shape: f32[1,384], index: 5, kind: input, shape index: {}]
  %s6 = inlined_call_operand.vmem [shape: f32[1,384], index: 6, kind: input, shape index: {}]
  %s7 = inlined_call_operand.vmem [shape: f32[1,384], index: 7, kind: input, shape index: {}]
  %s8 = inlined_call_operand.vmem [shape: bf16[1024,384], index: 8, kind: input, shape index: {}]
  %s9 = inlined_call_operand.vmem [shape: f32[1,384], index: 9, kind: input, shape index: {}]
  %s10 = inlined_call_operand.vmem [shape: f32[1,384], index: 10, kind: input, shape index: {}]
  %s11 = inlined_call_operand.vmem [shape: f32[1,384], index: 11, kind: input, shape index: {}]
  %s12 = inlined_call_operand.vmem [shape: bf16[384,384], index: 12, kind: input, shape index: {}]
  %s13 = inlined_call_operand.vmem [shape: bf16[384,384], index: 13, kind: input, shape index: {}]
  %s14 = inlined_call_operand.vmem [shape: f32[1,384], index: 14, kind: input, shape index: {}]
  %s15 = inlined_call_operand.vmem [shape: bf16[384,128], index: 15, kind: input, shape index: {}]
  %s16 = inlined_call_operand.vmem [shape: f32[1,128], index: 16, kind: input, shape index: {}]
  %s17 = inlined_call_operand.vmem [shape: f32[8,384], index: 17, kind: output, shape index: {0}]
  %s18 = inlined_call_operand.vmem [shape: f32[8,128], index: 18, kind: output, shape index: {1}]
  %19 = xla_tuple %s17, %s18
  %s20 = sld [smem:[#allocation0]]
  $region86: #{drj_forward.3} parent=0
    _
  %s22 = ssub.s32 1, %s20
  %s23 = scalar_select 0, %s22, %s20
  // Predicated region
  $region2: #{drj_forward.3} parent=0 // pred_check
    _
  $region3: #{drj_forward.3} parent=0 // pred_check_branch
    %25 = sbr.rel (0) target = $region5
  $region4: #{drj_forward.3} parent=0 // pred_region
    _
  $region5: #{drj_forward.3} parent=0 // pred_fallthru
    _
  // Predicated region
  $region6: #{drj_forward.3} parent=0 // pred_check
    _
  $region7: #{drj_forward.3} parent=0 // pred_check_branch
    %27 = sbr.rel (0) target = $region9
  $region8: #{drj_forward.3} parent=0 // pred_region
    _
  $region9: #{drj_forward.3} parent=0 // pred_fallthru
    _
  // Predicated region
  $region10: #{drj_forward.3} parent=0 // pred_check
    _
  $region11: #{drj_forward.3} parent=0 // pred_check_branch
    %29 = sbr.rel (0) target = $region13
  $region12: #{drj_forward.3} parent=0 // pred_region
    _
  $region13: #{drj_forward.3} parent=0 // pred_fallthru
    _
  // Predicated region
  $region14: #{drj_forward.3} parent=0 // pred_check
    _
  $region15: #{drj_forward.3} parent=0 // pred_check_branch
    %31 = sbr.rel (0) target = $region17
  $region16: #{drj_forward.3} parent=0 // pred_region
    _
  $region17: #{drj_forward.3} parent=0 // pred_fallthru
    _
  // Predicated region
  $region18: #{drj_forward.3} parent=0 // pred_check
    _
  $region19: #{drj_forward.3} parent=0 // pred_check_branch
    %33 = sbr.rel (0) target = $region21
  $region20: #{drj_forward.3} parent=0 // pred_region
    _
  $region21: #{drj_forward.3} parent=0 // pred_fallthru
    _
  // Predicated region
  $region22: #{drj_forward.3} parent=0 // pred_check
    _
  $region23: #{drj_forward.3} parent=0 // pred_check_branch
    %35 = sbr.rel (0) target = $region25
  $region24: #{drj_forward.3} parent=0 // pred_region
    _
  $region25: #{drj_forward.3} parent=0 // pred_fallthru
    _
  // Predicated region
  $region26: #{drj_forward.3} parent=0 // pred_check
    _
  $region27: #{drj_forward.3} parent=0 // pred_check_branch
    %37 = sbr.rel (0) target = $region29
  $region28: #{drj_forward.3} parent=0 // pred_region
    _
  $region29: #{drj_forward.3} parent=0 // pred_fallthru
    _
  // Predicated region
  $region30: #{drj_forward.3} parent=0 // pred_check
    _
  $region31: #{drj_forward.3} parent=0 // pred_check_branch
    %39 = sbr.rel (0) target = $region33
  $region32: #{drj_forward.3} parent=0 // pred_region
    _
  $region33: #{drj_forward.3} parent=0 // pred_fallthru
    _
  // Predicated region
  $region34: #{drj_forward.3} parent=0 // pred_check
    _
  $region35: #{drj_forward.3} parent=0 // pred_check_branch
    %41 = sbr.rel (0) target = $region37
  $region36: #{drj_forward.3} parent=0 // pred_region
    _
  $region37: #{drj_forward.3} parent=0 // pred_fallthru
    _
  // Predicated region
  $region38: #{drj_forward.3} parent=0 // pred_check
    _
  $region39: #{drj_forward.3} parent=0 // pred_check_branch
    %43 = sbr.rel (0) target = $region41
  $region40: #{drj_forward.3} parent=0 // pred_region
    _
  $region41: #{drj_forward.3} parent=0 // pred_fallthru
    _
  // Predicated region
  $region42: #{drj_forward.3} parent=0 // pred_check
    _
  $region43: #{drj_forward.3} parent=0 // pred_check_branch
    %45 = sbr.rel (0) target = $region45
  $region44: #{drj_forward.3} parent=0 // pred_region
    _
  $region45: #{drj_forward.3} parent=0 // pred_fallthru
    _
  // Predicated region
  $region46: #{drj_forward.3} parent=0 // pred_check
    _
  $region47: #{drj_forward.3} parent=0 // pred_check_branch
    %47 = sbr.rel (0) target = $region49
  $region48: #{drj_forward.3} parent=0 // pred_region
    _
  $region49: #{drj_forward.3} parent=0 // pred_fallthru
    _
  // Predicated region
  $region50: #{drj_forward.3} parent=0 // pred_check
    _
  $region51: #{drj_forward.3} parent=0 // pred_check_branch
    %49 = sbr.rel (0) target = $region53
  $region52: #{drj_forward.3} parent=0 // pred_region
    _
  $region53: #{drj_forward.3} parent=0 // pred_fallthru
    _
  // Predicated region
  $region54: #{drj_forward.3} parent=0 // pred_check
    _
  $region55: #{drj_forward.3} parent=0 // pred_check_branch
    %51 = sbr.rel (0) target = $region57
  $region56: #{drj_forward.3} parent=0 // pred_region
    _
  $region57: #{drj_forward.3} parent=0 // pred_fallthru
    _
  // Predicated region
  $region58: #{drj_forward.3} parent=0 // pred_check
    _
  $region59: #{drj_forward.3} parent=0 // pred_check_branch
    %53 = sbr.rel (0) target = $region61
  $region60: #{drj_forward.3} parent=0 // pred_region
    _
  $region61: #{drj_forward.3} parent=0 // pred_fallthru
    _
  // Predicated region
  $region62: #{drj_forward.3} parent=0 // pred_check
    _
  $region63: #{drj_forward.3} parent=0 // pred_check_branch
    %55 = sbr.rel (0) target = $region65
  $region64: #{drj_forward.3} parent=0 // pred_region
    _
  $region65: #{drj_forward.3} parent=0 // pred_fallthru
    _
  // Predicated region
  $region66: #{drj_forward.3} parent=0 // pred_check
    _
  $region67: #{drj_forward.3} parent=0 // pred_check_branch
    %57 = sbr.rel (0) target = $region69
  $region68: #{drj_forward.3} parent=0 // pred_region
    _
  $region69: #{drj_forward.3} parent=0 // pred_fallthru
    _
  %v59 = vld [vmem:[%s0] sm:$0xff]
  %v60 = vld [vmem:[%s0 + $0x8] sm:$0xff]
  %v61 = vld [vmem:[%s0 + $0x10] sm:$0xff]
  %v62 = vld [vmem:[%s0 + $0x18] sm:$0xff]
  %v63 = vld [vmem:[%s0 + $0x20] sm:$0xff]
  %v64 = vld [vmem:[%s0 + $0x28] sm:$0xff]
  %v65 = vpack.c.bf16 %v59, %v59
  %v66 = vpack.c.bf16 %v60, %v60
  %v67 = vpack.c.bf16 %v61, %v61
  %v68 = vpack.c.bf16 %v62, %v62
  %v69 = vpack.c.bf16 %v63, %v63
  %v70 = vpack.c.bf16 %v64, %v64
  %v71 = vld [vmem:[%s2] sm:$0xff]
  %v72 = vld [vmem:[%s2 + $0x8] sm:$0xff]
  %v73 = vld [vmem:[%s2 + $0x10] sm:$0xff]
  %v74 = vld [vmem:[%s2 + $0x18] sm:$0xff]
  %v75 = vld [vmem:[%s2 + $0x20] sm:$0xff]
  %v76 = vld [vmem:[%s2 + $0x28] sm:$0xff]
  %v77 = vld [vmem:[%s2 + $0x30] sm:$0xff]
  %v78 = vld [vmem:[%s2 + $0x38] sm:$0xff]
  %v79 = vld [vmem:[%s2 + $0x40] sm:$0xff]
  %v80 = vld [vmem:[%s2 + $0x48] sm:$0xff]
  %v81 = vld [vmem:[%s2 + $0x50] sm:$0xff]
  %v82 = vld [vmem:[%s2 + $0x58] sm:$0xff]
  %v83 = vld [vmem:[%s2 + $0x60] sm:$0xff]
  %v84 = vld [vmem:[%s2 + $0x68] sm:$0xff]
  %v85 = vld [vmem:[%s2 + $0x70] sm:$0xff]
  %v86 = vld [vmem:[%s2 + $0x78] sm:$0xff]
  %v87 = vld [vmem:[%s2 + $0x80] sm:$0xff]
  %v88 = vld [vmem:[%s2 + $0x88] sm:$0xff]
  %v89 = vld [vmem:[%s2 + $0x90] sm:$0xff]
  %v90 = vld [vmem:[%s2 + $0x98] sm:$0xff]
  %v91 = vld [vmem:[%s2 + $0xa0] sm:$0xff]
  %v92 = vld [vmem:[%s2 + $0xa8] sm:$0xff]
  %v93 = vld [vmem:[%s2 + $0xb0] sm:$0xff]
  %v94 = vld [vmem:[%s2 + $0xb8] sm:$0xff]
  %v95 = vld [vmem:[%s2 + $0xc0] sm:$0xff]
  %v96 = vld [vmem:[%s2 + $0xc8] sm:$0xff]
  %v97 = vld [vmem:[%s2 + $0xd0] sm:$0xff]
  %v98 = vld [vmem:[%s2 + $0xd8] sm:$0xff]
  %v99 = vld [vmem:[%s2 + $0xe0] sm:$0xff]
  %v100 = vld [vmem:[%s2 + $0xe8] sm:$0xff]
  %v101 = vld [vmem:[%s2 + $0xf0] sm:$0xff]
  %v102 = vld [vmem:[%s2 + $0xf8] sm:$0xff]
  %v103 = vld [vmem:[%s2 + $0x100] sm:$0xff]
  %v104 = vld [vmem:[%s2 + $0x108] sm:$0xff]
  %v105 = vld [vmem:[%s2 + $0x110] sm:$0xff]
  %v106 = vld [vmem:[%s2 + $0x118] sm:$0xff]
  %v107 = vld [vmem:[%s2 + $0x120] sm:$0xff]
  %v108 = vld [vmem:[%s2 + $0x128] sm:$0xff]
  %v109 = vld [vmem:[%s2 + $0x130] sm:$0xff]
  %v110 = vld [vmem:[%s2 + $0x138] sm:$0xff]
  %v111 = vld [vmem:[%s2 + $0x140] sm:$0xff]
  %v112 = vld [vmem:[%s2 + $0x148] sm:$0xff]
  %v113 = vld [vmem:[%s2 + $0x150] sm:$0xff]
  %v114 = vld [vmem:[%s2 + $0x158] sm:$0xff]
  %v115 = vld [vmem:[%s2 + $0x160] sm:$0xff]
  %v116 = vld [vmem:[%s2 + $0x168] sm:$0xff]
  %v117 = vld [vmem:[%s2 + $0x170] sm:$0xff]
  %v118 = vld [vmem:[%s2 + $0x178] sm:$0xff]
  %v119 = vld [vmem:[%s2 + $0x180] sm:$0xff]
  %v120 = vld [vmem:[%s2 + $0x188] sm:$0xff]
  %v121 = vld [vmem:[%s2 + $0x190] sm:$0xff]
  %v122 = vld [vmem:[%s2 + $0x198] sm:$0xff]
  %v123 = vld [vmem:[%s2 + $0x1a0] sm:$0xff]
  %v124 = vld [vmem:[%s2 + $0x1a8] sm:$0xff]
  %v125 = vld [vmem:[%s2 + $0x1b0] sm:$0xff]
  %v126 = vld [vmem:[%s2 + $0x1b8] sm:$0xff]
  %v127 = vld [vmem:[%s2 + $0x1c0] sm:$0xff]
  %v128 = vld [vmem:[%s2 + $0x1c8] sm:$0xff]
  %v129 = vld [vmem:[%s2 + $0x1d0] sm:$0xff]
  %v130 = vld [vmem:[%s2 + $0x1d8] sm:$0xff]
  %v131 = vld [vmem:[%s2 + $0x1e0] sm:$0xff]
  %v132 = vld [vmem:[%s2 + $0x1e8] sm:$0xff]
  %v133 = vld [vmem:[%s2 + $0x1f0] sm:$0xff]
  %v134 = vld [vmem:[%s2 + $0x1f8] sm:$0xff]
  %v135 = vld [vmem:[%s2 + $0x200] sm:$0xff]
  %v136 = vld [vmem:[%s2 + $0x208] sm:$0xff]
  %v137 = vld [vmem:[%s2 + $0x210] sm:$0xff]
  %v138 = vld [vmem:[%s2 + $0x218] sm:$0xff]
  %v139 = vld [vmem:[%s2 + $0x220] sm:$0xff]
  %v140 = vld [vmem:[%s2 + $0x228] sm:$0xff]
  %v141 = vld [vmem:[%s2 + $0x230] sm:$0xff]
  %v142 = vld [vmem:[%s2 + $0x238] sm:$0xff]
  %v143 = vld [vmem:[%s2 + $0x240] sm:$0xff]
  %v144 = vld [vmem:[%s2 + $0x248] sm:$0xff]
  %v145 = vld [vmem:[%s2 + $0x250] sm:$0xff]
  %v146 = vld [vmem:[%s2 + $0x258] sm:$0xff]
  %v147 = vld [vmem:[%s2 + $0x260] sm:$0xff]
  %v148 = vld [vmem:[%s2 + $0x268] sm:$0xff]
  %v149 = vld [vmem:[%s2 + $0x270] sm:$0xff]
  %v150 = vld [vmem:[%s2 + $0x278] sm:$0xff]
  %v151 = vld [vmem:[%s2 + $0x280] sm:$0xff]
  %v152 = vld [vmem:[%s2 + $0x288] sm:$0xff]
  %v153 = vld [vmem:[%s2 + $0x290] sm:$0xff]
  %v154 = vld [vmem:[%s2 + $0x298] sm:$0xff]
  %v155 = vld [vmem:[%s2 + $0x2a0] sm:$0xff]
  %v156 = vld [vmem:[%s2 + $0x2a8] sm:$0xff]
  %v157 = vld [vmem:[%s2 + $0x2b0] sm:$0xff]
  %v158 = vld [vmem:[%s2 + $0x2b8] sm:$0xff]
  %v159 = vld [vmem:[%s2 + $0x2c0] sm:$0xff]
  %v160 = vld [vmem:[%s2 + $0x2c8] sm:$0xff]
  %v161 = vld [vmem:[%s2 + $0x2d0] sm:$0xff]
  %v162 = vld [vmem:[%s2 + $0x2d8] sm:$0xff]
  %v163 = vld [vmem:[%s2 + $0x2e0] sm:$0xff]
  %v164 = vld [vmem:[%s2 + $0x2e8] sm:$0xff]
  %v165 = vld [vmem:[%s2 + $0x2f0] sm:$0xff]
  %v166 = vld [vmem:[%s2 + $0x2f8] sm:$0xff]
  %v167 = vld [vmem:[%s2 + $0x300] sm:$0xff]
  %v168 = vld [vmem:[%s2 + $0x308] sm:$0xff]
  %v169 = vld [vmem:[%s2 + $0x310] sm:$0xff]
  %v170 = vld [vmem:[%s2 + $0x318] sm:$0xff]
  %v171 = vld [vmem:[%s2 + $0x320] sm:$0xff]
  %v172 = vld [vmem:[%s2 + $0x328] sm:$0xff]
  %v173 = vld [vmem:[%s2 + $0x330] sm:$0xff]
  %v174 = vld [vmem:[%s2 + $0x338] sm:$0xff]
  %v175 = vld [vmem:[%s2 + $0x340] sm:$0xff]
  %v176 = vld [vmem:[%s2 + $0x348] sm:$0xff]
  %v177 = vld [vmem:[%s2 + $0x350] sm:$0xff]
  %v178 = vld [vmem:[%s2 + $0x358] sm:$0xff]
  %v179 = vld [vmem:[%s2 + $0x360] sm:$0xff]
  %v180 = vld [vmem:[%s2 + $0x368] sm:$0xff]
  %v181 = vld [vmem:[%s2 + $0x370] sm:$0xff]
  %v182 = vld [vmem:[%s2 + $0x378] sm:$0xff]
  %v183 = vld [vmem:[%s2 + $0x380] sm:$0xff]
  %v184 = vld [vmem:[%s2 + $0x388] sm:$0xff]
  %v185 = vld [vmem:[%s2 + $0x390] sm:$0xff]
  %v186 = vld [vmem:[%s2 + $0x398] sm:$0xff]
  %v187 = vld [vmem:[%s2 + $0x3a0] sm:$0xff]
  %v188 = vld [vmem:[%s2 + $0x3a8] sm:$0xff]
  %v189 = vld [vmem:[%s2 + $0x3b0] sm:$0xff]
  %v190 = vld [vmem:[%s2 + $0x3b8] sm:$0xff]
  %v191 = vld [vmem:[%s2 + $0x3c0] sm:$0xff]
  %v192 = vld [vmem:[%s2 + $0x3c8] sm:$0xff]
  %v193 = vld [vmem:[%s2 + $0x3d0] sm:$0xff]
  %v194 = vld [vmem:[%s2 + $0x3d8] sm:$0xff]
  %v195 = vld [vmem:[%s2 + $0x3e0] sm:$0xff]
  %v196 = vld [vmem:[%s2 + $0x3e8] sm:$0xff]
  %v197 = vld [vmem:[%s2 + $0x3f0] sm:$0xff]
  %v198 = vld [vmem:[%s2 + $0x3f8] sm:$0xff]
  %v199 = vld [vmem:[%s2 + $0x400] sm:$0xff]
  %v200 = vld [vmem:[%s2 + $0x408] sm:$0xff]
  %v201 = vld [vmem:[%s2 + $0x410] sm:$0xff]
  %v202 = vld [vmem:[%s2 + $0x418] sm:$0xff]
  %v203 = vld [vmem:[%s2 + $0x420] sm:$0xff]
  %v204 = vld [vmem:[%s2 + $0x428] sm:$0xff]
  %v205 = vld [vmem:[%s2 + $0x430] sm:$0xff]
  %v206 = vld [vmem:[%s2 + $0x438] sm:$0xff]
  %v207 = vld [vmem:[%s2 + $0x440] sm:$0xff]
  %v208 = vld [vmem:[%s2 + $0x448] sm:$0xff]
  %v209 = vld [vmem:[%s2 + $0x450] sm:$0xff]
  %v210 = vld [vmem:[%s2 + $0x458] sm:$0xff]
  %v211 = vld [vmem:[%s2 + $0x460] sm:$0xff]
  %v212 = vld [vmem:[%s2 + $0x468] sm:$0xff]
  %v213 = vld [vmem:[%s2 + $0x470] sm:$0xff]
  %v214 = vld [vmem:[%s2 + $0x478] sm:$0xff]
  %v215 = vld [vmem:[%s2 + $0x480] sm:$0xff]
  %v216 = vld [vmem:[%s2 + $0x488] sm:$0xff]
  %v217 = vld [vmem:[%s2 + $0x490] sm:$0xff]
  %v218 = vld [vmem:[%s2 + $0x498] sm:$0xff]
  %v219 = vld [vmem:[%s2 + $0x4a0] sm:$0xff]
  %v220 = vld [vmem:[%s2 + $0x4a8] sm:$0xff]
  %v221 = vld [vmem:[%s2 + $0x4b0] sm:$0xff]
  %v222 = vld [vmem:[%s2 + $0x4b8] sm:$0xff]
  %v223 = vld [vmem:[%s2 + $0x4c0] sm:$0xff]
  %v224 = vld [vmem:[%s2 + $0x4c8] sm:$0xff]
  %v225 = vld [vmem:[%s2 + $0x4d0] sm:$0xff]
  %v226 = vld [vmem:[%s2 + $0x4d8] sm:$0xff]
  %v227 = vld [vmem:[%s2 + $0x4e0] sm:$0xff]
  %v228 = vld [vmem:[%s2 + $0x4e8] sm:$0xff]
  %v229 = vld [vmem:[%s2 + $0x4f0] sm:$0xff]
  %v230 = vld [vmem:[%s2 + $0x4f8] sm:$0xff]
  %v231 = vld [vmem:[%s2 + $0x500] sm:$0xff]
  %v232 = vld [vmem:[%s2 + $0x508] sm:$0xff]
  %v233 = vld [vmem:[%s2 + $0x510] sm:$0xff]
  %v234 = vld [vmem:[%s2 + $0x518] sm:$0xff]
  %v235 = vld [vmem:[%s2 + $0x520] sm:$0xff]
  %v236 = vld [vmem:[%s2 + $0x528] sm:$0xff]
  %v237 = vld [vmem:[%s2 + $0x530] sm:$0xff]
  %v238 = vld [vmem:[%s2 + $0x538] sm:$0xff]
  %v239 = vld [vmem:[%s2 + $0x540] sm:$0xff]
  %v240 = vld [vmem:[%s2 + $0x548] sm:$0xff]
  %v241 = vld [vmem:[%s2 + $0x550] sm:$0xff]
  %v242 = vld [vmem:[%s2 + $0x558] sm:$0xff]
  %v243 = vld [vmem:[%s2 + $0x560] sm:$0xff]
  %v244 = vld [vmem:[%s2 + $0x568] sm:$0xff]
  %v245 = vld [vmem:[%s2 + $0x570] sm:$0xff]
  %v246 = vld [vmem:[%s2 + $0x578] sm:$0xff]
  %v247 = vld [vmem:[%s2 + $0x580] sm:$0xff]
  %v248 = vld [vmem:[%s2 + $0x588] sm:$0xff]
  %v249 = vld [vmem:[%s2 + $0x590] sm:$0xff]
  %v250 = vld [vmem:[%s2 + $0x598] sm:$0xff]
  %v251 = vld [vmem:[%s2 + $0x5a0] sm:$0xff]
  %v252 = vld [vmem:[%s2 + $0x5a8] sm:$0xff]
  %v253 = vld [vmem:[%s2 + $0x5b0] sm:$0xff]
  %v254 = vld [vmem:[%s2 + $0x5b8] sm:$0xff]
  %v255 = vld [vmem:[%s2 + $0x5c0] sm:$0xff]
  %v256 = vld [vmem:[%s2 + $0x5c8] sm:$0xff]
  %v257 = vld [vmem:[%s2 + $0x5d0] sm:$0xff]
  %v258 = vld [vmem:[%s2 + $0x5d8] sm:$0xff]
  %v259 = vld [vmem:[%s2 + $0x5e0] sm:$0xff]
  %v260 = vld [vmem:[%s2 + $0x5e8] sm:$0xff]
  %v261 = vld [vmem:[%s2 + $0x5f0] sm:$0xff]
  %v262 = vld [vmem:[%s2 + $0x5f8] sm:$0xff]
  %v263 = vld [vmem:[%s2 + $0x600] sm:$0xff]
  %v264 = vld [vmem:[%s2 + $0x608] sm:$0xff]
  %v265 = vld [vmem:[%s2 + $0x610] sm:$0xff]
  %v266 = vld [vmem:[%s2 + $0x618] sm:$0xff]
  %v267 = vld [vmem:[%s2 + $0x620] sm:$0xff]
  %v268 = vld [vmem:[%s2 + $0x628] sm:$0xff]
  %v269 = vld [vmem:[%s2 + $0x630] sm:$0xff]
  %v270 = vld [vmem:[%s2 + $0x638] sm:$0xff]
  %v271 = vld [vmem:[%s2 + $0x640] sm:$0xff]
  %v272 = vld [vmem:[%s2 + $0x648] sm:$0xff]
  %v273 = vld [vmem:[%s2 + $0x650] sm:$0xff]
  %v274 = vld [vmem:[%s2 + $0x658] sm:$0xff]
  %v275 = vld [vmem:[%s2 + $0x660] sm:$0xff]
  %v276 = vld [vmem:[%s2 + $0x668] sm:$0xff]
  %v277 = vld [vmem:[%s2 + $0x670] sm:$0xff]
  %v278 = vld [vmem:[%s2 + $0x678] sm:$0xff]
  %v279 = vld [vmem:[%s2 + $0x680] sm:$0xff]
  %v280 = vld [vmem:[%s2 + $0x688] sm:$0xff]
  %v281 = vld [vmem:[%s2 + $0x690] sm:$0xff]
  %v282 = vld [vmem:[%s2 + $0x698] sm:$0xff]
  %v283 = vld [vmem:[%s2 + $0x6a0] sm:$0xff]
  %v284 = vld [vmem:[%s2 + $0x6a8] sm:$0xff]
  %v285 = vld [vmem:[%s2 + $0x6b0] sm:$0xff]
  %v286 = vld [vmem:[%s2 + $0x6b8] sm:$0xff]
  %v287 = vld [vmem:[%s2 + $0x6c0] sm:$0xff]
  %v288 = vld [vmem:[%s2 + $0x6c8] sm:$0xff]
  %v289 = vld [vmem:[%s2 + $0x6d0] sm:$0xff]
  %v290 = vld [vmem:[%s2 + $0x6d8] sm:$0xff]
  %v291 = vld [vmem:[%s2 + $0x6e0] sm:$0xff]
  %v292 = vld [vmem:[%s2 + $0x6e8] sm:$0xff]
  %v293 = vld [vmem:[%s2 + $0x6f0] sm:$0xff]
  %v294 = vld [vmem:[%s2 + $0x6f8] sm:$0xff]
  %v295 = vld [vmem:[%s2 + $0x700] sm:$0xff]
  %v296 = vld [vmem:[%s2 + $0x708] sm:$0xff]
  %v297 = vld [vmem:[%s2 + $0x710] sm:$0xff]
  %v298 = vld [vmem:[%s2 + $0x718] sm:$0xff]
  %v299 = vld [vmem:[%s2 + $0x720] sm:$0xff]
  %v300 = vld [vmem:[%s2 + $0x728] sm:$0xff]
  %v301 = vld [vmem:[%s2 + $0x730] sm:$0xff]
  %v302 = vld [vmem:[%s2 + $0x738] sm:$0xff]
  %v303 = vld [vmem:[%s2 + $0x740] sm:$0xff]
  %v304 = vld [vmem:[%s2 + $0x748] sm:$0xff]
  %v305 = vld [vmem:[%s2 + $0x750] sm:$0xff]
  %v306 = vld [vmem:[%s2 + $0x758] sm:$0xff]
  %v307 = vld [vmem:[%s2 + $0x760] sm:$0xff]
  %v308 = vld [vmem:[%s2 + $0x768] sm:$0xff]
  %v309 = vld [vmem:[%s2 + $0x770] sm:$0xff]
  %v310 = vld [vmem:[%s2 + $0x778] sm:$0xff]
  %v311 = vld [vmem:[%s2 + $0x780] sm:$0xff]
  %v312 = vld [vmem:[%s2 + $0x788] sm:$0xff]
  %v313 = vld [vmem:[%s2 + $0x790] sm:$0xff]
  %v314 = vld [vmem:[%s2 + $0x798] sm:$0xff]
  %v315 = vld [vmem:[%s2 + $0x7a0] sm:$0xff]
  %v316 = vld [vmem:[%s2 + $0x7a8] sm:$0xff]
  %v317 = vld [vmem:[%s2 + $0x7b0] sm:$0xff]
  %v318 = vld [vmem:[%s2 + $0x7b8] sm:$0xff]
  %v319 = vld [vmem:[%s2 + $0x7c0] sm:$0xff]
  %v320 = vld [vmem:[%s2 + $0x7c8] sm:$0xff]
  %v321 = vld [vmem:[%s2 + $0x7d0] sm:$0xff]
  %v322 = vld [vmem:[%s2 + $0x7d8] sm:$0xff]
  %v323 = vld [vmem:[%s2 + $0x7e0] sm:$0xff]
  %v324 = vld [vmem:[%s2 + $0x7e8] sm:$0xff]
  %v325 = vld [vmem:[%s2 + $0x7f0] sm:$0xff]
  %v326 = vld [vmem:[%s2 + $0x7f8] sm:$0xff]
  %v327 = vld [vmem:[%s2 + $0x800] sm:$0xff]
  %v328 = vld [vmem:[%s2 + $0x808] sm:$0xff]
  %v329 = vld [vmem:[%s2 + $0x810] sm:$0xff]
  %v330 = vld [vmem:[%s2 + $0x818] sm:$0xff]
  %v331 = vld [vmem:[%s2 + $0x820] sm:$0xff]
  %v332 = vld [vmem:[%s2 + $0x828] sm:$0xff]
  %v333 = vld [vmem:[%s2 + $0x830] sm:$0xff]
  %v334 = vld [vmem:[%s2 + $0x838] sm:$0xff]
  %v335 = vld [vmem:[%s2 + $0x840] sm:$0xff]
  %v336 = vld [vmem:[%s2 + $0x848] sm:$0xff]
  %v337 = vld [vmem:[%s2 + $0x850] sm:$0xff]
  %v338 = vld [vmem:[%s2 + $0x858] sm:$0xff]
  %v339 = vld [vmem:[%s2 + $0x860] sm:$0xff]
  %v340 = vld [vmem:[%s2 + $0x868] sm:$0xff]
  %v341 = vld [vmem:[%s2 + $0x870] sm:$0xff]
  %v342 = vld [vmem:[%s2 + $0x878] sm:$0xff]
  %v343 = vld [vmem:[%s2 + $0x880] sm:$0xff]
  %v344 = vld [vmem:[%s2 + $0x888] sm:$0xff]
  %v345 = vld [vmem:[%s2 + $0x890] sm:$0xff]
  %v346 = vld [vmem:[%s2 + $0x898] sm:$0xff]
  %v347 = vld [vmem:[%s2 + $0x8a0] sm:$0xff]
  %v348 = vld [vmem:[%s2 + $0x8a8] sm:$0xff]
  %v349 = vld [vmem:[%s2 + $0x8b0] sm:$0xff]
  %v350 = vld [vmem:[%s2 + $0x8b8] sm:$0xff]
  %v351 = vld [vmem:[%s2 + $0x8c0] sm:$0xff]
  %v352 = vld [vmem:[%s2 + $0x8c8] sm:$0xff]
  %v353 = vld [vmem:[%s2 + $0x8d0] sm:$0xff]
  %v354 = vld [vmem:[%s2 + $0x8d8] sm:$0xff]
  %v355 = vld [vmem:[%s2 + $0x8e0] sm:$0xff]
  %v356 = vld [vmem:[%s2 + $0x8e8] sm:$0xff]
  %v357 = vld [vmem:[%s2 + $0x8f0] sm:$0xff]
  %v358 = vld [vmem:[%s2 + $0x8f8] sm:$0xff]
  %v359 = vld [vmem:[%s3] sm:$0x3f]
  %v361 = vlaneseq
  %v362 = vshrl.u32 %v361, 7
  %v363 = vsub.s32 0, %v362
  %v364 = vrot.slane %v359, %v363
  %v365 = vlaneseq
  %v366 = vshrl.u32 %v365, 7
  %v367 = vsub.s32 1, %v366
  %v368 = vrot.slane %v359, %v367
  %v369 = vlaneseq
  %v370 = vshrl.u32 %v369, 7
  %v371 = vsub.s32 2, %v370
  %v372 = vrot.slane %v359, %v371
  %v373 = vlaneseq
  %v374 = vshrl.u32 %v373, 7
  %v375 = vsub.s32 3, %v374
  %v376 = vrot.slane %v359, %v375
  %v377 = vlaneseq
  %v378 = vshrl.u32 %v377, 7
  %v379 = vsub.s32 4, %v378
  %v380 = vrot.slane %v359, %v379
  %v381 = vlaneseq
  %v382 = vshrl.u32 %v381, 7
  %v383 = vsub.s32 5, %v382
  %v384 = vrot.slane %v359, %v383
  %v679 = vunpack.c.l.b16 %v71
  %v680 = vunpack.c.h.b16 %v71
  %v681 = vunpack.c.l.b16 %v72
  %v682 = vunpack.c.h.b16 %v72
  %v683 = vunpack.c.l.b16 %v73
  %v684 = vunpack.c.h.b16 %v73
  %v685 = vunpack.c.l.b16 %v74
  %v686 = vunpack.c.h.b16 %v74
  %v687 = vunpack.c.l.b16 %v75
  %v688 = vunpack.c.h.b16 %v75
  %v689 = vunpack.c.l.b16 %v76
  %v690 = vunpack.c.h.b16 %v76
  %v691 = vunpack.c.l.b16 %v77
  %v692 = vunpack.c.h.b16 %v77
  %v693 = vunpack.c.l.b16 %v78
  %v694 = vunpack.c.h.b16 %v78
  %v695 = vunpack.c.l.b16 %v79
  %v696 = vunpack.c.h.b16 %v79
  %v697 = vunpack.c.l.b16 %v80
  %v698 = vunpack.c.h.b16 %v80
  %v699 = vunpack.c.l.b16 %v81
  %v700 = vunpack.c.h.b16 %v81
  %v701 = vunpack.c.l.b16 %v82
  %v702 = vunpack.c.h.b16 %v82
  %v703 = vunpack.c.l.b16 %v83
  %v704 = vunpack.c.h.b16 %v83
  %v705 = vunpack.c.l.b16 %v84
  %v706 = vunpack.c.h.b16 %v84
  %v707 = vunpack.c.l.b16 %v85
  %v708 = vunpack.c.h.b16 %v85
  %v709 = vunpack.c.l.b16 %v86
  %v710 = vunpack.c.h.b16 %v86
  %v711 = vunpack.c.l.b16 %v87
  %v712 = vunpack.c.h.b16 %v87
  %v713 = vunpack.c.l.b16 %v88
  %v714 = vunpack.c.h.b16 %v88
  %v715 = vunpack.c.l.b16 %v89
  %v716 = vunpack.c.h.b16 %v89
  %v717 = vunpack.c.l.b16 %v90
  %v718 = vunpack.c.h.b16 %v90
  %v719 = vunpack.c.l.b16 %v91
  %v720 = vunpack.c.h.b16 %v91
  %v721 = vunpack.c.l.b16 %v92
  %v722 = vunpack.c.h.b16 %v92
  %v723 = vunpack.c.l.b16 %v93
  %v724 = vunpack.c.h.b16 %v93
  %v725 = vunpack.c.l.b16 %v94
  %v726 = vunpack.c.h.b16 %v94
  %v727 = vunpack.c.l.b16 %v95
  %v728 = vunpack.c.h.b16 %v95
  %v729 = vunpack.c.l.b16 %v96
  %v730 = vunpack.c.h.b16 %v96
  %v731 = vunpack.c.l.b16 %v97
  %v732 = vunpack.c.h.b16 %v97
  %v733 = vunpack.c.l.b16 %v98
  %v734 = vunpack.c.h.b16 %v98
  %v735 = vunpack.c.l.b16 %v99
  %v736 = vunpack.c.h.b16 %v99
  %v737 = vunpack.c.l.b16 %v100
  %v738 = vunpack.c.h.b16 %v100
  %v739 = vunpack.c.l.b16 %v101
  %v740 = vunpack.c.h.b16 %v101
  %v741 = vunpack.c.l.b16 %v102
  %v742 = vunpack.c.h.b16 %v102
  %v743 = vunpack.c.l.b16 %v103
  %v744 = vunpack.c.h.b16 %v103
  %v745 = vunpack.c.l.b16 %v104
  %v746 = vunpack.c.h.b16 %v104
  %v747 = vunpack.c.l.b16 %v105
  %v748 = vunpack.c.h.b16 %v105
  %v749 = vunpack.c.l.b16 %v106
  %v750 = vunpack.c.h.b16 %v106
  %v751 = vunpack.c.l.b16 %v107
  %v752 = vunpack.c.h.b16 %v107
  %v753 = vunpack.c.l.b16 %v108
  %v754 = vunpack.c.h.b16 %v108
  %v755 = vunpack.c.l.b16 %v109
  %v756 = vunpack.c.h.b16 %v109
  %v757 = vunpack.c.l.b16 %v110
  %v758 = vunpack.c.h.b16 %v110
  %v759 = vunpack.c.l.b16 %v111
  %v760 = vunpack.c.h.b16 %v111
  %v761 = vunpack.c.l.b16 %v112
  %v762 = vunpack.c.h.b16 %v112
  %v763 = vunpack.c.l.b16 %v113
  %v764 = vunpack.c.h.b16 %v113
  %v765 = vunpack.c.l.b16 %v114
  %v766 = vunpack.c.h.b16 %v114
  %v767 = vunpack.c.l.b16 %v115
  %v768 = vunpack.c.h.b16 %v115
  %v769 = vunpack.c.l.b16 %v116
  %v770 = vunpack.c.h.b16 %v116
  %v771 = vunpack.c.l.b16 %v117
  %v772 = vunpack.c.h.b16 %v117
  %v773 = vunpack.c.l.b16 %v118
  %v774 = vunpack.c.h.b16 %v118
  %v775 = vunpack.c.l.b16 %v119
  %v776 = vunpack.c.h.b16 %v119
  %v777 = vunpack.c.l.b16 %v120
  %v778 = vunpack.c.h.b16 %v120
  %v779 = vunpack.c.l.b16 %v121
  %v780 = vunpack.c.h.b16 %v121
  %v781 = vunpack.c.l.b16 %v122
  %v782 = vunpack.c.h.b16 %v122
  %v783 = vunpack.c.l.b16 %v123
  %v784 = vunpack.c.h.b16 %v123
  %v785 = vunpack.c.l.b16 %v124
  %v786 = vunpack.c.h.b16 %v124
  %v787 = vunpack.c.l.b16 %v125
  %v788 = vunpack.c.h.b16 %v125
  %v789 = vunpack.c.l.b16 %v126
  %v790 = vunpack.c.h.b16 %v126
  %v791 = vunpack.c.l.b16 %v127
  %v792 = vunpack.c.h.b16 %v127
  %v793 = vunpack.c.l.b16 %v128
  %v794 = vunpack.c.h.b16 %v128
  %v795 = vunpack.c.l.b16 %v129
  %v796 = vunpack.c.h.b16 %v129
  %v797 = vunpack.c.l.b16 %v130
  %v798 = vunpack.c.h.b16 %v130
  %v799 = vunpack.c.l.b16 %v131
  %v800 = vunpack.c.h.b16 %v131
  %v801 = vunpack.c.l.b16 %v132
  %v802 = vunpack.c.h.b16 %v132
  %v803 = vunpack.c.l.b16 %v133
  %v804 = vunpack.c.h.b16 %v133
  %v805 = vunpack.c.l.b16 %v134
  %v806 = vunpack.c.h.b16 %v134
  %v807 = vunpack.c.l.b16 %v135
  %v808 = vunpack.c.h.b16 %v135
  %v809 = vunpack.c.l.b16 %v136
  %v810 = vunpack.c.h.b16 %v136
  %v811 = vunpack.c.l.b16 %v137
  %v812 = vunpack.c.h.b16 %v137
  %v813 = vunpack.c.l.b16 %v138
  %v814 = vunpack.c.h.b16 %v138
  %v815 = vunpack.c.l.b16 %v139
  %v816 = vunpack.c.h.b16 %v139
  %v817 = vunpack.c.l.b16 %v140
  %v818 = vunpack.c.h.b16 %v140
  %v819 = vunpack.c.l.b16 %v141
  %v820 = vunpack.c.h.b16 %v141
  %v821 = vunpack.c.l.b16 %v142
  %v822 = vunpack.c.h.b16 %v142
  %v823 = vunpack.c.l.b16 %v143
  %v824 = vunpack.c.h.b16 %v143
  %v825 = vunpack.c.l.b16 %v144
  %v826 = vunpack.c.h.b16 %v144
  %v827 = vunpack.c.l.b16 %v145
  %v828 = vunpack.c.h.b16 %v145
  %v829 = vunpack.c.l.b16 %v146
  %v830 = vunpack.c.h.b16 %v146
  %v831 = vunpack.c.l.b16 %v147
  %v832 = vunpack.c.h.b16 %v147
  %v833 = vunpack.c.l.b16 %v148
  %v834 = vunpack.c.h.b16 %v148
  %v835 = vunpack.c.l.b16 %v149
  %v836 = vunpack.c.h.b16 %v149
  %v837 = vunpack.c.l.b16 %v150
  %v838 = vunpack.c.h.b16 %v150
  %v839 = vunpack.c.l.b16 %v151
  %v840 = vunpack.c.h.b16 %v151
  %v841 = vunpack.c.l.b16 %v152
  %v842 = vunpack.c.h.b16 %v152
  %v843 = vunpack.c.l.b16 %v153
  %v844 = vunpack.c.h.b16 %v153
  %v845 = vunpack.c.l.b16 %v154
  %v846 = vunpack.c.h.b16 %v154
  %v847 = vunpack.c.l.b16 %v155
  %v848 = vunpack.c.h.b16 %v155
  %v849 = vunpack.c.l.b16 %v156
  %v850 = vunpack.c.h.b16 %v156
  %v851 = vunpack.c.l.b16 %v157
  %v852 = vunpack.c.h.b16 %v157
  %v853 = vunpack.c.l.b16 %v158
  %v854 = vunpack.c.h.b16 %v158
  %v855 = vunpack.c.l.b16 %v159
  %v856 = vunpack.c.h.b16 %v159
  %v857 = vunpack.c.l.b16 %v160
  %v858 = vunpack.c.h.b16 %v160
  %v859 = vunpack.c.l.b16 %v161
  %v860 = vunpack.c.h.b16 %v161
  %v861 = vunpack.c.l.b16 %v162
  %v862 = vunpack.c.h.b16 %v162
  %v863 = vunpack.c.l.b16 %v163
  %v864 = vunpack.c.h.b16 %v163
  %v865 = vunpack.c.l.b16 %v164
  %v866 = vunpack.c.h.b16 %v164
  %v867 = vunpack.c.l.b16 %v165
  %v868 = vunpack.c.h.b16 %v165
  %v869 = vunpack.c.l.b16 %v166
  %v870 = vunpack.c.h.b16 %v166
  %v871 = vunpack.c.l.b16 %v167
  %v872 = vunpack.c.h.b16 %v167
  %v873 = vunpack.c.l.b16 %v168
  %v874 = vunpack.c.h.b16 %v168
  %v875 = vunpack.c.l.b16 %v169
  %v876 = vunpack.c.h.b16 %v169
  %v877 = vunpack.c.l.b16 %v170
  %v878 = vunpack.c.h.b16 %v170
  %v879 = vunpack.c.l.b16 %v171
  %v880 = vunpack.c.h.b16 %v171
  %v881 = vunpack.c.l.b16 %v172
  %v882 = vunpack.c.h.b16 %v172
  %v883 = vunpack.c.l.b16 %v173
  %v884 = vunpack.c.h.b16 %v173
  %v885 = vunpack.c.l.b16 %v174
  %v886 = vunpack.c.h.b16 %v174
  %v887 = vunpack.c.l.b16 %v175
  %v888 = vunpack.c.h.b16 %v175
  %v889 = vunpack.c.l.b16 %v176
  %v890 = vunpack.c.h.b16 %v176
  %v891 = vunpack.c.l.b16 %v177
  %v892 = vunpack.c.h.b16 %v177
  %v893 = vunpack.c.l.b16 %v178
  %v894 = vunpack.c.h.b16 %v178
  %v895 = vunpack.c.l.b16 %v179
  %v896 = vunpack.c.h.b16 %v179
  %v897 = vunpack.c.l.b16 %v180
  %v898 = vunpack.c.h.b16 %v180
  %v899 = vunpack.c.l.b16 %v181
  %v900 = vunpack.c.h.b16 %v181
  %v901 = vunpack.c.l.b16 %v182
  %v902 = vunpack.c.h.b16 %v182
  %v903 = vunpack.c.l.b16 %v183
  %v904 = vunpack.c.h.b16 %v183
  %v905 = vunpack.c.l.b16 %v184
  %v906 = vunpack.c.h.b16 %v184
  %v907 = vunpack.c.l.b16 %v185
  %v908 = vunpack.c.h.b16 %v185
  %v909 = vunpack.c.l.b16 %v186
  %v910 = vunpack.c.h.b16 %v186
  %v911 = vunpack.c.l.b16 %v187
  %v912 = vunpack.c.h.b16 %v187
  %v913 = vunpack.c.l.b16 %v188
  %v914 = vunpack.c.h.b16 %v188
  %v915 = vunpack.c.l.b16 %v189
  %v916 = vunpack.c.h.b16 %v189
  %v917 = vunpack.c.l.b16 %v190
  %v918 = vunpack.c.h.b16 %v190
  %v919 = vunpack.c.l.b16 %v191
  %v920 = vunpack.c.h.b16 %v191
  %v921 = vunpack.c.l.b16 %v192
  %v922 = vunpack.c.h.b16 %v192
  %v923 = vunpack.c.l.b16 %v193
  %v924 = vunpack.c.h.b16 %v193
  %v925 = vunpack.c.l.b16 %v194
  %v926 = vunpack.c.h.b16 %v194
  %v927 = vunpack.c.l.b16 %v195
  %v928 = vunpack.c.h.b16 %v195
  %v929 = vunpack.c.l.b16 %v196
  %v930 = vunpack.c.h.b16 %v196
  %v931 = vunpack.c.l.b16 %v197
  %v932 = vunpack.c.h.b16 %v197
  %v933 = vunpack.c.l.b16 %v198
  %v934 = vunpack.c.h.b16 %v198
  %v935 = vunpack.c.l.b16 %v199
  %v936 = vunpack.c.h.b16 %v199
  %v937 = vunpack.c.l.b16 %v200
  %v938 = vunpack.c.h.b16 %v200
  %v939 = vunpack.c.l.b16 %v201
  %v940 = vunpack.c.h.b16 %v201
  %v941 = vunpack.c.l.b16 %v202
  %v942 = vunpack.c.h.b16 %v202
  %v943 = vunpack.c.l.b16 %v203
  %v944 = vunpack.c.h.b16 %v203
  %v945 = vunpack.c.l.b16 %v204
  %v946 = vunpack.c.h.b16 %v204
  %v947 = vunpack.c.l.b16 %v205
  %v948 = vunpack.c.h.b16 %v205
  %v949 = vunpack.c.l.b16 %v206
  %v950 = vunpack.c.h.b16 %v206
  %v951 = vunpack.c.l.b16 %v207
  %v952 = vunpack.c.h.b16 %v207
  %v953 = vunpack.c.l.b16 %v208
  %v954 = vunpack.c.h.b16 %v208
  %v955 = vunpack.c.l.b16 %v209
  %v956 = vunpack.c.h.b16 %v209
  %v957 = vunpack.c.l.b16 %v210
  %v958 = vunpack.c.h.b16 %v210
  %v959 = vunpack.c.l.b16 %v211
  %v960 = vunpack.c.h.b16 %v211
  %v961 = vunpack.c.l.b16 %v212
  %v962 = vunpack.c.h.b16 %v212
  %v963 = vunpack.c.l.b16 %v213
  %v964 = vunpack.c.h.b16 %v213
  %v965 = vunpack.c.l.b16 %v214
  %v966 = vunpack.c.h.b16 %v214
  %v967 = vunpack.c.l.b16 %v215
  %v968 = vunpack.c.h.b16 %v215
  %v969 = vunpack.c.l.b16 %v216
  %v970 = vunpack.c.h.b16 %v216
  %v971 = vunpack.c.l.b16 %v217
  %v972 = vunpack.c.h.b16 %v217
  %v973 = vunpack.c.l.b16 %v218
  %v974 = vunpack.c.h.b16 %v218
  %v975 = vunpack.c.l.b16 %v219
  %v976 = vunpack.c.h.b16 %v219
  %v977 = vunpack.c.l.b16 %v220
  %v978 = vunpack.c.h.b16 %v220
  %v979 = vunpack.c.l.b16 %v221
  %v980 = vunpack.c.h.b16 %v221
  %v981 = vunpack.c.l.b16 %v222
  %v982 = vunpack.c.h.b16 %v222
  %v983 = vunpack.c.l.b16 %v223
  %v984 = vunpack.c.h.b16 %v223
  %v985 = vunpack.c.l.b16 %v224
  %v986 = vunpack.c.h.b16 %v224
  %v987 = vunpack.c.l.b16 %v225
  %v988 = vunpack.c.h.b16 %v225
  %v989 = vunpack.c.l.b16 %v226
  %v990 = vunpack.c.h.b16 %v226
  %v991 = vunpack.c.l.b16 %v227
  %v992 = vunpack.c.h.b16 %v227
  %v993 = vunpack.c.l.b16 %v228
  %v994 = vunpack.c.h.b16 %v228
  %v995 = vunpack.c.l.b16 %v229
  %v996 = vunpack.c.h.b16 %v229
  %v997 = vunpack.c.l.b16 %v230
  %v998 = vunpack.c.h.b16 %v230
  %v999 = vunpack.c.l.b16 %v231
  %v1000 = vunpack.c.h.b16 %v231
  %v1001 = vunpack.c.l.b16 %v232
  %v1002 = vunpack.c.h.b16 %v232
  %v1003 = vunpack.c.l.b16 %v233
  %v1004 = vunpack.c.h.b16 %v233
  %v1005 = vunpack.c.l.b16 %v234
  %v1006 = vunpack.c.h.b16 %v234
  %v1007 = vunpack.c.l.b16 %v235
  %v1008 = vunpack.c.h.b16 %v235
  %v1009 = vunpack.c.l.b16 %v236
  %v1010 = vunpack.c.h.b16 %v236
  %v1011 = vunpack.c.l.b16 %v237
  %v1012 = vunpack.c.h.b16 %v237
  %v1013 = vunpack.c.l.b16 %v238
  %v1014 = vunpack.c.h.b16 %v238
  %v1015 = vunpack.c.l.b16 %v239
  %v1016 = vunpack.c.h.b16 %v239
  %v1017 = vunpack.c.l.b16 %v240
  %v1018 = vunpack.c.h.b16 %v240
  %v1019 = vunpack.c.l.b16 %v241
  %v1020 = vunpack.c.h.b16 %v241
  %v1021 = vunpack.c.l.b16 %v242
  %v1022 = vunpack.c.h.b16 %v242
  %v1023 = vunpack.c.l.b16 %v243
  %v1024 = vunpack.c.h.b16 %v243
  %v1025 = vunpack.c.l.b16 %v244
  %v1026 = vunpack.c.h.b16 %v244
  %v1027 = vunpack.c.l.b16 %v245
  %v1028 = vunpack.c.h.b16 %v245
  %v1029 = vunpack.c.l.b16 %v246
  %v1030 = vunpack.c.h.b16 %v246
  %v1031 = vunpack.c.l.b16 %v247
  %v1032 = vunpack.c.h.b16 %v247
  %v1033 = vunpack.c.l.b16 %v248
  %v1034 = vunpack.c.h.b16 %v248
  %v1035 = vunpack.c.l.b16 %v249
  %v1036 = vunpack.c.h.b16 %v249
  %v1037 = vunpack.c.l.b16 %v250
  %v1038 = vunpack.c.h.b16 %v250
  %v1039 = vunpack.c.l.b16 %v251
  %v1040 = vunpack.c.h.b16 %v251
  %v1041 = vunpack.c.l.b16 %v252
  %v1042 = vunpack.c.h.b16 %v252
  %v1043 = vunpack.c.l.b16 %v253
  %v1044 = vunpack.c.h.b16 %v253
  %v1045 = vunpack.c.l.b16 %v254
  %v1046 = vunpack.c.h.b16 %v254
  %v1047 = vunpack.c.l.b16 %v255
  %v1048 = vunpack.c.h.b16 %v255
  %v1049 = vunpack.c.l.b16 %v256
  %v1050 = vunpack.c.h.b16 %v256
  %v1051 = vunpack.c.l.b16 %v257
  %v1052 = vunpack.c.h.b16 %v257
  %v1053 = vunpack.c.l.b16 %v258
  %v1054 = vunpack.c.h.b16 %v258
  %v1055 = vunpack.c.l.b16 %v259
  %v1056 = vunpack.c.h.b16 %v259
  %v1057 = vunpack.c.l.b16 %v260
  %v1058 = vunpack.c.h.b16 %v260
  %v1059 = vunpack.c.l.b16 %v261
  %v1060 = vunpack.c.h.b16 %v261
  %v1061 = vunpack.c.l.b16 %v262
  %v1062 = vunpack.c.h.b16 %v262
  %v1063 = vunpack.c.l.b16 %v263
  %v1064 = vunpack.c.h.b16 %v263
  %v1065 = vunpack.c.l.b16 %v264
  %v1066 = vunpack.c.h.b16 %v264
  %v1067 = vunpack.c.l.b16 %v265
  %v1068 = vunpack.c.h.b16 %v265
  %v1069 = vunpack.c.l.b16 %v266
  %v1070 = vunpack.c.h.b16 %v266
  %v1071 = vunpack.c.l.b16 %v267
  %v1072 = vunpack.c.h.b16 %v267
  %v1073 = vunpack.c.l.b16 %v268
  %v1074 = vunpack.c.h.b16 %v268
  %v1075 = vunpack.c.l.b16 %v269
  %v1076 = vunpack.c.h.b16 %v269
  %v1077 = vunpack.c.l.b16 %v270
  %v1078 = vunpack.c.h.b16 %v270
  %v1079 = vunpack.c.l.b16 %v271
  %v1080 = vunpack.c.h.b16 %v271
  %v1081 = vunpack.c.l.b16 %v272
  %v1082 = vunpack.c.h.b16 %v272
  %v1083 = vunpack.c.l.b16 %v273
  %v1084 = vunpack.c.h.b16 %v273
  %v1085 = vunpack.c.l.b16 %v274
  %v1086 = vunpack.c.h.b16 %v274
  %v1087 = vunpack.c.l.b16 %v275
  %v1088 = vunpack.c.h.b16 %v275
  %v1089 = vunpack.c.l.b16 %v276
  %v1090 = vunpack.c.h.b16 %v276
  %v1091 = vunpack.c.l.b16 %v277
  %v1092 = vunpack.c.h.b16 %v277
  %v1093 = vunpack.c.l.b16 %v278
  %v1094 = vunpack.c.h.b16 %v278
  %v1095 = vunpack.c.l.b16 %v279
  %v1096 = vunpack.c.h.b16 %v279
  %v1097 = vunpack.c.l.b16 %v280
  %v1098 = vunpack.c.h.b16 %v280
  %v1099 = vunpack.c.l.b16 %v281
  %v1100 = vunpack.c.h.b16 %v281
  %v1101 = vunpack.c.l.b16 %v282
  %v1102 = vunpack.c.h.b16 %v282
  %v1103 = vunpack.c.l.b16 %v283
  %v1104 = vunpack.c.h.b16 %v283
  %v1105 = vunpack.c.l.b16 %v284
  %v1106 = vunpack.c.h.b16 %v284
  %v1107 = vunpack.c.l.b16 %v285
  %v1108 = vunpack.c.h.b16 %v285
  %v1109 = vunpack.c.l.b16 %v286
  %v1110 = vunpack.c.h.b16 %v286
  %v1111 = vunpack.c.l.b16 %v287
  %v1112 = vunpack.c.h.b16 %v287
  %v1113 = vunpack.c.l.b16 %v288
  %v1114 = vunpack.c.h.b16 %v288
  %v1115 = vunpack.c.l.b16 %v289
  %v1116 = vunpack.c.h.b16 %v289
  %v1117 = vunpack.c.l.b16 %v290
  %v1118 = vunpack.c.h.b16 %v290
  %v1119 = vunpack.c.l.b16 %v291
  %v1120 = vunpack.c.h.b16 %v291
  %v1121 = vunpack.c.l.b16 %v292
  %v1122 = vunpack.c.h.b16 %v292
  %v1123 = vunpack.c.l.b16 %v293
  %v1124 = vunpack.c.h.b16 %v293
  %v1125 = vunpack.c.l.b16 %v294
  %v1126 = vunpack.c.h.b16 %v294
  %v1127 = vunpack.c.l.b16 %v295
  %v1128 = vunpack.c.h.b16 %v295
  %v1129 = vunpack.c.l.b16 %v296
  %v1130 = vunpack.c.h.b16 %v296
  %v1131 = vunpack.c.l.b16 %v297
  %v1132 = vunpack.c.h.b16 %v297
  %v1133 = vunpack.c.l.b16 %v298
  %v1134 = vunpack.c.h.b16 %v298
  %v1135 = vunpack.c.l.b16 %v299
  %v1136 = vunpack.c.h.b16 %v299
  %v1137 = vunpack.c.l.b16 %v300
  %v1138 = vunpack.c.h.b16 %v300
  %v1139 = vunpack.c.l.b16 %v301
  %v1140 = vunpack.c.h.b16 %v301
  %v1141 = vunpack.c.l.b16 %v302
  %v1142 = vunpack.c.h.b16 %v302
  %v1143 = vunpack.c.l.b16 %v303
  %v1144 = vunpack.c.h.b16 %v303
  %v1145 = vunpack.c.l.b16 %v304
  %v1146 = vunpack.c.h.b16 %v304
  %v1147 = vunpack.c.l.b16 %v305
  %v1148 = vunpack.c.h.b16 %v305
  %v1149 = vunpack.c.l.b16 %v306
  %v1150 = vunpack.c.h.b16 %v306
  %v1151 = vunpack.c.l.b16 %v307
  %v1152 = vunpack.c.h.b16 %v307
  %v1153 = vunpack.c.l.b16 %v308
  %v1154 = vunpack.c.h.b16 %v308
  %v1155 = vunpack.c.l.b16 %v309
  %v1156 = vunpack.c.h.b16 %v309
  %v1157 = vunpack.c.l.b16 %v310
  %v1158 = vunpack.c.h.b16 %v310
  %v1159 = vunpack.c.l.b16 %v311
  %v1160 = vunpack.c.h.b16 %v311
  %v1161 = vunpack.c.l.b16 %v312
  %v1162 = vunpack.c.h.b16 %v312
  %v1163 = vunpack.c.l.b16 %v313
  %v1164 = vunpack.c.h.b16 %v313
  %v1165 = vunpack.c.l.b16 %v314
  %v1166 = vunpack.c.h.b16 %v314
  %v1167 = vunpack.c.l.b16 %v315
  %v1168 = vunpack.c.h.b16 %v315
  %v1169 = vunpack.c.l.b16 %v316
  %v1170 = vunpack.c.h.b16 %v316
  %v1171 = vunpack.c.l.b16 %v317
  %v1172 = vunpack.c.h.b16 %v317
  %v1173 = vunpack.c.l.b16 %v318
  %v1174 = vunpack.c.h.b16 %v318
  %v1175 = vunpack.c.l.b16 %v319
  %v1176 = vunpack.c.h.b16 %v319
  %v1177 = vunpack.c.l.b16 %v320
  %v1178 = vunpack.c.h.b16 %v320
  %v1179 = vunpack.c.l.b16 %v321
  %v1180 = vunpack.c.h.b16 %v321
  %v1181 = vunpack.c.l.b16 %v322
  %v1182 = vunpack.c.h.b16 %v322
  %v1183 = vunpack.c.l.b16 %v323
  %v1184 = vunpack.c.h.b16 %v323
  %v1185 = vunpack.c.l.b16 %v324
  %v1186 = vunpack.c.h.b16 %v324
  %v1187 = vunpack.c.l.b16 %v325
  %v1188 = vunpack.c.h.b16 %v325
  %v1189 = vunpack.c.l.b16 %v326
  %v1190 = vunpack.c.h.b16 %v326
  %v1191 = vunpack.c.l.b16 %v327
  %v1192 = vunpack.c.h.b16 %v327
  %v1193 = vunpack.c.l.b16 %v328
  %v1194 = vunpack.c.h.b16 %v328
  %v1195 = vunpack.c.l.b16 %v329
  %v1196 = vunpack.c.h.b16 %v329
  %v1197 = vunpack.c.l.b16 %v330
  %v1198 = vunpack.c.h.b16 %v330
  %v1199 = vunpack.c.l.b16 %v331
  %v1200 = vunpack.c.h.b16 %v331
  %v1201 = vunpack.c.l.b16 %v332
  %v1202 = vunpack.c.h.b16 %v332
  %v1203 = vunpack.c.l.b16 %v333
  %v1204 = vunpack.c.h.b16 %v333
  %v1205 = vunpack.c.l.b16 %v334
  %v1206 = vunpack.c.h.b16 %v334
  %v1207 = vunpack.c.l.b16 %v335
  %v1208 = vunpack.c.h.b16 %v335
  %v1209 = vunpack.c.l.b16 %v336
  %v1210 = vunpack.c.h.b16 %v336
  %v1211 = vunpack.c.l.b16 %v337
  %v1212 = vunpack.c.h.b16 %v337
  %v1213 = vunpack.c.l.b16 %v338
  %v1214 = vunpack.c.h.b16 %v338
  %v1215 = vunpack.c.l.b16 %v339
  %v1216 = vunpack.c.h.b16 %v339
  %v1217 = vunpack.c.l.b16 %v340
  %v1218 = vunpack.c.h.b16 %v340
  %v1219 = vunpack.c.l.b16 %v341
  %v1220 = vunpack.c.h.b16 %v341
  %v1221 = vunpack.c.l.b16 %v342
  %v1222 = vunpack.c.h.b16 %v342
  %v1223 = vunpack.c.l.b16 %v343
  %v1224 = vunpack.c.h.b16 %v343
  %v1225 = vunpack.c.l.b16 %v344
  %v1226 = vunpack.c.h.b16 %v344
  %v1227 = vunpack.c.l.b16 %v345
  %v1228 = vunpack.c.h.b16 %v345
  %v1229 = vunpack.c.l.b16 %v346
  %v1230 = vunpack.c.h.b16 %v346
  %v1231 = vunpack.c.l.b16 %v347
  %v1232 = vunpack.c.h.b16 %v347
  %v1233 = vunpack.c.l.b16 %v348
  %v1234 = vunpack.c.h.b16 %v348
  %v1235 = vunpack.c.l.b16 %v349
  %v1236 = vunpack.c.h.b16 %v349
  %v1237 = vunpack.c.l.b16 %v350
  %v1238 = vunpack.c.h.b16 %v350
  %v1239 = vunpack.c.l.b16 %v351
  %v1240 = vunpack.c.h.b16 %v351
  %v1241 = vunpack.c.l.b16 %v352
  %v1242 = vunpack.c.h.b16 %v352
  %v1243 = vunpack.c.l.b16 %v353
  %v1244 = vunpack.c.h.b16 %v353
  %v1245 = vunpack.c.l.b16 %v354
  %v1246 = vunpack.c.h.b16 %v354
  %v1247 = vunpack.c.l.b16 %v355
  %v1248 = vunpack.c.h.b16 %v355
  %v1249 = vunpack.c.l.b16 %v356
  %v1250 = vunpack.c.h.b16 %v356
  %v1251 = vunpack.c.l.b16 %v357
  %v1252 = vunpack.c.h.b16 %v357
  %v1253 = vunpack.c.l.b16 %v358
  %v1254 = vunpack.c.h.b16 %v358
  %v1255 = vpack.c.b16 %v685, %v679
  %v1256 = vpack.c.b16 %v686, %v680
  %v1257 = vpack.c.b16 %v687, %v681
  %v1258 = vpack.c.b16 %v688, %v682
  %v1259 = vpack.c.b16 %v689, %v683
  %v1260 = vpack.c.b16 %v690, %v684
  %v1261 = vpack.c.b16 %v697, %v691
  %v1262 = vpack.c.b16 %v698, %v692
  %v1263 = vpack.c.b16 %v699, %v693
  %v1264 = vpack.c.b16 %v700, %v694
  %v1265 = vpack.c.b16 %v701, %v695
  %v1266 = vpack.c.b16 %v702, %v696
  %v1267 = vpack.c.b16 %v709, %v703
  %v1268 = vpack.c.b16 %v710, %v704
  %v1269 = vpack.c.b16 %v711, %v705
  %v1270 = vpack.c.b16 %v712, %v706
  %v1271 = vpack.c.b16 %v713, %v707
  %v1272 = vpack.c.b16 %v714, %v708
  %v1273 = vpack.c.b16 %v721, %v715
  %v1274 = vpack.c.b16 %v722, %v716
  %v1275 = vpack.c.b16 %v723, %v717
  %v1276 = vpack.c.b16 %v724, %v718
  %v1277 = vpack.c.b16 %v725, %v719
  %v1278 = vpack.c.b16 %v726, %v720
  %v1279 = vpack.c.b16 %v733, %v727
  %v1280 = vpack.c.b16 %v734, %v728
  %v1281 = vpack.c.b16 %v735, %v729
  %v1282 = vpack.c.b16 %v736, %v730
  %v1283 = vpack.c.b16 %v737, %v731
  %v1284 = vpack.c.b16 %v738, %v732
  %v1285 = vpack.c.b16 %v745, %v739
  %v1286 = vpack.c.b16 %v746, %v740
  %v1287 = vpack.c.b16 %v747, %v741
  %v1288 = vpack.c.b16 %v748, %v742
  %v1289 = vpack.c.b16 %v749, %v743
  %v1290 = vpack.c.b16 %v750, %v744
  %v1291 = vpack.c.b16 %v757, %v751
  %v1292 = vpack.c.b16 %v758, %v752
  %v1293 = vpack.c.b16 %v759, %v753
  %v1294 = vpack.c.b16 %v760, %v754
  %v1295 = vpack.c.b16 %v761, %v755
  %v1296 = vpack.c.b16 %v762, %v756
  %v1297 = vpack.c.b16 %v769, %v763
  %v1298 = vpack.c.b16 %v770, %v764
  %v1299 = vpack.c.b16 %v771, %v765
  %v1300 = vpack.c.b16 %v772, %v766
  %v1301 = vpack.c.b16 %v773, %v767
  %v1302 = vpack.c.b16 %v774, %v768
  %v1303 = vpack.c.b16 %v781, %v775
  %v1304 = vpack.c.b16 %v782, %v776
  %v1305 = vpack.c.b16 %v783, %v777
  %v1306 = vpack.c.b16 %v784, %v778
  %v1307 = vpack.c.b16 %v785, %v779
  %v1308 = vpack.c.b16 %v786, %v780
  %v1309 = vpack.c.b16 %v793, %v787
  %v1310 = vpack.c.b16 %v794, %v788
  %v1311 = vpack.c.b16 %v795, %v789
  %v1312 = vpack.c.b16 %v796, %v790
  %v1313 = vpack.c.b16 %v797, %v791
  %v1314 = vpack.c.b16 %v798, %v792
  %v1315 = vpack.c.b16 %v805, %v799
  %v1316 = vpack.c.b16 %v806, %v800
  %v1317 = vpack.c.b16 %v807, %v801
  %v1318 = vpack.c.b16 %v808, %v802
  %v1319 = vpack.c.b16 %v809, %v803
  %v1320 = vpack.c.b16 %v810, %v804
  %v1321 = vpack.c.b16 %v817, %v811
  %v1322 = vpack.c.b16 %v818, %v812
  %v1323 = vpack.c.b16 %v819, %v813
  %v1324 = vpack.c.b16 %v820, %v814
  %v1325 = vpack.c.b16 %v821, %v815
  %v1326 = vpack.c.b16 %v822, %v816
  %v1327 = vpack.c.b16 %v829, %v823
  %v1328 = vpack.c.b16 %v830, %v824
  %v1329 = vpack.c.b16 %v831, %v825
  %v1330 = vpack.c.b16 %v832, %v826
  %v1331 = vpack.c.b16 %v833, %v827
  %v1332 = vpack.c.b16 %v834, %v828
  %v1333 = vpack.c.b16 %v841, %v835
  %v1334 = vpack.c.b16 %v842, %v836
  %v1335 = vpack.c.b16 %v843, %v837
  %v1336 = vpack.c.b16 %v844, %v838
  %v1337 = vpack.c.b16 %v845, %v839
  %v1338 = vpack.c.b16 %v846, %v840
  %v1339 = vpack.c.b16 %v853, %v847
  %v1340 = vpack.c.b16 %v854, %v848
  %v1341 = vpack.c.b16 %v855, %v849
  %v1342 = vpack.c.b16 %v856, %v850
  %v1343 = vpack.c.b16 %v857, %v851
  %v1344 = vpack.c.b16 %v858, %v852
  %v1345 = vpack.c.b16 %v865, %v859
  %v1346 = vpack.c.b16 %v866, %v860
  %v1347 = vpack.c.b16 %v867, %v861
  %v1348 = vpack.c.b16 %v868, %v862
  %v1349 = vpack.c.b16 %v869, %v863
  %v1350 = vpack.c.b16 %v870, %v864
  %v1351 = vpack.c.b16 %v877, %v871
  %v1352 = vpack.c.b16 %v878, %v872
  %v1353 = vpack.c.b16 %v879, %v873
  %v1354 = vpack.c.b16 %v880, %v874
  %v1355 = vpack.c.b16 %v881, %v875
  %v1356 = vpack.c.b16 %v882, %v876
  %v1357 = vpack.c.b16 %v889, %v883
  %v1358 = vpack.c.b16 %v890, %v884
  %v1359 = vpack.c.b16 %v891, %v885
  %v1360 = vpack.c.b16 %v892, %v886
  %v1361 = vpack.c.b16 %v893, %v887
  %v1362 = vpack.c.b16 %v894, %v888
  %v1363 = vpack.c.b16 %v901, %v895
  %v1364 = vpack.c.b16 %v902, %v896
  %v1365 = vpack.c.b16 %v903, %v897
  %v1366 = vpack.c.b16 %v904, %v898
  %v1367 = vpack.c.b16 %v905, %v899
  %v1368 = vpack.c.b16 %v906, %v900
  %v1369 = vpack.c.b16 %v913, %v907
  %v1370 = vpack.c.b16 %v914, %v908
  %v1371 = vpack.c.b16 %v915, %v909
  %v1372 = vpack.c.b16 %v916, %v910
  %v1373 = vpack.c.b16 %v917, %v911
  %v1374 = vpack.c.b16 %v918, %v912
  %v1375 = vpack.c.b16 %v925, %v919
  %v1376 = vpack.c.b16 %v926, %v920
  %v1377 = vpack.c.b16 %v927, %v921
  %v1378 = vpack.c.b16 %v928, %v922
  %v1379 = vpack.c.b16 %v929, %v923
  %v1380 = vpack.c.b16 %v930, %v924
  %v1381 = vpack.c.b16 %v937, %v931
  %v1382 = vpack.c.b16 %v938, %v932
  %v1383 = vpack.c.b16 %v939, %v933
  %v1384 = vpack.c.b16 %v940, %v934
  %v1385 = vpack.c.b16 %v941, %v935
  %v1386 = vpack.c.b16 %v942, %v936
  %v1387 = vpack.c.b16 %v949, %v943
  %v1388 = vpack.c.b16 %v950, %v944
  %v1389 = vpack.c.b16 %v951, %v945
  %v1390 = vpack.c.b16 %v952, %v946
  %v1391 = vpack.c.b16 %v953, %v947
  %v1392 = vpack.c.b16 %v954, %v948
  %v1393 = vpack.c.b16 %v961, %v955
  %v1394 = vpack.c.b16 %v962, %v956
  %v1395 = vpack.c.b16 %v963, %v957
  %v1396 = vpack.c.b16 %v964, %v958
  %v1397 = vpack.c.b16 %v965, %v959
  %v1398 = vpack.c.b16 %v966, %v960
  %v1399 = vpack.c.b16 %v973, %v967
  %v1400 = vpack.c.b16 %v974, %v968
  %v1401 = vpack.c.b16 %v975, %v969
  %v1402 = vpack.c.b16 %v976, %v970
  %v1403 = vpack.c.b16 %v977, %v971
  %v1404 = vpack.c.b16 %v978, %v972
  %v1405 = vpack.c.b16 %v985, %v979
  %v1406 = vpack.c.b16 %v986, %v980
  %v1407 = vpack.c.b16 %v987, %v981
  %v1408 = vpack.c.b16 %v988, %v982
  %v1409 = vpack.c.b16 %v989, %v983
  %v1410 = vpack.c.b16 %v990, %v984
  %v1411 = vpack.c.b16 %v997, %v991
  %v1412 = vpack.c.b16 %v998, %v992
  %v1413 = vpack.c.b16 %v999, %v993
  %v1414 = vpack.c.b16 %v1000, %v994
  %v1415 = vpack.c.b16 %v1001, %v995
  %v1416 = vpack.c.b16 %v1002, %v996
  %v1417 = vpack.c.b16 %v1009, %v1003
  %v1418 = vpack.c.b16 %v1010, %v1004
  %v1419 = vpack.c.b16 %v1011, %v1005
  %v1420 = vpack.c.b16 %v1012, %v1006
  %v1421 = vpack.c.b16 %v1013, %v1007
  %v1422 = vpack.c.b16 %v1014, %v1008
  %v1423 = vpack.c.b16 %v1021, %v1015
  %v1424 = vpack.c.b16 %v1022, %v1016
  %v1425 = vpack.c.b16 %v1023, %v1017
  %v1426 = vpack.c.b16 %v1024, %v1018
  %v1427 = vpack.c.b16 %v1025, %v1019
  %v1428 = vpack.c.b16 %v1026, %v1020
  %v1429 = vpack.c.b16 %v1033, %v1027
  %v1430 = vpack.c.b16 %v1034, %v1028
  %v1431 = vpack.c.b16 %v1035, %v1029
  %v1432 = vpack.c.b16 %v1036, %v1030
  %v1433 = vpack.c.b16 %v1037, %v1031
  %v1434 = vpack.c.b16 %v1038, %v1032
  %v1435 = vpack.c.b16 %v1045, %v1039
  %v1436 = vpack.c.b16 %v1046, %v1040
  %v1437 = vpack.c.b16 %v1047, %v1041
  %v1438 = vpack.c.b16 %v1048, %v1042
  %v1439 = vpack.c.b16 %v1049, %v1043
  %v1440 = vpack.c.b16 %v1050, %v1044
  %v1441 = vpack.c.b16 %v1057, %v1051
  %v1442 = vpack.c.b16 %v1058, %v1052
  %v1443 = vpack.c.b16 %v1059, %v1053
  %v1444 = vpack.c.b16 %v1060, %v1054
  %v1445 = vpack.c.b16 %v1061, %v1055
  %v1446 = vpack.c.b16 %v1062, %v1056
  %v1447 = vpack.c.b16 %v1069, %v1063
  %v1448 = vpack.c.b16 %v1070, %v1064
  %v1449 = vpack.c.b16 %v1071, %v1065
  %v1450 = vpack.c.b16 %v1072, %v1066
  %v1451 = vpack.c.b16 %v1073, %v1067
  %v1452 = vpack.c.b16 %v1074, %v1068
  %v1453 = vpack.c.b16 %v1081, %v1075
  %v1454 = vpack.c.b16 %v1082, %v1076
  %v1455 = vpack.c.b16 %v1083, %v1077
  %v1456 = vpack.c.b16 %v1084, %v1078
  %v1457 = vpack.c.b16 %v1085, %v1079
  %v1458 = vpack.c.b16 %v1086, %v1080
  %v1459 = vpack.c.b16 %v1093, %v1087
  %v1460 = vpack.c.b16 %v1094, %v1088
  %v1461 = vpack.c.b16 %v1095, %v1089
  %v1462 = vpack.c.b16 %v1096, %v1090
  %v1463 = vpack.c.b16 %v1097, %v1091
  %v1464 = vpack.c.b16 %v1098, %v1092
  %v1465 = vpack.c.b16 %v1105, %v1099
  %v1466 = vpack.c.b16 %v1106, %v1100
  %v1467 = vpack.c.b16 %v1107, %v1101
  %v1468 = vpack.c.b16 %v1108, %v1102
  %v1469 = vpack.c.b16 %v1109, %v1103
  %v1470 = vpack.c.b16 %v1110, %v1104
  %v1471 = vpack.c.b16 %v1117, %v1111
  %v1472 = vpack.c.b16 %v1118, %v1112
  %v1473 = vpack.c.b16 %v1119, %v1113
  %v1474 = vpack.c.b16 %v1120, %v1114
  %v1475 = vpack.c.b16 %v1121, %v1115
  %v1476 = vpack.c.b16 %v1122, %v1116
  %v1477 = vpack.c.b16 %v1129, %v1123
  %v1478 = vpack.c.b16 %v1130, %v1124
  %v1479 = vpack.c.b16 %v1131, %v1125
  %v1480 = vpack.c.b16 %v1132, %v1126
  %v1481 = vpack.c.b16 %v1133, %v1127
  %v1482 = vpack.c.b16 %v1134, %v1128
  %v1483 = vpack.c.b16 %v1141, %v1135
  %v1484 = vpack.c.b16 %v1142, %v1136
  %v1485 = vpack.c.b16 %v1143, %v1137
  %v1486 = vpack.c.b16 %v1144, %v1138
  %v1487 = vpack.c.b16 %v1145, %v1139
  %v1488 = vpack.c.b16 %v1146, %v1140
  %v1489 = vpack.c.b16 %v1153, %v1147
  %v1490 = vpack.c.b16 %v1154, %v1148
  %v1491 = vpack.c.b16 %v1155, %v1149
  %v1492 = vpack.c.b16 %v1156, %v1150
  %v1493 = vpack.c.b16 %v1157, %v1151
  %v1494 = vpack.c.b16 %v1158, %v1152
  %v1495 = vpack.c.b16 %v1165, %v1159
  %v1496 = vpack.c.b16 %v1166, %v1160
  %v1497 = vpack.c.b16 %v1167, %v1161
  %v1498 = vpack.c.b16 %v1168, %v1162
  %v1499 = vpack.c.b16 %v1169, %v1163
  %v1500 = vpack.c.b16 %v1170, %v1164
  %v1501 = vpack.c.b16 %v1177, %v1171
  %v1502 = vpack.c.b16 %v1178, %v1172
  %v1503 = vpack.c.b16 %v1179, %v1173
  %v1504 = vpack.c.b16 %v1180, %v1174
  %v1505 = vpack.c.b16 %v1181, %v1175
  %v1506 = vpack.c.b16 %v1182, %v1176
  %v1507 = vpack.c.b16 %v1189, %v1183
  %v1508 = vpack.c.b16 %v1190, %v1184
  %v1509 = vpack.c.b16 %v1191, %v1185
  %v1510 = vpack.c.b16 %v1192, %v1186
  %v1511 = vpack.c.b16 %v1193, %v1187
  %v1512 = vpack.c.b16 %v1194, %v1188
  %v1513 = vpack.c.b16 %v1201, %v1195
  %v1514 = vpack.c.b16 %v1202, %v1196
  %v1515 = vpack.c.b16 %v1203, %v1197
  %v1516 = vpack.c.b16 %v1204, %v1198
  %v1517 = vpack.c.b16 %v1205, %v1199
  %v1518 = vpack.c.b16 %v1206, %v1200
  %v1519 = vpack.c.b16 %v1213, %v1207
  %v1520 = vpack.c.b16 %v1214, %v1208
  %v1521 = vpack.c.b16 %v1215, %v1209
  %v1522 = vpack.c.b16 %v1216, %v1210
  %v1523 = vpack.c.b16 %v1217, %v1211
  %v1524 = vpack.c.b16 %v1218, %v1212
  %v1525 = vpack.c.b16 %v1225, %v1219
  %v1526 = vpack.c.b16 %v1226, %v1220
  %v1527 = vpack.c.b16 %v1227, %v1221
  %v1528 = vpack.c.b16 %v1228, %v1222
  %v1529 = vpack.c.b16 %v1229, %v1223
  %v1530 = vpack.c.b16 %v1230, %v1224
  %v1531 = vpack.c.b16 %v1237, %v1231
  %v1532 = vpack.c.b16 %v1238, %v1232
  %v1533 = vpack.c.b16 %v1239, %v1233
  %v1534 = vpack.c.b16 %v1240, %v1234
  %v1535 = vpack.c.b16 %v1241, %v1235
  %v1536 = vpack.c.b16 %v1242, %v1236
  %v1537 = vpack.c.b16 %v1249, %v1243
  %v1538 = vpack.c.b16 %v1250, %v1244
  %v1539 = vpack.c.b16 %v1251, %v1245
  %v1540 = vpack.c.b16 %v1252, %v1246
  %v1541 = vpack.c.b16 %v1253, %v1247
  %v1542 = vpack.c.b16 %v1254, %v1248
  %1831 = vmatprep.subr.bf16.mxu0 %v1256
  %1832 = vmatpush1.bf16.msra.mxu0 %v1255
  %1833 = vmatprep.subr.bf16.mxu0 %v1262
  %1834 = vmatpush1.bf16.msra.mxu0 %v1261
  %1835 = vmatprep.subr.bf16.mxu0 %v1268
  %1836 = vmatpush1.bf16.msra.mxu0 %v1267
  %1837 = vmatprep.subr.bf16.mxu0 %v1274
  %1838 = vmatpush1.bf16.msra.mxu0 %v1273
  %1839 = vmatprep.subr.bf16.mxu0 %v1280
  %1840 = vmatpush1.bf16.msra.mxu0 %v1279
  %1841 = vmatprep.subr.bf16.mxu0 %v1286
  %1842 = vmatpush1.bf16.msra.mxu0 %v1285
  %1843 = vmatprep.subr.bf16.mxu0 %v1292
  %1844 = vmatpush1.bf16.msra.mxu0 %v1291
  %1845 = vmatprep.subr.bf16.mxu0 %v1298
  %1846 = vmatpush1.bf16.msra.mxu0 %v1297
  %1847 = vmatprep.subr.bf16.mxu0 %v1304
  %1848 = vmatpush1.bf16.msra.mxu0 %v1303
  %1849 = vmatprep.subr.bf16.mxu0 %v1310
  %1850 = vmatpush1.bf16.msra.mxu0 %v1309
  %1851 = vmatprep.subr.bf16.mxu0 %v1316
  %1852 = vmatpush1.bf16.msra.mxu0 %v1315
  %1853 = vmatprep.subr.bf16.mxu0 %v1322
  %1854 = vmatpush1.bf16.msra.mxu0 %v1321
  %1855 = vmatprep.subr.bf16.mxu0 %v1328
  %1856 = vmatpush1.bf16.msra.mxu0 %v1327
  %1857 = vmatprep.subr.bf16.mxu0 %v1334
  %1858 = vmatpush1.bf16.msra.mxu0 %v1333
  %1859 = vmatprep.subr.bf16.mxu0 %v1340
  %1860 = vmatpush1.bf16.msra.mxu0 %v1339
  %1861 = vmatprep.subr.bf16.mxu0 %v1346
  %1862 = vmatpush1.bf16.msra.mxu0 %v1345
  %1863 = vmatprep.mubr.bf16.mxu0 %v66
  %1864 = vmatmul.mubr.bf16.gmra.mrb[0].mxu0 %v65
  %v1865 = vpop.f32.mrb[0].mxu0
  %v1866 = vadd.f32 %v364, %v1865
  %v1867 = vpop.f32.mrb[0].mxu0
  %v1868 = vadd.f32 %v368, %v1867
  %v1869 = vpop.f32.mrb[0].mxu0
  %v1870 = vpop.f32.mrb[0].mxu0
  %1871 = vdwg.mxu0
  %1872 = vmatprep.subr.bf16.mxu0 %v1352
  %1873 = vmatpush1.bf16.msra.mxu0 %v1351
  %1874 = vmatprep.subr.bf16.mxu0 %v1358
  %1875 = vmatpush1.bf16.msra.mxu0 %v1357
  %1876 = vmatprep.subr.bf16.mxu0 %v1364
  %1877 = vmatpush1.bf16.msra.mxu0 %v1363
  %1878 = vmatprep.subr.bf16.mxu0 %v1370
  %1879 = vmatpush1.bf16.msra.mxu0 %v1369
  %1880 = vmatprep.subr.bf16.mxu0 %v1376
  %1881 = vmatpush1.bf16.msra.mxu0 %v1375
  %1882 = vmatprep.subr.bf16.mxu0 %v1382
  %1883 = vmatpush1.bf16.msra.mxu0 %v1381
  %1884 = vmatprep.subr.bf16.mxu0 %v1388
  %1885 = vmatpush1.bf16.msra.mxu0 %v1387
  %1886 = vmatprep.subr.bf16.mxu0 %v1394
  %1887 = vmatpush1.bf16.msra.mxu0 %v1393
  %1888 = vmatprep.subr.bf16.mxu0 %v1400
  %1889 = vmatpush1.bf16.msra.mxu0 %v1399
  %1890 = vmatprep.subr.bf16.mxu0 %v1406
  %1891 = vmatpush1.bf16.msra.mxu0 %v1405
  %1892 = vmatprep.subr.bf16.mxu0 %v1412
  %1893 = vmatpush1.bf16.msra.mxu0 %v1411
  %1894 = vmatprep.subr.bf16.mxu0 %v1418
  %1895 = vmatpush1.bf16.msra.mxu0 %v1417
  %1896 = vmatprep.subr.bf16.mxu0 %v1424
  %1897 = vmatpush1.bf16.msra.mxu0 %v1423
  %1898 = vmatprep.subr.bf16.mxu0 %v1430
  %1899 = vmatpush1.bf16.msra.mxu0 %v1429
  %1900 = vmatprep.subr.bf16.mxu0 %v1436
  %1901 = vmatpush1.bf16.msra.mxu0 %v1435
  %1902 = vmatprep.subr.bf16.mxu0 %v1442
  %1903 = vmatpush1.bf16.msra.mxu0 %v1441
  %1904 = vmatprep.mubr.bf16.mxu0 %v68
  %1905 = vmatmul.mubr.bf16.gmra.mrb[0].mxu0 %v67
  %v1906 = vpop.f32.mrb[0].mxu0
  %v1907 = vadd.f32 %v1866, %v1906
  %v1908 = vpop.f32.mrb[0].mxu0
  %v1909 = vadd.f32 %v1868, %v1908
  %v1910 = vpop.f32.mrb[0].mxu0
  %v1911 = vpop.f32.mrb[0].mxu0
  %1912 = vdwg.mxu0
  %1913 = vmatprep.subr.bf16.mxu0 %v1448
  %1914 = vmatpush1.bf16.msra.mxu0 %v1447
  %1915 = vmatprep.subr.bf16.mxu0 %v1454
  %1916 = vmatpush1.bf16.msra.mxu0 %v1453
  %1917 = vmatprep.subr.bf16.mxu0 %v1460
  %1918 = vmatpush1.bf16.msra.mxu0 %v1459
  %1919 = vmatprep.subr.bf16.mxu0 %v1466
  %1920 = vmatpush1.bf16.msra.mxu0 %v1465
  %1921 = vmatprep.subr.bf16.mxu0 %v1472
  %1922 = vmatpush1.bf16.msra.mxu0 %v1471
  %1923 = vmatprep.subr.bf16.mxu0 %v1478
  %1924 = vmatpush1.bf16.msra.mxu0 %v1477
  %1925 = vmatprep.subr.bf16.mxu0 %v1484
  %1926 = vmatpush1.bf16.msra.mxu0 %v1483
  %1927 = vmatprep.subr.bf16.mxu0 %v1490
  %1928 = vmatpush1.bf16.msra.mxu0 %v1489
  %1929 = vmatprep.subr.bf16.mxu0 %v1496
  %1930 = vmatpush1.bf16.msra.mxu0 %v1495
  %1931 = vmatprep.subr.bf16.mxu0 %v1502
  %1932 = vmatpush1.bf16.msra.mxu0 %v1501
  %1933 = vmatprep.subr.bf16.mxu0 %v1508
  %1934 = vmatpush1.bf16.msra.mxu0 %v1507
  %1935 = vmatprep.subr.bf16.mxu0 %v1514
  %1936 = vmatpush1.bf16.msra.mxu0 %v1513
  %1937 = vmatprep.subr.bf16.mxu0 %v1520
  %1938 = vmatpush1.bf16.msra.mxu0 %v1519
  %1939 = vmatprep.subr.bf16.mxu0 %v1526
  %1940 = vmatpush1.bf16.msra.mxu0 %v1525
  %1941 = vmatprep.subr.bf16.mxu0 %v1532
  %1942 = vmatpush1.bf16.msra.mxu0 %v1531
  %1943 = vmatprep.subr.bf16.mxu0 %v1538
  %1944 = vmatpush1.bf16.msra.mxu0 %v1537
  %1945 = vmatprep.mubr.bf16.mxu0 %v70
  %1946 = vmatmul.mubr.bf16.gmra.mrb[0].mxu0 %v69
  %v1947 = vpop.f32.mrb[0].mxu0
  %v1948 = vadd.f32 %v1907, %v1947
  %v1949 = vpop.f32.mrb[0].mxu0
  %v1950 = vadd.f32 %v1909, %v1949
  %v1951 = vpop.f32.mrb[0].mxu0
  %v1952 = vpop.f32.mrb[0].mxu0
  %1953 = vdwg.mxu0
  %1954 = vmatprep.subr.bf16.mxu0 %v1258
  %1955 = vmatpush1.bf16.msra.mxu0 %v1257
  %1956 = vmatprep.subr.bf16.mxu0 %v1264
  %1957 = vmatpush1.bf16.msra.mxu0 %v1263
  %1958 = vmatprep.subr.bf16.mxu0 %v1270
  %1959 = vmatpush1.bf16.msra.mxu0 %v1269
  %1960 = vmatprep.subr.bf16.mxu0 %v1276
  %1961 = vmatpush1.bf16.msra.mxu0 %v1275
  %1962 = vmatprep.subr.bf16.mxu0 %v1282
  %1963 = vmatpush1.bf16.msra.mxu0 %v1281
  %1964 = vmatprep.subr.bf16.mxu0 %v1288
  %1965 = vmatpush1.bf16.msra.mxu0 %v1287
  %1966 = vmatprep.subr.bf16.mxu0 %v1294
  %1967 = vmatpush1.bf16.msra.mxu0 %v1293
  %1968 = vmatprep.subr.bf16.mxu0 %v1300
  %1969 = vmatpush1.bf16.msra.mxu0 %v1299
  %1970 = vmatprep.subr.bf16.mxu0 %v1306
  %1971 = vmatpush1.bf16.msra.mxu0 %v1305
  %1972 = vmatprep.subr.bf16.mxu0 %v1312
  %1973 = vmatpush1.bf16.msra.mxu0 %v1311
  %1974 = vmatprep.subr.bf16.mxu0 %v1318
  %1975 = vmatpush1.bf16.msra.mxu0 %v1317
  %1976 = vmatprep.subr.bf16.mxu0 %v1324
  %1977 = vmatpush1.bf16.msra.mxu0 %v1323
  %1978 = vmatprep.subr.bf16.mxu0 %v1330
  %1979 = vmatpush1.bf16.msra.mxu0 %v1329
  %1980 = vmatprep.subr.bf16.mxu0 %v1336
  %1981 = vmatpush1.bf16.msra.mxu0 %v1335
  %1982 = vmatprep.subr.bf16.mxu0 %v1342
  %1983 = vmatpush1.bf16.msra.mxu0 %v1341
  %1984 = vmatprep.subr.bf16.mxu0 %v1348
  %1985 = vmatpush1.bf16.msra.mxu0 %v1347
  %1986 = vmatprep.mubr.bf16.mxu0 %v66
  %1987 = vmatmul.mubr.bf16.gmra.mrb[0].mxu0 %v65
  %v1988 = vpop.f32.mrb[0].mxu0
  %v1989 = vadd.f32 %v372, %v1988
  %v1990 = vpop.f32.mrb[0].mxu0
  %v1991 = vadd.f32 %v376, %v1990
  %v1992 = vpop.f32.mrb[0].mxu0
  %v1993 = vpop.f32.mrb[0].mxu0
  %1994 = vdwg.mxu0
  %1995 = vmatprep.subr.bf16.mxu0 %v1354
  %1996 = vmatpush1.bf16.msra.mxu0 %v1353
  %1997 = vmatprep.subr.bf16.mxu0 %v1360
  %1998 = vmatpush1.bf16.msra.mxu0 %v1359
  %1999 = vmatprep.subr.bf16.mxu0 %v1366
  %2000 = vmatpush1.bf16.msra.mxu0 %v1365
  %2001 = vmatprep.subr.bf16.mxu0 %v1372
  %2002 = vmatpush1.bf16.msra.mxu0 %v1371
  %2003 = vmatprep.subr.bf16.mxu0 %v1378
  %2004 = vmatpush1.bf16.msra.mxu0 %v1377
  %2005 = vmatprep.subr.bf16.mxu0 %v1384
  %2006 = vmatpush1.bf16.msra.mxu0 %v1383
  %2007 = vmatprep.subr.bf16.mxu0 %v1390
  %2008 = vmatpush1.bf16.msra.mxu0 %v1389
  %2009 = vmatprep.subr.bf16.mxu0 %v1396
  %2010 = vmatpush1.bf16.msra.mxu0 %v1395
  %2011 = vmatprep.subr.bf16.mxu0 %v1402
  %2012 = vmatpush1.bf16.msra.mxu0 %v1401
  %2013 = vmatprep.subr.bf16.mxu0 %v1408
  %2014 = vmatpush1.bf16.msra.mxu0 %v1407
  %2015 = vmatprep.subr.bf16.mxu0 %v1414
  %2016 = vmatpush1.bf16.msra.mxu0 %v1413
  %2017 = vmatprep.subr.bf16.mxu0 %v1420
  %2018 = vmatpush1.bf16.msra.mxu0 %v1419
  %2019 = vmatprep.subr.bf16.mxu0 %v1426
  %2020 = vmatpush1.bf16.msra.mxu0 %v1425
  %2021 = vmatprep.subr.bf16.mxu0 %v1432
  %2022 = vmatpush1.bf16.msra.mxu0 %v1431
  %2023 = vmatprep.subr.bf16.mxu0 %v1438
  %2024 = vmatpush1.bf16.msra.mxu0 %v1437
  %2025 = vmatprep.subr.bf16.mxu0 %v1444
  %2026 = vmatpush1.bf16.msra.mxu0 %v1443
  %2027 = vmatprep.mubr.bf16.mxu0 %v68
  %2028 = vmatmul.mubr.bf16.gmra.mrb[0].mxu0 %v67
  %v2029 = vpop.f32.mrb[0].mxu0
  %v2030 = vadd.f32 %v1989, %v2029
  %v2031 = vpop.f32.mrb[0].mxu0
  %v2032 = vadd.f32 %v1991, %v2031
  %v2033 = vpop.f32.mrb[0].mxu0
  %v2034 = vpop.f32.mrb[0].mxu0
  %2035 = vdwg.mxu0
  %2036 = vmatprep.subr.bf16.mxu0 %v1450
  %2037 = vmatpush1.bf16.msra.mxu0 %v1449
  %2038 = vmatprep.subr.bf16.mxu0 %v1456
  %2039 = vmatpush1.bf16.msra.mxu0 %v1455
  %2040 = vmatprep.subr.bf16.mxu0 %v1462
  %2041 = vmatpush1.bf16.msra.mxu0 %v1461
  %2042 = vmatprep.subr.bf16.mxu0 %v1468
  %2043 = vmatpush1.bf16.msra.mxu0 %v1467
  %2044 = vmatprep.subr.bf16.mxu0 %v1474
  %2045 = vmatpush1.bf16.msra.mxu0 %v1473
  %2046 = vmatprep.subr.bf16.mxu0 %v1480
  %2047 = vmatpush1.bf16.msra.mxu0 %v1479
  %2048 = vmatprep.subr.bf16.mxu0 %v1486
  %2049 = vmatpush1.bf16.msra.mxu0 %v1485
  %2050 = vmatprep.subr.bf16.mxu0 %v1492
  %2051 = vmatpush1.bf16.msra.mxu0 %v1491
  %2052 = vmatprep.subr.bf16.mxu0 %v1498
  %2053 = vmatpush1.bf16.msra.mxu0 %v1497
  %2054 = vmatprep.subr.bf16.mxu0 %v1504
  %2055 = vmatpush1.bf16.msra.mxu0 %v1503
  %2056 = vmatprep.subr.bf16.mxu0 %v1510
  %2057 = vmatpush1.bf16.msra.mxu0 %v1509
  %2058 = vmatprep.subr.bf16.mxu0 %v1516
  %2059 = vmatpush1.bf16.msra.mxu0 %v1515
  %2060 = vmatprep.subr.bf16.mxu0 %v1522
  %2061 = vmatpush1.bf16.msra.mxu0 %v1521
  %2062 = vmatprep.subr.bf16.mxu0 %v1528
  %2063 = vmatpush1.bf16.msra.mxu0 %v1527
  %2064 = vmatprep.subr.bf16.mxu0 %v1534
  %2065 = vmatpush1.bf16.msra.mxu0 %v1533
  %2066 = vmatprep.subr.bf16.mxu0 %v1540
  %2067 = vmatpush1.bf16.msra.mxu0 %v1539
  %2068 = vmatprep.mubr.bf16.mxu0 %v70
  %2069 = vmatmul.mubr.bf16.gmra.mrb[0].mxu0 %v69
  %v2070 = vpop.f32.mrb[0].mxu0
  %v2071 = vadd.f32 %v2030, %v2070
  %v2072 = vpop.f32.mrb[0].mxu0
  %v2073 = vadd.f32 %v2032, %v2072
  %v2074 = vpop.f32.mrb[0].mxu0
  %v2075 = vpop.f32.mrb[0].mxu0
  %2076 = vdwg.mxu0
  %2077 = vmatprep.subr.bf16.mxu0 %v1260
  %2078 = vmatpush1.bf16.msra.mxu0 %v1259
  %2079 = vmatprep.subr.bf16.mxu0 %v1266
  %2080 = vmatpush1.bf16.msra.mxu0 %v1265
  %2081 = vmatprep.subr.bf16.mxu0 %v1272
  %2082 = vmatpush1.bf16.msra.mxu0 %v1271
  %2083 = vmatprep.subr.bf16.mxu0 %v1278
  %2084 = vmatpush1.bf16.msra.mxu0 %v1277
  %2085 = vmatprep.subr.bf16.mxu0 %v1284
  %2086 = vmatpush1.bf16.msra.mxu0 %v1283
  %2087 = vmatprep.subr.bf16.mxu0 %v1290
  %2088 = vmatpush1.bf16.msra.mxu0 %v1289
  %2089 = vmatprep.subr.bf16.mxu0 %v1296
  %2090 = vmatpush1.bf16.msra.mxu0 %v1295
  %2091 = vmatprep.subr.bf16.mxu0 %v1302
  %2092 = vmatpush1.bf16.msra.mxu0 %v1301
  %2093 = vmatprep.subr.bf16.mxu0 %v1308
  %2094 = vmatpush1.bf16.msra.mxu0 %v1307
  %2095 = vmatprep.subr.bf16.mxu0 %v1314
  %2096 = vmatpush1.bf16.msra.mxu0 %v1313
  %2097 = vmatprep.subr.bf16.mxu0 %v1320
  %2098 = vmatpush1.bf16.msra.mxu0 %v1319
  %2099 = vmatprep.subr.bf16.mxu0 %v1326
  %2100 = vmatpush1.bf16.msra.mxu0 %v1325
  %2101 = vmatprep.subr.bf16.mxu0 %v1332
  %2102 = vmatpush1.bf16.msra.mxu0 %v1331
  %2103 = vmatprep.subr.bf16.mxu0 %v1338
  %2104 = vmatpush1.bf16.msra.mxu0 %v1337
  %2105 = vmatprep.subr.bf16.mxu0 %v1344
  %2106 = vmatpush1.bf16.msra.mxu0 %v1343
  %2107 = vmatprep.subr.bf16.mxu0 %v1350
  %2108 = vmatpush1.bf16.msra.mxu0 %v1349
  %2109 = vmatprep.mubr.bf16.mxu0 %v66
  %2110 = vmatmul.mubr.bf16.gmra.mrb[0].mxu0 %v65
  %v2111 = vpop.f32.mrb[0].mxu0
  %v2112 = vadd.f32 %v380, %v2111
  %v2113 = vpop.f32.mrb[0].mxu0
  %v2114 = vadd.f32 %v384, %v2113
  %v2115 = vpop.f32.mrb[0].mxu0
  %v2116 = vpop.f32.mrb[0].mxu0
  %2117 = vdwg.mxu0
  %2118 = vmatprep.subr.bf16.mxu0 %v1356
  %2119 = vmatpush1.bf16.msra.mxu0 %v1355
  %2120 = vmatprep.subr.bf16.mxu0 %v1362
  %2121 = vmatpush1.bf16.msra.mxu0 %v1361
  %2122 = vmatprep.subr.bf16.mxu0 %v1368
  %2123 = vmatpush1.bf16.msra.mxu0 %v1367
  %2124 = vmatprep.subr.bf16.mxu0 %v1374
  %2125 = vmatpush1.bf16.msra.mxu0 %v1373
  %2126 = vmatprep.subr.bf16.mxu0 %v1380
  %2127 = vmatpush1.bf16.msra.mxu0 %v1379
  %2128 = vmatprep.subr.bf16.mxu0 %v1386
  %2129 = vmatpush1.bf16.msra.mxu0 %v1385
  %2130 = vmatprep.subr.bf16.mxu0 %v1392
  %2131 = vmatpush1.bf16.msra.mxu0 %v1391
  %2132 = vmatprep.subr.bf16.mxu0 %v1398
  %2133 = vmatpush1.bf16.msra.mxu0 %v1397
  %2134 = vmatprep.subr.bf16.mxu0 %v1404
  %2135 = vmatpush1.bf16.msra.mxu0 %v1403
  %2136 = vmatprep.subr.bf16.mxu0 %v1410
  %2137 = vmatpush1.bf16.msra.mxu0 %v1409
  %2138 = vmatprep.subr.bf16.mxu0 %v1416
  %2139 = vmatpush1.bf16.msra.mxu0 %v1415
  %2140 = vmatprep.subr.bf16.mxu0 %v1422
  %2141 = vmatpush1.bf16.msra.mxu0 %v1421
  %2142 = vmatprep.subr.bf16.mxu0 %v1428
  %2143 = vmatpush1.bf16.msra.mxu0 %v1427
  %2144 = vmatprep.subr.bf16.mxu0 %v1434
  %2145 = vmatpush1.bf16.msra.mxu0 %v1433
  %2146 = vmatprep.subr.bf16.mxu0 %v1440
  %2147 = vmatpush1.bf16.msra.mxu0 %v1439
  %2148 = vmatprep.subr.bf16.mxu0 %v1446
  %2149 = vmatpush1.bf16.msra.mxu0 %v1445
  %2150 = vmatprep.mubr.bf16.mxu0 %v68
  %2151 = vmatmul.mubr.bf16.gmra.mrb[0].mxu0 %v67
  %v2152 = vpop.f32.mrb[0].mxu0
  %v2153 = vadd.f32 %v2112, %v2152
  %v2154 = vpop.f32.mrb[0].mxu0
  %v2155 = vadd.f32 %v2114, %v2154
  %v2156 = vpop.f32.mrb[0].mxu0
  %v2157 = vpop.f32.mrb[0].mxu0
  %2158 = vdwg.mxu0
  %2159 = vmatprep.subr.bf16.mxu0 %v1452
  %2160 = vmatpush1.bf16.msra.mxu0 %v1451
  %2161 = vmatprep.subr.bf16.mxu0 %v1458
  %2162 = vmatpush1.bf16.msra.mxu0 %v1457
  %2163 = vmatprep.subr.bf16.mxu0 %v1464
  %2164 = vmatpush1.bf16.msra.mxu0 %v1463
  %2165 = vmatprep.subr.bf16.mxu0 %v1470
  %2166 = vmatpush1.bf16.msra.mxu0 %v1469
  %2167 = vmatprep.subr.bf16.mxu0 %v1476
  %2168 = vmatpush1.bf16.msra.mxu0 %v1475
  %2169 = vmatprep.subr.bf16.mxu0 %v1482
  %2170 = vmatpush1.bf16.msra.mxu0 %v1481
  %2171 = vmatprep.subr.bf16.mxu0 %v1488
  %2172 = vmatpush1.bf16.msra.mxu0 %v1487
  %2173 = vmatprep.subr.bf16.mxu0 %v1494
  %2174 = vmatpush1.bf16.msra.mxu0 %v1493
  %2175 = vmatprep.subr.bf16.mxu0 %v1500
  %2176 = vmatpush1.bf16.msra.mxu0 %v1499
  %2177 = vmatprep.subr.bf16.mxu0 %v1506
  %2178 = vmatpush1.bf16.msra.mxu0 %v1505
  %2179 = vmatprep.subr.bf16.mxu0 %v1512
  %2180 = vmatpush1.bf16.msra.mxu0 %v1511
  %2181 = vmatprep.subr.bf16.mxu0 %v1518
  %2182 = vmatpush1.bf16.msra.mxu0 %v1517
  %2183 = vmatprep.subr.bf16.mxu0 %v1524
  %2184 = vmatpush1.bf16.msra.mxu0 %v1523
  %2185 = vmatprep.subr.bf16.mxu0 %v1530
  %2186 = vmatpush1.bf16.msra.mxu0 %v1529
  %2187 = vmatprep.subr.bf16.mxu0 %v1536
  %2188 = vmatpush1.bf16.msra.mxu0 %v1535
  %2189 = vmatprep.subr.bf16.mxu0 %v1542
  %2190 = vmatpush1.bf16.msra.mxu0 %v1541
  %2191 = vmatprep.mubr.bf16.mxu0 %v70
  %2192 = vmatmul.mubr.bf16.gmra.mrb[0].mxu0 %v69
  %v2193 = vpop.f32.mrb[0].mxu0
  %v2194 = vadd.f32 %v2153, %v2193
  %v2195 = vpop.f32.mrb[0].mxu0
  %v2196 = vadd.f32 %v2155, %v2195
  %v2197 = vpop.f32.mrb[0].mxu0
  %v2198 = vpop.f32.mrb[0].mxu0
  %2199 = vdwg.mxu0
  %v2200 = vmax.f32 %v1948, 0.0
  %v2201 = vmax.f32 %v1950, 0.0
  %v2202 = vmax.f32 %v2071, 0.0
  %v2203 = vmax.f32 %v2073, 0.0
  %v2204 = vmax.f32 %v2194, 0.0
  %v2205 = vmax.f32 %v2196, 0.0
  %v2206 = vpack.c.bf16 %v2200, %v2200
  %v2207 = vpack.c.bf16 %v2201, %v2201
  %v2208 = vpack.c.bf16 %v2202, %v2202
  %v2209 = vpack.c.bf16 %v2203, %v2203
  %v2210 = vpack.c.bf16 %v2204, %v2204
  %v2211 = vpack.c.bf16 %v2205, %v2205
  %v2212 = vld [vmem:[%s4] sm:$0xff]
  %v2213 = vld [vmem:[%s4 + $0x8] sm:$0xf]
  %v2214 = vld [vmem:[%s4 + $0xc] sm:$0xff]
  %v2215 = vld [vmem:[%s4 + $0x14] sm:$0xf]
  %v2216 = vld [vmem:[%s4 + $0x18] sm:$0xff]
  %v2217 = vld [vmem:[%s4 + $0x20] sm:$0xf]
  %v2218 = vld [vmem:[%s4 + $0x24] sm:$0xff]
  %v2219 = vld [vmem:[%s4 + $0x2c] sm:$0xf]
  %v2220 = vld [vmem:[%s4 + $0x30] sm:$0xff]
  %v2221 = vld [vmem:[%s4 + $0x38] sm:$0xf]
  %v2222 = vld [vmem:[%s4 + $0x3c] sm:$0xff]
  %v2223 = vld [vmem:[%s4 + $0x44] sm:$0xf]
  %v2224 = vld [vmem:[%s4 + $0x48] sm:$0xff]
  %v2225 = vld [vmem:[%s4 + $0x50] sm:$0xf]
  %v2226 = vld [vmem:[%s4 + $0x54] sm:$0xff]
  %v2227 = vld [vmem:[%s4 + $0x5c] sm:$0xf]
  %v2228 = vld [vmem:[%s4 + $0x60] sm:$0xff]
  %v2229 = vld [vmem:[%s4 + $0x68] sm:$0xf]
  %v2230 = vld [vmem:[%s4 + $0x6c] sm:$0xff]
  %v2231 = vld [vmem:[%s4 + $0x74] sm:$0xf]
  %v2232 = vld [vmem:[%s4 + $0x78] sm:$0xff]
  %v2233 = vld [vmem:[%s4 + $0x80] sm:$0xf]
  %v2234 = vld [vmem:[%s4 + $0x84] sm:$0xff]
  %v2235 = vld [vmem:[%s4 + $0x8c] sm:$0xf]
  %v2236 = vld [vmem:[%s4 + $0x90] sm:$0xff]
  %v2237 = vld [vmem:[%s4 + $0x98] sm:$0xf]
  %v2238 = vld [vmem:[%s4 + $0x9c] sm:$0xff]
  %v2239 = vld [vmem:[%s4 + $0xa4] sm:$0xf]
  %v2240 = vld [vmem:[%s4 + $0xa8] sm:$0xff]
  %v2241 = vld [vmem:[%s4 + $0xb0] sm:$0xf]
  %v2242 = vld [vmem:[%s4 + $0xb4] sm:$0xff]
  %v2243 = vld [vmem:[%s4 + $0xbc] sm:$0xf]
  %v2244 = vld [vmem:[%s4 + $0xc0] sm:$0xff]
  %v2245 = vld [vmem:[%s4 + $0xc8] sm:$0xf]
  %v2246 = vld [vmem:[%s4 + $0xcc] sm:$0xff]
  %v2247 = vld [vmem:[%s4 + $0xd4] sm:$0xf]
  %v2248 = vld [vmem:[%s4 + $0xd8] sm:$0xff]
  %v2249 = vld [vmem:[%s4 + $0xe0] sm:$0xf]
  %v2250 = vld [vmem:[%s4 + $0xe4] sm:$0xff]
  %v2251 = vld [vmem:[%s4 + $0xec] sm:$0xf]
  %v2252 = vld [vmem:[%s4 + $0xf0] sm:$0xff]
  %v2253 = vld [vmem:[%s4 + $0xf8] sm:$0xf]
  %v2254 = vld [vmem:[%s4 + $0xfc] sm:$0xff]
  %v2255 = vld [vmem:[%s4 + $0x104] sm:$0xf]
  %v2256 = vld [vmem:[%s4 + $0x108] sm:$0xff]
  %v2257 = vld [vmem:[%s4 + $0x110] sm:$0xf]
  %v2258 = vld [vmem:[%s4 + $0x114] sm:$0xff]
  %v2259 = vld [vmem:[%s4 + $0x11c] sm:$0xf]
  %v2260 = vld [vmem:[%s4 + $0x120] sm:$0xff]
  %v2261 = vld [vmem:[%s4 + $0x128] sm:$0xf]
  %v2262 = vld [vmem:[%s4 + $0x12c] sm:$0xff]
  %v2263 = vld [vmem:[%s4 + $0x134] sm:$0xf]
  %v2264 = vld [vmem:[%s4 + $0x138] sm:$0xff]
  %v2265 = vld [vmem:[%s4 + $0x140] sm:$0xf]
  %v2266 = vld [vmem:[%s4 + $0x144] sm:$0xff]
  %v2267 = vld [vmem:[%s4 + $0x14c] sm:$0xf]
  %v2268 = vld [vmem:[%s4 + $0x150] sm:$0xff]
  %v2269 = vld [vmem:[%s4 + $0x158] sm:$0xf]
  %v2270 = vld [vmem:[%s4 + $0x15c] sm:$0xff]
  %v2271 = vld [vmem:[%s4 + $0x164] sm:$0xf]
  %v2272 = vld [vmem:[%s4 + $0x168] sm:$0xff]
  %v2273 = vld [vmem:[%s4 + $0x170] sm:$0xf]
  %v2274 = vld [vmem:[%s4 + $0x174] sm:$0xff]
  %v2275 = vld [vmem:[%s4 + $0x17c] sm:$0xf]
  %v2276 = vld [vmem:[%s4 + $0x180] sm:$0xff]
  %v2277 = vld [vmem:[%s4 + $0x188] sm:$0xf]
  %v2278 = vld [vmem:[%s4 + $0x18c] sm:$0xff]
  %v2279 = vld [vmem:[%s4 + $0x194] sm:$0xf]
  %v2280 = vld [vmem:[%s4 + $0x198] sm:$0xff]
  %v2281 = vld [vmem:[%s4 + $0x1a0] sm:$0xf]
  %v2282 = vld [vmem:[%s4 + $0x1a4] sm:$0xff]
  %v2283 = vld [vmem:[%s4 + $0x1ac] sm:$0xf]
  %v2284 = vld [vmem:[%s4 + $0x1b0] sm:$0xff]
  %v2285 = vld [vmem:[%s4 + $0x1b8] sm:$0xf]
  %v2286 = vld [vmem:[%s4 + $0x1bc] sm:$0xff]
  %v2287 = vld [vmem:[%s4 + $0x1c4] sm:$0xf]
  %v2288 = vld [vmem:[%s4 + $0x1c8] sm:$0xff]
  %v2289 = vld [vmem:[%s4 + $0x1d0] sm:$0xf]
  %v2290 = vld [vmem:[%s4 + $0x1d4] sm:$0xff]
  %v2291 = vld [vmem:[%s4 + $0x1dc] sm:$0xf]
  %v2292 = vld [vmem:[%s4 + $0x1e0] sm:$0xff]
  %v2293 = vld [vmem:[%s4 + $0x1e8] sm:$0xf]
  %v2294 = vld [vmem:[%s4 + $0x1ec] sm:$0xff]
  %v2295 = vld [vmem:[%s4 + $0x1f4] sm:$0xf]
  %v2296 = vld [vmem:[%s4 + $0x1f8] sm:$0xff]
  %v2297 = vld [vmem:[%s4 + $0x200] sm:$0xf]
  %v2298 = vld [vmem:[%s4 + $0x204] sm:$0xff]
  %v2299 = vld [vmem:[%s4 + $0x20c] sm:$0xf]
  %v2300 = vld [vmem:[%s4 + $0x210] sm:$0xff]
  %v2301 = vld [vmem:[%s4 + $0x218] sm:$0xf]
  %v2302 = vld [vmem:[%s4 + $0x21c] sm:$0xff]
  %v2303 = vld [vmem:[%s4 + $0x224] sm:$0xf]
  %v2304 = vld [vmem:[%s4 + $0x228] sm:$0xff]
  %v2305 = vld [vmem:[%s4 + $0x230] sm:$0xf]
  %v2306 = vld [vmem:[%s4 + $0x234] sm:$0xff]
  %v2307 = vld [vmem:[%s4 + $0x23c] sm:$0xf]
  %v2308 = vld [vmem:[%s4 + $0x240] sm:$0xff]
  %v2309 = vld [vmem:[%s4 + $0x248] sm:$0xf]
  %v2310 = vld [vmem:[%s4 + $0x24c] sm:$0xff]
  %v2311 = vld [vmem:[%s4 + $0x254] sm:$0xf]
  %v2312 = vld [vmem:[%s4 + $0x258] sm:$0xff]
  %v2313 = vld [vmem:[%s4 + $0x260] sm:$0xf]
  %v2314 = vld [vmem:[%s4 + $0x264] sm:$0xff]
  %v2315 = vld [vmem:[%s4 + $0x26c] sm:$0xf]
  %v2316 = vld [vmem:[%s4 + $0x270] sm:$0xff]
  %v2317 = vld [vmem:[%s4 + $0x278] sm:$0xf]
  %v2318 = vld [vmem:[%s4 + $0x27c] sm:$0xff]
  %v2319 = vld [vmem:[%s4 + $0x284] sm:$0xf]
  %v2320 = vld [vmem:[%s4 + $0x288] sm:$0xff]
  %v2321 = vld [vmem:[%s4 + $0x290] sm:$0xf]
  %v2322 = vld [vmem:[%s4 + $0x294] sm:$0xff]
  %v2323 = vld [vmem:[%s4 + $0x29c] sm:$0xf]
  %v2324 = vld [vmem:[%s4 + $0x2a0] sm:$0xff]
  %v2325 = vld [vmem:[%s4 + $0x2a8] sm:$0xf]
  %v2326 = vld [vmem:[%s4 + $0x2ac] sm:$0xff]
  %v2327 = vld [vmem:[%s4 + $0x2b4] sm:$0xf]
  %v2328 = vld [vmem:[%s4 + $0x2b8] sm:$0xff]
  %v2329 = vld [vmem:[%s4 + $0x2c0] sm:$0xf]
  %v2330 = vld [vmem:[%s4 + $0x2c4] sm:$0xff]
  %v2331 = vld [vmem:[%s4 + $0x2cc] sm:$0xf]
  %v2332 = vld [vmem:[%s4 + $0x2d0] sm:$0xff]
  %v2333 = vld [vmem:[%s4 + $0x2d8] sm:$0xf]
  %v2334 = vld [vmem:[%s4 + $0x2dc] sm:$0xff]
  %v2335 = vld [vmem:[%s4 + $0x2e4] sm:$0xf]
  %v2336 = vld [vmem:[%s4 + $0x2e8] sm:$0xff]
  %v2337 = vld [vmem:[%s4 + $0x2f0] sm:$0xf]
  %v2338 = vld [vmem:[%s4 + $0x2f4] sm:$0xff]
  %v2339 = vld [vmem:[%s4 + $0x2fc] sm:$0xf]
  %v2340 = vld [vmem:[%s4 + $0x300] sm:$0xff]
  %v2341 = vld [vmem:[%s4 + $0x308] sm:$0xf]
  %v2342 = vld [vmem:[%s4 + $0x30c] sm:$0xff]
  %v2343 = vld [vmem:[%s4 + $0x314] sm:$0xf]
  %v2344 = vld [vmem:[%s4 + $0x318] sm:$0xff]
  %v2345 = vld [vmem:[%s4 + $0x320] sm:$0xf]
  %v2346 = vld [vmem:[%s4 + $0x324] sm:$0xff]
  %v2347 = vld [vmem:[%s4 + $0x32c] sm:$0xf]
  %v2348 = vld [vmem:[%s4 + $0x330] sm:$0xff]
  %v2349 = vld [vmem:[%s4 + $0x338] sm:$0xf]
  %v2350 = vld [vmem:[%s4 + $0x33c] sm:$0xff]
  %v2351 = vld [vmem:[%s4 + $0x344] sm:$0xf]
  %v2352 = vld [vmem:[%s4 + $0x348] sm:$0xff]
  %v2353 = vld [vmem:[%s4 + $0x350] sm:$0xf]
  %v2354 = vld [vmem:[%s4 + $0x354] sm:$0xff]
  %v2355 = vld [vmem:[%s4 + $0x35c] sm:$0xf]
  %v2356 = vld [vmem:[%s4 + $0x360] sm:$0xff]
  %v2357 = vld [vmem:[%s4 + $0x368] sm:$0xf]
  %v2358 = vld [vmem:[%s4 + $0x36c] sm:$0xff]
  %v2359 = vld [vmem:[%s4 + $0x374] sm:$0xf]
  %v2360 = vld [vmem:[%s4 + $0x378] sm:$0xff]
  %v2361 = vld [vmem:[%s4 + $0x380] sm:$0xf]
  %v2362 = vld [vmem:[%s4 + $0x384] sm:$0xff]
  %v2363 = vld [vmem:[%s4 + $0x38c] sm:$0xf]
  %v2364 = vld [vmem:[%s4 + $0x390] sm:$0xff]
  %v2365 = vld [vmem:[%s4 + $0x398] sm:$0xf]
  %v2366 = vld [vmem:[%s4 + $0x39c] sm:$0xff]
  %v2367 = vld [vmem:[%s4 + $0x3a4] sm:$0xf]
  %v2368 = vld [vmem:[%s4 + $0x3a8] sm:$0xff]
  %v2369 = vld [vmem:[%s4 + $0x3b0] sm:$0xf]
  %v2370 = vld [vmem:[%s4 + $0x3b4] sm:$0xff]
  %v2371 = vld [vmem:[%s4 + $0x3bc] sm:$0xf]
  %v2372 = vld [vmem:[%s4 + $0x3c0] sm:$0xff]
  %v2373 = vld [vmem:[%s4 + $0x3c8] sm:$0xf]
  %v2374 = vld [vmem:[%s4 + $0x3cc] sm:$0xff]
  %v2375 = vld [vmem:[%s4 + $0x3d4] sm:$0xf]
  %v2376 = vld [vmem:[%s4 + $0x3d8] sm:$0xff]
  %v2377 = vld [vmem:[%s4 + $0x3e0] sm:$0xf]
  %v2378 = vld [vmem:[%s4 + $0x3e4] sm:$0xff]
  %v2379 = vld [vmem:[%s4 + $0x3ec] sm:$0xf]
  %v2380 = vld [vmem:[%s4 + $0x3f0] sm:$0xff]
  %v2381 = vld [vmem:[%s4 + $0x3f8] sm:$0xf]
  %v2382 = vld [vmem:[%s4 + $0x3fc] sm:$0xff]
  %v2383 = vld [vmem:[%s4 + $0x404] sm:$0xf]
  %v2384 = vld [vmem:[%s4 + $0x408] sm:$0xff]
  %v2385 = vld [vmem:[%s4 + $0x410] sm:$0xf]
  %v2386 = vld [vmem:[%s4 + $0x414] sm:$0xff]
  %v2387 = vld [vmem:[%s4 + $0x41c] sm:$0xf]
  %v2388 = vld [vmem:[%s4 + $0x420] sm:$0xff]
  %v2389 = vld [vmem:[%s4 + $0x428] sm:$0xf]
  %v2390 = vld [vmem:[%s4 + $0x42c] sm:$0xff]
  %v2391 = vld [vmem:[%s4 + $0x434] sm:$0xf]
  %v2392 = vld [vmem:[%s4 + $0x438] sm:$0xff]
  %v2393 = vld [vmem:[%s4 + $0x440] sm:$0xf]
  %v2394 = vld [vmem:[%s4 + $0x444] sm:$0xff]
  %v2395 = vld [vmem:[%s4 + $0x44c] sm:$0xf]
  %v2396 = vld [vmem:[%s4 + $0x450] sm:$0xff]
  %v2397 = vld [vmem:[%s4 + $0x458] sm:$0xf]
  %v2398 = vld [vmem:[%s4 + $0x45c] sm:$0xff]
  %v2399 = vld [vmem:[%s4 + $0x464] sm:$0xf]
  %v2400 = vld [vmem:[%s4 + $0x468] sm:$0xff]
  %v2401 = vld [vmem:[%s4 + $0x470] sm:$0xf]
  %v2402 = vld [vmem:[%s4 + $0x474] sm:$0xff]
  %v2403 = vld [vmem:[%s4 + $0x47c] sm:$0xf]
  %v2404 = vld [vmem:[%s5] sm:$0x7]
  %v2406 = vlaneseq
  %v2407 = vshrl.u32 %v2406, 7
  %v2408 = vsub.s32 0, %v2407
  %v2409 = vrot.slane %v2404, %v2408
  %v2410 = vlaneseq
  %v2411 = vshrl.u32 %v2410, 7
  %v2412 = vsub.s32 1, %v2411
  %v2413 = vrot.slane %v2404, %v2412
  %v2414 = vlaneseq
  %v2415 = vshrl.u32 %v2414, 7
  %v2416 = vsub.s32 2, %v2415
  %v2417 = vrot.slane %v2404, %v2416
  %v2613 = vunpack.c.l.b16 %v2212
  %v2614 = vunpack.c.h.b16 %v2212
  %v2615 = vunpack.c.l.b16 %v2213
  %v2616 = vunpack.c.l.b16 %v2214
  %v2617 = vunpack.c.h.b16 %v2214
  %v2618 = vunpack.c.l.b16 %v2215
  %v2619 = vunpack.c.l.b16 %v2216
  %v2620 = vunpack.c.h.b16 %v2216
  %v2621 = vunpack.c.l.b16 %v2217
  %v2622 = vunpack.c.l.b16 %v2218
  %v2623 = vunpack.c.h.b16 %v2218
  %v2624 = vunpack.c.l.b16 %v2219
  %v2625 = vunpack.c.l.b16 %v2220
  %v2626 = vunpack.c.h.b16 %v2220
  %v2627 = vunpack.c.l.b16 %v2221
  %v2628 = vunpack.c.l.b16 %v2222
  %v2629 = vunpack.c.h.b16 %v2222
  %v2630 = vunpack.c.l.b16 %v2223
  %v2631 = vunpack.c.l.b16 %v2224
  %v2632 = vunpack.c.h.b16 %v2224
  %v2633 = vunpack.c.l.b16 %v2225
  %v2634 = vunpack.c.l.b16 %v2226
  %v2635 = vunpack.c.h.b16 %v2226
  %v2636 = vunpack.c.l.b16 %v2227
  %v2637 = vunpack.c.l.b16 %v2228
  %v2638 = vunpack.c.h.b16 %v2228
  %v2639 = vunpack.c.l.b16 %v2229
  %v2640 = vunpack.c.l.b16 %v2230
  %v2641 = vunpack.c.h.b16 %v2230
  %v2642 = vunpack.c.l.b16 %v2231
  %v2643 = vunpack.c.l.b16 %v2232
  %v2644 = vunpack.c.h.b16 %v2232
  %v2645 = vunpack.c.l.b16 %v2233
  %v2646 = vunpack.c.l.b16 %v2234
  %v2647 = vunpack.c.h.b16 %v2234
  %v2648 = vunpack.c.l.b16 %v2235
  %v2649 = vunpack.c.l.b16 %v2236
  %v2650 = vunpack.c.h.b16 %v2236
  %v2651 = vunpack.c.l.b16 %v2237
  %v2652 = vunpack.c.l.b16 %v2238
  %v2653 = vunpack.c.h.b16 %v2238
  %v2654 = vunpack.c.l.b16 %v2239
  %v2655 = vunpack.c.l.b16 %v2240
  %v2656 = vunpack.c.h.b16 %v2240
  %v2657 = vunpack.c.l.b16 %v2241
  %v2658 = vunpack.c.l.b16 %v2242
  %v2659 = vunpack.c.h.b16 %v2242
  %v2660 = vunpack.c.l.b16 %v2243
  %v2661 = vunpack.c.l.b16 %v2244
  %v2662 = vunpack.c.h.b16 %v2244
  %v2663 = vunpack.c.l.b16 %v2245
  %v2664 = vunpack.c.l.b16 %v2246
  %v2665 = vunpack.c.h.b16 %v2246
  %v2666 = vunpack.c.l.b16 %v2247
  %v2667 = vunpack.c.l.b16 %v2248
  %v2668 = vunpack.c.h.b16 %v2248
  %v2669 = vunpack.c.l.b16 %v2249
  %v2670 = vunpack.c.l.b16 %v2250
  %v2671 = vunpack.c.h.b16 %v2250
  %v2672 = vunpack.c.l.b16 %v2251
  %v2673 = vunpack.c.l.b16 %v2252
  %v2674 = vunpack.c.h.b16 %v2252
  %v2675 = vunpack.c.l.b16 %v2253
  %v2676 = vunpack.c.l.b16 %v2254
  %v2677 = vunpack.c.h.b16 %v2254
  %v2678 = vunpack.c.l.b16 %v2255
  %v2679 = vunpack.c.l.b16 %v2256
  %v2680 = vunpack.c.h.b16 %v2256
  %v2681 = vunpack.c.l.b16 %v2257
  %v2682 = vunpack.c.l.b16 %v2258
  %v2683 = vunpack.c.h.b16 %v2258
  %v2684 = vunpack.c.l.b16 %v2259
  %v2685 = vunpack.c.l.b16 %v2260
  %v2686 = vunpack.c.h.b16 %v2260
  %v2687 = vunpack.c.l.b16 %v2261
  %v2688 = vunpack.c.l.b16 %v2262
  %v2689 = vunpack.c.h.b16 %v2262
  %v2690 = vunpack.c.l.b16 %v2263
  %v2691 = vunpack.c.l.b16 %v2264
  %v2692 = vunpack.c.h.b16 %v2264
  %v2693 = vunpack.c.l.b16 %v2265
  %v2694 = vunpack.c.l.b16 %v2266
  %v2695 = vunpack.c.h.b16 %v2266
  %v2696 = vunpack.c.l.b16 %v2267
  %v2697 = vunpack.c.l.b16 %v2268
  %v2698 = vunpack.c.h.b16 %v2268
  %v2699 = vunpack.c.l.b16 %v2269
  %v2700 = vunpack.c.l.b16 %v2270
  %v2701 = vunpack.c.h.b16 %v2270
  %v2702 = vunpack.c.l.b16 %v2271
  %v2703 = vunpack.c.l.b16 %v2272
  %v2704 = vunpack.c.h.b16 %v2272
  %v2705 = vunpack.c.l.b16 %v2273
  %v2706 = vunpack.c.l.b16 %v2274
  %v2707 = vunpack.c.h.b16 %v2274
  %v2708 = vunpack.c.l.b16 %v2275
  %v2709 = vunpack.c.l.b16 %v2276
  %v2710 = vunpack.c.h.b16 %v2276
  %v2711 = vunpack.c.l.b16 %v2277
  %v2712 = vunpack.c.l.b16 %v2278
  %v2713 = vunpack.c.h.b16 %v2278
  %v2714 = vunpack.c.l.b16 %v2279
  %v2715 = vunpack.c.l.b16 %v2280
  %v2716 = vunpack.c.h.b16 %v2280
  %v2717 = vunpack.c.l.b16 %v2281
  %v2718 = vunpack.c.l.b16 %v2282
  %v2719 = vunpack.c.h.b16 %v2282
  %v2720 = vunpack.c.l.b16 %v2283
  %v2721 = vunpack.c.l.b16 %v2284
  %v2722 = vunpack.c.h.b16 %v2284
  %v2723 = vunpack.c.l.b16 %v2285
  %v2724 = vunpack.c.l.b16 %v2286
  %v2725 = vunpack.c.h.b16 %v2286
  %v2726 = vunpack.c.l.b16 %v2287
  %v2727 = vunpack.c.l.b16 %v2288
  %v2728 = vunpack.c.h.b16 %v2288
  %v2729 = vunpack.c.l.b16 %v2289
  %v2730 = vunpack.c.l.b16 %v2290
  %v2731 = vunpack.c.h.b16 %v2290
  %v2732 = vunpack.c.l.b16 %v2291
  %v2733 = vunpack.c.l.b16 %v2292
  %v2734 = vunpack.c.h.b16 %v2292
  %v2735 = vunpack.c.l.b16 %v2293
  %v2736 = vunpack.c.l.b16 %v2294
  %v2737 = vunpack.c.h.b16 %v2294
  %v2738 = vunpack.c.l.b16 %v2295
  %v2739 = vunpack.c.l.b16 %v2296
  %v2740 = vunpack.c.h.b16 %v2296
  %v2741 = vunpack.c.l.b16 %v2297
  %v2742 = vunpack.c.l.b16 %v2298
  %v2743 = vunpack.c.h.b16 %v2298
  %v2744 = vunpack.c.l.b16 %v2299
  %v2745 = vunpack.c.l.b16 %v2300
  %v2746 = vunpack.c.h.b16 %v2300
  %v2747 = vunpack.c.l.b16 %v2301
  %v2748 = vunpack.c.l.b16 %v2302
  %v2749 = vunpack.c.h.b16 %v2302
  %v2750 = vunpack.c.l.b16 %v2303
  %v2751 = vunpack.c.l.b16 %v2304
  %v2752 = vunpack.c.h.b16 %v2304
  %v2753 = vunpack.c.l.b16 %v2305
  %v2754 = vunpack.c.l.b16 %v2306
  %v2755 = vunpack.c.h.b16 %v2306
  %v2756 = vunpack.c.l.b16 %v2307
  %v2757 = vunpack.c.l.b16 %v2308
  %v2758 = vunpack.c.h.b16 %v2308
  %v2759 = vunpack.c.l.b16 %v2309
  %v2760 = vunpack.c.l.b16 %v2310
  %v2761 = vunpack.c.h.b16 %v2310
  %v2762 = vunpack.c.l.b16 %v2311
  %v2763 = vunpack.c.l.b16 %v2312
  %v2764 = vunpack.c.h.b16 %v2312
  %v2765 = vunpack.c.l.b16 %v2313
  %v2766 = vunpack.c.l.b16 %v2314
  %v2767 = vunpack.c.h.b16 %v2314
  %v2768 = vunpack.c.l.b16 %v2315
  %v2769 = vunpack.c.l.b16 %v2316
  %v2770 = vunpack.c.h.b16 %v2316
  %v2771 = vunpack.c.l.b16 %v2317
  %v2772 = vunpack.c.l.b16 %v2318
  %v2773 = vunpack.c.h.b16 %v2318
  %v2774 = vunpack.c.l.b16 %v2319
  %v2775 = vunpack.c.l.b16 %v2320
  %v2776 = vunpack.c.h.b16 %v2320
  %v2777 = vunpack.c.l.b16 %v2321
  %v2778 = vunpack.c.l.b16 %v2322
  %v2779 = vunpack.c.h.b16 %v2322
  %v2780 = vunpack.c.l.b16 %v2323
  %v2781 = vunpack.c.l.b16 %v2324
  %v2782 = vunpack.c.h.b16 %v2324
  %v2783 = vunpack.c.l.b16 %v2325
  %v2784 = vunpack.c.l.b16 %v2326
  %v2785 = vunpack.c.h.b16 %v2326
  %v2786 = vunpack.c.l.b16 %v2327
  %v2787 = vunpack.c.l.b16 %v2328
  %v2788 = vunpack.c.h.b16 %v2328
  %v2789 = vunpack.c.l.b16 %v2329
  %v2790 = vunpack.c.l.b16 %v2330
  %v2791 = vunpack.c.h.b16 %v2330
  %v2792 = vunpack.c.l.b16 %v2331
  %v2793 = vunpack.c.l.b16 %v2332
  %v2794 = vunpack.c.h.b16 %v2332
  %v2795 = vunpack.c.l.b16 %v2333
  %v2796 = vunpack.c.l.b16 %v2334
  %v2797 = vunpack.c.h.b16 %v2334
  %v2798 = vunpack.c.l.b16 %v2335
  %v2799 = vunpack.c.l.b16 %v2336
  %v2800 = vunpack.c.h.b16 %v2336
  %v2801 = vunpack.c.l.b16 %v2337
  %v2802 = vunpack.c.l.b16 %v2338
  %v2803 = vunpack.c.h.b16 %v2338
  %v2804 = vunpack.c.l.b16 %v2339
  %v2805 = vunpack.c.l.b16 %v2340
  %v2806 = vunpack.c.h.b16 %v2340
  %v2807 = vunpack.c.l.b16 %v2341
  %v2808 = vunpack.c.l.b16 %v2342
  %v2809 = vunpack.c.h.b16 %v2342
  %v2810 = vunpack.c.l.b16 %v2343
  %v2811 = vunpack.c.l.b16 %v2344
  %v2812 = vunpack.c.h.b16 %v2344
  %v2813 = vunpack.c.l.b16 %v2345
  %v2814 = vunpack.c.l.b16 %v2346
  %v2815 = vunpack.c.h.b16 %v2346
  %v2816 = vunpack.c.l.b16 %v2347
  %v2817 = vunpack.c.l.b16 %v2348
  %v2818 = vunpack.c.h.b16 %v2348
  %v2819 = vunpack.c.l.b16 %v2349
  %v2820 = vunpack.c.l.b16 %v2350
  %v2821 = vunpack.c.h.b16 %v2350
  %v2822 = vunpack.c.l.b16 %v2351
  %v2823 = vunpack.c.l.b16 %v2352
  %v2824 = vunpack.c.h.b16 %v2352
  %v2825 = vunpack.c.l.b16 %v2353
  %v2826 = vunpack.c.l.b16 %v2354
  %v2827 = vunpack.c.h.b16 %v2354
  %v2828 = vunpack.c.l.b16 %v2355
  %v2829 = vunpack.c.l.b16 %v2356
  %v2830 = vunpack.c.h.b16 %v2356
  %v2831 = vunpack.c.l.b16 %v2357
  %v2832 = vunpack.c.l.b16 %v2358
  %v2833 = vunpack.c.h.b16 %v2358
  %v2834 = vunpack.c.l.b16 %v2359
  %v2835 = vunpack.c.l.b16 %v2360
  %v2836 = vunpack.c.h.b16 %v2360
  %v2837 = vunpack.c.l.b16 %v2361
  %v2838 = vunpack.c.l.b16 %v2362
  %v2839 = vunpack.c.h.b16 %v2362
  %v2840 = vunpack.c.l.b16 %v2363
  %v2841 = vunpack.c.l.b16 %v2364
  %v2842 = vunpack.c.h.b16 %v2364
  %v2843 = vunpack.c.l.b16 %v2365
  %v2844 = vunpack.c.l.b16 %v2366
  %v2845 = vunpack.c.h.b16 %v2366
  %v2846 = vunpack.c.l.b16 %v2367
  %v2847 = vunpack.c.l.b16 %v2368
  %v2848 = vunpack.c.h.b16 %v2368
  %v2849 = vunpack.c.l.b16 %v2369
  %v2850 = vunpack.c.l.b16 %v2370
  %v2851 = vunpack.c.h.b16 %v2370
  %v2852 = vunpack.c.l.b16 %v2371
  %v2853 = vunpack.c.l.b16 %v2372
  %v2854 = vunpack.c.h.b16 %v2372
  %v2855 = vunpack.c.l.b16 %v2373
  %v2856 = vunpack.c.l.b16 %v2374
  %v2857 = vunpack.c.h.b16 %v2374
  %v2858 = vunpack.c.l.b16 %v2375
  %v2859 = vunpack.c.l.b16 %v2376
  %v2860 = vunpack.c.h.b16 %v2376
  %v2861 = vunpack.c.l.b16 %v2377
  %v2862 = vunpack.c.l.b16 %v2378
  %v2863 = vunpack.c.h.b16 %v2378
  %v2864 = vunpack.c.l.b16 %v2379
  %v2865 = vunpack.c.l.b16 %v2380
  %v2866 = vunpack.c.h.b16 %v2380
  %v2867 = vunpack.c.l.b16 %v2381
  %v2868 = vunpack.c.l.b16 %v2382
  %v2869 = vunpack.c.h.b16 %v2382
  %v2870 = vunpack.c.l.b16 %v2383
  %v2871 = vunpack.c.l.b16 %v2384
  %v2872 = vunpack.c.h.b16 %v2384
  %v2873 = vunpack.c.l.b16 %v2385
  %v2874 = vunpack.c.l.b16 %v2386
  %v2875 = vunpack.c.h.b16 %v2386
  %v2876 = vunpack.c.l.b16 %v2387
  %v2877 = vunpack.c.l.b16 %v2388
  %v2878 = vunpack.c.h.b16 %v2388
  %v2879 = vunpack.c.l.b16 %v2389
  %v2880 = vunpack.c.l.b16 %v2390
  %v2881 = vunpack.c.h.b16 %v2390
  %v2882 = vunpack.c.l.b16 %v2391
  %v2883 = vunpack.c.l.b16 %v2392
  %v2884 = vunpack.c.h.b16 %v2392
  %v2885 = vunpack.c.l.b16 %v2393
  %v2886 = vunpack.c.l.b16 %v2394
  %v2887 = vunpack.c.h.b16 %v2394
  %v2888 = vunpack.c.l.b16 %v2395
  %v2889 = vunpack.c.l.b16 %v2396
  %v2890 = vunpack.c.h.b16 %v2396
  %v2891 = vunpack.c.l.b16 %v2397
  %v2892 = vunpack.c.l.b16 %v2398
  %v2893 = vunpack.c.h.b16 %v2398
  %v2894 = vunpack.c.l.b16 %v2399
  %v2895 = vunpack.c.l.b16 %v2400
  %v2896 = vunpack.c.h.b16 %v2400
  %v2897 = vunpack.c.l.b16 %v2401
  %v2898 = vunpack.c.l.b16 %v2402
  %v2899 = vunpack.c.h.b16 %v2402
  %v2900 = vunpack.c.l.b16 %v2403
  %v2901 = vpack.c.b16 %v2616, %v2613
  %v2902 = vpack.c.b16 %v2617, %v2614
  %v2903 = vpack.c.b16 %v2618, %v2615
  %v2904 = vpack.c.b16 %v2622, %v2619
  %v2905 = vpack.c.b16 %v2623, %v2620
  %v2906 = vpack.c.b16 %v2624, %v2621
  %v2907 = vpack.c.b16 %v2628, %v2625
  %v2908 = vpack.c.b16 %v2629, %v2626
  %v2909 = vpack.c.b16 %v2630, %v2627
  %v2910 = vpack.c.b16 %v2634, %v2631
  %v2911 = vpack.c.b16 %v2635, %v2632
  %v2912 = vpack.c.b16 %v2636, %v2633
  %v2913 = vpack.c.b16 %v2640, %v2637
  %v2914 = vpack.c.b16 %v2641, %v2638
  %v2915 = vpack.c.b16 %v2642, %v2639
  %v2916 = vpack.c.b16 %v2646, %v2643
  %v2917 = vpack.c.b16 %v2647, %v2644
  %v2918 = vpack.c.b16 %v2648, %v2645
  %v2919 = vpack.c.b16 %v2652, %v2649
  %v2920 = vpack.c.b16 %v2653, %v2650
  %v2921 = vpack.c.b16 %v2654, %v2651
  %v2922 = vpack.c.b16 %v2658, %v2655
  %v2923 = vpack.c.b16 %v2659, %v2656
  %v2924 = vpack.c.b16 %v2660, %v2657
  %v2925 = vpack.c.b16 %v2664, %v2661
  %v2926 = vpack.c.b16 %v2665, %v2662
  %v2927 = vpack.c.b16 %v2666, %v2663
  %v2928 = vpack.c.b16 %v2670, %v2667
  %v2929 = vpack.c.b16 %v2671, %v2668
  %v2930 = vpack.c.b16 %v2672, %v2669
  %v2931 = vpack.c.b16 %v2676, %v2673
  %v2932 = vpack.c.b16 %v2677, %v2674
  %v2933 = vpack.c.b16 %v2678, %v2675
  %v2934 = vpack.c.b16 %v2682, %v2679
  %v2935 = vpack.c.b16 %v2683, %v2680
  %v2936 = vpack.c.b16 %v2684, %v2681
  %v2937 = vpack.c.b16 %v2688, %v2685
  %v2938 = vpack.c.b16 %v2689, %v2686
  %v2939 = vpack.c.b16 %v2690, %v2687
  %v2940 = vpack.c.b16 %v2694, %v2691
  %v2941 = vpack.c.b16 %v2695, %v2692
  %v2942 = vpack.c.b16 %v2696, %v2693
  %v2943 = vpack.c.b16 %v2700, %v2697
  %v2944 = vpack.c.b16 %v2701, %v2698
  %v2945 = vpack.c.b16 %v2702, %v2699
  %v2946 = vpack.c.b16 %v2706, %v2703
  %v2947 = vpack.c.b16 %v2707, %v2704
  %v2948 = vpack.c.b16 %v2708, %v2705
  %v2949 = vpack.c.b16 %v2712, %v2709
  %v2950 = vpack.c.b16 %v2713, %v2710
  %v2951 = vpack.c.b16 %v2714, %v2711
  %v2952 = vpack.c.b16 %v2718, %v2715
  %v2953 = vpack.c.b16 %v2719, %v2716
  %v2954 = vpack.c.b16 %v2720, %v2717
  %v2955 = vpack.c.b16 %v2724, %v2721
  %v2956 = vpack.c.b16 %v2725, %v2722
  %v2957 = vpack.c.b16 %v2726, %v2723
  %v2958 = vpack.c.b16 %v2730, %v2727
  %v2959 = vpack.c.b16 %v2731, %v2728
  %v2960 = vpack.c.b16 %v2732, %v2729
  %v2961 = vpack.c.b16 %v2736, %v2733
  %v2962 = vpack.c.b16 %v2737, %v2734
  %v2963 = vpack.c.b16 %v2738, %v2735
  %v2964 = vpack.c.b16 %v2742, %v2739
  %v2965 = vpack.c.b16 %v2743, %v2740
  %v2966 = vpack.c.b16 %v2744, %v2741
  %v2967 = vpack.c.b16 %v2748, %v2745
  %v2968 = vpack.c.b16 %v2749, %v2746
  %v2969 = vpack.c.b16 %v2750, %v2747
  %v2970 = vpack.c.b16 %v2754, %v2751
  %v2971 = vpack.c.b16 %v2755, %v2752
  %v2972 = vpack.c.b16 %v2756, %v2753
  %v2973 = vpack.c.b16 %v2760, %v2757
  %v2974 = vpack.c.b16 %v2761, %v2758
  %v2975 = vpack.c.b16 %v2762, %v2759
  %v2976 = vpack.c.b16 %v2766, %v2763
  %v2977 = vpack.c.b16 %v2767, %v2764
  %v2978 = vpack.c.b16 %v2768, %v2765
  %v2979 = vpack.c.b16 %v2772, %v2769
  %v2980 = vpack.c.b16 %v2773, %v2770
  %v2981 = vpack.c.b16 %v2774, %v2771
  %v2982 = vpack.c.b16 %v2778, %v2775
  %v2983 = vpack.c.b16 %v2779, %v2776
  %v2984 = vpack.c.b16 %v2780, %v2777
  %v2985 = vpack.c.b16 %v2784, %v2781
  %v2986 = vpack.c.b16 %v2785, %v2782
  %v2987 = vpack.c.b16 %v2786, %v2783
  %v2988 = vpack.c.b16 %v2790, %v2787
  %v2989 = vpack.c.b16 %v2791, %v2788
  %v2990 = vpack.c.b16 %v2792, %v2789
  %v2991 = vpack.c.b16 %v2796, %v2793
  %v2992 = vpack.c.b16 %v2797, %v2794
  %v2993 = vpack.c.b16 %v2798, %v2795
  %v2994 = vpack.c.b16 %v2802, %v2799
  %v2995 = vpack.c.b16 %v2803, %v2800
  %v2996 = vpack.c.b16 %v2804, %v2801
  %v2997 = vpack.c.b16 %v2808, %v2805
  %v2998 = vpack.c.b16 %v2809, %v2806
  %v2999 = vpack.c.b16 %v2810, %v2807
  %v3000 = vpack.c.b16 %v2814, %v2811
  %v3001 = vpack.c.b16 %v2815, %v2812
  %v3002 = vpack.c.b16 %v2816, %v2813
  %v3003 = vpack.c.b16 %v2820, %v2817
  %v3004 = vpack.c.b16 %v2821, %v2818
  %v3005 = vpack.c.b16 %v2822, %v2819
  %v3006 = vpack.c.b16 %v2826, %v2823
  %v3007 = vpack.c.b16 %v2827, %v2824
  %v3008 = vpack.c.b16 %v2828, %v2825
  %v3009 = vpack.c.b16 %v2832, %v2829
  %v3010 = vpack.c.b16 %v2833, %v2830
  %v3011 = vpack.c.b16 %v2834, %v2831
  %v3012 = vpack.c.b16 %v2838, %v2835
  %v3013 = vpack.c.b16 %v2839, %v2836
  %v3014 = vpack.c.b16 %v2840, %v2837
  %v3015 = vpack.c.b16 %v2844, %v2841
  %v3016 = vpack.c.b16 %v2845, %v2842
  %v3017 = vpack.c.b16 %v2846, %v2843
  %v3018 = vpack.c.b16 %v2850, %v2847
  %v3019 = vpack.c.b16 %v2851, %v2848
  %v3020 = vpack.c.b16 %v2852, %v2849
  %v3021 = vpack.c.b16 %v2856, %v2853
  %v3022 = vpack.c.b16 %v2857, %v2854
  %v3023 = vpack.c.b16 %v2858, %v2855
  %v3024 = vpack.c.b16 %v2862, %v2859
  %v3025 = vpack.c.b16 %v2863, %v2860
  %v3026 = vpack.c.b16 %v2864, %v2861
  %v3027 = vpack.c.b16 %v2868, %v2865
  %v3028 = vpack.c.b16 %v2869, %v2866
  %v3029 = vpack.c.b16 %v2870, %v2867
  %v3030 = vpack.c.b16 %v2874, %v2871
  %v3031 = vpack.c.b16 %v2875, %v2872
  %v3032 = vpack.c.b16 %v2876, %v2873
  %v3033 = vpack.c.b16 %v2880, %v2877
  %v3034 = vpack.c.b16 %v2881, %v2878
  %v3035 = vpack.c.b16 %v2882, %v2879
  %v3036 = vpack.c.b16 %v2886, %v2883
  %v3037 = vpack.c.b16 %v2887, %v2884
  %v3038 = vpack.c.b16 %v2888, %v2885
  %v3039 = vpack.c.b16 %v2892, %v2889
  %v3040 = vpack.c.b16 %v2893, %v2890
  %v3041 = vpack.c.b16 %v2894, %v2891
  %v3042 = vpack.c.b16 %v2898, %v2895
  %v3043 = vpack.c.b16 %v2899, %v2896
  %v3044 = vpack.c.b16 %v2900, %v2897
  %3189 = vmatprep.subr.bf16.mxu0 %v2902
  %3190 = vmatpush1.bf16.msra.mxu0 %v2901
  %3191 = vmatprep.subr.bf16.mxu0 %v2905
  %3192 = vmatpush1.bf16.msra.mxu0 %v2904
  %3193 = vmatprep.subr.bf16.mxu0 %v2908
  %3194 = vmatpush1.bf16.msra.mxu0 %v2907
  %3195 = vmatprep.subr.bf16.mxu0 %v2911
  %3196 = vmatpush1.bf16.msra.mxu0 %v2910
  %3197 = vmatprep.subr.bf16.mxu0 %v2914
  %3198 = vmatpush1.bf16.msra.mxu0 %v2913
  %3199 = vmatprep.subr.bf16.mxu0 %v2917
  %3200 = vmatpush1.bf16.msra.mxu0 %v2916
  %3201 = vmatprep.subr.bf16.mxu0 %v2920
  %3202 = vmatpush1.bf16.msra.mxu0 %v2919
  %3203 = vmatprep.subr.bf16.mxu0 %v2923
  %3204 = vmatpush1.bf16.msra.mxu0 %v2922
  %3205 = vmatprep.subr.bf16.mxu0 %v2926
  %3206 = vmatpush1.bf16.msra.mxu0 %v2925
  %3207 = vmatprep.subr.bf16.mxu0 %v2929
  %3208 = vmatpush1.bf16.msra.mxu0 %v2928
  %3209 = vmatprep.subr.bf16.mxu0 %v2932
  %3210 = vmatpush1.bf16.msra.mxu0 %v2931
  %3211 = vmatprep.subr.bf16.mxu0 %v2935
  %3212 = vmatpush1.bf16.msra.mxu0 %v2934
  %3213 = vmatprep.subr.bf16.mxu0 %v2938
  %3214 = vmatpush1.bf16.msra.mxu0 %v2937
  %3215 = vmatprep.subr.bf16.mxu0 %v2941
  %3216 = vmatpush1.bf16.msra.mxu0 %v2940
  %3217 = vmatprep.subr.bf16.mxu0 %v2944
  %3218 = vmatpush1.bf16.msra.mxu0 %v2943
  %3219 = vmatprep.subr.bf16.mxu0 %v2947
  %3220 = vmatpush1.bf16.msra.mxu0 %v2946
  %3221 = vmatprep.mubr.bf16.mxu0 %v2207
  %3222 = vmatmul.mubr.bf16.gmra.mrb[0].mxu0 %v2206
  %v3223 = vpop.f32.mrb[0].mxu0
  %v3224 = vadd.f32 %v2409, %v3223
  %v3225 = vpop.f32.mrb[0].mxu0
  %v3226 = vadd.f32 %v2413, %v3225
  %v3227 = vpop.f32.mrb[0].mxu0
  %v3228 = vpop.f32.mrb[0].mxu0
  %3229 = vdwg.mxu0
  %3230 = vmatprep.subr.bf16.mxu0 %v2950
  %3231 = vmatpush1.bf16.msra.mxu0 %v2949
  %3232 = vmatprep.subr.bf16.mxu0 %v2953
  %3233 = vmatpush1.bf16.msra.mxu0 %v2952
  %3234 = vmatprep.subr.bf16.mxu0 %v2956
  %3235 = vmatpush1.bf16.msra.mxu0 %v2955
  %3236 = vmatprep.subr.bf16.mxu0 %v2959
  %3237 = vmatpush1.bf16.msra.mxu0 %v2958
  %3238 = vmatprep.subr.bf16.mxu0 %v2962
  %3239 = vmatpush1.bf16.msra.mxu0 %v2961
  %3240 = vmatprep.subr.bf16.mxu0 %v2965
  %3241 = vmatpush1.bf16.msra.mxu0 %v2964
  %3242 = vmatprep.subr.bf16.mxu0 %v2968
  %3243 = vmatpush1.bf16.msra.mxu0 %v2967
  %3244 = vmatprep.subr.bf16.mxu0 %v2971
  %3245 = vmatpush1.bf16.msra.mxu0 %v2970
  %3246 = vmatprep.subr.bf16.mxu0 %v2974
  %3247 = vmatpush1.bf16.msra.mxu0 %v2973
  %3248 = vmatprep.subr.bf16.mxu0 %v2977
  %3249 = vmatpush1.bf16.msra.mxu0 %v2976
  %3250 = vmatprep.subr.bf16.mxu0 %v2980
  %3251 = vmatpush1.bf16.msra.mxu0 %v2979
  %3252 = vmatprep.subr.bf16.mxu0 %v2983
  %3253 = vmatpush1.bf16.msra.mxu0 %v2982
  %3254 = vmatprep.subr.bf16.mxu0 %v2986
  %3255 = vmatpush1.bf16.msra.mxu0 %v2985
  %3256 = vmatprep.subr.bf16.mxu0 %v2989
  %3257 = vmatpush1.bf16.msra.mxu0 %v2988
  %3258 = vmatprep.subr.bf16.mxu0 %v2992
  %3259 = vmatpush1.bf16.msra.mxu0 %v2991
  %3260 = vmatprep.subr.bf16.mxu0 %v2995
  %3261 = vmatpush1.bf16.msra.mxu0 %v2994
  %3262 = vmatprep.mubr.bf16.mxu0 %v2209
  %3263 = vmatmul.mubr.bf16.gmra.mrb[0].mxu0 %v2208
  %v3264 = vpop.f32.mrb[0].mxu0
  %v3265 = vadd.f32 %v3224, %v3264
  %v3266 = vpop.f32.mrb[0].mxu0
  %v3267 = vadd.f32 %v3226, %v3266
  %v3268 = vpop.f32.mrb[0].mxu0
  %v3269 = vpop.f32.mrb[0].mxu0
  %3270 = vdwg.mxu0
  %3271 = vmatprep.subr.bf16.mxu0 %v2998
  %3272 = vmatpush1.bf16.msra.mxu0 %v2997
  %3273 = vmatprep.subr.bf16.mxu0 %v3001
  %3274 = vmatpush1.bf16.msra.mxu0 %v3000
  %3275 = vmatprep.subr.bf16.mxu0 %v3004
  %3276 = vmatpush1.bf16.msra.mxu0 %v3003
  %3277 = vmatprep.subr.bf16.mxu0 %v3007
  %3278 = vmatpush1.bf16.msra.mxu0 %v3006
  %3279 = vmatprep.subr.bf16.mxu0 %v3010
  %3280 = vmatpush1.bf16.msra.mxu0 %v3009
  %3281 = vmatprep.subr.bf16.mxu0 %v3013
  %3282 = vmatpush1.bf16.msra.mxu0 %v3012
  %3283 = vmatprep.subr.bf16.mxu0 %v3016
  %3284 = vmatpush1.bf16.msra.mxu0 %v3015
  %3285 = vmatprep.subr.bf16.mxu0 %v3019
  %3286 = vmatpush1.bf16.msra.mxu0 %v3018
  %3287 = vmatprep.subr.bf16.mxu0 %v3022
  %3288 = vmatpush1.bf16.msra.mxu0 %v3021
  %3289 = vmatprep.subr.bf16.mxu0 %v3025
  %3290 = vmatpush1.bf16.msra.mxu0 %v3024
  %3291 = vmatprep.subr.bf16.mxu0 %v3028
  %3292 = vmatpush1.bf16.msra.mxu0 %v3027
  %3293 = vmatprep.subr.bf16.mxu0 %v3031
  %3294 = vmatpush1.bf16.msra.mxu0 %v3030
  %3295 = vmatprep.subr.bf16.mxu0 %v3034
  %3296 = vmatpush1.bf16.msra.mxu0 %v3033
  %3297 = vmatprep.subr.bf16.mxu0 %v3037
  %3298 = vmatpush1.bf16.msra.mxu0 %v3036
  %3299 = vmatprep.subr.bf16.mxu0 %v3040
  %3300 = vmatpush1.bf16.msra.mxu0 %v3039
  %3301 = vmatprep.subr.bf16.mxu0 %v3043
  %3302 = vmatpush1.bf16.msra.mxu0 %v3042
  %3303 = vmatprep.mubr.bf16.mxu0 %v2211
  %3304 = vmatmul.mubr.bf16.gmra.mrb[0].mxu0 %v2210
  %v3305 = vpop.f32.mrb[0].mxu0
  %v3306 = vadd.f32 %v3265, %v3305
  %v3307 = vpop.f32.mrb[0].mxu0
  %v3308 = vadd.f32 %v3267, %v3307
  %v3309 = vpop.f32.mrb[0].mxu0
  %v3310 = vpop.f32.mrb[0].mxu0
  %3311 = vdwg.mxu0
  %3312 = vmatprep.subr.bf16.mxu0 0
  %3313 = vmatpush1.bf16.msra.mxu0 %v2903
  %3314 = vmatprep.subr.bf16.mxu0 0
  %3315 = vmatpush1.bf16.msra.mxu0 %v2906
  %3316 = vmatprep.subr.bf16.mxu0 0
  %3317 = vmatpush1.bf16.msra.mxu0 %v2909
  %3318 = vmatprep.subr.bf16.mxu0 0
  %3319 = vmatpush1.bf16.msra.mxu0 %v2912
  %3320 = vmatprep.subr.bf16.mxu0 0
  %3321 = vmatpush1.bf16.msra.mxu0 %v2915
  %3322 = vmatprep.subr.bf16.mxu0 0
  %3323 = vmatpush1.bf16.msra.mxu0 %v2918
  %3324 = vmatprep.subr.bf16.mxu0 0
  %3325 = vmatpush1.bf16.msra.mxu0 %v2921
  %3326 = vmatprep.subr.bf16.mxu0 0
  %3327 = vmatpush1.bf16.msra.mxu0 %v2924
  %3328 = vmatprep.subr.bf16.mxu0 0
  %3329 = vmatpush1.bf16.msra.mxu0 %v2927
  %3330 = vmatprep.subr.bf16.mxu0 0
  %3331 = vmatpush1.bf16.msra.mxu0 %v2930
  %3332 = vmatprep.subr.bf16.mxu0 0
  %3333 = vmatpush1.bf16.msra.mxu0 %v2933
  %3334 = vmatprep.subr.bf16.mxu0 0
  %3335 = vmatpush1.bf16.msra.mxu0 %v2936
  %3336 = vmatprep.subr.bf16.mxu0 0
  %3337 = vmatpush1.bf16.msra.mxu0 %v2939
  %3338 = vmatprep.subr.bf16.mxu0 0
  %3339 = vmatpush1.bf16.msra.mxu0 %v2942
  %3340 = vmatprep.subr.bf16.mxu0 0
  %3341 = vmatpush1.bf16.msra.mxu0 %v2945
  %3342 = vmatprep.subr.bf16.mxu0 0
  %3343 = vmatpush1.bf16.msra.mxu0 %v2948
  %3344 = vmatprep.mubr.bf16.mxu0 %v2207
  %3345 = vmatmul.mubr.bf16.gmra.mrb[0].mxu0 %v2206
  %v3346 = vpop.f32.mrb[0].mxu0
  %v3347 = vadd.f32 %v2417, %v3346
  %v3348 = vpop.f32.mrb[0].mxu0
  %v3349 = vpop.f32.mrb[0].mxu0
  %v3350 = vpop.f32.mrb[0].mxu0
  %3351 = vdwg.mxu0
  %3352 = vmatprep.subr.bf16.mxu0 0
  %3353 = vmatpush1.bf16.msra.mxu0 %v2951
  %3354 = vmatprep.subr.bf16.mxu0 0
  %3355 = vmatpush1.bf16.msra.mxu0 %v2954
  %3356 = vmatprep.subr.bf16.mxu0 0
  %3357 = vmatpush1.bf16.msra.mxu0 %v2957
  %3358 = vmatprep.subr.bf16.mxu0 0
  %3359 = vmatpush1.bf16.msra.mxu0 %v2960
  %3360 = vmatprep.subr.bf16.mxu0 0
  %3361 = vmatpush1.bf16.msra.mxu0 %v2963
  %3362 = vmatprep.subr.bf16.mxu0 0
  %3363 = vmatpush1.bf16.msra.mxu0 %v2966
  %3364 = vmatprep.subr.bf16.mxu0 0
  %3365 = vmatpush1.bf16.msra.mxu0 %v2969
  %3366 = vmatprep.subr.bf16.mxu0 0
  %3367 = vmatpush1.bf16.msra.mxu0 %v2972
  %3368 = vmatprep.subr.bf16.mxu0 0
  %3369 = vmatpush1.bf16.msra.mxu0 %v2975
  %3370 = vmatprep.subr.bf16.mxu0 0
  %3371 = vmatpush1.bf16.msra.mxu0 %v2978
  %3372 = vmatprep.subr.bf16.mxu0 0
  %3373 = vmatpush1.bf16.msra.mxu0 %v2981
  %3374 = vmatprep.subr.bf16.mxu0 0
  %3375 = vmatpush1.bf16.msra.mxu0 %v2984
  %3376 = vmatprep.subr.bf16.mxu0 0
  %3377 = vmatpush1.bf16.msra.mxu0 %v2987
  %3378 = vmatprep.subr.bf16.mxu0 0
  %3379 = vmatpush1.bf16.msra.mxu0 %v2990
  %3380 = vmatprep.subr.bf16.mxu0 0
  %3381 = vmatpush1.bf16.msra.mxu0 %v2993
  %3382 = vmatprep.subr.bf16.mxu0 0
  %3383 = vmatpush1.bf16.msra.mxu0 %v2996
  %3384 = vmatprep.mubr.bf16.mxu0 %v2209
  %3385 = vmatmul.mubr.bf16.gmra.mrb[0].mxu0 %v2208
  %v3386 = vpop.f32.mrb[0].mxu0
  %v3387 = vadd.f32 %v3347, %v3386
  %v3388 = vpop.f32.mrb[0].mxu0
  %v3389 = vpop.f32.mrb[0].mxu0
  %v3390 = vpop.f32.mrb[0].mxu0
  %3391 = vdwg.mxu0
  %3392 = vmatprep.subr.bf16.mxu0 0
  %3393 = vmatpush1.bf16.msra.mxu0 %v2999
  %3394 = vmatprep.subr.bf16.mxu0 0
  %3395 = vmatpush1.bf16.msra.mxu0 %v3002
  %3396 = vmatprep.subr.bf16.mxu0 0
  %3397 = vmatpush1.bf16.msra.mxu0 %v3005
  %3398 = vmatprep.subr.bf16.mxu0 0
  %3399 = vmatpush1.bf16.msra.mxu0 %v3008
  %3400 = vmatprep.subr.bf16.mxu0 0
  %3401 = vmatpush1.bf16.msra.mxu0 %v3011
  %3402 = vmatprep.subr.bf16.mxu0 0
  %3403 = vmatpush1.bf16.msra.mxu0 %v3014
  %3404 = vmatprep.subr.bf16.mxu0 0
  %3405 = vmatpush1.bf16.msra.mxu0 %v3017
  %3406 = vmatprep.subr.bf16.mxu0 0
  %3407 = vmatpush1.bf16.msra.mxu0 %v3020
  %3408 = vmatprep.subr.bf16.mxu0 0
  %3409 = vmatpush1.bf16.msra.mxu0 %v3023
  %3410 = vmatprep.subr.bf16.mxu0 0
  %3411 = vmatpush1.bf16.msra.mxu0 %v3026
  %3412 = vmatprep.subr.bf16.mxu0 0
  %3413 = vmatpush1.bf16.msra.mxu0 %v3029
  %3414 = vmatprep.subr.bf16.mxu0 0
  %3415 = vmatpush1.bf16.msra.mxu0 %v3032
  %3416 = vmatprep.subr.bf16.mxu0 0
  %3417 = vmatpush1.bf16.msra.mxu0 %v3035
  %3418 = vmatprep.subr.bf16.mxu0 0
  %3419 = vmatpush1.bf16.msra.mxu0 %v3038
  %3420 = vmatprep.subr.bf16.mxu0 0
  %3421 = vmatpush1.bf16.msra.mxu0 %v3041
  %3422 = vmatprep.subr.bf16.mxu0 0
  %3423 = vmatpush1.bf16.msra.mxu0 %v3044
  %3424 = vmatprep.mubr.bf16.mxu0 %v2211
  %3425 = vmatmul.mubr.bf16.gmra.mrb[0].mxu0 %v2210
  %v3426 = vpop.f32.mrb[0].mxu0
  %v3427 = vadd.f32 %v3387, %v3426
  %v3428 = vpop.f32.mrb[0].mxu0
  %v3429 = vpop.f32.mrb[0].mxu0
  %v3430 = vpop.f32.mrb[0].mxu0
  %3431 = vdwg.mxu0
  %v3432 = vld [vmem:[%s6] sm:$0x7]
  %v3433 = vld [vmem:[%s7] sm:$0x7]
  %v3434 = vadd.f32 %v3306, %v3308
  %v3435 = vadd.f32 %v3434, %v3427
  %3436 = vadd.xlane.f32.xlu0 %v3435
  %v3437 = vpop.xlane.xlu0 %3436
  %v3438 = vmul.f32 %v3306, %v3306
  %v3439 = vmul.f32 %v3308, %v3308
  %v3440 = vmul.f32 %v3427, %v3427
  %v3441 = vadd.f32 %v3438, %v3439
  %v3442 = vadd.f32 %v3441, %v3440
  %3443 = vadd.xlane.f32.xlu0 %v3442
  %v3444 = vpop.xlane.xlu0 %3443
  %v3445 = vrcp.pop 300.0
  %v3446 = vmul.f32 %v3437, %v3445
  %v3447 = vmul.f32 %v3444, %v3445
  %v3448 = vmul.f32 %v3446, %v3446
  %v3449 = vsub.f32 %v3447, %v3448
  %v3450 = vmax.f32 %v3449, 0.0
  %v3451 = vsub.f32 %v3306, %v3446
  %v3452 = vsub.f32 %v3308, %v3446
  %v3453 = vsub.f32 %v3427, %v3446
  %v3454 = vadd.f32 %v3450, 1e-05
  %v3455 = vrsqrt.pop %v3454
  %v3456 = vmul.f32 %v3451, %v3455
  %v3457 = vmul.f32 %v3452, %v3455
  %v3458 = vmul.f32 %v3453, %v3455
  %v3460 = vlaneseq
  %v3461 = vshrl.u32 %v3460, 7
  %v3462 = vsub.s32 0, %v3461
  %v3463 = vrot.slane %v3432, %v3462
  %v3464 = vlaneseq
  %v3465 = vshrl.u32 %v3464, 7
  %v3466 = vsub.s32 1, %v3465
  %v3467 = vrot.slane %v3432, %v3466
  %v3468 = vlaneseq
  %v3469 = vshrl.u32 %v3468, 7
  %v3470 = vsub.s32 2, %v3469
  %v3471 = vrot.slane %v3432, %v3470
  %v3475 = vmul.f32 %v3456, %v3463
  %v3476 = vmul.f32 %v3457, %v3467
  %v3477 = vmul.f32 %v3458, %v3471
  %v3479 = vlaneseq
  %v3480 = vshrl.u32 %v3479, 7
  %v3481 = vsub.s32 0, %v3480
  %v3482 = vrot.slane %v3433, %v3481
  %v3483 = vlaneseq
  %v3484 = vshrl.u32 %v3483, 7
  %v3485 = vsub.s32 1, %v3484
  %v3486 = vrot.slane %v3433, %v3485
  %v3487 = vlaneseq
  %v3488 = vshrl.u32 %v3487, 7
  %v3489 = vsub.s32 2, %v3488
  %v3490 = vrot.slane %v3433, %v3489
  %v3494 = vadd.f32 %v3475, %v3482
  %v3495 = vadd.f32 %v3476, %v3486
  %v3496 = vadd.f32 %v3477, %v3490
  %v3497 = vmax.f32 %v3494, 0.0
  %v3498 = vmax.f32 %v3495, 0.0
  %v3499 = vmax.f32 %v3496, 0.0
  %v3500 = vld [vmem:[%s1] sm:$0xff]
  %v3501 = vld [vmem:[%s1 + $0x8] sm:$0xff]
  %v3502 = vld [vmem:[%s1 + $0x10] sm:$0xff]
  %v3503 = vld [vmem:[%s1 + $0x18] sm:$0xff]
  %v3504 = vld [vmem:[%s1 + $0x20] sm:$0xff]
  %v3505 = vld [vmem:[%s1 + $0x28] sm:$0xff]
  %v3506 = vld [vmem:[%s1 + $0x30] sm:$0xff]
  %v3507 = vld [vmem:[%s1 + $0x38] sm:$0xff]
  %v3508 = vpack.c.bf16 %v3500, %v3500
  %v3509 = vpack.c.bf16 %v3501, %v3501
  %v3510 = vpack.c.bf16 %v3502, %v3502
  %v3511 = vpack.c.bf16 %v3503, %v3503
  %v3512 = vpack.c.bf16 %v3504, %v3504
  %v3513 = vpack.c.bf16 %v3505, %v3505
  %v3514 = vpack.c.bf16 %v3506, %v3506
  %v3515 = vpack.c.bf16 %v3507, %v3507
  %v3516 = vld [vmem:[%s8] sm:$0xff]
  %v3517 = vld [vmem:[%s8 + $0x8] sm:$0xf]
  %v3518 = vld [vmem:[%s8 + $0xc] sm:$0xff]
  %v3519 = vld [vmem:[%s8 + $0x14] sm:$0xf]
  %v3520 = vld [vmem:[%s8 + $0x18] sm:$0xff]
  %v3521 = vld [vmem:[%s8 + $0x20] sm:$0xf]
  %v3522 = vld [vmem:[%s8 + $0x24] sm:$0xff]
  %v3523 = vld [vmem:[%s8 + $0x2c] sm:$0xf]
  %v3524 = vld [vmem:[%s8 + $0x30] sm:$0xff]
  %v3525 = vld [vmem:[%s8 + $0x38] sm:$0xf]
  %v3526 = vld [vmem:[%s8 + $0x3c] sm:$0xff]
  %v3527 = vld [vmem:[%s8 + $0x44] sm:$0xf]
  %v3528 = vld [vmem:[%s8 + $0x48] sm:$0xff]
  %v3529 = vld [vmem:[%s8 + $0x50] sm:$0xf]
  %v3530 = vld [vmem:[%s8 + $0x54] sm:$0xff]
  %v3531 = vld [vmem:[%s8 + $0x5c] sm:$0xf]
  %v3532 = vld [vmem:[%s8 + $0x60] sm:$0xff]
  %v3533 = vld [vmem:[%s8 + $0x68] sm:$0xf]
  %v3534 = vld [vmem:[%s8 + $0x6c] sm:$0xff]
  %v3535 = vld [vmem:[%s8 + $0x74] sm:$0xf]
  %v3536 = vld [vmem:[%s8 + $0x78] sm:$0xff]
  %v3537 = vld [vmem:[%s8 + $0x80] sm:$0xf]
  %v3538 = vld [vmem:[%s8 + $0x84] sm:$0xff]
  %v3539 = vld [vmem:[%s8 + $0x8c] sm:$0xf]
  %v3540 = vld [vmem:[%s8 + $0x90] sm:$0xff]
  %v3541 = vld [vmem:[%s8 + $0x98] sm:$0xf]
  %v3542 = vld [vmem:[%s8 + $0x9c] sm:$0xff]
  %v3543 = vld [vmem:[%s8 + $0xa4] sm:$0xf]
  %v3544 = vld [vmem:[%s8 + $0xa8] sm:$0xff]
  %v3545 = vld [vmem:[%s8 + $0xb0] sm:$0xf]
  %v3546 = vld [vmem:[%s8 + $0xb4] sm:$0xff]
  %v3547 = vld [vmem:[%s8 + $0xbc] sm:$0xf]
  %v3548 = vld [vmem:[%s8 + $0xc0] sm:$0xff]
  %v3549 = vld [vmem:[%s8 + $0xc8] sm:$0xf]
  %v3550 = vld [vmem:[%s8 + $0xcc] sm:$0xff]
  %v3551 = vld [vmem:[%s8 + $0xd4] sm:$0xf]
  %v3552 = vld [vmem:[%s8 + $0xd8] sm:$0xff]
  %v3553 = vld [vmem:[%s8 + $0xe0] sm:$0xf]
  %v3554 = vld [vmem:[%s8 + $0xe4] sm:$0xff]
  %v3555 = vld [vmem:[%s8 + $0xec] sm:$0xf]
  %v3556 = vld [vmem:[%s8 + $0xf0] sm:$0xff]
  %v3557 = vld [vmem:[%s8 + $0xf8] sm:$0xf]
  %v3558 = vld [vmem:[%s8 + $0xfc] sm:$0xff]
  %v3559 = vld [vmem:[%s8 + $0x104] sm:$0xf]
  %v3560 = vld [vmem:[%s8 + $0x108] sm:$0xff]
  %v3561 = vld [vmem:[%s8 + $0x110] sm:$0xf]
  %v3562 = vld [vmem:[%s8 + $0x114] sm:$0xff]
  %v3563 = vld [vmem:[%s8 + $0x11c] sm:$0xf]
  %v3564 = vld [vmem:[%s8 + $0x120] sm:$0xff]
  %v3565 = vld [vmem:[%s8 + $0x128] sm:$0xf]
  %v3566 = vld [vmem:[%s8 + $0x12c] sm:$0xff]
  %v3567 = vld [vmem:[%s8 + $0x134] sm:$0xf]
  %v3568 = vld [vmem:[%s8 + $0x138] sm:$0xff]
  %v3569 = vld [vmem:[%s8 + $0x140] sm:$0xf]
  %v3570 = vld [vmem:[%s8 + $0x144] sm:$0xff]
  %v3571 = vld [vmem:[%s8 + $0x14c] sm:$0xf]
  %v3572 = vld [vmem:[%s8 + $0x150] sm:$0xff]
  %v3573 = vld [vmem:[%s8 + $0x158] sm:$0xf]
  %v3574 = vld [vmem:[%s8 + $0x15c] sm:$0xff]
  %v3575 = vld [vmem:[%s8 + $0x164] sm:$0xf]
  %v3576 = vld [vmem:[%s8 + $0x168] sm:$0xff]
  %v3577 = vld [vmem:[%s8 + $0x170] sm:$0xf]
  %v3578 = vld [vmem:[%s8 + $0x174] sm:$0xff]
  %v3579 = vld [vmem:[%s8 + $0x17c] sm:$0xf]
  %v3580 = vld [vmem:[%s8 + $0x180] sm:$0xff]
  %v3581 = vld [vmem:[%s8 + $0x188] sm:$0xf]
  %v3582 = vld [vmem:[%s8 + $0x18c] sm:$0xff]
  %v3583 = vld [vmem:[%s8 + $0x194] sm:$0xf]
  %v3584 = vld [vmem:[%s8 + $0x198] sm:$0xff]
  %v3585 = vld [vmem:[%s8 + $0x1a0] sm:$0xf]
  %v3586 = vld [vmem:[%s8 + $0x1a4] sm:$0xff]
  %v3587 = vld [vmem:[%s8 + $0x1ac] sm:$0xf]
  %v3588 = vld [vmem:[%s8 + $0x1b0] sm:$0xff]
  %v3589 = vld [vmem:[%s8 + $0x1b8] sm:$0xf]
  %v3590 = vld [vmem:[%s8 + $0x1bc] sm:$0xff]
  %v3591 = vld [vmem:[%s8 + $0x1c4] sm:$0xf]
  %v3592 = vld [vmem:[%s8 + $0x1c8] sm:$0xff]
  %v3593 = vld [vmem:[%s8 + $0x1d0] sm:$0xf]
  %v3594 = vld [vmem:[%s8 + $0x1d4] sm:$0xff]
  %v3595 = vld [vmem:[%s8 + $0x1dc] sm:$0xf]
  %v3596 = vld [vmem:[%s8 + $0x1e0] sm:$0xff]
  %v3597 = vld [vmem:[%s8 + $0x1e8] sm:$0xf]
  %v3598 = vld [vmem:[%s8 + $0x1ec] sm:$0xff]
  %v3599 = vld [vmem:[%s8 + $0x1f4] sm:$0xf]
  %v3600 = vld [vmem:[%s8 + $0x1f8] sm:$0xff]
  %v3601 = vld [vmem:[%s8 + $0x200] sm:$0xf]
  %v3602 = vld [vmem:[%s8 + $0x204] sm:$0xff]
  %v3603 = vld [vmem:[%s8 + $0x20c] sm:$0xf]
  %v3604 = vld [vmem:[%s8 + $0x210] sm:$0xff]
  %v3605 = vld [vmem:[%s8 + $0x218] sm:$0xf]
  %v3606 = vld [vmem:[%s8 + $0x21c] sm:$0xff]
  %v3607 = vld [vmem:[%s8 + $0x224] sm:$0xf]
  %v3608 = vld [vmem:[%s8 + $0x228] sm:$0xff]
  %v3609 = vld [vmem:[%s8 + $0x230] sm:$0xf]
  %v3610 = vld [vmem:[%s8 + $0x234] sm:$0xff]
  %v3611 = vld [vmem:[%s8 + $0x23c] sm:$0xf]
  %v3612 = vld [vmem:[%s8 + $0x240] sm:$0xff]
  %v3613 = vld [vmem:[%s8 + $0x248] sm:$0xf]
  %v3614 = vld [vmem:[%s8 + $0x24c] sm:$0xff]
  %v3615 = vld [vmem:[%s8 + $0x254] sm:$0xf]
  %v3616 = vld [vmem:[%s8 + $0x258] sm:$0xff]
  %v3617 = vld [vmem:[%s8 + $0x260] sm:$0xf]
  %v3618 = vld [vmem:[%s8 + $0x264] sm:$0xff]
  %v3619 = vld [vmem:[%s8 + $0x26c] sm:$0xf]
  %v3620 = vld [vmem:[%s8 + $0x270] sm:$0xff]
  %v3621 = vld [vmem:[%s8 + $0x278] sm:$0xf]
  %v3622 = vld [vmem:[%s8 + $0x27c] sm:$0xff]
  %v3623 = vld [vmem:[%s8 + $0x284] sm:$0xf]
  %v3624 = vld [vmem:[%s8 + $0x288] sm:$0xff]
  %v3625 = vld [vmem:[%s8 + $0x290] sm:$0xf]
  %v3626 = vld [vmem:[%s8 + $0x294] sm:$0xff]
  %v3627 = vld [vmem:[%s8 + $0x29c] sm:$0xf]
  %v3628 = vld [vmem:[%s8 + $0x2a0] sm:$0xff]
  %v3629 = vld [vmem:[%s8 + $0x2a8] sm:$0xf]
  %v3630 = vld [vmem:[%s8 + $0x2ac] sm:$0xff]
  %v3631 = vld [vmem:[%s8 + $0x2b4] sm:$0xf]
  %v3632 = vld [vmem:[%s8 + $0x2b8] sm:$0xff]
  %v3633 = vld [vmem:[%s8 + $0x2c0] sm:$0xf]
  %v3634 = vld [vmem:[%s8 + $0x2c4] sm:$0xff]
  %v3635 = vld [vmem:[%s8 + $0x2cc] sm:$0xf]
  %v3636 = vld [vmem:[%s8 + $0x2d0] sm:$0xff]
  %v3637 = vld [vmem:[%s8 + $0x2d8] sm:$0xf]
  %v3638 = vld [vmem:[%s8 + $0x2dc] sm:$0xff]
  %v3639 = vld [vmem:[%s8 + $0x2e4] sm:$0xf]
  %v3640 = vld [vmem:[%s8 + $0x2e8] sm:$0xff]
  %v3641 = vld [vmem:[%s8 + $0x2f0] sm:$0xf]
  %v3642 = vld [vmem:[%s8 + $0x2f4] sm:$0xff]
  %v3643 = vld [vmem:[%s8 + $0x2fc] sm:$0xf]
  %v3644 = vld [vmem:[%s8 + $0x300] sm:$0xff]
  %v3645 = vld [vmem:[%s8 + $0x308] sm:$0xf]
  %v3646 = vld [vmem:[%s8 + $0x30c] sm:$0xff]
  %v3647 = vld [vmem:[%s8 + $0x314] sm:$0xf]
  %v3648 = vld [vmem:[%s8 + $0x318] sm:$0xff]
  %v3649 = vld [vmem:[%s8 + $0x320] sm:$0xf]
  %v3650 = vld [vmem:[%s8 + $0x324] sm:$0xff]
  %v3651 = vld [vmem:[%s8 + $0x32c] sm:$0xf]
  %v3652 = vld [vmem:[%s8 + $0x330] sm:$0xff]
  %v3653 = vld [vmem:[%s8 + $0x338] sm:$0xf]
  %v3654 = vld [vmem:[%s8 + $0x33c] sm:$0xff]
  %v3655 = vld [vmem:[%s8 + $0x344] sm:$0xf]
  %v3656 = vld [vmem:[%s8 + $0x348] sm:$0xff]
  %v3657 = vld [vmem:[%s8 + $0x350] sm:$0xf]
  %v3658 = vld [vmem:[%s8 + $0x354] sm:$0xff]
  %v3659 = vld [vmem:[%s8 + $0x35c] sm:$0xf]
  %v3660 = vld [vmem:[%s8 + $0x360] sm:$0xff]
  %v3661 = vld [vmem:[%s8 + $0x368] sm:$0xf]
  %v3662 = vld [vmem:[%s8 + $0x36c] sm:$0xff]
  %v3663 = vld [vmem:[%s8 + $0x374] sm:$0xf]
  %v3664 = vld [vmem:[%s8 + $0x378] sm:$0xff]
  %v3665 = vld [vmem:[%s8 + $0x380] sm:$0xf]
  %v3666 = vld [vmem:[%s8 + $0x384] sm:$0xff]
  %v3667 = vld [vmem:[%s8 + $0x38c] sm:$0xf]
  %v3668 = vld [vmem:[%s8 + $0x390] sm:$0xff]
  %v3669 = vld [vmem:[%s8 + $0x398] sm:$0xf]
  %v3670 = vld [vmem:[%s8 + $0x39c] sm:$0xff]
  %v3671 = vld [vmem:[%s8 + $0x3a4] sm:$0xf]
  %v3672 = vld [vmem:[%s8 + $0x3a8] sm:$0xff]
  %v3673 = vld [vmem:[%s8 + $0x3b0] sm:$0xf]
  %v3674 = vld [vmem:[%s8 + $0x3b4] sm:$0xff]
  %v3675 = vld [vmem:[%s8 + $0x3bc] sm:$0xf]
  %v3676 = vld [vmem:[%s8 + $0x3c0] sm:$0xff]
  %v3677 = vld [vmem:[%s8 + $0x3c8] sm:$0xf]
  %v3678 = vld [vmem:[%s8 + $0x3cc] sm:$0xff]
  %v3679 = vld [vmem:[%s8 + $0x3d4] sm:$0xf]
  %v3680 = vld [vmem:[%s8 + $0x3d8] sm:$0xff]
  %v3681 = vld [vmem:[%s8 + $0x3e0] sm:$0xf]
  %v3682 = vld [vmem:[%s8 + $0x3e4] sm:$0xff]
  %v3683 = vld [vmem:[%s8 + $0x3ec] sm:$0xf]
  %v3684 = vld [vmem:[%s8 + $0x3f0] sm:$0xff]
  %v3685 = vld [vmem:[%s8 + $0x3f8] sm:$0xf]
  %v3686 = vld [vmem:[%s8 + $0x3fc] sm:$0xff]
  %v3687 = vld [vmem:[%s8 + $0x404] sm:$0xf]
  %v3688 = vld [vmem:[%s8 + $0x408] sm:$0xff]
  %v3689 = vld [vmem:[%s8 + $0x410] sm:$0xf]
  %v3690 = vld [vmem:[%s8 + $0x414] sm:$0xff]
  %v3691 = vld [vmem:[%s8 + $0x41c] sm:$0xf]
  %v3692 = vld [vmem:[%s8 + $0x420] sm:$0xff]
  %v3693 = vld [vmem:[%s8 + $0x428] sm:$0xf]
  %v3694 = vld [vmem:[%s8 + $0x42c] sm:$0xff]
  %v3695 = vld [vmem:[%s8 + $0x434] sm:$0xf]
  %v3696 = vld [vmem:[%s8 + $0x438] sm:$0xff]
  %v3697 = vld [vmem:[%s8 + $0x440] sm:$0xf]
  %v3698 = vld [vmem:[%s8 + $0x444] sm:$0xff]
  %v3699 = vld [vmem:[%s8 + $0x44c] sm:$0xf]
  %v3700 = vld [vmem:[%s8 + $0x450] sm:$0xff]
  %v3701 = vld [vmem:[%s8 + $0x458] sm:$0xf]
  %v3702 = vld [vmem:[%s8 + $0x45c] sm:$0xff]
  %v3703 = vld [vmem:[%s8 + $0x464] sm:$0xf]
  %v3704 = vld [vmem:[%s8 + $0x468] sm:$0xff]
  %v3705 = vld [vmem:[%s8 + $0x470] sm:$0xf]
  %v3706 = vld [vmem:[%s8 + $0x474] sm:$0xff]
  %v3707 = vld [vmem:[%s8 + $0x47c] sm:$0xf]
  %v3708 = vld [vmem:[%s8 + $0x480] sm:$0xff]
  %v3709 = vld [vmem:[%s8 + $0x488] sm:$0xf]
  %v3710 = vld [vmem:[%s8 + $0x48c] sm:$0xff]
  %v3711 = vld [vmem:[%s8 + $0x494] sm:$0xf]
  %v3712 = vld [vmem:[%s8 + $0x498] sm:$0xff]
  %v3713 = vld [vmem:[%s8 + $0x4a0] sm:$0xf]
  %v3714 = vld [vmem:[%s8 + $0x4a4] sm:$0xff]
  %v3715 = vld [vmem:[%s8 + $0x4ac] sm:$0xf]
  %v3716 = vld [vmem:[%s8 + $0x4b0] sm:$0xff]
  %v3717 = vld [vmem:[%s8 + $0x4b8] sm:$0xf]
  %v3718 = vld [vmem:[%s8 + $0x4bc] sm:$0xff]
  %v3719 = vld [vmem:[%s8 + $0x4c4] sm:$0xf]
  %v3720 = vld [vmem:[%s8 + $0x4c8] sm:$0xff]
  %v3721 = vld [vmem:[%s8 + $0x4d0] sm:$0xf]
  %v3722 = vld [vmem:[%s8 + $0x4d4] sm:$0xff]
  %v3723 = vld [vmem:[%s8 + $0x4dc] sm:$0xf]
  %v3724 = vld [vmem:[%s8 + $0x4e0] sm:$0xff]
  %v3725 = vld [vmem:[%s8 + $0x4e8] sm:$0xf]
  %v3726 = vld [vmem:[%s8 + $0x4ec] sm:$0xff]
  %v3727 = vld [vmem:[%s8 + $0x4f4] sm:$0xf]
  %v3728 = vld [vmem:[%s8 + $0x4f8] sm:$0xff]
  %v3729 = vld [vmem:[%s8 + $0x500] sm:$0xf]
  %v3730 = vld [vmem:[%s8 + $0x504] sm:$0xff]
  %v3731 = vld [vmem:[%s8 + $0x50c] sm:$0xf]
  %v3732 = vld [vmem:[%s8 + $0x510] sm:$0xff]
  %v3733 = vld [vmem:[%s8 + $0x518] sm:$0xf]
  %v3734 = vld [vmem:[%s8 + $0x51c] sm:$0xff]
  %v3735 = vld [vmem:[%s8 + $0x524] sm:$0xf]
  %v3736 = vld [vmem:[%s8 + $0x528] sm:$0xff]
  %v3737 = vld [vmem:[%s8 + $0x530] sm:$0xf]
  %v3738 = vld [vmem:[%s8 + $0x534] sm:$0xff]
  %v3739 = vld [vmem:[%s8 + $0x53c] sm:$0xf]
  %v3740 = vld [vmem:[%s8 + $0x540] sm:$0xff]
  %v3741 = vld [vmem:[%s8 + $0x548] sm:$0xf]
  %v3742 = vld [vmem:[%s8 + $0x54c] sm:$0xff]
  %v3743 = vld [vmem:[%s8 + $0x554] sm:$0xf]
  %v3744 = vld [vmem:[%s8 + $0x558] sm:$0xff]
  %v3745 = vld [vmem:[%s8 + $0x560] sm:$0xf]
  %v3746 = vld [vmem:[%s8 + $0x564] sm:$0xff]
  %v3747 = vld [vmem:[%s8 + $0x56c] sm:$0xf]
  %v3748 = vld [vmem:[%s8 + $0x570] sm:$0xff]
  %v3749 = vld [vmem:[%s8 + $0x578] sm:$0xf]
  %v3750 = vld [vmem:[%s8 + $0x57c] sm:$0xff]
  %v3751 = vld [vmem:[%s8 + $0x584] sm:$0xf]
  %v3752 = vld [vmem:[%s8 + $0x588] sm:$0xff]
  %v3753 = vld [vmem:[%s8 + $0x590] sm:$0xf]
  %v3754 = vld [vmem:[%s8 + $0x594] sm:$0xff]
  %v3755 = vld [vmem:[%s8 + $0x59c] sm:$0xf]
  %v3756 = vld [vmem:[%s8 + $0x5a0] sm:$0xff]
  %v3757 = vld [vmem:[%s8 + $0x5a8] sm:$0xf]
  %v3758 = vld [vmem:[%s8 + $0x5ac] sm:$0xff]
  %v3759 = vld [vmem:[%s8 + $0x5b4] sm:$0xf]
  %v3760 = vld [vmem:[%s8 + $0x5b8] sm:$0xff]
  %v3761 = vld [vmem:[%s8 + $0x5c0] sm:$0xf]
  %v3762 = vld [vmem:[%s8 + $0x5c4] sm:$0xff]
  %v3763 = vld [vmem:[%s8 + $0x5cc] sm:$0xf]
  %v3764 = vld [vmem:[%s8 + $0x5d0] sm:$0xff]
  %v3765 = vld [vmem:[%s8 + $0x5d8] sm:$0xf]
  %v3766 = vld [vmem:[%s8 + $0x5dc] sm:$0xff]
  %v3767 = vld [vmem:[%s8 + $0x5e4] sm:$0xf]
  %v3768 = vld [vmem:[%s8 + $0x5e8] sm:$0xff]
  %v3769 = vld [vmem:[%s8 + $0x5f0] sm:$0xf]
  %v3770 = vld [vmem:[%s8 + $0x5f4] sm:$0xff]
  %v3771 = vld [vmem:[%s8 + $0x5fc] sm:$0xf]
  %v3772 = vld [vmem:[%s9] sm:$0x7]
  %v3774 = vlaneseq
  %v3775 = vshrl.u32 %v3774, 7
  %v3776 = vsub.s32 0, %v3775
  %v3777 = vrot.slane %v3772, %v3776
  %v3778 = vlaneseq
  %v3779 = vshrl.u32 %v3778, 7
  %v3780 = vsub.s32 1, %v3779
  %v3781 = vrot.slane %v3772, %v3780
  %v3782 = vlaneseq
  %v3783 = vshrl.u32 %v3782, 7
  %v3784 = vsub.s32 2, %v3783
  %v3785 = vrot.slane %v3772, %v3784
  %v4045 = vunpack.c.l.b16 %v3516
  %v4046 = vunpack.c.h.b16 %v3516
  %v4047 = vunpack.c.l.b16 %v3517
  %v4048 = vunpack.c.l.b16 %v3518
  %v4049 = vunpack.c.h.b16 %v3518
  %v4050 = vunpack.c.l.b16 %v3519
  %v4051 = vunpack.c.l.b16 %v3520
  %v4052 = vunpack.c.h.b16 %v3520
  %v4053 = vunpack.c.l.b16 %v3521
  %v4054 = vunpack.c.l.b16 %v3522
  %v4055 = vunpack.c.h.b16 %v3522
  %v4056 = vunpack.c.l.b16 %v3523
  %v4057 = vunpack.c.l.b16 %v3524
  %v4058 = vunpack.c.h.b16 %v3524
  %v4059 = vunpack.c.l.b16 %v3525
  %v4060 = vunpack.c.l.b16 %v3526
  %v4061 = vunpack.c.h.b16 %v3526
  %v4062 = vunpack.c.l.b16 %v3527
  %v4063 = vunpack.c.l.b16 %v3528
  %v4064 = vunpack.c.h.b16 %v3528
  %v4065 = vunpack.c.l.b16 %v3529
  %v4066 = vunpack.c.l.b16 %v3530
  %v4067 = vunpack.c.h.b16 %v3530
  %v4068 = vunpack.c.l.b16 %v3531
  %v4069 = vunpack.c.l.b16 %v3532
  %v4070 = vunpack.c.h.b16 %v3532
  %v4071 = vunpack.c.l.b16 %v3533
  %v4072 = vunpack.c.l.b16 %v3534
  %v4073 = vunpack.c.h.b16 %v3534
  %v4074 = vunpack.c.l.b16 %v3535
  %v4075 = vunpack.c.l.b16 %v3536
  %v4076 = vunpack.c.h.b16 %v3536
  %v4077 = vunpack.c.l.b16 %v3537
  %v4078 = vunpack.c.l.b16 %v3538
  %v4079 = vunpack.c.h.b16 %v3538
  %v4080 = vunpack.c.l.b16 %v3539
  %v4081 = vunpack.c.l.b16 %v3540
  %v4082 = vunpack.c.h.b16 %v3540
  %v4083 = vunpack.c.l.b16 %v3541
  %v4084 = vunpack.c.l.b16 %v3542
  %v4085 = vunpack.c.h.b16 %v3542
  %v4086 = vunpack.c.l.b16 %v3543
  %v4087 = vunpack.c.l.b16 %v3544
  %v4088 = vunpack.c.h.b16 %v3544
  %v4089 = vunpack.c.l.b16 %v3545
  %v4090 = vunpack.c.l.b16 %v3546
  %v4091 = vunpack.c.h.b16 %v3546
  %v4092 = vunpack.c.l.b16 %v3547
  %v4093 = vunpack.c.l.b16 %v3548
  %v4094 = vunpack.c.h.b16 %v3548
  %v4095 = vunpack.c.l.b16 %v3549
  %v4096 = vunpack.c.l.b16 %v3550
  %v4097 = vunpack.c.h.b16 %v3550
  %v4098 = vunpack.c.l.b16 %v3551
  %v4099 = vunpack.c.l.b16 %v3552
  %v4100 = vunpack.c.h.b16 %v3552
  %v4101 = vunpack.c.l.b16 %v3553
  %v4102 = vunpack.c.l.b16 %v3554
  %v4103 = vunpack.c.h.b16 %v3554
  %v4104 = vunpack.c.l.b16 %v3555
  %v4105 = vunpack.c.l.b16 %v3556
  %v4106 = vunpack.c.h.b16 %v3556
  %v4107 = vunpack.c.l.b16 %v3557
  %v4108 = vunpack.c.l.b16 %v3558
  %v4109 = vunpack.c.h.b16 %v3558
  %v4110 = vunpack.c.l.b16 %v3559
  %v4111 = vunpack.c.l.b16 %v3560
  %v4112 = vunpack.c.h.b16 %v3560
  %v4113 = vunpack.c.l.b16 %v3561
  %v4114 = vunpack.c.l.b16 %v3562
  %v4115 = vunpack.c.h.b16 %v3562
  %v4116 = vunpack.c.l.b16 %v3563
  %v4117 = vunpack.c.l.b16 %v3564
  %v4118 = vunpack.c.h.b16 %v3564
  %v4119 = vunpack.c.l.b16 %v3565
  %v4120 = vunpack.c.l.b16 %v3566
  %v4121 = vunpack.c.h.b16 %v3566
  %v4122 = vunpack.c.l.b16 %v3567
  %v4123 = vunpack.c.l.b16 %v3568
  %v4124 = vunpack.c.h.b16 %v3568
  %v4125 = vunpack.c.l.b16 %v3569
  %v4126 = vunpack.c.l.b16 %v3570
  %v4127 = vunpack.c.h.b16 %v3570
  %v4128 = vunpack.c.l.b16 %v3571
  %v4129 = vunpack.c.l.b16 %v3572
  %v4130 = vunpack.c.h.b16 %v3572
  %v4131 = vunpack.c.l.b16 %v3573
  %v4132 = vunpack.c.l.b16 %v3574
  %v4133 = vunpack.c.h.b16 %v3574
  %v4134 = vunpack.c.l.b16 %v3575
  %v4135 = vunpack.c.l.b16 %v3576
  %v4136 = vunpack.c.h.b16 %v3576
  %v4137 = vunpack.c.l.b16 %v3577
  %v4138 = vunpack.c.l.b16 %v3578
  %v4139 = vunpack.c.h.b16 %v3578
  %v4140 = vunpack.c.l.b16 %v3579
  %v4141 = vunpack.c.l.b16 %v3580
  %v4142 = vunpack.c.h.b16 %v3580
  %v4143 = vunpack.c.l.b16 %v3581
  %v4144 = vunpack.c.l.b16 %v3582
  %v4145 = vunpack.c.h.b16 %v3582
  %v4146 = vunpack.c.l.b16 %v3583
  %v4147 = vunpack.c.l.b16 %v3584
  %v4148 = vunpack.c.h.b16 %v3584
  %v4149 = vunpack.c.l.b16 %v3585
  %v4150 = vunpack.c.l.b16 %v3586
  %v4151 = vunpack.c.h.b16 %v3586
  %v4152 = vunpack.c.l.b16 %v3587
  %v4153 = vunpack.c.l.b16 %v3588
  %v4154 = vunpack.c.h.b16 %v3588
  %v4155 = vunpack.c.l.b16 %v3589
  %v4156 = vunpack.c.l.b16 %v3590
  %v4157 = vunpack.c.h.b16 %v3590
  %v4158 = vunpack.c.l.b16 %v3591
  %v4159 = vunpack.c.l.b16 %v3592
  %v4160 = vunpack.c.h.b16 %v3592
  %v4161 = vunpack.c.l.b16 %v3593
  %v4162 = vunpack.c.l.b16 %v3594
  %v4163 = vunpack.c.h.b16 %v3594
  %v4164 = vunpack.c.l.b16 %v3595
  %v4165 = vunpack.c.l.b16 %v3596
  %v4166 = vunpack.c.h.b16 %v3596
  %v4167 = vunpack.c.l.b16 %v3597
  %v4168 = vunpack.c.l.b16 %v3598
  %v4169 = vunpack.c.h.b16 %v3598
  %v4170 = vunpack.c.l.b16 %v3599
  %v4171 = vunpack.c.l.b16 %v3600
  %v4172 = vunpack.c.h.b16 %v3600
  %v4173 = vunpack.c.l.b16 %v3601
  %v4174 = vunpack.c.l.b16 %v3602
  %v4175 = vunpack.c.h.b16 %v3602
  %v4176 = vunpack.c.l.b16 %v3603
  %v4177 = vunpack.c.l.b16 %v3604
  %v4178 = vunpack.c.h.b16 %v3604
  %v4179 = vunpack.c.l.b16 %v3605
  %v4180 = vunpack.c.l.b16 %v3606
  %v4181 = vunpack.c.h.b16 %v3606
  %v4182 = vunpack.c.l.b16 %v3607
  %v4183 = vunpack.c.l.b16 %v3608
  %v4184 = vunpack.c.h.b16 %v3608
  %v4185 = vunpack.c.l.b16 %v3609
  %v4186 = vunpack.c.l.b16 %v3610
  %v4187 = vunpack.c.h.b16 %v3610
  %v4188 = vunpack.c.l.b16 %v3611
  %v4189 = vunpack.c.l.b16 %v3612
  %v4190 = vunpack.c.h.b16 %v3612
  %v4191 = vunpack.c.l.b16 %v3613
  %v4192 = vunpack.c.l.b16 %v3614
  %v4193 = vunpack.c.h.b16 %v3614
  %v4194 = vunpack.c.l.b16 %v3615
  %v4195 = vunpack.c.l.b16 %v3616
  %v4196 = vunpack.c.h.b16 %v3616
  %v4197 = vunpack.c.l.b16 %v3617
  %v4198 = vunpack.c.l.b16 %v3618
  %v4199 = vunpack.c.h.b16 %v3618
  %v4200 = vunpack.c.l.b16 %v3619
  %v4201 = vunpack.c.l.b16 %v3620
  %v4202 = vunpack.c.h.b16 %v3620
  %v4203 = vunpack.c.l.b16 %v3621
  %v4204 = vunpack.c.l.b16 %v3622
  %v4205 = vunpack.c.h.b16 %v3622
  %v4206 = vunpack.c.l.b16 %v3623
  %v4207 = vunpack.c.l.b16 %v3624
  %v4208 = vunpack.c.h.b16 %v3624
  %v4209 = vunpack.c.l.b16 %v3625
  %v4210 = vunpack.c.l.b16 %v3626
  %v4211 = vunpack.c.h.b16 %v3626
  %v4212 = vunpack.c.l.b16 %v3627
  %v4213 = vunpack.c.l.b16 %v3628
  %v4214 = vunpack.c.h.b16 %v3628
  %v4215 = vunpack.c.l.b16 %v3629
  %v4216 = vunpack.c.l.b16 %v3630
  %v4217 = vunpack.c.h.b16 %v3630
  %v4218 = vunpack.c.l.b16 %v3631
  %v4219 = vunpack.c.l.b16 %v3632
  %v4220 = vunpack.c.h.b16 %v3632
  %v4221 = vunpack.c.l.b16 %v3633
  %v4222 = vunpack.c.l.b16 %v3634
  %v4223 = vunpack.c.h.b16 %v3634
  %v4224 = vunpack.c.l.b16 %v3635
  %v4225 = vunpack.c.l.b16 %v3636
  %v4226 = vunpack.c.h.b16 %v3636
  %v4227 = vunpack.c.l.b16 %v3637
  %v4228 = vunpack.c.l.b16 %v3638
  %v4229 = vunpack.c.h.b16 %v3638
  %v4230 = vunpack.c.l.b16 %v3639
  %v4231 = vunpack.c.l.b16 %v3640
  %v4232 = vunpack.c.h.b16 %v3640
  %v4233 = vunpack.c.l.b16 %v3641
  %v4234 = vunpack.c.l.b16 %v3642
  %v4235 = vunpack.c.h.b16 %v3642
  %v4236 = vunpack.c.l.b16 %v3643
  %v4237 = vunpack.c.l.b16 %v3644
  %v4238 = vunpack.c.h.b16 %v3644
  %v4239 = vunpack.c.l.b16 %v3645
  %v4240 = vunpack.c.l.b16 %v3646
  %v4241 = vunpack.c.h.b16 %v3646
  %v4242 = vunpack.c.l.b16 %v3647
  %v4243 = vunpack.c.l.b16 %v3648
  %v4244 = vunpack.c.h.b16 %v3648
  %v4245 = vunpack.c.l.b16 %v3649
  %v4246 = vunpack.c.l.b16 %v3650
  %v4247 = vunpack.c.h.b16 %v3650
  %v4248 = vunpack.c.l.b16 %v3651
  %v4249 = vunpack.c.l.b16 %v3652
  %v4250 = vunpack.c.h.b16 %v3652
  %v4251 = vunpack.c.l.b16 %v3653
  %v4252 = vunpack.c.l.b16 %v3654
  %v4253 = vunpack.c.h.b16 %v3654
  %v4254 = vunpack.c.l.b16 %v3655
  %v4255 = vunpack.c.l.b16 %v3656
  %v4256 = vunpack.c.h.b16 %v3656
  %v4257 = vunpack.c.l.b16 %v3657
  %v4258 = vunpack.c.l.b16 %v3658
  %v4259 = vunpack.c.h.b16 %v3658
  %v4260 = vunpack.c.l.b16 %v3659
  %v4261 = vunpack.c.l.b16 %v3660
  %v4262 = vunpack.c.h.b16 %v3660
  %v4263 = vunpack.c.l.b16 %v3661
  %v4264 = vunpack.c.l.b16 %v3662
  %v4265 = vunpack.c.h.b16 %v3662
  %v4266 = vunpack.c.l.b16 %v3663
  %v4267 = vunpack.c.l.b16 %v3664
  %v4268 = vunpack.c.h.b16 %v3664
  %v4269 = vunpack.c.l.b16 %v3665
  %v4270 = vunpack.c.l.b16 %v3666
  %v4271 = vunpack.c.h.b16 %v3666
  %v4272 = vunpack.c.l.b16 %v3667
  %v4273 = vunpack.c.l.b16 %v3668
  %v4274 = vunpack.c.h.b16 %v3668
  %v4275 = vunpack.c.l.b16 %v3669
  %v4276 = vunpack.c.l.b16 %v3670
  %v4277 = vunpack.c.h.b16 %v3670
  %v4278 = vunpack.c.l.b16 %v3671
  %v4279 = vunpack.c.l.b16 %v3672
  %v4280 = vunpack.c.h.b16 %v3672
  %v4281 = vunpack.c.l.b16 %v3673
  %v4282 = vunpack.c.l.b16 %v3674
  %v4283 = vunpack.c.h.b16 %v3674
  %v4284 = vunpack.c.l.b16 %v3675
  %v4285 = vunpack.c.l.b16 %v3676
  %v4286 = vunpack.c.h.b16 %v3676
  %v4287 = vunpack.c.l.b16 %v3677
  %v4288 = vunpack.c.l.b16 %v3678
  %v4289 = vunpack.c.h.b16 %v3678
  %v4290 = vunpack.c.l.b16 %v3679
  %v4291 = vunpack.c.l.b16 %v3680
  %v4292 = vunpack.c.h.b16 %v3680
  %v4293 = vunpack.c.l.b16 %v3681
  %v4294 = vunpack.c.l.b16 %v3682
  %v4295 = vunpack.c.h.b16 %v3682
  %v4296 = vunpack.c.l.b16 %v3683
  %v4297 = vunpack.c.l.b16 %v3684
  %v4298 = vunpack.c.h.b16 %v3684
  %v4299 = vunpack.c.l.b16 %v3685
  %v4300 = vunpack.c.l.b16 %v3686
  %v4301 = vunpack.c.h.b16 %v3686
  %v4302 = vunpack.c.l.b16 %v3687
  %v4303 = vunpack.c.l.b16 %v3688
  %v4304 = vunpack.c.h.b16 %v3688
  %v4305 = vunpack.c.l.b16 %v3689
  %v4306 = vunpack.c.l.b16 %v3690
  %v4307 = vunpack.c.h.b16 %v3690
  %v4308 = vunpack.c.l.b16 %v3691
  %v4309 = vunpack.c.l.b16 %v3692
  %v4310 = vunpack.c.h.b16 %v3692
  %v4311 = vunpack.c.l.b16 %v3693
  %v4312 = vunpack.c.l.b16 %v3694
  %v4313 = vunpack.c.h.b16 %v3694
  %v4314 = vunpack.c.l.b16 %v3695
  %v4315 = vunpack.c.l.b16 %v3696
  %v4316 = vunpack.c.h.b16 %v3696
  %v4317 = vunpack.c.l.b16 %v3697
  %v4318 = vunpack.c.l.b16 %v3698
  %v4319 = vunpack.c.h.b16 %v3698
  %v4320 = vunpack.c.l.b16 %v3699
  %v4321 = vunpack.c.l.b16 %v3700
  %v4322 = vunpack.c.h.b16 %v3700
  %v4323 = vunpack.c.l.b16 %v3701
  %v4324 = vunpack.c.l.b16 %v3702
  %v4325 = vunpack.c.h.b16 %v3702
  %v4326 = vunpack.c.l.b16 %v3703
  %v4327 = vunpack.c.l.b16 %v3704
  %v4328 = vunpack.c.h.b16 %v3704
  %v4329 = vunpack.c.l.b16 %v3705
  %v4330 = vunpack.c.l.b16 %v3706
  %v4331 = vunpack.c.h.b16 %v3706
  %v4332 = vunpack.c.l.b16 %v3707
  %v4333 = vunpack.c.l.b16 %v3708
  %v4334 = vunpack.c.h.b16 %v3708
  %v4335 = vunpack.c.l.b16 %v3709
  %v4336 = vunpack.c.l.b16 %v3710
  %v4337 = vunpack.c.h.b16 %v3710
  %v4338 = vunpack.c.l.b16 %v3711
  %v4339 = vunpack.c.l.b16 %v3712
  %v4340 = vunpack.c.h.b16 %v3712
  %v4341 = vunpack.c.l.b16 %v3713
  %v4342 = vunpack.c.l.b16 %v3714
  %v4343 = vunpack.c.h.b16 %v3714
  %v4344 = vunpack.c.l.b16 %v3715
  %v4345 = vunpack.c.l.b16 %v3716
  %v4346 = vunpack.c.h.b16 %v3716
  %v4347 = vunpack.c.l.b16 %v3717
  %v4348 = vunpack.c.l.b16 %v3718
  %v4349 = vunpack.c.h.b16 %v3718
  %v4350 = vunpack.c.l.b16 %v3719
  %v4351 = vunpack.c.l.b16 %v3720
  %v4352 = vunpack.c.h.b16 %v3720
  %v4353 = vunpack.c.l.b16 %v3721
  %v4354 = vunpack.c.l.b16 %v3722
  %v4355 = vunpack.c.h.b16 %v3722
  %v4356 = vunpack.c.l.b16 %v3723
  %v4357 = vunpack.c.l.b16 %v3724
  %v4358 = vunpack.c.h.b16 %v3724
  %v4359 = vunpack.c.l.b16 %v3725
  %v4360 = vunpack.c.l.b16 %v3726
  %v4361 = vunpack.c.h.b16 %v3726
  %v4362 = vunpack.c.l.b16 %v3727
  %v4363 = vunpack.c.l.b16 %v3728
  %v4364 = vunpack.c.h.b16 %v3728
  %v4365 = vunpack.c.l.b16 %v3729
  %v4366 = vunpack.c.l.b16 %v3730
  %v4367 = vunpack.c.h.b16 %v3730
  %v4368 = vunpack.c.l.b16 %v3731
  %v4369 = vunpack.c.l.b16 %v3732
  %v4370 = vunpack.c.h.b16 %v3732
  %v4371 = vunpack.c.l.b16 %v3733
  %v4372 = vunpack.c.l.b16 %v3734
  %v4373 = vunpack.c.h.b16 %v3734
  %v4374 = vunpack.c.l.b16 %v3735
  %v4375 = vunpack.c.l.b16 %v3736
  %v4376 = vunpack.c.h.b16 %v3736
  %v4377 = vunpack.c.l.b16 %v3737
  %v4378 = vunpack.c.l.b16 %v3738
  %v4379 = vunpack.c.h.b16 %v3738
  %v4380 = vunpack.c.l.b16 %v3739
  %v4381 = vunpack.c.l.b16 %v3740
  %v4382 = vunpack.c.h.b16 %v3740
  %v4383 = vunpack.c.l.b16 %v3741
  %v4384 = vunpack.c.l.b16 %v3742
  %v4385 = vunpack.c.h.b16 %v3742
  %v4386 = vunpack.c.l.b16 %v3743
  %v4387 = vunpack.c.l.b16 %v3744
  %v4388 = vunpack.c.h.b16 %v3744
  %v4389 = vunpack.c.l.b16 %v3745
  %v4390 = vunpack.c.l.b16 %v3746
  %v4391 = vunpack.c.h.b16 %v3746
  %v4392 = vunpack.c.l.b16 %v3747
  %v4393 = vunpack.c.l.b16 %v3748
  %v4394 = vunpack.c.h.b16 %v3748
  %v4395 = vunpack.c.l.b16 %v3749
  %v4396 = vunpack.c.l.b16 %v3750
  %v4397 = vunpack.c.h.b16 %v3750
  %v4398 = vunpack.c.l.b16 %v3751
  %v4399 = vunpack.c.l.b16 %v3752
  %v4400 = vunpack.c.h.b16 %v3752
  %v4401 = vunpack.c.l.b16 %v3753
  %v4402 = vunpack.c.l.b16 %v3754
  %v4403 = vunpack.c.h.b16 %v3754
  %v4404 = vunpack.c.l.b16 %v3755
  %v4405 = vunpack.c.l.b16 %v3756
  %v4406 = vunpack.c.h.b16 %v3756
  %v4407 = vunpack.c.l.b16 %v3757
  %v4408 = vunpack.c.l.b16 %v3758
  %v4409 = vunpack.c.h.b16 %v3758
  %v4410 = vunpack.c.l.b16 %v3759
  %v4411 = vunpack.c.l.b16 %v3760
  %v4412 = vunpack.c.h.b16 %v3760
  %v4413 = vunpack.c.l.b16 %v3761
  %v4414 = vunpack.c.l.b16 %v3762
  %v4415 = vunpack.c.h.b16 %v3762
  %v4416 = vunpack.c.l.b16 %v3763
  %v4417 = vunpack.c.l.b16 %v3764
  %v4418 = vunpack.c.h.b16 %v3764
  %v4419 = vunpack.c.l.b16 %v3765
  %v4420 = vunpack.c.l.b16 %v3766
  %v4421 = vunpack.c.h.b16 %v3766
  %v4422 = vunpack.c.l.b16 %v3767
  %v4423 = vunpack.c.l.b16 %v3768
  %v4424 = vunpack.c.h.b16 %v3768
  %v4425 = vunpack.c.l.b16 %v3769
  %v4426 = vunpack.c.l.b16 %v3770
  %v4427 = vunpack.c.h.b16 %v3770
  %v4428 = vunpack.c.l.b16 %v3771
  %v4429 = vpack.c.b16 %v4048, %v4045
  %v4430 = vpack.c.b16 %v4049, %v4046
  %v4431 = vpack.c.b16 %v4050, %v4047
  %v4432 = vpack.c.b16 %v4054, %v4051
  %v4433 = vpack.c.b16 %v4055, %v4052
  %v4434 = vpack.c.b16 %v4056, %v4053
  %v4435 = vpack.c.b16 %v4060, %v4057
  %v4436 = vpack.c.b16 %v4061, %v4058
  %v4437 = vpack.c.b16 %v4062, %v4059
  %v4438 = vpack.c.b16 %v4066, %v4063
  %v4439 = vpack.c.b16 %v4067, %v4064
  %v4440 = vpack.c.b16 %v4068, %v4065
  %v4441 = vpack.c.b16 %v4072, %v4069
  %v4442 = vpack.c.b16 %v4073, %v4070
  %v4443 = vpack.c.b16 %v4074, %v4071
  %v4444 = vpack.c.b16 %v4078, %v4075
  %v4445 = vpack.c.b16 %v4079, %v4076
  %v4446 = vpack.c.b16 %v4080, %v4077
  %v4447 = vpack.c.b16 %v4084, %v4081
  %v4448 = vpack.c.b16 %v4085, %v4082
  %v4449 = vpack.c.b16 %v4086, %v4083
  %v4450 = vpack.c.b16 %v4090, %v4087
  %v4451 = vpack.c.b16 %v4091, %v4088
  %v4452 = vpack.c.b16 %v4092, %v4089
  %v4453 = vpack.c.b16 %v4096, %v4093
  %v4454 = vpack.c.b16 %v4097, %v4094
  %v4455 = vpack.c.b16 %v4098, %v4095
  %v4456 = vpack.c.b16 %v4102, %v4099
  %v4457 = vpack.c.b16 %v4103, %v4100
  %v4458 = vpack.c.b16 %v4104, %v4101
  %v4459 = vpack.c.b16 %v4108, %v4105
  %v4460 = vpack.c.b16 %v4109, %v4106
  %v4461 = vpack.c.b16 %v4110, %v4107
  %v4462 = vpack.c.b16 %v4114, %v4111
  %v4463 = vpack.c.b16 %v4115, %v4112
  %v4464 = vpack.c.b16 %v4116, %v4113
  %v4465 = vpack.c.b16 %v4120, %v4117
  %v4466 = vpack.c.b16 %v4121, %v4118
  %v4467 = vpack.c.b16 %v4122, %v4119
  %v4468 = vpack.c.b16 %v4126, %v4123
  %v4469 = vpack.c.b16 %v4127, %v4124
  %v4470 = vpack.c.b16 %v4128, %v4125
  %v4471 = vpack.c.b16 %v4132, %v4129
  %v4472 = vpack.c.b16 %v4133, %v4130
  %v4473 = vpack.c.b16 %v4134, %v4131
  %v4474 = vpack.c.b16 %v4138, %v4135
  %v4475 = vpack.c.b16 %v4139, %v4136
  %v4476 = vpack.c.b16 %v4140, %v4137
  %v4477 = vpack.c.b16 %v4144, %v4141
  %v4478 = vpack.c.b16 %v4145, %v4142
  %v4479 = vpack.c.b16 %v4146, %v4143
  %v4480 = vpack.c.b16 %v4150, %v4147
  %v4481 = vpack.c.b16 %v4151, %v4148
  %v4482 = vpack.c.b16 %v4152, %v4149
  %v4483 = vpack.c.b16 %v4156, %v4153
  %v4484 = vpack.c.b16 %v4157, %v4154
  %v4485 = vpack.c.b16 %v4158, %v4155
  %v4486 = vpack.c.b16 %v4162, %v4159
  %v4487 = vpack.c.b16 %v4163, %v4160
  %v4488 = vpack.c.b16 %v4164, %v4161
  %v4489 = vpack.c.b16 %v4168, %v4165
  %v4490 = vpack.c.b16 %v4169, %v4166
  %v4491 = vpack.c.b16 %v4170, %v4167
  %v4492 = vpack.c.b16 %v4174, %v4171
  %v4493 = vpack.c.b16 %v4175, %v4172
  %v4494 = vpack.c.b16 %v4176, %v4173
  %v4495 = vpack.c.b16 %v4180, %v4177
  %v4496 = vpack.c.b16 %v4181, %v4178
  %v4497 = vpack.c.b16 %v4182, %v4179
  %v4498 = vpack.c.b16 %v4186, %v4183
  %v4499 = vpack.c.b16 %v4187, %v4184
  %v4500 = vpack.c.b16 %v4188, %v4185
  %v4501 = vpack.c.b16 %v4192, %v4189
  %v4502 = vpack.c.b16 %v4193, %v4190
  %v4503 = vpack.c.b16 %v4194, %v4191
  %v4504 = vpack.c.b16 %v4198, %v4195
  %v4505 = vpack.c.b16 %v4199, %v4196
  %v4506 = vpack.c.b16 %v4200, %v4197
  %v4507 = vpack.c.b16 %v4204, %v4201
  %v4508 = vpack.c.b16 %v4205, %v4202
  %v4509 = vpack.c.b16 %v4206, %v4203
  %v4510 = vpack.c.b16 %v4210, %v4207
  %v4511 = vpack.c.b16 %v4211, %v4208
  %v4512 = vpack.c.b16 %v4212, %v4209
  %v4513 = vpack.c.b16 %v4216, %v4213
  %v4514 = vpack.c.b16 %v4217, %v4214
  %v4515 = vpack.c.b16 %v4218, %v4215
  %v4516 = vpack.c.b16 %v4222, %v4219
  %v4517 = vpack.c.b16 %v4223, %v4220
  %v4518 = vpack.c.b16 %v4224, %v4221
  %v4519 = vpack.c.b16 %v4228, %v4225
  %v4520 = vpack.c.b16 %v4229, %v4226
  %v4521 = vpack.c.b16 %v4230, %v4227
  %v4522 = vpack.c.b16 %v4234, %v4231
  %v4523 = vpack.c.b16 %v4235, %v4232
  %v4524 = vpack.c.b16 %v4236, %v4233
  %v4525 = vpack.c.b16 %v4240, %v4237
  %v4526 = vpack.c.b16 %v4241, %v4238
  %v4527 = vpack.c.b16 %v4242, %v4239
  %v4528 = vpack.c.b16 %v4246, %v4243
  %v4529 = vpack.c.b16 %v4247, %v4244
  %v4530 = vpack.c.b16 %v4248, %v4245
  %v4531 = vpack.c.b16 %v4252, %v4249
  %v4532 = vpack.c.b16 %v4253, %v4250
  %v4533 = vpack.c.b16 %v4254, %v4251
  %v4534 = vpack.c.b16 %v4258, %v4255
  %v4535 = vpack.c.b16 %v4259, %v4256
  %v4536 = vpack.c.b16 %v4260, %v4257
  %v4537 = vpack.c.b16 %v4264, %v4261
  %v4538 = vpack.c.b16 %v4265, %v4262
  %v4539 = vpack.c.b16 %v4266, %v4263
  %v4540 = vpack.c.b16 %v4270, %v4267
  %v4541 = vpack.c.b16 %v4271, %v4268
  %v4542 = vpack.c.b16 %v4272, %v4269
  %v4543 = vpack.c.b16 %v4276, %v4273
  %v4544 = vpack.c.b16 %v4277, %v4274
  %v4545 = vpack.c.b16 %v4278, %v4275
  %v4546 = vpack.c.b16 %v4282, %v4279
  %v4547 = vpack.c.b16 %v4283, %v4280
  %v4548 = vpack.c.b16 %v4284, %v4281
  %v4549 = vpack.c.b16 %v4288, %v4285
  %v4550 = vpack.c.b16 %v4289, %v4286
  %v4551 = vpack.c.b16 %v4290, %v4287
  %v4552 = vpack.c.b16 %v4294, %v4291
  %v4553 = vpack.c.b16 %v4295, %v4292
  %v4554 = vpack.c.b16 %v4296, %v4293
  %v4555 = vpack.c.b16 %v4300, %v4297
  %v4556 = vpack.c.b16 %v4301, %v4298
  %v4557 = vpack.c.b16 %v4302, %v4299
  %v4558 = vpack.c.b16 %v4306, %v4303
  %v4559 = vpack.c.b16 %v4307, %v4304
  %v4560 = vpack.c.b16 %v4308, %v4305
  %v4561 = vpack.c.b16 %v4312, %v4309
  %v4562 = vpack.c.b16 %v4313, %v4310
  %v4563 = vpack.c.b16 %v4314, %v4311
  %v4564 = vpack.c.b16 %v4318, %v4315
  %v4565 = vpack.c.b16 %v4319, %v4316
  %v4566 = vpack.c.b16 %v4320, %v4317
  %v4567 = vpack.c.b16 %v4324, %v4321
  %v4568 = vpack.c.b16 %v4325, %v4322
  %v4569 = vpack.c.b16 %v4326, %v4323
  %v4570 = vpack.c.b16 %v4330, %v4327
  %v4571 = vpack.c.b16 %v4331, %v4328
  %v4572 = vpack.c.b16 %v4332, %v4329
  %v4573 = vpack.c.b16 %v4336, %v4333
  %v4574 = vpack.c.b16 %v4337, %v4334
  %v4575 = vpack.c.b16 %v4338, %v4335
  %v4576 = vpack.c.b16 %v4342, %v4339
  %v4577 = vpack.c.b16 %v4343, %v4340
  %v4578 = vpack.c.b16 %v4344, %v4341
  %v4579 = vpack.c.b16 %v4348, %v4345
  %v4580 = vpack.c.b16 %v4349, %v4346
  %v4581 = vpack.c.b16 %v4350, %v4347
  %v4582 = vpack.c.b16 %v4354, %v4351
  %v4583 = vpack.c.b16 %v4355, %v4352
  %v4584 = vpack.c.b16 %v4356, %v4353
  %v4585 = vpack.c.b16 %v4360, %v4357
  %v4586 = vpack.c.b16 %v4361, %v4358
  %v4587 = vpack.c.b16 %v4362, %v4359
  %v4588 = vpack.c.b16 %v4366, %v4363
  %v4589 = vpack.c.b16 %v4367, %v4364
  %v4590 = vpack.c.b16 %v4368, %v4365
  %v4591 = vpack.c.b16 %v4372, %v4369
  %v4592 = vpack.c.b16 %v4373, %v4370
  %v4593 = vpack.c.b16 %v4374, %v4371
  %v4594 = vpack.c.b16 %v4378, %v4375
  %v4595 = vpack.c.b16 %v4379, %v4376
  %v4596 = vpack.c.b16 %v4380, %v4377
  %v4597 = vpack.c.b16 %v4384, %v4381
  %v4598 = vpack.c.b16 %v4385, %v4382
  %v4599 = vpack.c.b16 %v4386, %v4383
  %v4600 = vpack.c.b16 %v4390, %v4387
  %v4601 = vpack.c.b16 %v4391, %v4388
  %v4602 = vpack.c.b16 %v4392, %v4389
  %v4603 = vpack.c.b16 %v4396, %v4393
  %v4604 = vpack.c.b16 %v4397, %v4394
  %v4605 = vpack.c.b16 %v4398, %v4395
  %v4606 = vpack.c.b16 %v4402, %v4399
  %v4607 = vpack.c.b16 %v4403, %v4400
  %v4608 = vpack.c.b16 %v4404, %v4401
  %v4609 = vpack.c.b16 %v4408, %v4405
  %v4610 = vpack.c.b16 %v4409, %v4406
  %v4611 = vpack.c.b16 %v4410, %v4407
  %v4612 = vpack.c.b16 %v4414, %v4411
  %v4613 = vpack.c.b16 %v4415, %v4412
  %v4614 = vpack.c.b16 %v4416, %v4413
  %v4615 = vpack.c.b16 %v4420, %v4417
  %v4616 = vpack.c.b16 %v4421, %v4418
  %v4617 = vpack.c.b16 %v4422, %v4419
  %v4618 = vpack.c.b16 %v4426, %v4423
  %v4619 = vpack.c.b16 %v4427, %v4424
  %v4620 = vpack.c.b16 %v4428, %v4425
  %4813 = vmatprep.subr.bf16.mxu0 %v4430
  %4814 = vmatpush1.bf16.msra.mxu0 %v4429
  %4815 = vmatprep.subr.bf16.mxu0 %v4433
  %4816 = vmatpush1.bf16.msra.mxu0 %v4432
  %4817 = vmatprep.subr.bf16.mxu0 %v4436
  %4818 = vmatpush1.bf16.msra.mxu0 %v4435
  %4819 = vmatprep.subr.bf16.mxu0 %v4439
  %4820 = vmatpush1.bf16.msra.mxu0 %v4438
  %4821 = vmatprep.subr.bf16.mxu0 %v4442
  %4822 = vmatpush1.bf16.msra.mxu0 %v4441
  %4823 = vmatprep.subr.bf16.mxu0 %v4445
  %4824 = vmatpush1.bf16.msra.mxu0 %v4444
  %4825 = vmatprep.subr.bf16.mxu0 %v4448
  %4826 = vmatpush1.bf16.msra.mxu0 %v4447
  %4827 = vmatprep.subr.bf16.mxu0 %v4451
  %4828 = vmatpush1.bf16.msra.mxu0 %v4450
  %4829 = vmatprep.subr.bf16.mxu0 %v4454
  %4830 = vmatpush1.bf16.msra.mxu0 %v4453
  %4831 = vmatprep.subr.bf16.mxu0 %v4457
  %4832 = vmatpush1.bf16.msra.mxu0 %v4456
  %4833 = vmatprep.subr.bf16.mxu0 %v4460
  %4834 = vmatpush1.bf16.msra.mxu0 %v4459
  %4835 = vmatprep.subr.bf16.mxu0 %v4463
  %4836 = vmatpush1.bf16.msra.mxu0 %v4462
  %4837 = vmatprep.subr.bf16.mxu0 %v4466
  %4838 = vmatpush1.bf16.msra.mxu0 %v4465
  %4839 = vmatprep.subr.bf16.mxu0 %v4469
  %4840 = vmatpush1.bf16.msra.mxu0 %v4468
  %4841 = vmatprep.subr.bf16.mxu0 %v4472
  %4842 = vmatpush1.bf16.msra.mxu0 %v4471
  %4843 = vmatprep.subr.bf16.mxu0 %v4475
  %4844 = vmatpush1.bf16.msra.mxu0 %v4474
  %4845 = vmatprep.mubr.bf16.mxu0 %v3509
  %4846 = vmatmul.mubr.bf16.gmra.mrb[0].mxu0 %v3508
  %v4847 = vpop.f32.mrb[0].mxu0
  %v4848 = vadd.f32 %v3777, %v4847
  %v4849 = vpop.f32.mrb[0].mxu0
  %v4850 = vadd.f32 %v3781, %v4849
  %v4851 = vpop.f32.mrb[0].mxu0
  %v4852 = vpop.f32.mrb[0].mxu0
  %4853 = vdwg.mxu0
  %4854 = vmatprep.subr.bf16.mxu0 %v4478
  %4855 = vmatpush1.bf16.msra.mxu0 %v4477
  %4856 = vmatprep.subr.bf16.mxu0 %v4481
  %4857 = vmatpush1.bf16.msra.mxu0 %v4480
  %4858 = vmatprep.subr.bf16.mxu0 %v4484
  %4859 = vmatpush1.bf16.msra.mxu0 %v4483
  %4860 = vmatprep.subr.bf16.mxu0 %v4487
  %4861 = vmatpush1.bf16.msra.mxu0 %v4486
  %4862 = vmatprep.subr.bf16.mxu0 %v4490
  %4863 = vmatpush1.bf16.msra.mxu0 %v4489
  %4864 = vmatprep.subr.bf16.mxu0 %v4493
  %4865 = vmatpush1.bf16.msra.mxu0 %v4492
  %4866 = vmatprep.subr.bf16.mxu0 %v4496
  %4867 = vmatpush1.bf16.msra.mxu0 %v4495
  %4868 = vmatprep.subr.bf16.mxu0 %v4499
  %4869 = vmatpush1.bf16.msra.mxu0 %v4498
  %4870 = vmatprep.subr.bf16.mxu0 %v4502
  %4871 = vmatpush1.bf16.msra.mxu0 %v4501
  %4872 = vmatprep.subr.bf16.mxu0 %v4505
  %4873 = vmatpush1.bf16.msra.mxu0 %v4504
  %4874 = vmatprep.subr.bf16.mxu0 %v4508
  %4875 = vmatpush1.bf16.msra.mxu0 %v4507
  %4876 = vmatprep.subr.bf16.mxu0 %v4511
  %4877 = vmatpush1.bf16.msra.mxu0 %v4510
  %4878 = vmatprep.subr.bf16.mxu0 %v4514
  %4879 = vmatpush1.bf16.msra.mxu0 %v4513
  %4880 = vmatprep.subr.bf16.mxu0 %v4517
  %4881 = vmatpush1.bf16.msra.mxu0 %v4516
  %4882 = vmatprep.subr.bf16.mxu0 %v4520
  %4883 = vmatpush1.bf16.msra.mxu0 %v4519
  %4884 = vmatprep.subr.bf16.mxu0 %v4523
  %4885 = vmatpush1.bf16.msra.mxu0 %v4522
  %4886 = vmatprep.mubr.bf16.mxu0 %v3511
  %4887 = vmatmul.mubr.bf16.gmra.mrb[0].mxu0 %v3510
  %v4888 = vpop.f32.mrb[0].mxu0
  %v4889 = vadd.f32 %v4848, %v4888
  %v4890 = vpop.f32.mrb[0].mxu0
  %v4891 = vadd.f32 %v4850, %v4890
  %v4892 = vpop.f32.mrb[0].mxu0
  %v4893 = vpop.f32.mrb[0].mxu0
  %4894 = vdwg.mxu0
  %4895 = vmatprep.subr.bf16.mxu0 %v4526
  %4896 = vmatpush1.bf16.msra.mxu0 %v4525
  %4897 = vmatprep.subr.bf16.mxu0 %v4529
  %4898 = vmatpush1.bf16.msra.mxu0 %v4528
  %4899 = vmatprep.subr.bf16.mxu0 %v4532
  %4900 = vmatpush1.bf16.msra.mxu0 %v4531
  %4901 = vmatprep.subr.bf16.mxu0 %v4535
  %4902 = vmatpush1.bf16.msra.mxu0 %v4534
  %4903 = vmatprep.subr.bf16.mxu0 %v4538
  %4904 = vmatpush1.bf16.msra.mxu0 %v4537
  %4905 = vmatprep.subr.bf16.mxu0 %v4541
  %4906 = vmatpush1.bf16.msra.mxu0 %v4540
  %4907 = vmatprep.subr.bf16.mxu0 %v4544
  %4908 = vmatpush1.bf16.msra.mxu0 %v4543
  %4909 = vmatprep.subr.bf16.mxu0 %v4547
  %4910 = vmatpush1.bf16.msra.mxu0 %v4546
  %4911 = vmatprep.subr.bf16.mxu0 %v4550
  %4912 = vmatpush1.bf16.msra.mxu0 %v4549
  %4913 = vmatprep.subr.bf16.mxu0 %v4553
  %4914 = vmatpush1.bf16.msra.mxu0 %v4552
  %4915 = vmatprep.subr.bf16.mxu0 %v4556
  %4916 = vmatpush1.bf16.msra.mxu0 %v4555
  %4917 = vmatprep.subr.bf16.mxu0 %v4559
  %4918 = vmatpush1.bf16.msra.mxu0 %v4558
  %4919 = vmatprep.subr.bf16.mxu0 %v4562
  %4920 = vmatpush1.bf16.msra.mxu0 %v4561
  %4921 = vmatprep.subr.bf16.mxu0 %v4565
  %4922 = vmatpush1.bf16.msra.mxu0 %v4564
  %4923 = vmatprep.subr.bf16.mxu0 %v4568
  %4924 = vmatpush1.bf16.msra.mxu0 %v4567
  %4925 = vmatprep.subr.bf16.mxu0 %v4571
  %4926 = vmatpush1.bf16.msra.mxu0 %v4570
  %4927 = vmatprep.mubr.bf16.mxu0 %v3513
  %4928 = vmatmul.mubr.bf16.gmra.mrb[0].mxu0 %v3512
  %v4929 = vpop.f32.mrb[0].mxu0
  %v4930 = vadd.f32 %v4889, %v4929
  %v4931 = vpop.f32.mrb[0].mxu0
  %v4932 = vadd.f32 %v4891, %v4931
  %v4933 = vpop.f32.mrb[0].mxu0
  %v4934 = vpop.f32.mrb[0].mxu0
  %4935 = vdwg.mxu0
  %4936 = vmatprep.subr.bf16.mxu0 %v4574
  %4937 = vmatpush1.bf16.msra.mxu0 %v4573
  %4938 = vmatprep.subr.bf16.mxu0 %v4577
  %4939 = vmatpush1.bf16.msra.mxu0 %v4576
  %4940 = vmatprep.subr.bf16.mxu0 %v4580
  %4941 = vmatpush1.bf16.msra.mxu0 %v4579
  %4942 = vmatprep.subr.bf16.mxu0 %v4583
  %4943 = vmatpush1.bf16.msra.mxu0 %v4582
  %4944 = vmatprep.subr.bf16.mxu0 %v4586
  %4945 = vmatpush1.bf16.msra.mxu0 %v4585
  %4946 = vmatprep.subr.bf16.mxu0 %v4589
  %4947 = vmatpush1.bf16.msra.mxu0 %v4588
  %4948 = vmatprep.subr.bf16.mxu0 %v4592
  %4949 = vmatpush1.bf16.msra.mxu0 %v4591
  %4950 = vmatprep.subr.bf16.mxu0 %v4595
  %4951 = vmatpush1.bf16.msra.mxu0 %v4594
  %4952 = vmatprep.subr.bf16.mxu0 %v4598
  %4953 = vmatpush1.bf16.msra.mxu0 %v4597
  %4954 = vmatprep.subr.bf16.mxu0 %v4601
  %4955 = vmatpush1.bf16.msra.mxu0 %v4600
  %4956 = vmatprep.subr.bf16.mxu0 %v4604
  %4957 = vmatpush1.bf16.msra.mxu0 %v4603
  %4958 = vmatprep.subr.bf16.mxu0 %v4607
  %4959 = vmatpush1.bf16.msra.mxu0 %v4606
  %4960 = vmatprep.subr.bf16.mxu0 %v4610
  %4961 = vmatpush1.bf16.msra.mxu0 %v4609
  %4962 = vmatprep.subr.bf16.mxu0 %v4613
  %4963 = vmatpush1.bf16.msra.mxu0 %v4612
  %4964 = vmatprep.subr.bf16.mxu0 %v4616
  %4965 = vmatpush1.bf16.msra.mxu0 %v4615
  %4966 = vmatprep.subr.bf16.mxu0 %v4619
  %4967 = vmatpush1.bf16.msra.mxu0 %v4618
  %4968 = vmatprep.mubr.bf16.mxu0 %v3515
  %4969 = vmatmul.mubr.bf16.gmra.mrb[0].mxu0 %v3514
  %v4970 = vpop.f32.mrb[0].mxu0
  %v4971 = vadd.f32 %v4930, %v4970
  %v4972 = vpop.f32.mrb[0].mxu0
  %v4973 = vadd.f32 %v4932, %v4972
  %v4974 = vpop.f32.mrb[0].mxu0
  %v4975 = vpop.f32.mrb[0].mxu0
  %4976 = vdwg.mxu0
  %4977 = vmatprep.subr.bf16.mxu0 0
  %4978 = vmatpush1.bf16.msra.mxu0 %v4431
  %4979 = vmatprep.subr.bf16.mxu0 0
  %4980 = vmatpush1.bf16.msra.mxu0 %v4434
  %4981 = vmatprep.subr.bf16.mxu0 0
  %4982 = vmatpush1.bf16.msra.mxu0 %v4437
  %4983 = vmatprep.subr.bf16.mxu0 0
  %4984 = vmatpush1.bf16.msra.mxu0 %v4440
  %4985 = vmatprep.subr.bf16.mxu0 0
  %4986 = vmatpush1.bf16.msra.mxu0 %v4443
  %4987 = vmatprep.subr.bf16.mxu0 0
  %4988 = vmatpush1.bf16.msra.mxu0 %v4446
  %4989 = vmatprep.subr.bf16.mxu0 0
  %4990 = vmatpush1.bf16.msra.mxu0 %v4449
  %4991 = vmatprep.subr.bf16.mxu0 0
  %4992 = vmatpush1.bf16.msra.mxu0 %v4452
  %4993 = vmatprep.subr.bf16.mxu0 0
  %4994 = vmatpush1.bf16.msra.mxu0 %v4455
  %4995 = vmatprep.subr.bf16.mxu0 0
  %4996 = vmatpush1.bf16.msra.mxu0 %v4458
  %4997 = vmatprep.subr.bf16.mxu0 0
  %4998 = vmatpush1.bf16.msra.mxu0 %v4461
  %4999 = vmatprep.subr.bf16.mxu0 0
  %5000 = vmatpush1.bf16.msra.mxu0 %v4464
  %5001 = vmatprep.subr.bf16.mxu0 0
  %5002 = vmatpush1.bf16.msra.mxu0 %v4467
  %5003 = vmatprep.subr.bf16.mxu0 0
  %5004 = vmatpush1.bf16.msra.mxu0 %v4470
  %5005 = vmatprep.subr.bf16.mxu0 0
  %5006 = vmatpush1.bf16.msra.mxu0 %v4473
  %5007 = vmatprep.subr.bf16.mxu0 0
  %5008 = vmatpush1.bf16.msra.mxu0 %v4476
  %5009 = vmatprep.mubr.bf16.mxu0 %v3509
  %5010 = vmatmul.mubr.bf16.gmra.mrb[0].mxu0 %v3508
  %v5011 = vpop.f32.mrb[0].mxu0
  %v5012 = vadd.f32 %v3785, %v5011
  %v5013 = vpop.f32.mrb[0].mxu0
  %v5014 = vpop.f32.mrb[0].mxu0
  %v5015 = vpop.f32.mrb[0].mxu0
  %5016 = vdwg.mxu0
  %5017 = vmatprep.subr.bf16.mxu0 0
  %5018 = vmatpush1.bf16.msra.mxu0 %v4479
  %5019 = vmatprep.subr.bf16.mxu0 0
  %5020 = vmatpush1.bf16.msra.mxu0 %v4482
  %5021 = vmatprep.subr.bf16.mxu0 0
  %5022 = vmatpush1.bf16.msra.mxu0 %v4485
  %5023 = vmatprep.subr.bf16.mxu0 0
  %5024 = vmatpush1.bf16.msra.mxu0 %v4488
  %5025 = vmatprep.subr.bf16.mxu0 0
  %5026 = vmatpush1.bf16.msra.mxu0 %v4491
  %5027 = vmatprep.subr.bf16.mxu0 0
  %5028 = vmatpush1.bf16.msra.mxu0 %v4494
  %5029 = vmatprep.subr.bf16.mxu0 0
  %5030 = vmatpush1.bf16.msra.mxu0 %v4497
  %5031 = vmatprep.subr.bf16.mxu0 0
  %5032 = vmatpush1.bf16.msra.mxu0 %v4500
  %5033 = vmatprep.subr.bf16.mxu0 0
  %5034 = vmatpush1.bf16.msra.mxu0 %v4503
  %5035 = vmatprep.subr.bf16.mxu0 0
  %5036 = vmatpush1.bf16.msra.mxu0 %v4506
  %5037 = vmatprep.subr.bf16.mxu0 0
  %5038 = vmatpush1.bf16.msra.mxu0 %v4509
  %5039 = vmatprep.subr.bf16.mxu0 0
  %5040 = vmatpush1.bf16.msra.mxu0 %v4512
  %5041 = vmatprep.subr.bf16.mxu0 0
  %5042 = vmatpush1.bf16.msra.mxu0 %v4515
  %5043 = vmatprep.subr.bf16.mxu0 0
  %5044 = vmatpush1.bf16.msra.mxu0 %v4518
  %5045 = vmatprep.subr.bf16.mxu0 0
  %5046 = vmatpush1.bf16.msra.mxu0 %v4521
  %5047 = vmatprep.subr.bf16.mxu0 0
  %5048 = vmatpush1.bf16.msra.mxu0 %v4524
  %5049 = vmatprep.mubr.bf16.mxu0 %v3511
  %5050 = vmatmul.mubr.bf16.gmra.mrb[0].mxu0 %v3510
  %v5051 = vpop.f32.mrb[0].mxu0
  %v5052 = vadd.f32 %v5012, %v5051
  %v5053 = vpop.f32.mrb[0].mxu0
  %v5054 = vpop.f32.mrb[0].mxu0
  %v5055 = vpop.f32.mrb[0].mxu0
  %5056 = vdwg.mxu0
  %5057 = vmatprep.subr.bf16.mxu0 0
  %5058 = vmatpush1.bf16.msra.mxu0 %v4527
  %5059 = vmatprep.subr.bf16.mxu0 0
  %5060 = vmatpush1.bf16.msra.mxu0 %v4530
  %5061 = vmatprep.subr.bf16.mxu0 0
  %5062 = vmatpush1.bf16.msra.mxu0 %v4533
  %5063 = vmatprep.subr.bf16.mxu0 0
  %5064 = vmatpush1.bf16.msra.mxu0 %v4536
  %5065 = vmatprep.subr.bf16.mxu0 0
  %5066 = vmatpush1.bf16.msra.mxu0 %v4539
  %5067 = vmatprep.subr.bf16.mxu0 0
  %5068 = vmatpush1.bf16.msra.mxu0 %v4542
  %5069 = vmatprep.subr.bf16.mxu0 0
  %5070 = vmatpush1.bf16.msra.mxu0 %v4545
  %5071 = vmatprep.subr.bf16.mxu0 0
  %5072 = vmatpush1.bf16.msra.mxu0 %v4548
  %5073 = vmatprep.subr.bf16.mxu0 0
  %5074 = vmatpush1.bf16.msra.mxu0 %v4551
  %5075 = vmatprep.subr.bf16.mxu0 0
  %5076 = vmatpush1.bf16.msra.mxu0 %v4554
  %5077 = vmatprep.subr.bf16.mxu0 0
  %5078 = vmatpush1.bf16.msra.mxu0 %v4557
  %5079 = vmatprep.subr.bf16.mxu0 0
  %5080 = vmatpush1.bf16.msra.mxu0 %v4560
  %5081 = vmatprep.subr.bf16.mxu0 0
  %5082 = vmatpush1.bf16.msra.mxu0 %v4563
  %5083 = vmatprep.subr.bf16.mxu0 0
  %5084 = vmatpush1.bf16.msra.mxu0 %v4566
  %5085 = vmatprep.subr.bf16.mxu0 0
  %5086 = vmatpush1.bf16.msra.mxu0 %v4569
  %5087 = vmatprep.subr.bf16.mxu0 0
  %5088 = vmatpush1.bf16.msra.mxu0 %v4572
  %5089 = vmatprep.mubr.bf16.mxu0 %v3513
  %5090 = vmatmul.mubr.bf16.gmra.mrb[0].mxu0 %v3512
  %v5091 = vpop.f32.mrb[0].mxu0
  %v5092 = vadd.f32 %v5052, %v5091
  %v5093 = vpop.f32.mrb[0].mxu0
  %v5094 = vpop.f32.mrb[0].mxu0
  %v5095 = vpop.f32.mrb[0].mxu0
  %5096 = vdwg.mxu0
  %5097 = vmatprep.subr.bf16.mxu0 0
  %5098 = vmatpush1.bf16.msra.mxu0 %v4575
  %5099 = vmatprep.subr.bf16.mxu0 0
  %5100 = vmatpush1.bf16.msra.mxu0 %v4578
  %5101 = vmatprep.subr.bf16.mxu0 0
  %5102 = vmatpush1.bf16.msra.mxu0 %v4581
  %5103 = vmatprep.subr.bf16.mxu0 0
  %5104 = vmatpush1.bf16.msra.mxu0 %v4584
  %5105 = vmatprep.subr.bf16.mxu0 0
  %5106 = vmatpush1.bf16.msra.mxu0 %v4587
  %5107 = vmatprep.subr.bf16.mxu0 0
  %5108 = vmatpush1.bf16.msra.mxu0 %v4590
  %5109 = vmatprep.subr.bf16.mxu0 0
  %5110 = vmatpush1.bf16.msra.mxu0 %v4593
  %5111 = vmatprep.subr.bf16.mxu0 0
  %5112 = vmatpush1.bf16.msra.mxu0 %v4596
  %5113 = vmatprep.subr.bf16.mxu0 0
  %5114 = vmatpush1.bf16.msra.mxu0 %v4599
  %5115 = vmatprep.subr.bf16.mxu0 0
  %5116 = vmatpush1.bf16.msra.mxu0 %v4602
  %5117 = vmatprep.subr.bf16.mxu0 0
  %5118 = vmatpush1.bf16.msra.mxu0 %v4605
  %5119 = vmatprep.subr.bf16.mxu0 0
  %5120 = vmatpush1.bf16.msra.mxu0 %v4608
  %5121 = vmatprep.subr.bf16.mxu0 0
  %5122 = vmatpush1.bf16.msra.mxu0 %v4611
  %5123 = vmatprep.subr.bf16.mxu0 0
  %5124 = vmatpush1.bf16.msra.mxu0 %v4614
  %5125 = vmatprep.subr.bf16.mxu0 0
  %5126 = vmatpush1.bf16.msra.mxu0 %v4617
  %5127 = vmatprep.subr.bf16.mxu0 0
  %5128 = vmatpush1.bf16.msra.mxu0 %v4620
  %5129 = vmatprep.mubr.bf16.mxu0 %v3515
  %5130 = vmatmul.mubr.bf16.gmra.mrb[0].mxu0 %v3514
  %v5131 = vpop.f32.mrb[0].mxu0
  %v5132 = vadd.f32 %v5092, %v5131
  %v5133 = vpop.f32.mrb[0].mxu0
  %v5134 = vpop.f32.mrb[0].mxu0
  %v5135 = vpop.f32.mrb[0].mxu0
  %5136 = vdwg.mxu0
  %v5137 = vld [vmem:[%s10] sm:$0x7]
  %v5138 = vld [vmem:[%s11] sm:$0x7]
  %v5139 = vadd.f32 %v4971, %v4973
  %v5140 = vadd.f32 %v5139, %v5132
  %5141 = vadd.xlane.f32.xlu0 %v5140
  %v5142 = vpop.xlane.xlu0 %5141
  %v5143 = vmul.f32 %v4971, %v4971
  %v5144 = vmul.f32 %v4973, %v4973
  %v5145 = vmul.f32 %v5132, %v5132
  %v5146 = vadd.f32 %v5143, %v5144
  %v5147 = vadd.f32 %v5146, %v5145
  %5148 = vadd.xlane.f32.xlu0 %v5147
  %v5149 = vpop.xlane.xlu0 %5148
  %v5150 = vmul.f32 %v5142, %v3445
  %v5151 = vmul.f32 %v5149, %v3445
  %v5152 = vmul.f32 %v5150, %v5150
  %v5153 = vsub.f32 %v5151, %v5152
  %v5154 = vmax.f32 %v5153, 0.0
  %v5155 = vsub.f32 %v4971, %v5150
  %v5156 = vsub.f32 %v4973, %v5150
  %v5157 = vsub.f32 %v5132, %v5150
  %v5158 = vadd.f32 %v5154, 1e-05
  %v5159 = vrsqrt.pop %v5158
  %v5160 = vmul.f32 %v5155, %v5159
  %v5161 = vmul.f32 %v5156, %v5159
  %v5162 = vmul.f32 %v5157, %v5159
  %v5164 = vlaneseq
  %v5165 = vshrl.u32 %v5164, 7
  %v5166 = vsub.s32 0, %v5165
  %v5167 = vrot.slane %v5137, %v5166
  %v5168 = vlaneseq
  %v5169 = vshrl.u32 %v5168, 7
  %v5170 = vsub.s32 1, %v5169
  %v5171 = vrot.slane %v5137, %v5170
  %v5172 = vlaneseq
  %v5173 = vshrl.u32 %v5172, 7
  %v5174 = vsub.s32 2, %v5173
  %v5175 = vrot.slane %v5137, %v5174
  %v5179 = vmul.f32 %v5160, %v5167
  %v5180 = vmul.f32 %v5161, %v5171
  %v5181 = vmul.f32 %v5162, %v5175
  %v5183 = vlaneseq
  %v5184 = vshrl.u32 %v5183, 7
  %v5185 = vsub.s32 0, %v5184
  %v5186 = vrot.slane %v5138, %v5185
  %v5187 = vlaneseq
  %v5188 = vshrl.u32 %v5187, 7
  %v5189 = vsub.s32 1, %v5188
  %v5190 = vrot.slane %v5138, %v5189
  %v5191 = vlaneseq
  %v5192 = vshrl.u32 %v5191, 7
  %v5193 = vsub.s32 2, %v5192
  %v5194 = vrot.slane %v5138, %v5193
  %v5198 = vadd.f32 %v5179, %v5186
  %v5199 = vadd.f32 %v5180, %v5190
  %v5200 = vadd.f32 %v5181, %v5194
  %v5201 = vmax.f32 %v5198, 0.0
  %v5202 = vmax.f32 %v5199, 0.0
  %v5203 = vmax.f32 %v5200, 0.0
  %v5204 = vpack.c.bf16 %v3497, %v3497
  %v5205 = vpack.c.bf16 %v3498, %v3498
  %v5206 = vpack.c.bf16 %v3499, %v3499
  %v5207 = vld [vmem:[%s12] sm:$0xff]
  %v5208 = vld [vmem:[%s12 + $0x8] sm:$0xf]
  %v5209 = vld [vmem:[%s12 + $0xc] sm:$0xff]
  %v5210 = vld [vmem:[%s12 + $0x14] sm:$0xf]
  %v5211 = vld [vmem:[%s12 + $0x18] sm:$0xff]
  %v5212 = vld [vmem:[%s12 + $0x20] sm:$0xf]
  %v5213 = vld [vmem:[%s12 + $0x24] sm:$0xff]
  %v5214 = vld [vmem:[%s12 + $0x2c] sm:$0xf]
  %v5215 = vld [vmem:[%s12 + $0x30] sm:$0xff]
  %v5216 = vld [vmem:[%s12 + $0x38] sm:$0xf]
  %v5217 = vld [vmem:[%s12 + $0x3c] sm:$0xff]
  %v5218 = vld [vmem:[%s12 + $0x44] sm:$0xf]
  %v5219 = vld [vmem:[%s12 + $0x48] sm:$0xff]
  %v5220 = vld [vmem:[%s12 + $0x50] sm:$0xf]
  %v5221 = vld [vmem:[%s12 + $0x54] sm:$0xff]
  %v5222 = vld [vmem:[%s12 + $0x5c] sm:$0xf]
  %v5223 = vld [vmem:[%s12 + $0x60] sm:$0xff]
  %v5224 = vld [vmem:[%s12 + $0x68] sm:$0xf]
  %v5225 = vld [vmem:[%s12 + $0x6c] sm:$0xff]
  %v5226 = vld [vmem:[%s12 + $0x74] sm:$0xf]
  %v5227 = vld [vmem:[%s12 + $0x78] sm:$0xff]
  %v5228 = vld [vmem:[%s12 + $0x80] sm:$0xf]
  %v5229 = vld [vmem:[%s12 + $0x84] sm:$0xff]
  %v5230 = vld [vmem:[%s12 + $0x8c] sm:$0xf]
  %v5231 = vld [vmem:[%s12 + $0x90] sm:$0xff]
  %v5232 = vld [vmem:[%s12 + $0x98] sm:$0xf]
  %v5233 = vld [vmem:[%s12 + $0x9c] sm:$0xff]
  %v5234 = vld [vmem:[%s12 + $0xa4] sm:$0xf]
  %v5235 = vld [vmem:[%s12 + $0xa8] sm:$0xff]
  %v5236 = vld [vmem:[%s12 + $0xb0] sm:$0xf]
  %v5237 = vld [vmem:[%s12 + $0xb4] sm:$0xff]
  %v5238 = vld [vmem:[%s12 + $0xbc] sm:$0xf]
  %v5239 = vld [vmem:[%s12 + $0xc0] sm:$0xff]
  %v5240 = vld [vmem:[%s12 + $0xc8] sm:$0xf]
  %v5241 = vld [vmem:[%s12 + $0xcc] sm:$0xff]
  %v5242 = vld [vmem:[%s12 + $0xd4] sm:$0xf]
  %v5243 = vld [vmem:[%s12 + $0xd8] sm:$0xff]
  %v5244 = vld [vmem:[%s12 + $0xe0] sm:$0xf]
  %v5245 = vld [vmem:[%s12 + $0xe4] sm:$0xff]
  %v5246 = vld [vmem:[%s12 + $0xec] sm:$0xf]
  %v5247 = vld [vmem:[%s12 + $0xf0] sm:$0xff]
  %v5248 = vld [vmem:[%s12 + $0xf8] sm:$0xf]
  %v5249 = vld [vmem:[%s12 + $0xfc] sm:$0xff]
  %v5250 = vld [vmem:[%s12 + $0x104] sm:$0xf]
  %v5251 = vld [vmem:[%s12 + $0x108] sm:$0xff]
  %v5252 = vld [vmem:[%s12 + $0x110] sm:$0xf]
  %v5253 = vld [vmem:[%s12 + $0x114] sm:$0xff]
  %v5254 = vld [vmem:[%s12 + $0x11c] sm:$0xf]
  %v5255 = vld [vmem:[%s12 + $0x120] sm:$0xff]
  %v5256 = vld [vmem:[%s12 + $0x128] sm:$0xf]
  %v5257 = vld [vmem:[%s12 + $0x12c] sm:$0xff]
  %v5258 = vld [vmem:[%s12 + $0x134] sm:$0xf]
  %v5259 = vld [vmem:[%s12 + $0x138] sm:$0xff]
  %v5260 = vld [vmem:[%s12 + $0x140] sm:$0xf]
  %v5261 = vld [vmem:[%s12 + $0x144] sm:$0xff]
  %v5262 = vld [vmem:[%s12 + $0x14c] sm:$0xf]
  %v5263 = vld [vmem:[%s12 + $0x150] sm:$0xff]
  %v5264 = vld [vmem:[%s12 + $0x158] sm:$0xf]
  %v5265 = vld [vmem:[%s12 + $0x15c] sm:$0xff]
  %v5266 = vld [vmem:[%s12 + $0x164] sm:$0xf]
  %v5267 = vld [vmem:[%s12 + $0x168] sm:$0xff]
  %v5268 = vld [vmem:[%s12 + $0x170] sm:$0xf]
  %v5269 = vld [vmem:[%s12 + $0x174] sm:$0xff]
  %v5270 = vld [vmem:[%s12 + $0x17c] sm:$0xf]
  %v5271 = vld [vmem:[%s12 + $0x180] sm:$0xff]
  %v5272 = vld [vmem:[%s12 + $0x188] sm:$0xf]
  %v5273 = vld [vmem:[%s12 + $0x18c] sm:$0xff]
  %v5274 = vld [vmem:[%s12 + $0x194] sm:$0xf]
  %v5275 = vld [vmem:[%s12 + $0x198] sm:$0xff]
  %v5276 = vld [vmem:[%s12 + $0x1a0] sm:$0xf]
  %v5277 = vld [vmem:[%s12 + $0x1a4] sm:$0xff]
  %v5278 = vld [vmem:[%s12 + $0x1ac] sm:$0xf]
  %v5279 = vld [vmem:[%s12 + $0x1b0] sm:$0xff]
  %v5280 = vld [vmem:[%s12 + $0x1b8] sm:$0xf]
  %v5281 = vld [vmem:[%s12 + $0x1bc] sm:$0xff]
  %v5282 = vld [vmem:[%s12 + $0x1c4] sm:$0xf]
  %v5283 = vld [vmem:[%s12 + $0x1c8] sm:$0xff]
  %v5284 = vld [vmem:[%s12 + $0x1d0] sm:$0xf]
  %v5285 = vld [vmem:[%s12 + $0x1d4] sm:$0xff]
  %v5286 = vld [vmem:[%s12 + $0x1dc] sm:$0xf]
  %v5287 = vld [vmem:[%s12 + $0x1e0] sm:$0xff]
  %v5288 = vld [vmem:[%s12 + $0x1e8] sm:$0xf]
  %v5289 = vld [vmem:[%s12 + $0x1ec] sm:$0xff]
  %v5290 = vld [vmem:[%s12 + $0x1f4] sm:$0xf]
  %v5291 = vld [vmem:[%s12 + $0x1f8] sm:$0xff]
  %v5292 = vld [vmem:[%s12 + $0x200] sm:$0xf]
  %v5293 = vld [vmem:[%s12 + $0x204] sm:$0xff]
  %v5294 = vld [vmem:[%s12 + $0x20c] sm:$0xf]
  %v5295 = vld [vmem:[%s12 + $0x210] sm:$0xff]
  %v5296 = vld [vmem:[%s12 + $0x218] sm:$0xf]
  %v5297 = vld [vmem:[%s12 + $0x21c] sm:$0xff]
  %v5298 = vld [vmem:[%s12 + $0x224] sm:$0xf]
  %v5299 = vld [vmem:[%s12 + $0x228] sm:$0xff]
  %v5300 = vld [vmem:[%s12 + $0x230] sm:$0xf]
  %v5301 = vld [vmem:[%s12 + $0x234] sm:$0xff]
  %v5302 = vld [vmem:[%s12 + $0x23c] sm:$0xf]
  %v5303 = vpack.c.bf16 %v5201, %v5201
  %v5304 = vpack.c.bf16 %v5202, %v5202
  %v5305 = vpack.c.bf16 %v5203, %v5203
  %v5306 = vld [vmem:[%s13] sm:$0xff]
  %v5307 = vld [vmem:[%s13 + $0x8] sm:$0xf]
  %v5308 = vld [vmem:[%s13 + $0xc] sm:$0xff]
  %v5309 = vld [vmem:[%s13 + $0x14] sm:$0xf]
  %v5310 = vld [vmem:[%s13 + $0x18] sm:$0xff]
  %v5311 = vld [vmem:[%s13 + $0x20] sm:$0xf]
  %v5312 = vld [vmem:[%s13 + $0x24] sm:$0xff]
  %v5313 = vld [vmem:[%s13 + $0x2c] sm:$0xf]
  %v5314 = vld [vmem:[%s13 + $0x30] sm:$0xff]
  %v5315 = vld [vmem:[%s13 + $0x38] sm:$0xf]
  %v5316 = vld [vmem:[%s13 + $0x3c] sm:$0xff]
  %v5317 = vld [vmem:[%s13 + $0x44] sm:$0xf]
  %v5318 = vld [vmem:[%s13 + $0x48] sm:$0xff]
  %v5319 = vld [vmem:[%s13 + $0x50] sm:$0xf]
  %v5320 = vld [vmem:[%s13 + $0x54] sm:$0xff]
  %v5321 = vld [vmem:[%s13 + $0x5c] sm:$0xf]
  %v5322 = vld [vmem:[%s13 + $0x60] sm:$0xff]
  %v5323 = vld [vmem:[%s13 + $0x68] sm:$0xf]
  %v5324 = vld [vmem:[%s13 + $0x6c] sm:$0xff]
  %v5325 = vld [vmem:[%s13 + $0x74] sm:$0xf]
  %v5326 = vld [vmem:[%s13 + $0x78] sm:$0xff]
  %v5327 = vld [vmem:[%s13 + $0x80] sm:$0xf]
  %v5328 = vld [vmem:[%s13 + $0x84] sm:$0xff]
  %v5329 = vld [vmem:[%s13 + $0x8c] sm:$0xf]
  %v5330 = vld [vmem:[%s13 + $0x90] sm:$0xff]
  %v5331 = vld [vmem:[%s13 + $0x98] sm:$0xf]
  %v5332 = vld [vmem:[%s13 + $0x9c] sm:$0xff]
  %v5333 = vld [vmem:[%s13 + $0xa4] sm:$0xf]
  %v5334 = vld [vmem:[%s13 + $0xa8] sm:$0xff]
  %v5335 = vld [vmem:[%s13 + $0xb0] sm:$0xf]
  %v5336 = vld [vmem:[%s13 + $0xb4] sm:$0xff]
  %v5337 = vld [vmem:[%s13 + $0xbc] sm:$0xf]
  %v5338 = vld [vmem:[%s13 + $0xc0] sm:$0xff]
  %v5339 = vld [vmem:[%s13 + $0xc8] sm:$0xf]
  %v5340 = vld [vmem:[%s13 + $0xcc] sm:$0xff]
  %v5341 = vld [vmem:[%s13 + $0xd4] sm:$0xf]
  %v5342 = vld [vmem:[%s13 + $0xd8] sm:$0xff]
  %v5343 = vld [vmem:[%s13 + $0xe0] sm:$0xf]
  %v5344 = vld [vmem:[%s13 + $0xe4] sm:$0xff]
  %v5345 = vld [vmem:[%s13 + $0xec] sm:$0xf]
  %v5346 = vld [vmem:[%s13 + $0xf0] sm:$0xff]
  %v5347 = vld [vmem:[%s13 + $0xf8] sm:$0xf]
  %v5348 = vld [vmem:[%s13 + $0xfc] sm:$0xff]
  %v5349 = vld [vmem:[%s13 + $0x104] sm:$0xf]
  %v5350 = vld [vmem:[%s13 + $0x108] sm:$0xff]
  %v5351 = vld [vmem:[%s13 + $0x110] sm:$0xf]
  %v5352 = vld [vmem:[%s13 + $0x114] sm:$0xff]
  %v5353 = vld [vmem:[%s13 + $0x11c] sm:$0xf]
  %v5354 = vld [vmem:[%s13 + $0x120] sm:$0xff]
  %v5355 = vld [vmem:[%s13 + $0x128] sm:$0xf]
  %v5356 = vld [vmem:[%s13 + $0x12c] sm:$0xff]
  %v5357 = vld [vmem:[%s13 + $0x134] sm:$0xf]
  %v5358 = vld [vmem:[%s13 + $0x138] sm:$0xff]
  %v5359 = vld [vmem:[%s13 + $0x140] sm:$0xf]
  %v5360 = vld [vmem:[%s13 + $0x144] sm:$0xff]
  %v5361 = vld [vmem:[%s13 + $0x14c] sm:$0xf]
  %v5362 = vld [vmem:[%s13 + $0x150] sm:$0xff]
  %v5363 = vld [vmem:[%s13 + $0x158] sm:$0xf]
  %v5364 = vld [vmem:[%s13 + $0x15c] sm:$0xff]
  %v5365 = vld [vmem:[%s13 + $0x164] sm:$0xf]
  %v5366 = vld [vmem:[%s13 + $0x168] sm:$0xff]
  %v5367 = vld [vmem:[%s13 + $0x170] sm:$0xf]
  %v5368 = vld [vmem:[%s13 + $0x174] sm:$0xff]
  %v5369 = vld [vmem:[%s13 + $0x17c] sm:$0xf]
  %v5370 = vld [vmem:[%s13 + $0x180] sm:$0xff]
  %v5371 = vld [vmem:[%s13 + $0x188] sm:$0xf]
  %v5372 = vld [vmem:[%s13 + $0x18c] sm:$0xff]
  %v5373 = vld [vmem:[%s13 + $0x194] sm:$0xf]
  %v5374 = vld [vmem:[%s13 + $0x198] sm:$0xff]
  %v5375 = vld [vmem:[%s13 + $0x1a0] sm:$0xf]
  %v5376 = vld [vmem:[%s13 + $0x1a4] sm:$0xff]
  %v5377 = vld [vmem:[%s13 + $0x1ac] sm:$0xf]
  %v5378 = vld [vmem:[%s13 + $0x1b0] sm:$0xff]
  %v5379 = vld [vmem:[%s13 + $0x1b8] sm:$0xf]
  %v5380 = vld [vmem:[%s13 + $0x1bc] sm:$0xff]
  %v5381 = vld [vmem:[%s13 + $0x1c4] sm:$0xf]
  %v5382 = vld [vmem:[%s13 + $0x1c8] sm:$0xff]
  %v5383 = vld [vmem:[%s13 + $0x1d0] sm:$0xf]
  %v5384 = vld [vmem:[%s13 + $0x1d4] sm:$0xff]
  %v5385 = vld [vmem:[%s13 + $0x1dc] sm:$0xf]
  %v5386 = vld [vmem:[%s13 + $0x1e0] sm:$0xff]
  %v5387 = vld [vmem:[%s13 + $0x1e8] sm:$0xf]
  %v5388 = vld [vmem:[%s13 + $0x1ec] sm:$0xff]
  %v5389 = vld [vmem:[%s13 + $0x1f4] sm:$0xf]
  %v5390 = vld [vmem:[%s13 + $0x1f8] sm:$0xff]
  %v5391 = vld [vmem:[%s13 + $0x200] sm:$0xf]
  %v5392 = vld [vmem:[%s13 + $0x204] sm:$0xff]
  %v5393 = vld [vmem:[%s13 + $0x20c] sm:$0xf]
  %v5394 = vld [vmem:[%s13 + $0x210] sm:$0xff]
  %v5395 = vld [vmem:[%s13 + $0x218] sm:$0xf]
  %v5396 = vld [vmem:[%s13 + $0x21c] sm:$0xff]
  %v5397 = vld [vmem:[%s13 + $0x224] sm:$0xf]
  %v5398 = vld [vmem:[%s13 + $0x228] sm:$0xff]
  %v5399 = vld [vmem:[%s13 + $0x230] sm:$0xf]
  %v5400 = vld [vmem:[%s13 + $0x234] sm:$0xff]
  %v5401 = vld [vmem:[%s13 + $0x23c] sm:$0xf]
  %v5498 = vunpack.c.l.b16 %v5306
  %v5499 = vunpack.c.h.b16 %v5306
  %v5500 = vunpack.c.l.b16 %v5307
  %v5501 = vunpack.c.l.b16 %v5308
  %v5502 = vunpack.c.h.b16 %v5308
  %v5503 = vunpack.c.l.b16 %v5309
  %v5504 = vunpack.c.l.b16 %v5310
  %v5505 = vunpack.c.h.b16 %v5310
  %v5506 = vunpack.c.l.b16 %v5311
  %v5507 = vunpack.c.l.b16 %v5312
  %v5508 = vunpack.c.h.b16 %v5312
  %v5509 = vunpack.c.l.b16 %v5313
  %v5510 = vunpack.c.l.b16 %v5314
  %v5511 = vunpack.c.h.b16 %v5314
  %v5512 = vunpack.c.l.b16 %v5315
  %v5513 = vunpack.c.l.b16 %v5316
  %v5514 = vunpack.c.h.b16 %v5316
  %v5515 = vunpack.c.l.b16 %v5317
  %v5516 = vunpack.c.l.b16 %v5318
  %v5517 = vunpack.c.h.b16 %v5318
  %v5518 = vunpack.c.l.b16 %v5319
  %v5519 = vunpack.c.l.b16 %v5320
  %v5520 = vunpack.c.h.b16 %v5320
  %v5521 = vunpack.c.l.b16 %v5321
  %v5522 = vunpack.c.l.b16 %v5322
  %v5523 = vunpack.c.h.b16 %v5322
  %v5524 = vunpack.c.l.b16 %v5323
  %v5525 = vunpack.c.l.b16 %v5324
  %v5526 = vunpack.c.h.b16 %v5324
  %v5527 = vunpack.c.l.b16 %v5325
  %v5528 = vunpack.c.l.b16 %v5326
  %v5529 = vunpack.c.h.b16 %v5326
  %v5530 = vunpack.c.l.b16 %v5327
  %v5531 = vunpack.c.l.b16 %v5328
  %v5532 = vunpack.c.h.b16 %v5328
  %v5533 = vunpack.c.l.b16 %v5329
  %v5534 = vunpack.c.l.b16 %v5330
  %v5535 = vunpack.c.h.b16 %v5330
  %v5536 = vunpack.c.l.b16 %v5331
  %v5537 = vunpack.c.l.b16 %v5332
  %v5538 = vunpack.c.h.b16 %v5332
  %v5539 = vunpack.c.l.b16 %v5333
  %v5540 = vunpack.c.l.b16 %v5334
  %v5541 = vunpack.c.h.b16 %v5334
  %v5542 = vunpack.c.l.b16 %v5335
  %v5543 = vunpack.c.l.b16 %v5336
  %v5544 = vunpack.c.h.b16 %v5336
  %v5545 = vunpack.c.l.b16 %v5337
  %v5546 = vunpack.c.l.b16 %v5338
  %v5547 = vunpack.c.h.b16 %v5338
  %v5548 = vunpack.c.l.b16 %v5339
  %v5549 = vunpack.c.l.b16 %v5340
  %v5550 = vunpack.c.h.b16 %v5340
  %v5551 = vunpack.c.l.b16 %v5341
  %v5552 = vunpack.c.l.b16 %v5342
  %v5553 = vunpack.c.h.b16 %v5342
  %v5554 = vunpack.c.l.b16 %v5343
  %v5555 = vunpack.c.l.b16 %v5344
  %v5556 = vunpack.c.h.b16 %v5344
  %v5557 = vunpack.c.l.b16 %v5345
  %v5558 = vunpack.c.l.b16 %v5346
  %v5559 = vunpack.c.h.b16 %v5346
  %v5560 = vunpack.c.l.b16 %v5347
  %v5561 = vunpack.c.l.b16 %v5348
  %v5562 = vunpack.c.h.b16 %v5348
  %v5563 = vunpack.c.l.b16 %v5349
  %v5564 = vunpack.c.l.b16 %v5350
  %v5565 = vunpack.c.h.b16 %v5350
  %v5566 = vunpack.c.l.b16 %v5351
  %v5567 = vunpack.c.l.b16 %v5352
  %v5568 = vunpack.c.h.b16 %v5352
  %v5569 = vunpack.c.l.b16 %v5353
  %v5570 = vunpack.c.l.b16 %v5354
  %v5571 = vunpack.c.h.b16 %v5354
  %v5572 = vunpack.c.l.b16 %v5355
  %v5573 = vunpack.c.l.b16 %v5356
  %v5574 = vunpack.c.h.b16 %v5356
  %v5575 = vunpack.c.l.b16 %v5357
  %v5576 = vunpack.c.l.b16 %v5358
  %v5577 = vunpack.c.h.b16 %v5358
  %v5578 = vunpack.c.l.b16 %v5359
  %v5579 = vunpack.c.l.b16 %v5360
  %v5580 = vunpack.c.h.b16 %v5360
  %v5581 = vunpack.c.l.b16 %v5361
  %v5582 = vunpack.c.l.b16 %v5362
  %v5583 = vunpack.c.h.b16 %v5362
  %v5584 = vunpack.c.l.b16 %v5363
  %v5585 = vunpack.c.l.b16 %v5364
  %v5586 = vunpack.c.h.b16 %v5364
  %v5587 = vunpack.c.l.b16 %v5365
  %v5588 = vunpack.c.l.b16 %v5366
  %v5589 = vunpack.c.h.b16 %v5366
  %v5590 = vunpack.c.l.b16 %v5367
  %v5591 = vunpack.c.l.b16 %v5368
  %v5592 = vunpack.c.h.b16 %v5368
  %v5593 = vunpack.c.l.b16 %v5369
  %v5594 = vunpack.c.l.b16 %v5370
  %v5595 = vunpack.c.h.b16 %v5370
  %v5596 = vunpack.c.l.b16 %v5371
  %v5597 = vunpack.c.l.b16 %v5372
  %v5598 = vunpack.c.h.b16 %v5372
  %v5599 = vunpack.c.l.b16 %v5373
  %v5600 = vunpack.c.l.b16 %v5374
  %v5601 = vunpack.c.h.b16 %v5374
  %v5602 = vunpack.c.l.b16 %v5375
  %v5603 = vunpack.c.l.b16 %v5376
  %v5604 = vunpack.c.h.b16 %v5376
  %v5605 = vunpack.c.l.b16 %v5377
  %v5606 = vunpack.c.l.b16 %v5378
  %v5607 = vunpack.c.h.b16 %v5378
  %v5608 = vunpack.c.l.b16 %v5379
  %v5609 = vunpack.c.l.b16 %v5380
  %v5610 = vunpack.c.h.b16 %v5380
  %v5611 = vunpack.c.l.b16 %v5381
  %v5612 = vunpack.c.l.b16 %v5382
  %v5613 = vunpack.c.h.b16 %v5382
  %v5614 = vunpack.c.l.b16 %v5383
  %v5615 = vunpack.c.l.b16 %v5384
  %v5616 = vunpack.c.h.b16 %v5384
  %v5617 = vunpack.c.l.b16 %v5385
  %v5618 = vunpack.c.l.b16 %v5386
  %v5619 = vunpack.c.h.b16 %v5386
  %v5620 = vunpack.c.l.b16 %v5387
  %v5621 = vunpack.c.l.b16 %v5388
  %v5622 = vunpack.c.h.b16 %v5388
  %v5623 = vunpack.c.l.b16 %v5389
  %v5624 = vunpack.c.l.b16 %v5390
  %v5625 = vunpack.c.h.b16 %v5390
  %v5626 = vunpack.c.l.b16 %v5391
  %v5627 = vunpack.c.l.b16 %v5392
  %v5628 = vunpack.c.h.b16 %v5392
  %v5629 = vunpack.c.l.b16 %v5393
  %v5630 = vunpack.c.l.b16 %v5394
  %v5631 = vunpack.c.h.b16 %v5394
  %v5632 = vunpack.c.l.b16 %v5395
  %v5633 = vunpack.c.l.b16 %v5396
  %v5634 = vunpack.c.h.b16 %v5396
  %v5635 = vunpack.c.l.b16 %v5397
  %v5636 = vunpack.c.l.b16 %v5398
  %v5637 = vunpack.c.h.b16 %v5398
  %v5638 = vunpack.c.l.b16 %v5399
  %v5639 = vunpack.c.l.b16 %v5400
  %v5640 = vunpack.c.h.b16 %v5400
  %v5641 = vunpack.c.l.b16 %v5401
  %v5642 = vpack.c.b16 %v5501, %v5498
  %v5643 = vpack.c.b16 %v5502, %v5499
  %v5644 = vpack.c.b16 %v5503, %v5500
  %v5645 = vpack.c.b16 %v5507, %v5504
  %v5646 = vpack.c.b16 %v5508, %v5505
  %v5647 = vpack.c.b16 %v5509, %v5506
  %v5648 = vpack.c.b16 %v5513, %v5510
  %v5649 = vpack.c.b16 %v5514, %v5511
  %v5650 = vpack.c.b16 %v5515, %v5512
  %v5651 = vpack.c.b16 %v5519, %v5516
  %v5652 = vpack.c.b16 %v5520, %v5517
  %v5653 = vpack.c.b16 %v5521, %v5518
  %v5654 = vpack.c.b16 %v5525, %v5522
  %v5655 = vpack.c.b16 %v5526, %v5523
  %v5656 = vpack.c.b16 %v5527, %v5524
  %v5657 = vpack.c.b16 %v5531, %v5528
  %v5658 = vpack.c.b16 %v5532, %v5529
  %v5659 = vpack.c.b16 %v5533, %v5530
  %v5660 = vpack.c.b16 %v5537, %v5534
  %v5661 = vpack.c.b16 %v5538, %v5535
  %v5662 = vpack.c.b16 %v5539, %v5536
  %v5663 = vpack.c.b16 %v5543, %v5540
  %v5664 = vpack.c.b16 %v5544, %v5541
  %v5665 = vpack.c.b16 %v5545, %v5542
  %v5666 = vpack.c.b16 %v5549, %v5546
  %v5667 = vpack.c.b16 %v5550, %v5547
  %v5668 = vpack.c.b16 %v5551, %v5548
  %v5669 = vpack.c.b16 %v5555, %v5552
  %v5670 = vpack.c.b16 %v5556, %v5553
  %v5671 = vpack.c.b16 %v5557, %v5554
  %v5672 = vpack.c.b16 %v5561, %v5558
  %v5673 = vpack.c.b16 %v5562, %v5559
  %v5674 = vpack.c.b16 %v5563, %v5560
  %v5675 = vpack.c.b16 %v5567, %v5564
  %v5676 = vpack.c.b16 %v5568, %v5565
  %v5677 = vpack.c.b16 %v5569, %v5566
  %v5678 = vpack.c.b16 %v5573, %v5570
  %v5679 = vpack.c.b16 %v5574, %v5571
  %v5680 = vpack.c.b16 %v5575, %v5572
  %v5681 = vpack.c.b16 %v5579, %v5576
  %v5682 = vpack.c.b16 %v5580, %v5577
  %v5683 = vpack.c.b16 %v5581, %v5578
  %v5684 = vpack.c.b16 %v5585, %v5582
  %v5685 = vpack.c.b16 %v5586, %v5583
  %v5686 = vpack.c.b16 %v5587, %v5584
  %v5687 = vpack.c.b16 %v5591, %v5588
  %v5688 = vpack.c.b16 %v5592, %v5589
  %v5689 = vpack.c.b16 %v5593, %v5590
  %v5690 = vpack.c.b16 %v5597, %v5594
  %v5691 = vpack.c.b16 %v5598, %v5595
  %v5692 = vpack.c.b16 %v5599, %v5596
  %v5693 = vpack.c.b16 %v5603, %v5600
  %v5694 = vpack.c.b16 %v5604, %v5601
  %v5695 = vpack.c.b16 %v5605, %v5602
  %v5696 = vpack.c.b16 %v5609, %v5606
  %v5697 = vpack.c.b16 %v5610, %v5607
  %v5698 = vpack.c.b16 %v5611, %v5608
  %v5699 = vpack.c.b16 %v5615, %v5612
  %v5700 = vpack.c.b16 %v5616, %v5613
  %v5701 = vpack.c.b16 %v5617, %v5614
  %v5702 = vpack.c.b16 %v5621, %v5618
  %v5703 = vpack.c.b16 %v5622, %v5619
  %v5704 = vpack.c.b16 %v5623, %v5620
  %v5705 = vpack.c.b16 %v5627, %v5624
  %v5706 = vpack.c.b16 %v5628, %v5625
  %v5707 = vpack.c.b16 %v5629, %v5626
  %v5708 = vpack.c.b16 %v5633, %v5630
  %v5709 = vpack.c.b16 %v5634, %v5631
  %v5710 = vpack.c.b16 %v5635, %v5632
  %v5711 = vpack.c.b16 %v5639, %v5636
  %v5712 = vpack.c.b16 %v5640, %v5637
  %v5713 = vpack.c.b16 %v5641, %v5638
  %5786 = vmatprep.subr.bf16.mxu0 %v5643
  %5787 = vmatpush1.bf16.msra.mxu0 %v5642
  %5788 = vmatprep.subr.bf16.mxu0 %v5646
  %5789 = vmatpush1.bf16.msra.mxu0 %v5645
  %5790 = vmatprep.subr.bf16.mxu0 %v5649
  %5791 = vmatpush1.bf16.msra.mxu0 %v5648
  %5792 = vmatprep.subr.bf16.mxu0 %v5652
  %5793 = vmatpush1.bf16.msra.mxu0 %v5651
  %5794 = vmatprep.subr.bf16.mxu0 %v5655
  %5795 = vmatpush1.bf16.msra.mxu0 %v5654
  %5796 = vmatprep.subr.bf16.mxu0 %v5658
  %5797 = vmatpush1.bf16.msra.mxu0 %v5657
  %5798 = vmatprep.subr.bf16.mxu0 %v5661
  %5799 = vmatpush1.bf16.msra.mxu0 %v5660
  %5800 = vmatprep.subr.bf16.mxu0 %v5664
  %5801 = vmatpush1.bf16.msra.mxu0 %v5663
  %5802 = vmatprep.subr.bf16.mxu0 %v5667
  %5803 = vmatpush1.bf16.msra.mxu0 %v5666
  %5804 = vmatprep.subr.bf16.mxu0 %v5670
  %5805 = vmatpush1.bf16.msra.mxu0 %v5669
  %5806 = vmatprep.subr.bf16.mxu0 %v5673
  %5807 = vmatpush1.bf16.msra.mxu0 %v5672
  %5808 = vmatprep.subr.bf16.mxu0 %v5676
  %5809 = vmatpush1.bf16.msra.mxu0 %v5675
  %5810 = vmatprep.subr.bf16.mxu0 %v5679
  %5811 = vmatpush1.bf16.msra.mxu0 %v5678
  %5812 = vmatprep.subr.bf16.mxu0 %v5682
  %5813 = vmatpush1.bf16.msra.mxu0 %v5681
  %5814 = vmatprep.subr.bf16.mxu0 %v5685
  %5815 = vmatpush1.bf16.msra.mxu0 %v5684
  %5816 = vmatprep.subr.bf16.mxu0 %v5688
  %5817 = vmatpush1.bf16.msra.mxu0 %v5687
  %5818 = vmatprep.mubr.bf16.mxu0 %v5304
  %5819 = vmatmul.mubr.bf16.gmra.mrb[0].mxu0 %v5303
  %v5820 = vpop.f32.mrb[0].mxu0
  %v5821 = vadd.f32 0.0, %v5820
  %v5822 = vpop.f32.mrb[0].mxu0
  %v5823 = vadd.f32 0.0, %v5822
  %v5824 = vpop.f32.mrb[0].mxu0
  %v5825 = vpop.f32.mrb[0].mxu0
  %5826 = vdwg.mxu0
  %5827 = vmatprep.subr.bf16.mxu0 %v5691
  %5828 = vmatpush1.bf16.msra.mxu0 %v5690
  %5829 = vmatprep.subr.bf16.mxu0 %v5694
  %5830 = vmatpush1.bf16.msra.mxu0 %v5693
  %5831 = vmatprep.subr.bf16.mxu0 %v5697
  %5832 = vmatpush1.bf16.msra.mxu0 %v5696
  %5833 = vmatprep.subr.bf16.mxu0 %v5700
  %5834 = vmatpush1.bf16.msra.mxu0 %v5699
  %5835 = vmatprep.subr.bf16.mxu0 %v5703
  %5836 = vmatpush1.bf16.msra.mxu0 %v5702
  %5837 = vmatprep.subr.bf16.mxu0 %v5706
  %5838 = vmatpush1.bf16.msra.mxu0 %v5705
  %5839 = vmatprep.subr.bf16.mxu0 %v5709
  %5840 = vmatpush1.bf16.msra.mxu0 %v5708
  %5841 = vmatprep.subr.bf16.mxu0 %v5712
  %5842 = vmatpush1.bf16.msra.mxu0 %v5711
  %5843 = vmatprep.subr.bf16.mxu0 0
  %5844 = vmatpush1.bf16.msra.mxu0 0
  %5845 = vmatprep.subr.bf16.mxu0 0
  %5846 = vmatpush1.bf16.msra.mxu0 0
  %5847 = vmatprep.subr.bf16.mxu0 0
  %5848 = vmatpush1.bf16.msra.mxu0 0
  %5849 = vmatprep.subr.bf16.mxu0 0
  %5850 = vmatpush1.bf16.msra.mxu0 0
  %5851 = vmatprep.subr.bf16.mxu0 0
  %5852 = vmatpush1.bf16.msra.mxu0 0
  %5853 = vmatprep.subr.bf16.mxu0 0
  %5854 = vmatpush1.bf16.msra.mxu0 0
  %5855 = vmatprep.subr.bf16.mxu0 0
  %5856 = vmatpush1.bf16.msra.mxu0 0
  %5857 = vmatprep.subr.bf16.mxu0 0
  %5858 = vmatpush1.bf16.msra.mxu0 0
  %5859 = vmatprep.mubr.bf16.mxu0 0
  %5860 = vmatmul.mubr.bf16.gmra.mrb[0].mxu0 %v5305
  %v5861 = vpop.f32.mrb[0].mxu0
  %v5862 = vadd.f32 %v5821, %v5861
  %v5863 = vpop.f32.mrb[0].mxu0
  %v5864 = vadd.f32 %v5823, %v5863
  %v5865 = vpop.f32.mrb[0].mxu0
  %v5866 = vpop.f32.mrb[0].mxu0
  %5867 = vdwg.mxu0
  %5868 = vmatprep.subr.bf16.mxu0 0
  %5869 = vmatpush1.bf16.msra.mxu0 %v5644
  %5870 = vmatprep.subr.bf16.mxu0 0
  %5871 = vmatpush1.bf16.msra.mxu0 %v5647
  %5872 = vmatprep.subr.bf16.mxu0 0
  %5873 = vmatpush1.bf16.msra.mxu0 %v5650
  %5874 = vmatprep.subr.bf16.mxu0 0
  %5875 = vmatpush1.bf16.msra.mxu0 %v5653
  %5876 = vmatprep.subr.bf16.mxu0 0
  %5877 = vmatpush1.bf16.msra.mxu0 %v5656
  %5878 = vmatprep.subr.bf16.mxu0 0
  %5879 = vmatpush1.bf16.msra.mxu0 %v5659
  %5880 = vmatprep.subr.bf16.mxu0 0
  %5881 = vmatpush1.bf16.msra.mxu0 %v5662
  %5882 = vmatprep.subr.bf16.mxu0 0
  %5883 = vmatpush1.bf16.msra.mxu0 %v5665
  %5884 = vmatprep.subr.bf16.mxu0 0
  %5885 = vmatpush1.bf16.msra.mxu0 %v5668
  %5886 = vmatprep.subr.bf16.mxu0 0
  %5887 = vmatpush1.bf16.msra.mxu0 %v5671
  %5888 = vmatprep.subr.bf16.mxu0 0
  %5889 = vmatpush1.bf16.msra.mxu0 %v5674
  %5890 = vmatprep.subr.bf16.mxu0 0
  %5891 = vmatpush1.bf16.msra.mxu0 %v5677
  %5892 = vmatprep.subr.bf16.mxu0 0
  %5893 = vmatpush1.bf16.msra.mxu0 %v5680
  %5894 = vmatprep.subr.bf16.mxu0 0
  %5895 = vmatpush1.bf16.msra.mxu0 %v5683
  %5896 = vmatprep.subr.bf16.mxu0 0
  %5897 = vmatpush1.bf16.msra.mxu0 %v5686
  %5898 = vmatprep.subr.bf16.mxu0 0
  %5899 = vmatpush1.bf16.msra.mxu0 %v5689
  %5900 = vmatprep.mubr.bf16.mxu0 %v5304
  %5901 = vmatmul.mubr.bf16.gmra.mrb[0].mxu0 %v5303
  %v5902 = vpop.f32.mrb[0].mxu0
  %v5903 = vadd.f32 0.0, %v5902
  %v5904 = vpop.f32.mrb[0].mxu0
  %v5905 = vpop.f32.mrb[0].mxu0
  %v5906 = vpop.f32.mrb[0].mxu0
  %5907 = vdwg.mxu0
  %5908 = vmatprep.subr.bf16.mxu0 0
  %5909 = vmatpush1.bf16.msra.mxu0 %v5692
  %5910 = vmatprep.subr.bf16.mxu0 0
  %5911 = vmatpush1.bf16.msra.mxu0 %v5695
  %5912 = vmatprep.subr.bf16.mxu0 0
  %5913 = vmatpush1.bf16.msra.mxu0 %v5698
  %5914 = vmatprep.subr.bf16.mxu0 0
  %5915 = vmatpush1.bf16.msra.mxu0 %v5701
  %5916 = vmatprep.subr.bf16.mxu0 0
  %5917 = vmatpush1.bf16.msra.mxu0 %v5704
  %5918 = vmatprep.subr.bf16.mxu0 0
  %5919 = vmatpush1.bf16.msra.mxu0 %v5707
  %5920 = vmatprep.subr.bf16.mxu0 0
  %5921 = vmatpush1.bf16.msra.mxu0 %v5710
  %5922 = vmatprep.subr.bf16.mxu0 0
  %5923 = vmatpush1.bf16.msra.mxu0 %v5713
  %5924 = vmatprep.subr.bf16.mxu0 0
  %5925 = vmatpush1.bf16.msra.mxu0 0
  %5926 = vmatprep.subr.bf16.mxu0 0
  %5927 = vmatpush1.bf16.msra.mxu0 0
  %5928 = vmatprep.subr.bf16.mxu0 0
  %5929 = vmatpush1.bf16.msra.mxu0 0
  %5930 = vmatprep.subr.bf16.mxu0 0
  %5931 = vmatpush1.bf16.msra.mxu0 0
  %5932 = vmatprep.subr.bf16.mxu0 0
  %5933 = vmatpush1.bf16.msra.mxu0 0
  %5934 = vmatprep.subr.bf16.mxu0 0
  %5935 = vmatpush1.bf16.msra.mxu0 0
  %5936 = vmatprep.subr.bf16.mxu0 0
  %5937 = vmatpush1.bf16.msra.mxu0 0
  %5938 = vmatprep.subr.bf16.mxu0 0
  %5939 = vmatpush1.bf16.msra.mxu0 0
  %5940 = vmatprep.mubr.bf16.mxu0 0
  %5941 = vmatmul.mubr.bf16.gmra.mrb[0].mxu0 %v5305
  %v5942 = vpop.f32.mrb[0].mxu0
  %v5943 = vadd.f32 %v5903, %v5942
  %v5944 = vpop.f32.mrb[0].mxu0
  %v5945 = vpop.f32.mrb[0].mxu0
  %v5946 = vpop.f32.mrb[0].mxu0
  %5947 = vdwg.mxu0
  %v6044 = vunpack.c.l.b16 %v5207
  %v6045 = vunpack.c.h.b16 %v5207
  %v6046 = vunpack.c.l.b16 %v5208
  %v6047 = vunpack.c.l.b16 %v5209
  %v6048 = vunpack.c.h.b16 %v5209
  %v6049 = vunpack.c.l.b16 %v5210
  %v6050 = vunpack.c.l.b16 %v5211
  %v6051 = vunpack.c.h.b16 %v5211
  %v6052 = vunpack.c.l.b16 %v5212
  %v6053 = vunpack.c.l.b16 %v5213
  %v6054 = vunpack.c.h.b16 %v5213
  %v6055 = vunpack.c.l.b16 %v5214
  %v6056 = vunpack.c.l.b16 %v5215
  %v6057 = vunpack.c.h.b16 %v5215
  %v6058 = vunpack.c.l.b16 %v5216
  %v6059 = vunpack.c.l.b16 %v5217
  %v6060 = vunpack.c.h.b16 %v5217
  %v6061 = vunpack.c.l.b16 %v5218
  %v6062 = vunpack.c.l.b16 %v5219
  %v6063 = vunpack.c.h.b16 %v5219
  %v6064 = vunpack.c.l.b16 %v5220
  %v6065 = vunpack.c.l.b16 %v5221
  %v6066 = vunpack.c.h.b16 %v5221
  %v6067 = vunpack.c.l.b16 %v5222
  %v6068 = vunpack.c.l.b16 %v5223
  %v6069 = vunpack.c.h.b16 %v5223
  %v6070 = vunpack.c.l.b16 %v5224
  %v6071 = vunpack.c.l.b16 %v5225
  %v6072 = vunpack.c.h.b16 %v5225
  %v6073 = vunpack.c.l.b16 %v5226
  %v6074 = vunpack.c.l.b16 %v5227
  %v6075 = vunpack.c.h.b16 %v5227
  %v6076 = vunpack.c.l.b16 %v5228
  %v6077 = vunpack.c.l.b16 %v5229
  %v6078 = vunpack.c.h.b16 %v5229
  %v6079 = vunpack.c.l.b16 %v5230
  %v6080 = vunpack.c.l.b16 %v5231
  %v6081 = vunpack.c.h.b16 %v5231
  %v6082 = vunpack.c.l.b16 %v5232
  %v6083 = vunpack.c.l.b16 %v5233
  %v6084 = vunpack.c.h.b16 %v5233
  %v6085 = vunpack.c.l.b16 %v5234
  %v6086 = vunpack.c.l.b16 %v5235
  %v6087 = vunpack.c.h.b16 %v5235
  %v6088 = vunpack.c.l.b16 %v5236
  %v6089 = vunpack.c.l.b16 %v5237
  %v6090 = vunpack.c.h.b16 %v5237
  %v6091 = vunpack.c.l.b16 %v5238
  %v6092 = vunpack.c.l.b16 %v5239
  %v6093 = vunpack.c.h.b16 %v5239
  %v6094 = vunpack.c.l.b16 %v5240
  %v6095 = vunpack.c.l.b16 %v5241
  %v6096 = vunpack.c.h.b16 %v5241
  %v6097 = vunpack.c.l.b16 %v5242
  %v6098 = vunpack.c.l.b16 %v5243
  %v6099 = vunpack.c.h.b16 %v5243
  %v6100 = vunpack.c.l.b16 %v5244
  %v6101 = vunpack.c.l.b16 %v5245
  %v6102 = vunpack.c.h.b16 %v5245
  %v6103 = vunpack.c.l.b16 %v5246
  %v6104 = vunpack.c.l.b16 %v5247
  %v6105 = vunpack.c.h.b16 %v5247
  %v6106 = vunpack.c.l.b16 %v5248
  %v6107 = vunpack.c.l.b16 %v5249
  %v6108 = vunpack.c.h.b16 %v5249
  %v6109 = vunpack.c.l.b16 %v5250
  %v6110 = vunpack.c.l.b16 %v5251
  %v6111 = vunpack.c.h.b16 %v5251
  %v6112 = vunpack.c.l.b16 %v5252
  %v6113 = vunpack.c.l.b16 %v5253
  %v6114 = vunpack.c.h.b16 %v5253
  %v6115 = vunpack.c.l.b16 %v5254
  %v6116 = vunpack.c.l.b16 %v5255
  %v6117 = vunpack.c.h.b16 %v5255
  %v6118 = vunpack.c.l.b16 %v5256
  %v6119 = vunpack.c.l.b16 %v5257
  %v6120 = vunpack.c.h.b16 %v5257
  %v6121 = vunpack.c.l.b16 %v5258
  %v6122 = vunpack.c.l.b16 %v5259
  %v6123 = vunpack.c.h.b16 %v5259
  %v6124 = vunpack.c.l.b16 %v5260
  %v6125 = vunpack.c.l.b16 %v5261
  %v6126 = vunpack.c.h.b16 %v5261
  %v6127 = vunpack.c.l.b16 %v5262
  %v6128 = vunpack.c.l.b16 %v5263
  %v6129 = vunpack.c.h.b16 %v5263
  %v6130 = vunpack.c.l.b16 %v5264
  %v6131 = vunpack.c.l.b16 %v5265
  %v6132 = vunpack.c.h.b16 %v5265
  %v6133 = vunpack.c.l.b16 %v5266
  %v6134 = vunpack.c.l.b16 %v5267
  %v6135 = vunpack.c.h.b16 %v5267
  %v6136 = vunpack.c.l.b16 %v5268
  %v6137 = vunpack.c.l.b16 %v5269
  %v6138 = vunpack.c.h.b16 %v5269
  %v6139 = vunpack.c.l.b16 %v5270
  %v6140 = vunpack.c.l.b16 %v5271
  %v6141 = vunpack.c.h.b16 %v5271
  %v6142 = vunpack.c.l.b16 %v5272
  %v6143 = vunpack.c.l.b16 %v5273
  %v6144 = vunpack.c.h.b16 %v5273
  %v6145 = vunpack.c.l.b16 %v5274
  %v6146 = vunpack.c.l.b16 %v5275
  %v6147 = vunpack.c.h.b16 %v5275
  %v6148 = vunpack.c.l.b16 %v5276
  %v6149 = vunpack.c.l.b16 %v5277
  %v6150 = vunpack.c.h.b16 %v5277
  %v6151 = vunpack.c.l.b16 %v5278
  %v6152 = vunpack.c.l.b16 %v5279
  %v6153 = vunpack.c.h.b16 %v5279
  %v6154 = vunpack.c.l.b16 %v5280
  %v6155 = vunpack.c.l.b16 %v5281
  %v6156 = vunpack.c.h.b16 %v5281
  %v6157 = vunpack.c.l.b16 %v5282
  %v6158 = vunpack.c.l.b16 %v5283
  %v6159 = vunpack.c.h.b16 %v5283
  %v6160 = vunpack.c.l.b16 %v5284
  %v6161 = vunpack.c.l.b16 %v5285
  %v6162 = vunpack.c.h.b16 %v5285
  %v6163 = vunpack.c.l.b16 %v5286
  %v6164 = vunpack.c.l.b16 %v5287
  %v6165 = vunpack.c.h.b16 %v5287
  %v6166 = vunpack.c.l.b16 %v5288
  %v6167 = vunpack.c.l.b16 %v5289
  %v6168 = vunpack.c.h.b16 %v5289
  %v6169 = vunpack.c.l.b16 %v5290
  %v6170 = vunpack.c.l.b16 %v5291
  %v6171 = vunpack.c.h.b16 %v5291
  %v6172 = vunpack.c.l.b16 %v5292
  %v6173 = vunpack.c.l.b16 %v5293
  %v6174 = vunpack.c.h.b16 %v5293
  %v6175 = vunpack.c.l.b16 %v5294
  %v6176 = vunpack.c.l.b16 %v5295
  %v6177 = vunpack.c.h.b16 %v5295
  %v6178 = vunpack.c.l.b16 %v5296
  %v6179 = vunpack.c.l.b16 %v5297
  %v6180 = vunpack.c.h.b16 %v5297
  %v6181 = vunpack.c.l.b16 %v5298
  %v6182 = vunpack.c.l.b16 %v5299
  %v6183 = vunpack.c.h.b16 %v5299
  %v6184 = vunpack.c.l.b16 %v5300
  %v6185 = vunpack.c.l.b16 %v5301
  %v6186 = vunpack.c.h.b16 %v5301
  %v6187 = vunpack.c.l.b16 %v5302
  %v6188 = vpack.c.b16 %v6047, %v6044
  %v6189 = vpack.c.b16 %v6048, %v6045
  %v6190 = vpack.c.b16 %v6049, %v6046
  %v6191 = vpack.c.b16 %v6053, %v6050
  %v6192 = vpack.c.b16 %v6054, %v6051
  %v6193 = vpack.c.b16 %v6055, %v6052
  %v6194 = vpack.c.b16 %v6059, %v6056
  %v6195 = vpack.c.b16 %v6060, %v6057
  %v6196 = vpack.c.b16 %v6061, %v6058
  %v6197 = vpack.c.b16 %v6065, %v6062
  %v6198 = vpack.c.b16 %v6066, %v6063
  %v6199 = vpack.c.b16 %v6067, %v6064
  %v6200 = vpack.c.b16 %v6071, %v6068
  %v6201 = vpack.c.b16 %v6072, %v6069
  %v6202 = vpack.c.b16 %v6073, %v6070
  %v6203 = vpack.c.b16 %v6077, %v6074
  %v6204 = vpack.c.b16 %v6078, %v6075
  %v6205 = vpack.c.b16 %v6079, %v6076
  %v6206 = vpack.c.b16 %v6083, %v6080
  %v6207 = vpack.c.b16 %v6084, %v6081
  %v6208 = vpack.c.b16 %v6085, %v6082
  %v6209 = vpack.c.b16 %v6089, %v6086
  %v6210 = vpack.c.b16 %v6090, %v6087
  %v6211 = vpack.c.b16 %v6091, %v6088
  %v6212 = vpack.c.b16 %v6095, %v6092
  %v6213 = vpack.c.b16 %v6096, %v6093
  %v6214 = vpack.c.b16 %v6097, %v6094
  %v6215 = vpack.c.b16 %v6101, %v6098
  %v6216 = vpack.c.b16 %v6102, %v6099
  %v6217 = vpack.c.b16 %v6103, %v6100
  %v6218 = vpack.c.b16 %v6107, %v6104
  %v6219 = vpack.c.b16 %v6108, %v6105
  %v6220 = vpack.c.b16 %v6109, %v6106
  %v6221 = vpack.c.b16 %v6113, %v6110
  %v6222 = vpack.c.b16 %v6114, %v6111
  %v6223 = vpack.c.b16 %v6115, %v6112
  %v6224 = vpack.c.b16 %v6119, %v6116
  %v6225 = vpack.c.b16 %v6120, %v6117
  %v6226 = vpack.c.b16 %v6121, %v6118
  %v6227 = vpack.c.b16 %v6125, %v6122
  %v6228 = vpack.c.b16 %v6126, %v6123
  %v6229 = vpack.c.b16 %v6127, %v6124
  %v6230 = vpack.c.b16 %v6131, %v6128
  %v6231 = vpack.c.b16 %v6132, %v6129
  %v6232 = vpack.c.b16 %v6133, %v6130
  %v6233 = vpack.c.b16 %v6137, %v6134
  %v6234 = vpack.c.b16 %v6138, %v6135
  %v6235 = vpack.c.b16 %v6139, %v6136
  %v6236 = vpack.c.b16 %v6143, %v6140
  %v6237 = vpack.c.b16 %v6144, %v6141
  %v6238 = vpack.c.b16 %v6145, %v6142
  %v6239 = vpack.c.b16 %v6149, %v6146
  %v6240 = vpack.c.b16 %v6150, %v6147
  %v6241 = vpack.c.b16 %v6151, %v6148
  %v6242 = vpack.c.b16 %v6155, %v6152
  %v6243 = vpack.c.b16 %v6156, %v6153
  %v6244 = vpack.c.b16 %v6157, %v6154
  %v6245 = vpack.c.b16 %v6161, %v6158
  %v6246 = vpack.c.b16 %v6162, %v6159
  %v6247 = vpack.c.b16 %v6163, %v6160
  %v6248 = vpack.c.b16 %v6167, %v6164
  %v6249 = vpack.c.b16 %v6168, %v6165
  %v6250 = vpack.c.b16 %v6169, %v6166
  %v6251 = vpack.c.b16 %v6173, %v6170
  %v6252 = vpack.c.b16 %v6174, %v6171
  %v6253 = vpack.c.b16 %v6175, %v6172
  %v6254 = vpack.c.b16 %v6179, %v6176
  %v6255 = vpack.c.b16 %v6180, %v6177
  %v6256 = vpack.c.b16 %v6181, %v6178
  %v6257 = vpack.c.b16 %v6185, %v6182
  %v6258 = vpack.c.b16 %v6186, %v6183
  %v6259 = vpack.c.b16 %v6187, %v6184
  %6332 = vmatprep.subr.bf16.mxu0 %v6189
  %6333 = vmatpush1.bf16.msra.mxu0 %v6188
  %6334 = vmatprep.subr.bf16.mxu0 %v6192
  %6335 = vmatpush1.bf16.msra.mxu0 %v6191
  %6336 = vmatprep.subr.bf16.mxu0 %v6195
  %6337 = vmatpush1.bf16.msra.mxu0 %v6194
  %6338 = vmatprep.subr.bf16.mxu0 %v6198
  %6339 = vmatpush1.bf16.msra.mxu0 %v6197
  %6340 = vmatprep.subr.bf16.mxu0 %v6201
  %6341 = vmatpush1.bf16.msra.mxu0 %v6200
  %6342 = vmatprep.subr.bf16.mxu0 %v6204
  %6343 = vmatpush1.bf16.msra.mxu0 %v6203
  %6344 = vmatprep.subr.bf16.mxu0 %v6207
  %6345 = vmatpush1.bf16.msra.mxu0 %v6206
  %6346 = vmatprep.subr.bf16.mxu0 %v6210
  %6347 = vmatpush1.bf16.msra.mxu0 %v6209
  %6348 = vmatprep.subr.bf16.mxu0 %v6213
  %6349 = vmatpush1.bf16.msra.mxu0 %v6212
  %6350 = vmatprep.subr.bf16.mxu0 %v6216
  %6351 = vmatpush1.bf16.msra.mxu0 %v6215
  %6352 = vmatprep.subr.bf16.mxu0 %v6219
  %6353 = vmatpush1.bf16.msra.mxu0 %v6218
  %6354 = vmatprep.subr.bf16.mxu0 %v6222
  %6355 = vmatpush1.bf16.msra.mxu0 %v6221
  %6356 = vmatprep.subr.bf16.mxu0 %v6225
  %6357 = vmatpush1.bf16.msra.mxu0 %v6224
  %6358 = vmatprep.subr.bf16.mxu0 %v6228
  %6359 = vmatpush1.bf16.msra.mxu0 %v6227
  %6360 = vmatprep.subr.bf16.mxu0 %v6231
  %6361 = vmatpush1.bf16.msra.mxu0 %v6230
  %6362 = vmatprep.subr.bf16.mxu0 %v6234
  %6363 = vmatpush1.bf16.msra.mxu0 %v6233
  %6364 = vmatprep.mubr.bf16.mxu0 %v5205
  %6365 = vmatmul.mubr.bf16.gmra.mrb[0].mxu0 %v5204
  %v6366 = vpop.f32.mrb[0].mxu0
  %v6367 = vadd.f32 %v5862, %v6366
  %v6368 = vpop.f32.mrb[0].mxu0
  %v6369 = vadd.f32 %v5864, %v6368
  %v6370 = vpop.f32.mrb[0].mxu0
  %v6371 = vpop.f32.mrb[0].mxu0
  %6372 = vdwg.mxu0
  %6373 = vmatprep.subr.bf16.mxu0 %v6237
  %6374 = vmatpush1.bf16.msra.mxu0 %v6236
  %6375 = vmatprep.subr.bf16.mxu0 %v6240
  %6376 = vmatpush1.bf16.msra.mxu0 %v6239
  %6377 = vmatprep.subr.bf16.mxu0 %v6243
  %6378 = vmatpush1.bf16.msra.mxu0 %v6242
  %6379 = vmatprep.subr.bf16.mxu0 %v6246
  %6380 = vmatpush1.bf16.msra.mxu0 %v6245
  %6381 = vmatprep.subr.bf16.mxu0 %v6249
  %6382 = vmatpush1.bf16.msra.mxu0 %v6248
  %6383 = vmatprep.subr.bf16.mxu0 %v6252
  %6384 = vmatpush1.bf16.msra.mxu0 %v6251
  %6385 = vmatprep.subr.bf16.mxu0 %v6255
  %6386 = vmatpush1.bf16.msra.mxu0 %v6254
  %6387 = vmatprep.subr.bf16.mxu0 %v6258
  %6388 = vmatpush1.bf16.msra.mxu0 %v6257
  %6389 = vmatprep.subr.bf16.mxu0 0
  %6390 = vmatpush1.bf16.msra.mxu0 0
  %6391 = vmatprep.subr.bf16.mxu0 0
  %6392 = vmatpush1.bf16.msra.mxu0 0
  %6393 = vmatprep.subr.bf16.mxu0 0
  %6394 = vmatpush1.bf16.msra.mxu0 0
  %6395 = vmatprep.subr.bf16.mxu0 0
  %6396 = vmatpush1.bf16.msra.mxu0 0
  %6397 = vmatprep.subr.bf16.mxu0 0
  %6398 = vmatpush1.bf16.msra.mxu0 0
  %6399 = vmatprep.subr.bf16.mxu0 0
  %6400 = vmatpush1.bf16.msra.mxu0 0
  %6401 = vmatprep.subr.bf16.mxu0 0
  %6402 = vmatpush1.bf16.msra.mxu0 0
  %6403 = vmatprep.subr.bf16.mxu0 0
  %6404 = vmatpush1.bf16.msra.mxu0 0
  %6405 = vmatprep.mubr.bf16.mxu0 0
  %6406 = vmatmul.mubr.bf16.gmra.mrb[0].mxu0 %v5206
  %v6407 = vpop.f32.mrb[0].mxu0
  %v6408 = vadd.f32 %v6367, %v6407
  %v6409 = vpop.f32.mrb[0].mxu0
  %v6410 = vadd.f32 %v6369, %v6409
  %v6411 = vpop.f32.mrb[0].mxu0
  %v6412 = vpop.f32.mrb[0].mxu0
  %6413 = vdwg.mxu0
  %6414 = vmatprep.subr.bf16.mxu0 0
  %6415 = vmatpush1.bf16.msra.mxu0 %v6190
  %6416 = vmatprep.subr.bf16.mxu0 0
  %6417 = vmatpush1.bf16.msra.mxu0 %v6193
  %6418 = vmatprep.subr.bf16.mxu0 0
  %6419 = vmatpush1.bf16.msra.mxu0 %v6196
  %6420 = vmatprep.subr.bf16.mxu0 0
  %6421 = vmatpush1.bf16.msra.mxu0 %v6199
  %6422 = vmatprep.subr.bf16.mxu0 0
  %6423 = vmatpush1.bf16.msra.mxu0 %v6202
  %6424 = vmatprep.subr.bf16.mxu0 0
  %6425 = vmatpush1.bf16.msra.mxu0 %v6205
  %6426 = vmatprep.subr.bf16.mxu0 0
  %6427 = vmatpush1.bf16.msra.mxu0 %v6208
  %6428 = vmatprep.subr.bf16.mxu0 0
  %6429 = vmatpush1.bf16.msra.mxu0 %v6211
  %6430 = vmatprep.subr.bf16.mxu0 0
  %6431 = vmatpush1.bf16.msra.mxu0 %v6214
  %6432 = vmatprep.subr.bf16.mxu0 0
  %6433 = vmatpush1.bf16.msra.mxu0 %v6217
  %6434 = vmatprep.subr.bf16.mxu0 0
  %6435 = vmatpush1.bf16.msra.mxu0 %v6220
  %6436 = vmatprep.subr.bf16.mxu0 0
  %6437 = vmatpush1.bf16.msra.mxu0 %v6223
  %6438 = vmatprep.subr.bf16.mxu0 0
  %6439 = vmatpush1.bf16.msra.mxu0 %v6226
  %6440 = vmatprep.subr.bf16.mxu0 0
  %6441 = vmatpush1.bf16.msra.mxu0 %v6229
  %6442 = vmatprep.subr.bf16.mxu0 0
  %6443 = vmatpush1.bf16.msra.mxu0 %v6232
  %6444 = vmatprep.subr.bf16.mxu0 0
  %6445 = vmatpush1.bf16.msra.mxu0 %v6235
  %6446 = vmatprep.mubr.bf16.mxu0 %v5205
  %6447 = vmatmul.mubr.bf16.gmra.mrb[0].mxu0 %v5204
  %v6448 = vpop.f32.mrb[0].mxu0
  %v6449 = vadd.f32 %v5943, %v6448
  %v6450 = vpop.f32.mrb[0].mxu0
  %v6451 = vpop.f32.mrb[0].mxu0
  %v6452 = vpop.f32.mrb[0].mxu0
  %6453 = vdwg.mxu0
  %6454 = vmatprep.subr.bf16.mxu0 0
  %6455 = vmatpush1.bf16.msra.mxu0 %v6238
  %6456 = vmatprep.subr.bf16.mxu0 0
  %6457 = vmatpush1.bf16.msra.mxu0 %v6241
  %6458 = vmatprep.subr.bf16.mxu0 0
  %6459 = vmatpush1.bf16.msra.mxu0 %v6244
  %6460 = vmatprep.subr.bf16.mxu0 0
  %6461 = vmatpush1.bf16.msra.mxu0 %v6247
  %6462 = vmatprep.subr.bf16.mxu0 0
  %6463 = vmatpush1.bf16.msra.mxu0 %v6250
  %6464 = vmatprep.subr.bf16.mxu0 0
  %6465 = vmatpush1.bf16.msra.mxu0 %v6253
  %6466 = vmatprep.subr.bf16.mxu0 0
  %6467 = vmatpush1.bf16.msra.mxu0 %v6256
  %6468 = vmatprep.subr.bf16.mxu0 0
  %6469 = vmatpush1.bf16.msra.mxu0 %v6259
  %6470 = vmatprep.subr.bf16.mxu0 0
  %6471 = vmatpush1.bf16.msra.mxu0 0
  %6472 = vmatprep.subr.bf16.mxu0 0
  %6473 = vmatpush1.bf16.msra.mxu0 0
  %6474 = vmatprep.subr.bf16.mxu0 0
  %6475 = vmatpush1.bf16.msra.mxu0 0
  %6476 = vmatprep.subr.bf16.mxu0 0
  %6477 = vmatpush1.bf16.msra.mxu0 0
  %6478 = vmatprep.subr.bf16.mxu0 0
  %6479 = vmatpush1.bf16.msra.mxu0 0
  %6480 = vmatprep.subr.bf16.mxu0 0
  %6481 = vmatpush1.bf16.msra.mxu0 0
  %6482 = vmatprep.subr.bf16.mxu0 0
  %6483 = vmatpush1.bf16.msra.mxu0 0
  %6484 = vmatprep.subr.bf16.mxu0 0
  %6485 = vmatpush1.bf16.msra.mxu0 0
  %6486 = vmatprep.mubr.bf16.mxu0 0
  %6487 = vmatmul.mubr.bf16.gmra.mrb[0].mxu0 %v5206
  %v6488 = vpop.f32.mrb[0].mxu0
  %v6489 = vadd.f32 %v6449, %v6488
  %v6490 = vpop.f32.mrb[0].mxu0
  %v6491 = vpop.f32.mrb[0].mxu0
  %v6492 = vpop.f32.mrb[0].mxu0
  %6493 = vdwg.mxu0
  %v6494 = vld [vmem:[%s14] sm:$0x7]
  %v6496 = vlaneseq
  %v6497 = vshrl.u32 %v6496, 7
  %v6498 = vsub.s32 0, %v6497
  %v6499 = vrot.slane %v6494, %v6498
  %v6500 = vlaneseq
  %v6501 = vshrl.u32 %v6500, 7
  %v6502 = vsub.s32 1, %v6501
  %v6503 = vrot.slane %v6494, %v6502
  %v6504 = vlaneseq
  %v6505 = vshrl.u32 %v6504, 7
  %v6506 = vsub.s32 2, %v6505
  %v6507 = vrot.slane %v6494, %v6506
  %v6511 = vadd.f32 %v6408, %v6499
  %v6512 = vadd.f32 %v6410, %v6503
  %v6513 = vadd.f32 %v6489, %v6507
  %v6514 = vpack.c.bf16 %v6511, %v6511
  %v6515 = vpack.c.bf16 %v6512, %v6512
  %v6516 = vpack.c.bf16 %v6513, %v6513
  %v6517 = vld [vmem:[%s15] sm:$0xf]
  %v6518 = vld [vmem:[%s15 + $0x4] sm:$0xf]
  %v6519 = vld [vmem:[%s15 + $0x8] sm:$0xf]
  %v6520 = vld [vmem:[%s15 + $0xc] sm:$0xf]
  %v6521 = vld [vmem:[%s15 + $0x10] sm:$0xf]
  %v6522 = vld [vmem:[%s15 + $0x14] sm:$0xf]
  %v6523 = vld [vmem:[%s15 + $0x18] sm:$0xf]
  %v6524 = vld [vmem:[%s15 + $0x1c] sm:$0xf]
  %v6525 = vld [vmem:[%s15 + $0x20] sm:$0xf]
  %v6526 = vld [vmem:[%s15 + $0x24] sm:$0xf]
  %v6527 = vld [vmem:[%s15 + $0x28] sm:$0xf]
  %v6528 = vld [vmem:[%s15 + $0x2c] sm:$0xf]
  %v6529 = vld [vmem:[%s15 + $0x30] sm:$0xf]
  %v6530 = vld [vmem:[%s15 + $0x34] sm:$0xf]
  %v6531 = vld [vmem:[%s15 + $0x38] sm:$0xf]
  %v6532 = vld [vmem:[%s15 + $0x3c] sm:$0xf]
  %v6533 = vld [vmem:[%s15 + $0x40] sm:$0xf]
  %v6534 = vld [vmem:[%s15 + $0x44] sm:$0xf]
  %v6535 = vld [vmem:[%s15 + $0x48] sm:$0xf]
  %v6536 = vld [vmem:[%s15 + $0x4c] sm:$0xf]
  %v6537 = vld [vmem:[%s15 + $0x50] sm:$0xf]
  %v6538 = vld [vmem:[%s15 + $0x54] sm:$0xf]
  %v6539 = vld [vmem:[%s15 + $0x58] sm:$0xf]
  %v6540 = vld [vmem:[%s15 + $0x5c] sm:$0xf]
  %v6541 = vld [vmem:[%s15 + $0x60] sm:$0xf]
  %v6542 = vld [vmem:[%s15 + $0x64] sm:$0xf]
  %v6543 = vld [vmem:[%s15 + $0x68] sm:$0xf]
  %v6544 = vld [vmem:[%s15 + $0x6c] sm:$0xf]
  %v6545 = vld [vmem:[%s15 + $0x70] sm:$0xf]
  %v6546 = vld [vmem:[%s15 + $0x74] sm:$0xf]
  %v6547 = vld [vmem:[%s15 + $0x78] sm:$0xf]
  %v6548 = vld [vmem:[%s15 + $0x7c] sm:$0xf]
  %v6549 = vld [vmem:[%s15 + $0x80] sm:$0xf]
  %v6550 = vld [vmem:[%s15 + $0x84] sm:$0xf]
  %v6551 = vld [vmem:[%s15 + $0x88] sm:$0xf]
  %v6552 = vld [vmem:[%s15 + $0x8c] sm:$0xf]
  %v6553 = vld [vmem:[%s15 + $0x90] sm:$0xf]
  %v6554 = vld [vmem:[%s15 + $0x94] sm:$0xf]
  %v6555 = vld [vmem:[%s15 + $0x98] sm:$0xf]
  %v6556 = vld [vmem:[%s15 + $0x9c] sm:$0xf]
  %v6557 = vld [vmem:[%s15 + $0xa0] sm:$0xf]
  %v6558 = vld [vmem:[%s15 + $0xa4] sm:$0xf]
  %v6559 = vld [vmem:[%s15 + $0xa8] sm:$0xf]
  %v6560 = vld [vmem:[%s15 + $0xac] sm:$0xf]
  %v6561 = vld [vmem:[%s15 + $0xb0] sm:$0xf]
  %v6562 = vld [vmem:[%s15 + $0xb4] sm:$0xf]
  %v6563 = vld [vmem:[%s15 + $0xb8] sm:$0xf]
  %v6564 = vld [vmem:[%s15 + $0xbc] sm:$0xf]
  %v6565 = vld [vmem:[%s16] sm:$0x1]
  %v6567 = vlaneseq
  %v6568 = vshrl.u32 %v6567, 7
  %v6569 = vsub.s32 0, %v6568
  %v6570 = vrot.slane %v6565, %v6569
  %v6620 = vunpack.c.l.b16 %v6517
  %v6621 = vunpack.c.l.b16 %v6518
  %v6622 = vunpack.c.l.b16 %v6519
  %v6623 = vunpack.c.l.b16 %v6520
  %v6624 = vunpack.c.l.b16 %v6521
  %v6625 = vunpack.c.l.b16 %v6522
  %v6626 = vunpack.c.l.b16 %v6523
  %v6627 = vunpack.c.l.b16 %v6524
  %v6628 = vunpack.c.l.b16 %v6525
  %v6629 = vunpack.c.l.b16 %v6526
  %v6630 = vunpack.c.l.b16 %v6527
  %v6631 = vunpack.c.l.b16 %v6528
  %v6632 = vunpack.c.l.b16 %v6529
  %v6633 = vunpack.c.l.b16 %v6530
  %v6634 = vunpack.c.l.b16 %v6531
  %v6635 = vunpack.c.l.b16 %v6532
  %v6636 = vunpack.c.l.b16 %v6533
  %v6637 = vunpack.c.l.b16 %v6534
  %v6638 = vunpack.c.l.b16 %v6535
  %v6639 = vunpack.c.l.b16 %v6536
  %v6640 = vunpack.c.l.b16 %v6537
  %v6641 = vunpack.c.l.b16 %v6538
  %v6642 = vunpack.c.l.b16 %v6539
  %v6643 = vunpack.c.l.b16 %v6540
  %v6644 = vunpack.c.l.b16 %v6541
  %v6645 = vunpack.c.l.b16 %v6542
  %v6646 = vunpack.c.l.b16 %v6543
  %v6647 = vunpack.c.l.b16 %v6544
  %v6648 = vunpack.c.l.b16 %v6545
  %v6649 = vunpack.c.l.b16 %v6546
  %v6650 = vunpack.c.l.b16 %v6547
  %v6651 = vunpack.c.l.b16 %v6548
  %v6652 = vunpack.c.l.b16 %v6549
  %v6653 = vunpack.c.l.b16 %v6550
  %v6654 = vunpack.c.l.b16 %v6551
  %v6655 = vunpack.c.l.b16 %v6552
  %v6656 = vunpack.c.l.b16 %v6553
  %v6657 = vunpack.c.l.b16 %v6554
  %v6658 = vunpack.c.l.b16 %v6555
  %v6659 = vunpack.c.l.b16 %v6556
  %v6660 = vunpack.c.l.b16 %v6557
  %v6661 = vunpack.c.l.b16 %v6558
  %v6662 = vunpack.c.l.b16 %v6559
  %v6663 = vunpack.c.l.b16 %v6560
  %v6664 = vunpack.c.l.b16 %v6561
  %v6665 = vunpack.c.l.b16 %v6562
  %v6666 = vunpack.c.l.b16 %v6563
  %v6667 = vunpack.c.l.b16 %v6564
  %v6668 = vpack.c.b16 %v6621, %v6620
  %v6669 = vpack.c.b16 %v6623, %v6622
  %v6670 = vpack.c.b16 %v6625, %v6624
  %v6671 = vpack.c.b16 %v6627, %v6626
  %v6672 = vpack.c.b16 %v6629, %v6628
  %v6673 = vpack.c.b16 %v6631, %v6630
  %v6674 = vpack.c.b16 %v6633, %v6632
  %v6675 = vpack.c.b16 %v6635, %v6634
  %v6676 = vpack.c.b16 %v6637, %v6636
  %v6677 = vpack.c.b16 %v6639, %v6638
  %v6678 = vpack.c.b16 %v6641, %v6640
  %v6679 = vpack.c.b16 %v6643, %v6642
  %v6680 = vpack.c.b16 %v6645, %v6644
  %v6681 = vpack.c.b16 %v6647, %v6646
  %v6682 = vpack.c.b16 %v6649, %v6648
  %v6683 = vpack.c.b16 %v6651, %v6650
  %v6684 = vpack.c.b16 %v6653, %v6652
  %v6685 = vpack.c.b16 %v6655, %v6654
  %v6686 = vpack.c.b16 %v6657, %v6656
  %v6687 = vpack.c.b16 %v6659, %v6658
  %v6688 = vpack.c.b16 %v6661, %v6660
  %v6689 = vpack.c.b16 %v6663, %v6662
  %v6690 = vpack.c.b16 %v6665, %v6664
  %v6691 = vpack.c.b16 %v6667, %v6666
  %6716 = vmatprep.subr.bf16.mxu0 0
  %6717 = vmatpush1.bf16.msra.mxu0 %v6668
  %6718 = vmatprep.subr.bf16.mxu0 0
  %6719 = vmatpush1.bf16.msra.mxu0 %v6669
  %6720 = vmatprep.subr.bf16.mxu0 0
  %6721 = vmatpush1.bf16.msra.mxu0 %v6670
  %6722 = vmatprep.subr.bf16.mxu0 0
  %6723 = vmatpush1.bf16.msra.mxu0 %v6671
  %6724 = vmatprep.subr.bf16.mxu0 0
  %6725 = vmatpush1.bf16.msra.mxu0 %v6672
  %6726 = vmatprep.subr.bf16.mxu0 0
  %6727 = vmatpush1.bf16.msra.mxu0 %v6673
  %6728 = vmatprep.subr.bf16.mxu0 0
  %6729 = vmatpush1.bf16.msra.mxu0 %v6674
  %6730 = vmatprep.subr.bf16.mxu0 0
  %6731 = vmatpush1.bf16.msra.mxu0 %v6675
  %6732 = vmatprep.subr.bf16.mxu0 0
  %6733 = vmatpush1.bf16.msra.mxu0 %v6676
  %6734 = vmatprep.subr.bf16.mxu0 0
  %6735 = vmatpush1.bf16.msra.mxu0 %v6677
  %6736 = vmatprep.subr.bf16.mxu0 0
  %6737 = vmatpush1.bf16.msra.mxu0 %v6678
  %6738 = vmatprep.subr.bf16.mxu0 0
  %6739 = vmatpush1.bf16.msra.mxu0 %v6679
  %6740 = vmatprep.subr.bf16.mxu0 0
  %6741 = vmatpush1.bf16.msra.mxu0 %v6680
  %6742 = vmatprep.subr.bf16.mxu0 0
  %6743 = vmatpush1.bf16.msra.mxu0 %v6681
  %6744 = vmatprep.subr.bf16.mxu0 0
  %6745 = vmatpush1.bf16.msra.mxu0 %v6682
  %6746 = vmatprep.subr.bf16.mxu0 0
  %6747 = vmatpush1.bf16.msra.mxu0 %v6683
  %6748 = vmatprep.mubr.bf16.mxu0 %v6515
  %6749 = vmatmul.mubr.bf16.gmra.mrb[0].mxu0 %v6514
  %v6750 = vpop.f32.mrb[0].mxu0
  %v6751 = vadd.f32 %v6570, %v6750
  %v6752 = vpop.f32.mrb[0].mxu0
  %v6753 = vpop.f32.mrb[0].mxu0
  %v6754 = vpop.f32.mrb[0].mxu0
  %6755 = vdwg.mxu0
  %6756 = vmatprep.subr.bf16.mxu0 0
  %6757 = vmatpush1.bf16.msra.mxu0 %v6684
  %6758 = vmatprep.subr.bf16.mxu0 0
  %6759 = vmatpush1.bf16.msra.mxu0 %v6685
  %6760 = vmatprep.subr.bf16.mxu0 0
  %6761 = vmatpush1.bf16.msra.mxu0 %v6686
  %6762 = vmatprep.subr.bf16.mxu0 0
  %6763 = vmatpush1.bf16.msra.mxu0 %v6687
  %6764 = vmatprep.subr.bf16.mxu0 0
  %6765 = vmatpush1.bf16.msra.mxu0 %v6688
  %6766 = vmatprep.subr.bf16.mxu0 0
  %6767 = vmatpush1.bf16.msra.mxu0 %v6689
  %6768 = vmatprep.subr.bf16.mxu0 0
  %6769 = vmatpush1.bf16.msra.mxu0 %v6690
  %6770 = vmatprep.subr.bf16.mxu0 0
  %6771 = vmatpush1.bf16.msra.mxu0 %v6691
  %6772 = vmatprep.subr.bf16.mxu0 0
  %6773 = vmatpush1.bf16.msra.mxu0 0
  %6774 = vmatprep.subr.bf16.mxu0 0
  %6775 = vmatpush1.bf16.msra.mxu0 0
  %6776 = vmatprep.subr.bf16.mxu0 0
  %6777 = vmatpush1.bf16.msra.mxu0 0
  %6778 = vmatprep.subr.bf16.mxu0 0
  %6779 = vmatpush1.bf16.msra.mxu0 0
  %6780 = vmatprep.subr.bf16.mxu0 0
  %6781 = vmatpush1.bf16.msra.mxu0 0
  %6782 = vmatprep.subr.bf16.mxu0 0
  %6783 = vmatpush1.bf16.msra.mxu0 0
  %6784 = vmatprep.subr.bf16.mxu0 0
  %6785 = vmatpush1.bf16.msra.mxu0 0
  %6786 = vmatprep.subr.bf16.mxu0 0
  %6787 = vmatpush1.bf16.msra.mxu0 0
  %6788 = vmatprep.mubr.bf16.mxu0 0
  %6789 = vmatmul.mubr.bf16.gmra.mrb[0].mxu0 %v6516
  %v6790 = vpop.f32.mrb[0].mxu0
  %v6791 = vadd.f32 %v6751, %v6790
  %v6792 = vpop.f32.mrb[0].mxu0
  %v6793 = vpop.f32.mrb[0].mxu0
  %v6794 = vpop.f32.mrb[0].mxu0
  %6795 = vdwg.mxu0
  %6796 = vst [vmem:[%s17] sm:$0xff] %v6511
  %6797 = vst [vmem:[%s17 + $0x8] sm:$0xff] %v6512
  %6798 = vst [vmem:[%s17 + $0x10] sm:$0xff] %v6513
  %6799 = vst [vmem:[%s18] sm:$0xff] %v6791
  // Predicated region
  $region70: #{drj_forward.3} parent=0 // pred_check
    _
  $region71: #{drj_forward.3} parent=0 // pred_check_branch
    %6801 = sbr.rel (0) target = $region73
  $region72: #{drj_forward.3} parent=0 // pred_region
    _
  $region73: #{drj_forward.3} parent=0 // pred_fallthru
    _
  // Predicated region
  $region74: #{drj_forward.3} parent=0 // pred_check
    _
  $region75: #{drj_forward.3} parent=0 // pred_check_branch
    %6803 = sbr.rel (0) target = $region77
  $region76: #{drj_forward.3} parent=0 // pred_region
    _
  $region77: #{drj_forward.3} parent=0 // pred_fallthru
    _
  // Predicated region
  $region78: #{drj_forward.3} parent=0 // pred_check
    _
  $region79: #{drj_forward.3} parent=0 // pred_check_branch
    %6805 = sbr.rel (0) target = $region81
  $region80: #{drj_forward.3} parent=0 // pred_region
    _
  $region81: #{drj_forward.3} parent=0 // pred_fallthru
    _
  // Predicated region
  $region82: #{drj_forward.3} parent=0 // pred_check
    _
  $region83: #{drj_forward.3} parent=0 // pred_check_branch
    %6807 = sbr.rel (0) target = $region85
  $region84: #{drj_forward.3} parent=0 // pred_region
    _
  $region85: #{drj_forward.3} parent=0 // pred_fallthru
    _

// kernel: drj_forward.2
$region0: #{drj_forward.2}
  #allocation0 [shape = 'u32[]', space=smem, size = 0x4, offset = 0x4, fixed_abs, tag = 'smem constant byte address 0x4 - core index']
  #allocation1 [shape = 'u32[144,128]{1,0:T(1,128)}', space=vmem, size = 0x12000, scoped, tag = 'internal scratch']
  %s0 = inlined_call_operand.vmem [shape: f32[8,2048], index: 0, kind: input, shape index: {}]
  %s1 = inlined_call_operand.hbm [shape: bf16[2048,2048], index: 1, kind: input, shape index: {}]
  %s2 = inlined_call_operand.hbm [shape: f32[1,2048], index: 2, kind: input, shape index: {}]
  %s3 = inlined_call_operand.vmem [shape: f32[8,2048], index: 3, kind: output, shape index: {}]
  %s4 = sld [smem:[#allocation0]]
  $region61: #{drj_forward.2} parent=0
    _
  %s6 = ssub.s32 1, %s4
  %s7 = scalar_select 0, %s6, %s4
  $region1: #{drj_forward.2} parent=0
    #allocation2 [shape = 'u8[8388608]{0}', space=vmem, size = 0x800000, scoped, tag = 'input window, operand 1']
    #allocation3 [shape = 's32[2]{0}', space=sflag, size = 0x8, scoped, tag = 'scoped memory for drj_forward.2']
    #allocation4 [shape = 'u8[8192]{0}', space=vmem, size = 0x2000, scoped, tag = 'input window, operand 2']
    #allocation5 [shape = 's32[2]{0}', space=sflag, size = 0x8, scoped, tag = 'scoped memory for drj_forward.2']
    %8 = vsyncpa [#allocation3], 0
    %s9 = scalar_lea.sflag [#allocation3], 1
    %10 = vsyncpa %s9, 0
    %11 = vsyncpa [#allocation5], 0
    %s12 = scalar_lea.sflag [#allocation5], 1
    %13 = vsyncpa %s12, 0
    loop: start=0, step=1, limit=4
    $region2: #{drj_forward.2} parent=1 // loop_pre_header
      _
    $region3: #{drj_forward.2} parent=1 // loop_header
      %s15 = sphi 0, %s19
      %p16 = scmp.ge.s32.totalorder %s15, 4
      %s23 = sphi 0, %s23
      %s25 = sphi 0, %s23
      %s26 = sphi 0, %s25
      %s40 = sphi 0, %s26
      %s46 = sphi 0, %s48
      %s49 = sphi 0, %s46
      %s50 = sphi 0, %s49
      %s66 = sphi 0, %s50
      %s72 = sphi 0, %s74
      %s75 = sphi 0, %s72
      %s76 = sphi 0, %s75
      %s92 = sphi 0, %s76
      %s98 = sphi 0, %s100
      %s101 = sphi 0, %s98
      %s102 = sphi 0, %s101
      %s118 = sphi 0, %s102
    $region4: #{drj_forward.2} parent=1 // loop_header_branch
      %18 = sbr.rel (%p16) target = $region8
    $region5: #{drj_forward.2} parent=1 // loop_body
      %s20 = ssub.s32 %s15, 1
      %s21 = ssub.s32 %s15, 2
      %s22 = sadd.s32 %s15, 1
      %s24 = sadd.s32 %s23, 1
      %p27 = scmp.eq.s32.totalorder %s15, 1
      %p28 = scmp.ne.s32.totalorder %s23, %s25
      %p29 = scmp.eq.s32.totalorder %s15, 0
      %p30 = por %p28, %p29
      %p31 = scmp.ne.s32.totalorder %s23, %s25
      %p32 = scmp.eq.s32.totalorder %s20, 1
      %p33 = por %p31, %p32
      %p34 = scmp.ne.s32.totalorder %s25, %s26
      %p35 = scmp.eq.s32.totalorder %s20, 0
      %p36 = por %p34, %p35
      %p37 = scmp.ne.s32.totalorder %s25, %s26
      %p38 = scmp.eq.s32.totalorder %s21, 1
      %p39 = por %p37, %p38
      %p41 = scmp.ne.s32.totalorder %s26, %s40
      %p42 = scmp.eq.s32.totalorder %s21, 0
      %p43 = por %p41, %p42
      %s44 = ssub.s32 %s15, %s22
      %p45 = scmp.eq.s32.totalorder %s44, 0
      %s47 = sadd.s32 %s46, 1
      %s48 = scalar_select %p45, %s46, %s47
      %p51 = pneg %p45
      %p52 = scmp.eq.s32.totalorder %s15, 1
      %p53 = por %p51, %p52
      %p54 = scmp.ne.s32.totalorder %s46, %s49
      %p55 = scmp.eq.s32.totalorder %s15, 0
      %p56 = por %p54, %p55
      %p57 = scmp.ne.s32.totalorder %s46, %s49
      %p58 = scmp.eq.s32.totalorder %s20, 1
      %p59 = por %p57, %p58
      %p60 = scmp.ne.s32.totalorder %s49, %s50
      %p61 = scmp.eq.s32.totalorder %s20, 0
      %p62 = por %p60, %p61
      %p63 = scmp.ne.s32.totalorder %s49, %s50
      %p64 = scmp.eq.s32.totalorder %s21, 1
      %p65 = por %p63, %p64
      %p67 = scmp.ne.s32.totalorder %s50, %s66
      %p68 = scmp.eq.s32.totalorder %s21, 0
      %p69 = por %p67, %p68
      %s70 = ssub.s32 %s15, %s22
      %p71 = scmp.eq.s32.totalorder %s70, 0
      %s73 = sadd.s32 %s72, 1
      %s74 = scalar_select %p71, %s72, %s73
      %p77 = pneg %p71
      %p78 = scmp.eq.s32.totalorder %s15, 1
      %p79 = por %p77, %p78
      %p80 = scmp.ne.s32.totalorder %s72, %s75
      %p81 = scmp.eq.s32.totalorder %s15, 0
      %p82 = por %p80, %p81
      %p83 = scmp.ne.s32.totalorder %s72, %s75
      %p84 = scmp.eq.s32.totalorder %s20, 1
      %p85 = por %p83, %p84
      %p86 = scmp.ne.s32.totalorder %s75, %s76
      %p87 = scmp.eq.s32.totalorder %s20, 0
      %p88 = por %p86, %p87
      %p89 = scmp.ne.s32.totalorder %s75, %s76
      %p90 = scmp.eq.s32.totalorder %s21, 1
      %p91 = por %p89, %p90
      %p93 = scmp.ne.s32.totalorder %s76, %s92
      %p94 = scmp.eq.s32.totalorder %s21, 0
      %p95 = por %p93, %p94
      %s96 = ssub.s32 %s15, %s22
      %p97 = scmp.eq.s32.totalorder %s96, 0
      %s99 = sadd.s32 %s98, 1
      %s100 = scalar_select %p97, %s98, %s99
      %p103 = pneg %p97
      %p104 = scmp.eq.s32.totalorder %s15, 1
      %p105 = por %p103, %p104
      %p106 = scmp.ne.s32.totalorder %s98, %s101
      %p107 = scmp.eq.s32.totalorder %s15, 0
      %p108 = por %p106, %p107
      %p109 = scmp.ne.s32.totalorder %s98, %s101
      %p110 = scmp.eq.s32.totalorder %s20, 1
      %p111 = por %p109, %p110
      %p112 = scmp.ne.s32.totalorder %s101, %s102
      %p113 = scmp.eq.s32.totalorder %s20, 0
      %p114 = por %p112, %p113
      %p115 = scmp.ne.s32.totalorder %s101, %s102
      %p116 = scmp.eq.s32.totalorder %s21, 1
      %p117 = por %p115, %p116
      %p119 = scmp.ne.s32.totalorder %s102, %s118
      %p120 = scmp.eq.s32.totalorder %s21, 0
      %p121 = por %p119, %p120
      %p122 = scmp.le.s32.totalorder 1, %s15
      %p123 = scmp.lt.s32.totalorder %s15, 3
      %p124 = pnand %p122, %p123
      %p125 = pneg %p124
      // Predicated region
      $region9: #{drj_forward.2} parent=5 // pred_check
        _
      $region10: #{drj_forward.2} parent=5 // pred_check_branch
        %127 = sbr.rel (%p124) target = $region12
      $region11: #{drj_forward.2} parent=5 // pred_region
        %s128 = ssub.s32 %s15, 1
        // Predicated region
        $region13: #{drj_forward.2} parent=11 // pred_check
          %p129 = pneg %p36
        $region14: #{drj_forward.2} parent=11 // pred_check_branch
          %131 = sbr.rel (%p129) target = $region16
        $region15: #{drj_forward.2} parent=11 // pred_region
          _
        $region16: #{drj_forward.2} parent=11 // pred_fallthru
          _
      $region12: #{drj_forward.2} parent=5 // pred_fallthru
        _
      %p132 = scmp.lt.s32.totalorder %s15, 2
      // Predicated region
      $region17: #{drj_forward.2} parent=5 // pred_check
        %p133 = pneg %p132
      $region18: #{drj_forward.2} parent=5 // pred_check_branch
        %135 = sbr.rel (%p133) target = $region20
      $region19: #{drj_forward.2} parent=5 // pred_region
        // Predicated region
        $region21: #{drj_forward.2} parent=19 // pred_check
          %p136 = pneg %p56
        $region22: #{drj_forward.2} parent=19 // pred_check_branch
          %138 = sbr.rel (%p136) target = $region24
        $region23: #{drj_forward.2} parent=19 // pred_region
          %s139 = sand.u32 %s46, 1
          %s140 = scalar_lea.sflag [#allocation3], %s139
          %s141 = sand.u32 %s46, 1
          %s142 = smul.addr %s141, 8192
          %s143 = scalar_lea.vmem [#allocation2], %s142
          %s144 = smul.u32 8, %s15
          %s146 = ssub.s32 131072, 131072
          %147 = vsyncadd %s140, %s146
          %s148 = smul.addr %s144, 64
          %s149 = scalar_lea.hbm %s1, %s148
          %s150 = sshll.u32 %s143, 4
          %s151 = int_to_ptr.vmem [resolvable:$true] %s150
          %156 = dma.hbm_to_vmem [thread:$0]  %s149, 131072, %s151, %s140, 1024, 512, 32
        $region24: #{drj_forward.2} parent=19 // pred_fallthru
          _
        // Predicated region
        $region25: #{drj_forward.2} parent=19 // pred_check
          %p157 = pneg %p82
        $region26: #{drj_forward.2} parent=19 // pred_check_branch
          %159 = sbr.rel (%p157) target = $region28
        $region27: #{drj_forward.2} parent=19 // pred_region
          %s160 = sand.u32 %s72, 1
          %s161 = scalar_lea.sflag [#allocation5], %s160
          %s162 = sand.u32 %s72, 1
          %s163 = smul.addr %s162, 8
          %s164 = scalar_lea.vmem [#allocation4], %s163
          %s165 = smul.u32 8, %s15
          %s167 = ssub.s32 128, 128
          %168 = vsyncadd %s161, %s167
          %s169 = smul.addr %s165, 16
          %s170 = scalar_lea.hbm %s2, %s169
          %s172 = sshll.u32 %s164, 4
          %s173 = int_to_ptr.vmem [resolvable:$true] %s172
          %175 = dma.hbm_to_vmem [thread:$0]  %s170, 128, %s173, %s161
        $region28: #{drj_forward.2} parent=19 // pred_fallthru
          _
      $region20: #{drj_forward.2} parent=5 // pred_fallthru
        _
      %p176 = scmp.le.s32.totalorder 1, %s15
      %p177 = scmp.lt.s32.totalorder %s15, 3
      %p178 = pnand %p176, %p177
      %p179 = pneg %p178
      // Predicated region
      $region29: #{drj_forward.2} parent=5 // pred_check
        _
      $region30: #{drj_forward.2} parent=5 // pred_check_branch
        %181 = sbr.rel (%p178) target = $region32
      $region31: #{drj_forward.2} parent=5 // pred_region
        %s182 = ssub.s32 %s15, 1
        %s183 = sand.u32 %s49, 1
        %s184 = scalar_lea.sflag [#allocation3], %s183
        %s185 = sand.u32 %s49, 1
        %s186 = smul.addr %s185, 8192
        %s187 = scalar_lea.vmem [#allocation2], %s186
        // Predicated region
        $region33: #{drj_forward.2} parent=31 // pred_check
          %p188 = pneg %p62
        $region34: #{drj_forward.2} parent=31 // pred_check_branch
          %190 = sbr.rel (%p188) target = $region36
        $region35: #{drj_forward.2} parent=31 // pred_region
          %191 = dma.done %s184, 131072
        $region36: #{drj_forward.2} parent=31 // pred_fallthru
          _
        %s192 = sand.u32 %s75, 1
        %s193 = scalar_lea.sflag [#allocation5], %s192
        %s194 = sand.u32 %s75, 1
        %s195 = smul.addr %s194, 8
        %s196 = scalar_lea.vmem [#allocation4], %s195
        // Predicated region
        $region37: #{drj_forward.2} parent=31 // pred_check
          %p197 = pneg %p88
        $region38: #{drj_forward.2} parent=31 // pred_check_branch
          %199 = sbr.rel (%p197) target = $region40
        $region39: #{drj_forward.2} parent=31 // pred_region
          %200 = dma.done %s193, 128
        $region40: #{drj_forward.2} parent=31 // pred_fallthru
          _
        %p201 = pneg %p36
        %p202 = pneg %p33
        %s203 = sand.u32 %s49, 1
        %s204 = scalar_lea.sflag [#allocation3], %s203
        %s205 = sand.u32 %s49, 1
        %s206 = smul.addr %s205, 8192
        %s207 = scalar_lea.vmem [#allocation2], %s206
        %p208 = pneg %p62
        %p209 = pneg %p59
        %s210 = sand.u32 %s75, 1
        %s211 = scalar_lea.sflag [#allocation5], %s210
        %s212 = sand.u32 %s75, 1
        %s213 = smul.addr %s212, 8
        %s214 = scalar_lea.vmem [#allocation4], %s213
        %p215 = pneg %p88
        %p216 = pneg %p85
        %p217 = pneg %p114
        %p218 = pneg %p111
        %s219 = smul.u32 8, %s20
        %p220 = scmp.lt.s32.totalorder %s219, 15
        %s221 = scalar_select %p220, %s219, 15
        %s222 = smul.addr %s221, 8
        %s223 = scalar_lea.vmem %s3, %s222
        %s224 = smul.u32 8, %s20
        %s225 = smul.u32 8, %s20
        %s226 = smul.u32 8, %s20
        %p227 = scmp.lt.s32.totalorder %s226, 15
        %s228 = scalar_select %p227, %s226, 15
        %s229 = smul.addr %s228, 8
        %s230 = scalar_lea.vmem %s3, %s229
        %s231 = smul.u32 8, %s20
        %v232 = vld [vmem:[%s0] sm:$0xff]
        %v233 = vld [vmem:[%s0 + $0x8] sm:$0xff]
        %v234 = vld [vmem:[%s0 + $0x10] sm:$0xff]
        %v235 = vld [vmem:[%s0 + $0x18] sm:$0xff]
        %v236 = vld [vmem:[%s0 + $0x20] sm:$0xff]
        %v237 = vld [vmem:[%s0 + $0x28] sm:$0xff]
        %v238 = vld [vmem:[%s0 + $0x30] sm:$0xff]
        %v239 = vld [vmem:[%s0 + $0x38] sm:$0xff]
        %v240 = vld [vmem:[%s0 + $0x40] sm:$0xff]
        %v241 = vld [vmem:[%s0 + $0x48] sm:$0xff]
        %v242 = vld [vmem:[%s0 + $0x50] sm:$0xff]
        %v243 = vld [vmem:[%s0 + $0x58] sm:$0xff]
        %v244 = vld [vmem:[%s0 + $0x60] sm:$0xff]
        %v245 = vld [vmem:[%s0 + $0x68] sm:$0xff]
        %v246 = vld [vmem:[%s0 + $0x70] sm:$0xff]
        %v247 = vld [vmem:[%s0 + $0x78] sm:$0xff]
        %v248 = vpack.c.bf16 %v232, %v232
        %v249 = vpack.c.bf16 %v233, %v233
        %v250 = vpack.c.bf16 %v234, %v234
        %v251 = vpack.c.bf16 %v235, %v235
        %v252 = vpack.c.bf16 %v236, %v236
        %v253 = vpack.c.bf16 %v237, %v237
        %v254 = vpack.c.bf16 %v238, %v238
        %v255 = vpack.c.bf16 %v239, %v239
        %v256 = vpack.c.bf16 %v240, %v240
        %v257 = vpack.c.bf16 %v241, %v241
        %v258 = vpack.c.bf16 %v242, %v242
        %v259 = vpack.c.bf16 %v243, %v243
        %v260 = vpack.c.bf16 %v244, %v244
        %v261 = vpack.c.bf16 %v245, %v245
        %v262 = vpack.c.bf16 %v246, %v246
        %v263 = vpack.c.bf16 %v247, %v247
        %v264 = vld [vmem:[%s187] sm:$0xff]
        %v265 = vld [vmem:[%s187 + $0x8] sm:$0xff]
        %v266 = vld [vmem:[%s187 + $0x10] sm:$0xff]
        %v267 = vld [vmem:[%s187 + $0x18] sm:$0xff]
        %v268 = vld [vmem:[%s187 + $0x20] sm:$0xff]
        %v269 = vld [vmem:[%s187 + $0x28] sm:$0xff]
        %v270 = vld [vmem:[%s187 + $0x30] sm:$0xff]
        %v271 = vld [vmem:[%s187 + $0x38] sm:$0xff]
        %v272 = vld [vmem:[%s187 + $0x40] sm:$0xff]
        %v273 = vld [vmem:[%s187 + $0x48] sm:$0xff]
        %v274 = vld [vmem:[%s187 + $0x50] sm:$0xff]
        %v275 = vld [vmem:[%s187 + $0x58] sm:$0xff]
        %v276 = vld [vmem:[%s187 + $0x60] sm:$0xff]
        %v277 = vld [vmem:[%s187 + $0x68] sm:$0xff]
        %v278 = vld [vmem:[%s187 + $0x70] sm:$0xff]
        %v279 = vld [vmem:[%s187 + $0x78] sm:$0xff]
        %v280 = vld [vmem:[%s187 + $0x80] sm:$0xff]
        %v281 = vld [vmem:[%s187 + $0x88] sm:$0xff]
        %v282 = vld [vmem:[%s187 + $0x90] sm:$0xff]
        %v283 = vld [vmem:[%s187 + $0x98] sm:$0xff]
        %v284 = vld [vmem:[%s187 + $0xa0] sm:$0xff]
        %v285 = vld [vmem:[%s187 + $0xa8] sm:$0xff]
        %v286 = vld [vmem:[%s187 + $0xb0] sm:$0xff]
        %v287 = vld [vmem:[%s187 + $0xb8] sm:$0xff]
        %v288 = vld [vmem:[%s187 + $0xc0] sm:$0xff]
        %v289 = vld [vmem:[%s187 + $0xc8] sm:$0xff]
        %v290 = vld [vmem:[%s187 + $0xd0] sm:$0xff]
        %v291 = vld [vmem:[%s187 + $0xd8] sm:$0xff]
        %v292 = vld [vmem:[%s187 + $0xe0] sm:$0xff]
        %v293 = vld [vmem:[%s187 + $0xe8] sm:$0xff]
        %v294 = vld [vmem:[%s187 + $0xf0] sm:$0xff]
        %v295 = vld [vmem:[%s187 + $0xf8] sm:$0xff]
        %v296 = vld [vmem:[%s187 + $0x100] sm:$0xff]
        %v297 = vld [vmem:[%s187 + $0x108] sm:$0xff]
        %v298 = vld [vmem:[%s187 + $0x110] sm:$0xff]
        %v299 = vld [vmem:[%s187 + $0x118] sm:$0xff]
        %v300 = vld [vmem:[%s187 + $0x120] sm:$0xff]
        %v301 = vld [vmem:[%s187 + $0x128] sm:$0xff]
        %v302 = vld [vmem:[%s187 + $0x130] sm:$0xff]
        %v303 = vld [vmem:[%s187 + $0x138] sm:$0xff]
        %v304 = vld [vmem:[%s187 + $0x140] sm:$0xff]
        %v305 = vld [vmem:[%s187 + $0x148] sm:$0xff]
        %v306 = vld [vmem:[%s187 + $0x150] sm:$0xff]
        %v307 = vld [vmem:[%s187 + $0x158] sm:$0xff]
        %v308 = vld [vmem:[%s187 + $0x160] sm:$0xff]
        %v309 = vld [vmem:[%s187 + $0x168] sm:$0xff]
        %v310 = vld [vmem:[%s187 + $0x170] sm:$0xff]
        %v311 = vld [vmem:[%s187 + $0x178] sm:$0xff]
        %v312 = vld [vmem:[%s187 + $0x180] sm:$0xff]
        %v313 = vld [vmem:[%s187 + $0x188] sm:$0xff]
        %v314 = vld [vmem:[%s187 + $0x190] sm:$0xff]
        %v315 = vld [vmem:[%s187 + $0x198] sm:$0xff]
        %v316 = vld [vmem:[%s187 + $0x1a0] sm:$0xff]
        %v317 = vld [vmem:[%s187 + $0x1a8] sm:$0xff]
        %v318 = vld [vmem:[%s187 + $0x1b0] sm:$0xff]
        %v319 = vld [vmem:[%s187 + $0x1b8] sm:$0xff]
        %v320 = vld [vmem:[%s187 + $0x1c0] sm:$0xff]
        %v321 = vld [vmem:[%s187 + $0x1c8] sm:$0xff]
        %v322 = vld [vmem:[%s187 + $0x1d0] sm:$0xff]
        %v323 = vld [vmem:[%s187 + $0x1d8] sm:$0xff]
        %v324 = vld [vmem:[%s187 + $0x1e0] sm:$0xff]
        %v325 = vld [vmem:[%s187 + $0x1e8] sm:$0xff]
        %v326 = vld [vmem:[%s187 + $0x1f0] sm:$0xff]
        %v327 = vld [vmem:[%s187 + $0x1f8] sm:$0xff]
        %v328 = vld [vmem:[%s187 + $0x200] sm:$0xff]
        %v329 = vld [vmem:[%s187 + $0x208] sm:$0xff]
        %v330 = vld [vmem:[%s187 + $0x210] sm:$0xff]
        %v331 = vld [vmem:[%s187 + $0x218] sm:$0xff]
        %v332 = vld [vmem:[%s187 + $0x220] sm:$0xff]
        %v333 = vld [vmem:[%s187 + $0x228] sm:$0xff]
        %v334 = vld [vmem:[%s187 + $0x230] sm:$0xff]
        %v335 = vld [vmem:[%s187 + $0x238] sm:$0xff]
        %v336 = vld [vmem:[%s187 + $0x240] sm:$0xff]
        %v337 = vld [vmem:[%s187 + $0x248] sm:$0xff]
        %v338 = vld [vmem:[%s187 + $0x250] sm:$0xff]
        %v339 = vld [vmem:[%s187 + $0x258] sm:$0xff]
        %v340 = vld [vmem:[%s187 + $0x260] sm:$0xff]
        %v341 = vld [vmem:[%s187 + $0x268] sm:$0xff]
        %v342 = vld [vmem:[%s187 + $0x270] sm:$0xff]
        %v343 = vld [vmem:[%s187 + $0x278] sm:$0xff]
        %v344 = vld [vmem:[%s187 + $0x280] sm:$0xff]
        %v345 = vld [vmem:[%s187 + $0x288] sm:$0xff]
        %v346 = vld [vmem:[%s187 + $0x290] sm:$0xff]
        %v347 = vld [vmem:[%s187 + $0x298] sm:$0xff]
        %v348 = vld [vmem:[%s187 + $0x2a0] sm:$0xff]
        %v349 = vld [vmem:[%s187 + $0x2a8] sm:$0xff]
        %v350 = vld [vmem:[%s187 + $0x2b0] sm:$0xff]
        %v351 = vld [vmem:[%s187 + $0x2b8] sm:$0xff]
        %v352 = vld [vmem:[%s187 + $0x2c0] sm:$0xff]
        %v353 = vld [vmem:[%s187 + $0x2c8] sm:$0xff]
        %v354 = vld [vmem:[%s187 + $0x2d0] sm:$0xff]
        %v355 = vld [vmem:[%s187 + $0x2d8] sm:$0xff]
        %v356 = vld [vmem:[%s187 + $0x2e0] sm:$0xff]
        %v357 = vld [vmem:[%s187 + $0x2e8] sm:$0xff]
        %v358 = vld [vmem:[%s187 + $0x2f0] sm:$0xff]
        %v359 = vld [vmem:[%s187 + $0x2f8] sm:$0xff]
        %v360 = vld [vmem:[%s187 + $0x300] sm:$0xff]
        %v361 = vld [vmem:[%s187 + $0x308] sm:$0xff]
        %v362 = vld [vmem:[%s187 + $0x310] sm:$0xff]
        %v363 = vld [vmem:[%s187 + $0x318] sm:$0xff]
        %v364 = vld [vmem:[%s187 + $0x320] sm:$0xff]
        %v365 = vld [vmem:[%s187 + $0x328] sm:$0xff]
        %v366 = vld [vmem:[%s187 + $0x330] sm:$0xff]
        %v367 = vld [vmem:[%s187 + $0x338] sm:$0xff]
        %v368 = vld [vmem:[%s187 + $0x340] sm:$0xff]
        %v369 = vld [vmem:[%s187 + $0x348] sm:$0xff]
        %v370 = vld [vmem:[%s187 + $0x350] sm:$0xff]
        %v371 = vld [vmem:[%s187 + $0x358] sm:$0xff]
        %v372 = vld [vmem:[%s187 + $0x360] sm:$0xff]
        %v373 = vld [vmem:[%s187 + $0x368] sm:$0xff]
        %v374 = vld [vmem:[%s187 + $0x370] sm:$0xff]
        %v375 = vld [vmem:[%s187 + $0x378] sm:$0xff]
        %v376 = vld [vmem:[%s187 + $0x380] sm:$0xff]
        %v377 = vld [vmem:[%s187 + $0x388] sm:$0xff]
        %v378 = vld [vmem:[%s187 + $0x390] sm:$0xff]
        %v379 = vld [vmem:[%s187 + $0x398] sm:$0xff]
        %v380 = vld [vmem:[%s187 + $0x3a0] sm:$0xff]
        %v381 = vld [vmem:[%s187 + $0x3a8] sm:$0xff]
        %v382 = vld [vmem:[%s187 + $0x3b0] sm:$0xff]
        %v383 = vld [vmem:[%s187 + $0x3b8] sm:$0xff]
        %v384 = vld [vmem:[%s187 + $0x3c0] sm:$0xff]
        %v385 = vld [vmem:[%s187 + $0x3c8] sm:$0xff]
        %v386 = vld [vmem:[%s187 + $0x3d0] sm:$0xff]
        %v387 = vld [vmem:[%s187 + $0x3d8] sm:$0xff]
        %v388 = vld [vmem:[%s187 + $0x3e0] sm:$0xff]
        %v389 = vld [vmem:[%s187 + $0x3e8] sm:$0xff]
        %v390 = vld [vmem:[%s187 + $0x3f0] sm:$0xff]
        %v391 = vld [vmem:[%s187 + $0x3f8] sm:$0xff]
        %v392 = vld [vmem:[%s187 + $0x400] sm:$0xff]
        %v393 = vld [vmem:[%s187 + $0x408] sm:$0xff]
        %v394 = vld [vmem:[%s187 + $0x410] sm:$0xff]
        %v395 = vld [vmem:[%s187 + $0x418] sm:$0xff]
        %v396 = vld [vmem:[%s187 + $0x420] sm:$0xff]
        %v397 = vld [vmem:[%s187 + $0x428] sm:$0xff]
        %v398 = vld [vmem:[%s187 + $0x430] sm:$0xff]
        %v399 = vld [vmem:[%s187 + $0x438] sm:$0xff]
        %v400 = vld [vmem:[%s187 + $0x440] sm:$0xff]
        %v401 = vld [vmem:[%s187 + $0x448] sm:$0xff]
        %v402 = vld [vmem:[%s187 + $0x450] sm:$0xff]
        %v403 = vld [vmem:[%s187 + $0x458] sm:$0xff]
        %v404 = vld [vmem:[%s187 + $0x460] sm:$0xff]
        %v405 = vld [vmem:[%s187 + $0x468] sm:$0xff]
        %v406 = vld [vmem:[%s187 + $0x470] sm:$0xff]
        %v407 = vld [vmem:[%s187 + $0x478] sm:$0xff]
        %v408 = vld [vmem:[%s187 + $0x480] sm:$0xff]
        %v409 = vld [vmem:[%s187 + $0x488] sm:$0xff]
        %v410 = vld [vmem:[%s187 + $0x490] sm:$0xff]
        %v411 = vld [vmem:[%s187 + $0x498] sm:$0xff]
        %v412 = vld [vmem:[%s187 + $0x4a0] sm:$0xff]
        %v413 = vld [vmem:[%s187 + $0x4a8] sm:$0xff]
        %v414 = vld [vmem:[%s187 + $0x4b0] sm:$0xff]
        %v415 = vld [vmem:[%s187 + $0x4b8] sm:$0xff]
        %v416 = vld [vmem:[%s187 + $0x4c0] sm:$0xff]
        %v417 = vld [vmem:[%s187 + $0x4c8] sm:$0xff]
        %v418 = vld [vmem:[%s187 + $0x4d0] sm:$0xff]
        %v419 = vld [vmem:[%s187 + $0x4d8] sm:$0xff]
        %v420 = vld [vmem:[%s187 + $0x4e0] sm:$0xff]
        %v421 = vld [vmem:[%s187 + $0x4e8] sm:$0xff]
        %v422 = vld [vmem:[%s187 + $0x4f0] sm:$0xff]
        %v423 = vld [vmem:[%s187 + $0x4f8] sm:$0xff]
        %v424 = vld [vmem:[%s187 + $0x500] sm:$0xff]
        %v425 = vld [vmem:[%s187 + $0x508] sm:$0xff]
        %v426 = vld [vmem:[%s187 + $0x510] sm:$0xff]
        %v427 = vld [vmem:[%s187 + $0x518] sm:$0xff]
        %v428 = vld [vmem:[%s187 + $0x520] sm:$0xff]
        %v429 = vld [vmem:[%s187 + $0x528] sm:$0xff]
        %v430 = vld [vmem:[%s187 + $0x530] sm:$0xff]
        %v431 = vld [vmem:[%s187 + $0x538] sm:$0xff]
        %v432 = vld [vmem:[%s187 + $0x540] sm:$0xff]
        %v433 = vld [vmem:[%s187 + $0x548] sm:$0xff]
        %v434 = vld [vmem:[%s187 + $0x550] sm:$0xff]
        %v435 = vld [vmem:[%s187 + $0x558] sm:$0xff]
        %v436 = vld [vmem:[%s187 + $0x560] sm:$0xff]
        %v437 = vld [vmem:[%s187 + $0x568] sm:$0xff]
        %v438 = vld [vmem:[%s187 + $0x570] sm:$0xff]
        %v439 = vld [vmem:[%s187 + $0x578] sm:$0xff]
        %v440 = vld [vmem:[%s187 + $0x580] sm:$0xff]
        %v441 = vld [vmem:[%s187 + $0x588] sm:$0xff]
        %v442 = vld [vmem:[%s187 + $0x590] sm:$0xff]
        %v443 = vld [vmem:[%s187 + $0x598] sm:$0xff]
        %v444 = vld [vmem:[%s187 + $0x5a0] sm:$0xff]
        %v445 = vld [vmem:[%s187 + $0x5a8] sm:$0xff]
        %v446 = vld [vmem:[%s187 + $0x5b0] sm:$0xff]
        %v447 = vld [vmem:[%s187 + $0x5b8] sm:$0xff]
        %v448 = vld [vmem:[%s187 + $0x5c0] sm:$0xff]
        %v449 = vld [vmem:[%s187 + $0x5c8] sm:$0xff]
        %v450 = vld [vmem:[%s187 + $0x5d0] sm:$0xff]
        %v451 = vld [vmem:[%s187 + $0x5d8] sm:$0xff]
        %v452 = vld [vmem:[%s187 + $0x5e0] sm:$0xff]
        %v453 = vld [vmem:[%s187 + $0x5e8] sm:$0xff]
        %v454 = vld [vmem:[%s187 + $0x5f0] sm:$0xff]
        %v455 = vld [vmem:[%s187 + $0x5f8] sm:$0xff]
        %v456 = vld [vmem:[%s187 + $0x600] sm:$0xff]
        %v457 = vld [vmem:[%s187 + $0x608] sm:$0xff]
        %v458 = vld [vmem:[%s187 + $0x610] sm:$0xff]
        %v459 = vld [vmem:[%s187 + $0x618] sm:$0xff]
        %v460 = vld [vmem:[%s187 + $0x620] sm:$0xff]
        %v461 = vld [vmem:[%s187 + $0x628] sm:$0xff]
        %v462 = vld [vmem:[%s187 + $0x630] sm:$0xff]
        %v463 = vld [vmem:[%s187 + $0x638] sm:$0xff]
        %v464 = vld [vmem:[%s187 + $0x640] sm:$0xff]
        %v465 = vld [vmem:[%s187 + $0x648] sm:$0xff]
        %v466 = vld [vmem:[%s187 + $0x650] sm:$0xff]
        %v467 = vld [vmem:[%s187 + $0x658] sm:$0xff]
        %v468 = vld [vmem:[%s187 + $0x660] sm:$0xff]
        %v469 = vld [vmem:[%s187 + $0x668] sm:$0xff]
        %v470 = vld [vmem:[%s187 + $0x670] sm:$0xff]
        %v471 = vld [vmem:[%s187 + $0x678] sm:$0xff]
        %v472 = vld [vmem:[%s187 + $0x680] sm:$0xff]
        %v473 = vld [vmem:[%s187 + $0x688] sm:$0xff]
        %v474 = vld [vmem:[%s187 + $0x690] sm:$0xff]
        %v475 = vld [vmem:[%s187 + $0x698] sm:$0xff]
        %v476 = vld [vmem:[%s187 + $0x6a0] sm:$0xff]
        %v477 = vld [vmem:[%s187 + $0x6a8] sm:$0xff]
        %v478 = vld [vmem:[%s187 + $0x6b0] sm:$0xff]
        %v479 = vld [vmem:[%s187 + $0x6b8] sm:$0xff]
        %v480 = vld [vmem:[%s187 + $0x6c0] sm:$0xff]
        %v481 = vld [vmem:[%s187 + $0x6c8] sm:$0xff]
        %v482 = vld [vmem:[%s187 + $0x6d0] sm:$0xff]
        %v483 = vld [vmem:[%s187 + $0x6d8] sm:$0xff]
        %v484 = vld [vmem:[%s187 + $0x6e0] sm:$0xff]
        %v485 = vld [vmem:[%s187 + $0x6e8] sm:$0xff]
        %v486 = vld [vmem:[%s187 + $0x6f0] sm:$0xff]
        %v487 = vld [vmem:[%s187 + $0x6f8] sm:$0xff]
        %v488 = vld [vmem:[%s187 + $0x700] sm:$0xff]
        %v489 = vld [vmem:[%s187 + $0x708] sm:$0xff]
        %v490 = vld [vmem:[%s187 + $0x710] sm:$0xff]
        %v491 = vld [vmem:[%s187 + $0x718] sm:$0xff]
        %v492 = vld [vmem:[%s187 + $0x720] sm:$0xff]
        %v493 = vld [vmem:[%s187 + $0x728] sm:$0xff]
        %v494 = vld [vmem:[%s187 + $0x730] sm:$0xff]
        %v495 = vld [vmem:[%s187 + $0x738] sm:$0xff]
        %v496 = vld [vmem:[%s187 + $0x740] sm:$0xff]
        %v497 = vld [vmem:[%s187 + $0x748] sm:$0xff]
        %v498 = vld [vmem:[%s187 + $0x750] sm:$0xff]
        %v499 = vld [vmem:[%s187 + $0x758] sm:$0xff]
        %v500 = vld [vmem:[%s187 + $0x760] sm:$0xff]
        %v501 = vld [vmem:[%s187 + $0x768] sm:$0xff]
        %v502 = vld [vmem:[%s187 + $0x770] sm:$0xff]
        %v503 = vld [vmem:[%s187 + $0x778] sm:$0xff]
        %v504 = vld [vmem:[%s187 + $0x780] sm:$0xff]
        %v505 = vld [vmem:[%s187 + $0x788] sm:$0xff]
        %v506 = vld [vmem:[%s187 + $0x790] sm:$0xff]
        %v507 = vld [vmem:[%s187 + $0x798] sm:$0xff]
        %v508 = vld [vmem:[%s187 + $0x7a0] sm:$0xff]
        %v509 = vld [vmem:[%s187 + $0x7a8] sm:$0xff]
        %v510 = vld [vmem:[%s187 + $0x7b0] sm:$0xff]
        %v511 = vld [vmem:[%s187 + $0x7b8] sm:$0xff]
        %v512 = vld [vmem:[%s187 + $0x7c0] sm:$0xff]
        %v513 = vld [vmem:[%s187 + $0x7c8] sm:$0xff]
        %v514 = vld [vmem:[%s187 + $0x7d0] sm:$0xff]
        %v515 = vld [vmem:[%s187 + $0x7d8] sm:$0xff]
        %v516 = vld [vmem:[%s187 + $0x7e0] sm:$0xff]
        %v517 = vld [vmem:[%s187 + $0x7e8] sm:$0xff]
        %v518 = vld [vmem:[%s187 + $0x7f0] sm:$0xff]
        %v519 = vld [vmem:[%s187 + $0x7f8] sm:$0xff]
        %v520 = vld [vmem:[%s187 + $0x800] sm:$0xff]
        %v521 = vld [vmem:[%s187 + $0x808] sm:$0xff]
        %v522 = vld [vmem:[%s187 + $0x810] sm:$0xff]
        %v523 = vld [vmem:[%s187 + $0x818] sm:$0xff]
        %v524 = vld [vmem:[%s187 + $0x820] sm:$0xff]
        %v525 = vld [vmem:[%s187 + $0x828] sm:$0xff]
        %v526 = vld [vmem:[%s187 + $0x830] sm:$0xff]
        %v527 = vld [vmem:[%s187 + $0x838] sm:$0xff]
        %v528 = vld [vmem:[%s187 + $0x840] sm:$0xff]
        %v529 = vld [vmem:[%s187 + $0x848] sm:$0xff]
        %v530 = vld [vmem:[%s187 + $0x850] sm:$0xff]
        %v531 = vld [vmem:[%s187 + $0x858] sm:$0xff]
        %v532 = vld [vmem:[%s187 + $0x860] sm:$0xff]
        %v533 = vld [vmem:[%s187 + $0x868] sm:$0xff]
        %v534 = vld [vmem:[%s187 + $0x870] sm:$0xff]
        %v535 = vld [vmem:[%s187 + $0x878] sm:$0xff]
        %v536 = vld [vmem:[%s187 + $0x880] sm:$0xff]
        %v537 = vld [vmem:[%s187 + $0x888] sm:$0xff]
        %v538 = vld [vmem:[%s187 + $0x890] sm:$0xff]
        %v539 = vld [vmem:[%s187 + $0x898] sm:$0xff]
        %v540 = vld [vmem:[%s187 + $0x8a0] sm:$0xff]
        %v541 = vld [vmem:[%s187 + $0x8a8] sm:$0xff]
        %v542 = vld [vmem:[%s187 + $0x8b0] sm:$0xff]
        %v543 = vld [vmem:[%s187 + $0x8b8] sm:$0xff]
        %v544 = vld [vmem:[%s187 + $0x8c0] sm:$0xff]
        %v545 = vld [vmem:[%s187 + $0x8c8] sm:$0xff]
        %v546 = vld [vmem:[%s187 + $0x8d0] sm:$0xff]
        %v547 = vld [vmem:[%s187 + $0x8d8] sm:$0xff]
        %v548 = vld [vmem:[%s187 + $0x8e0] sm:$0xff]
        %v549 = vld [vmem:[%s187 + $0x8e8] sm:$0xff]
        %v550 = vld [vmem:[%s187 + $0x8f0] sm:$0xff]
        %v551 = vld [vmem:[%s187 + $0x8f8] sm:$0xff]
        %v552 = vld [vmem:[%s187 + $0x900] sm:$0xff]
        %v553 = vld [vmem:[%s187 + $0x908] sm:$0xff]
        %v554 = vld [vmem:[%s187 + $0x910] sm:$0xff]
        %v555 = vld [vmem:[%s187 + $0x918] sm:$0xff]
        %v556 = vld [vmem:[%s187 + $0x920] sm:$0xff]
        %v557 = vld [vmem:[%s187 + $0x928] sm:$0xff]
        %v558 = vld [vmem:[%s187 + $0x930] sm:$0xff]
        %v559 = vld [vmem:[%s187 + $0x938] sm:$0xff]
        %v560 = vld [vmem:[%s187 + $0x940] sm:$0xff]
        %v561 = vld [vmem:[%s187 + $0x948] sm:$0xff]
        %v562 = vld [vmem:[%s187 + $0x950] sm:$0xff]
        %v563 = vld [vmem:[%s187 + $0x958] sm:$0xff]
        %v564 = vld [vmem:[%s187 + $0x960] sm:$0xff]
        %v565 = vld [vmem:[%s187 + $0x968] sm:$0xff]
        %v566 = vld [vmem:[%s187 + $0x970] sm:$0xff]
        %v567 = vld [vmem:[%s187 + $0x978] sm:$0xff]
        %v568 = vld [vmem:[%s187 + $0x980] sm:$0xff]
        %v569 = vld [vmem:[%s187 + $0x988] sm:$0xff]
        %v570 = vld [vmem:[%s187 + $0x990] sm:$0xff]
        %v571 = vld [vmem:[%s187 + $0x998] sm:$0xff]
        %v572 = vld [vmem:[%s187 + $0x9a0] sm:$0xff]
        %v573 = vld [vmem:[%s187 + $0x9a8] sm:$0xff]
        %v574 = vld [vmem:[%s187 + $0x9b0] sm:$0xff]
        %v575 = vld [vmem:[%s187 + $0x9b8] sm:$0xff]
        %v576 = vld [vmem:[%s187 + $0x9c0] sm:$0xff]
        %v577 = vld [vmem:[%s187 + $0x9c8] sm:$0xff]
        %v578 = vld [vmem:[%s187 + $0x9d0] sm:$0xff]
        %v579 = vld [vmem:[%s187 + $0x9d8] sm:$0xff]
        %v580 = vld [vmem:[%s187 + $0x9e0] sm:$0xff]
        %v581 = vld [vmem:[%s187 + $0x9e8] sm:$0xff]
        %v582 = vld [vmem:[%s187 + $0x9f0] sm:$0xff]
        %v583 = vld [vmem:[%s187 + $0x9f8] sm:$0xff]
        %v584 = vld [vmem:[%s187 + $0xa00] sm:$0xff]
        %v585 = vld [vmem:[%s187 + $0xa08] sm:$0xff]
        %v586 = vld [vmem:[%s187 + $0xa10] sm:$0xff]
        %v587 = vld [vmem:[%s187 + $0xa18] sm:$0xff]
        %v588 = vld [vmem:[%s187 + $0xa20] sm:$0xff]
        %v589 = vld [vmem:[%s187 + $0xa28] sm:$0xff]
        %v590 = vld [vmem:[%s187 + $0xa30] sm:$0xff]
        %v591 = vld [vmem:[%s187 + $0xa38] sm:$0xff]
        %v592 = vld [vmem:[%s187 + $0xa40] sm:$0xff]
        %v593 = vld [vmem:[%s187 + $0xa48] sm:$0xff]
        %v594 = vld [vmem:[%s187 + $0xa50] sm:$0xff]
        %v595 = vld [vmem:[%s187 + $0xa58] sm:$0xff]
        %v596 = vld [vmem:[%s187 + $0xa60] sm:$0xff]
        %v597 = vld [vmem:[%s187 + $0xa68] sm:$0xff]
        %v598 = vld [vmem:[%s187 + $0xa70] sm:$0xff]
        %v599 = vld [vmem:[%s187 + $0xa78] sm:$0xff]
        %v600 = vld [vmem:[%s187 + $0xa80] sm:$0xff]
        %v601 = vld [vmem:[%s187 + $0xa88] sm:$0xff]
        %v602 = vld [vmem:[%s187 + $0xa90] sm:$0xff]
        %v603 = vld [vmem:[%s187 + $0xa98] sm:$0xff]
        %v604 = vld [vmem:[%s187 + $0xaa0] sm:$0xff]
        %v605 = vld [vmem:[%s187 + $0xaa8] sm:$0xff]
        %v606 = vld [vmem:[%s187 + $0xab0] sm:$0xff]
        %v607 = vld [vmem:[%s187 + $0xab8] sm:$0xff]
        %v608 = vld [vmem:[%s187 + $0xac0] sm:$0xff]
        %v609 = vld [vmem:[%s187 + $0xac8] sm:$0xff]
        %v610 = vld [vmem:[%s187 + $0xad0] sm:$0xff]
        %v611 = vld [vmem:[%s187 + $0xad8] sm:$0xff]
        %v612 = vld [vmem:[%s187 + $0xae0] sm:$0xff]
        %v613 = vld [vmem:[%s187 + $0xae8] sm:$0xff]
        %v614 = vld [vmem:[%s187 + $0xaf0] sm:$0xff]
        %v615 = vld [vmem:[%s187 + $0xaf8] sm:$0xff]
        %v616 = vld [vmem:[%s187 + $0xb00] sm:$0xff]
        %v617 = vld [vmem:[%s187 + $0xb08] sm:$0xff]
        %v618 = vld [vmem:[%s187 + $0xb10] sm:$0xff]
        %v619 = vld [vmem:[%s187 + $0xb18] sm:$0xff]
        %v620 = vld [vmem:[%s187 + $0xb20] sm:$0xff]
        %v621 = vld [vmem:[%s187 + $0xb28] sm:$0xff]
        %v622 = vld [vmem:[%s187 + $0xb30] sm:$0xff]
        %v623 = vld [vmem:[%s187 + $0xb38] sm:$0xff]
        %v624 = vld [vmem:[%s187 + $0xb40] sm:$0xff]
        %v625 = vld [vmem:[%s187 + $0xb48] sm:$0xff]
        %v626 = vld [vmem:[%s187 + $0xb50] sm:$0xff]
        %v627 = vld [vmem:[%s187 + $0xb58] sm:$0xff]
        %v628 = vld [vmem:[%s187 + $0xb60] sm:$0xff]
        %v629 = vld [vmem:[%s187 + $0xb68] sm:$0xff]
        %v630 = vld [vmem:[%s187 + $0xb70] sm:$0xff]
        %v631 = vld [vmem:[%s187 + $0xb78] sm:$0xff]
        %v632 = vld [vmem:[%s187 + $0xb80] sm:$0xff]
        %v633 = vld [vmem:[%s187 + $0xb88] sm:$0xff]
        %v634 = vld [vmem:[%s187 + $0xb90] sm:$0xff]
        %v635 = vld [vmem:[%s187 + $0xb98] sm:$0xff]
        %v636 = vld [vmem:[%s187 + $0xba0] sm:$0xff]
        %v637 = vld [vmem:[%s187 + $0xba8] sm:$0xff]
        %v638 = vld [vmem:[%s187 + $0xbb0] sm:$0xff]
        %v639 = vld [vmem:[%s187 + $0xbb8] sm:$0xff]
        %v640 = vld [vmem:[%s187 + $0xbc0] sm:$0xff]
        %v641 = vld [vmem:[%s187 + $0xbc8] sm:$0xff]
        %v642 = vld [vmem:[%s187 + $0xbd0] sm:$0xff]
        %v643 = vld [vmem:[%s187 + $0xbd8] sm:$0xff]
        %v644 = vld [vmem:[%s187 + $0xbe0] sm:$0xff]
        %v645 = vld [vmem:[%s187 + $0xbe8] sm:$0xff]
        %v646 = vld [vmem:[%s187 + $0xbf0] sm:$0xff]
        %v647 = vld [vmem:[%s187 + $0xbf8] sm:$0xff]
        %v648 = vld [vmem:[%s187 + $0xc00] sm:$0xff]
        %v649 = vld [vmem:[%s187 + $0xc08] sm:$0xff]
        %v650 = vld [vmem:[%s187 + $0xc10] sm:$0xff]
        %v651 = vld [vmem:[%s187 + $0xc18] sm:$0xff]
        %v652 = vld [vmem:[%s187 + $0xc20] sm:$0xff]
        %v653 = vld [vmem:[%s187 + $0xc28] sm:$0xff]
        %v654 = vld [vmem:[%s187 + $0xc30] sm:$0xff]
        %v655 = vld [vmem:[%s187 + $0xc38] sm:$0xff]
        %v656 = vld [vmem:[%s187 + $0xc40] sm:$0xff]
        %v657 = vld [vmem:[%s187 + $0xc48] sm:$0xff]
        %v658 = vld [vmem:[%s187 + $0xc50] sm:$0xff]
        %v659 = vld [vmem:[%s187 + $0xc58] sm:$0xff]
        %v660 = vld [vmem:[%s187 + $0xc60] sm:$0xff]
        %v661 = vld [vmem:[%s187 + $0xc68] sm:$0xff]
        %v662 = vld [vmem:[%s187 + $0xc70] sm:$0xff]
        %v663 = vld [vmem:[%s187 + $0xc78] sm:$0xff]
        %v664 = vld [vmem:[%s187 + $0xc80] sm:$0xff]
        %v665 = vld [vmem:[%s187 + $0xc88] sm:$0xff]
        %v666 = vld [vmem:[%s187 + $0xc90] sm:$0xff]
        %v667 = vld [vmem:[%s187 + $0xc98] sm:$0xff]
        %v668 = vld [vmem:[%s187 + $0xca0] sm:$0xff]
        %v669 = vld [vmem:[%s187 + $0xca8] sm:$0xff]
        %v670 = vld [vmem:[%s187 + $0xcb0] sm:$0xff]
        %v671 = vld [vmem:[%s187 + $0xcb8] sm:$0xff]
        %v672 = vld [vmem:[%s187 + $0xcc0] sm:$0xff]
        %v673 = vld [vmem:[%s187 + $0xcc8] sm:$0xff]
        %v674 = vld [vmem:[%s187 + $0xcd0] sm:$0xff]
        %v675 = vld [vmem:[%s187 + $0xcd8] sm:$0xff]
        %v676 = vld [vmem:[%s187 + $0xce0] sm:$0xff]
        %v677 = vld [vmem:[%s187 + $0xce8] sm:$0xff]
        %v678 = vld [vmem:[%s187 + $0xcf0] sm:$0xff]
        %v679 = vld [vmem:[%s187 + $0xcf8] sm:$0xff]
        %v680 = vld [vmem:[%s187 + $0xd00] sm:$0xff]
        %v681 = vld [vmem:[%s187 + $0xd08] sm:$0xff]
        %v682 = vld [vmem:[%s187 + $0xd10] sm:$0xff]
        %v683 = vld [vmem:[%s187 + $0xd18] sm:$0xff]
        %v684 = vld [vmem:[%s187 + $0xd20] sm:$0xff]
        %v685 = vld [vmem:[%s187 + $0xd28] sm:$0xff]
        %v686 = vld [vmem:[%s187 + $0xd30] sm:$0xff]
        %v687 = vld [vmem:[%s187 + $0xd38] sm:$0xff]
        %v688 = vld [vmem:[%s187 + $0xd40] sm:$0xff]
        %v689 = vld [vmem:[%s187 + $0xd48] sm:$0xff]
        %v690 = vld [vmem:[%s187 + $0xd50] sm:$0xff]
        %v691 = vld [vmem:[%s187 + $0xd58] sm:$0xff]
        %v692 = vld [vmem:[%s187 + $0xd60] sm:$0xff]
        %v693 = vld [vmem:[%s187 + $0xd68] sm:$0xff]
        %v694 = vld [vmem:[%s187 + $0xd70] sm:$0xff]
        %v695 = vld [vmem:[%s187 + $0xd78] sm:$0xff]
        %v696 = vld [vmem:[%s187 + $0xd80] sm:$0xff]
        %v697 = vld [vmem:[%s187 + $0xd88] sm:$0xff]
        %v698 = vld [vmem:[%s187 + $0xd90] sm:$0xff]
        %v699 = vld [vmem:[%s187 + $0xd98] sm:$0xff]
        %v700 = vld [vmem:[%s187 + $0xda0] sm:$0xff]
        %v701 = vld [vmem:[%s187 + $0xda8] sm:$0xff]
        %v702 = vld [vmem:[%s187 + $0xdb0] sm:$0xff]
        %v703 = vld [vmem:[%s187 + $0xdb8] sm:$0xff]
        %v704 = vld [vmem:[%s187 + $0xdc0] sm:$0xff]
        %v705 = vld [vmem:[%s187 + $0xdc8] sm:$0xff]
        %v706 = vld [vmem:[%s187 + $0xdd0] sm:$0xff]
        %v707 = vld [vmem:[%s187 + $0xdd8] sm:$0xff]
        %v708 = vld [vmem:[%s187 + $0xde0] sm:$0xff]
        %v709 = vld [vmem:[%s187 + $0xde8] sm:$0xff]
        %v710 = vld [vmem:[%s187 + $0xdf0] sm:$0xff]
        %v711 = vld [vmem:[%s187 + $0xdf8] sm:$0xff]
        %v712 = vld [vmem:[%s187 + $0xe00] sm:$0xff]
        %v713 = vld [vmem:[%s187 + $0xe08] sm:$0xff]
        %v714 = vld [vmem:[%s187 + $0xe10] sm:$0xff]
        %v715 = vld [vmem:[%s187 + $0xe18] sm:$0xff]
        %v716 = vld [vmem:[%s187 + $0xe20] sm:$0xff]
        %v717 = vld [vmem:[%s187 + $0xe28] sm:$0xff]
        %v718 = vld [vmem:[%s187 + $0xe30] sm:$0xff]
        %v719 = vld [vmem:[%s187 + $0xe38] sm:$0xff]
        %v720 = vld [vmem:[%s187 + $0xe40] sm:$0xff]
        %v721 = vld [vmem:[%s187 + $0xe48] sm:$0xff]
        %v722 = vld [vmem:[%s187 + $0xe50] sm:$0xff]
        %v723 = vld [vmem:[%s187 + $0xe58] sm:$0xff]
        %v724 = vld [vmem:[%s187 + $0xe60] sm:$0xff]
        %v725 = vld [vmem:[%s187 + $0xe68] sm:$0xff]
        %v726 = vld [vmem:[%s187 + $0xe70] sm:$0xff]
        %v727 = vld [vmem:[%s187 + $0xe78] sm:$0xff]
        %v728 = vld [vmem:[%s187 + $0xe80] sm:$0xff]
        %v729 = vld [vmem:[%s187 + $0xe88] sm:$0xff]
        %v730 = vld [vmem:[%s187 + $0xe90] sm:$0xff]
        %v731 = vld [vmem:[%s187 + $0xe98] sm:$0xff]
        %v732 = vld [vmem:[%s187 + $0xea0] sm:$0xff]
        %v733 = vld [vmem:[%s187 + $0xea8] sm:$0xff]
        %v734 = vld [vmem:[%s187 + $0xeb0] sm:$0xff]
        %v735 = vld [vmem:[%s187 + $0xeb8] sm:$0xff]
        %v736 = vld [vmem:[%s187 + $0xec0] sm:$0xff]
        %v737 = vld [vmem:[%s187 + $0xec8] sm:$0xff]
        %v738 = vld [vmem:[%s187 + $0xed0] sm:$0xff]
        %v739 = vld [vmem:[%s187 + $0xed8] sm:$0xff]
        %v740 = vld [vmem:[%s187 + $0xee0] sm:$0xff]
        %v741 = vld [vmem:[%s187 + $0xee8] sm:$0xff]
        %v742 = vld [vmem:[%s187 + $0xef0] sm:$0xff]
        %v743 = vld [vmem:[%s187 + $0xef8] sm:$0xff]
        %v744 = vld [vmem:[%s187 + $0xf00] sm:$0xff]
        %v745 = vld [vmem:[%s187 + $0xf08] sm:$0xff]
        %v746 = vld [vmem:[%s187 + $0xf10] sm:$0xff]
        %v747 = vld [vmem:[%s187 + $0xf18] sm:$0xff]
        %v748 = vld [vmem:[%s187 + $0xf20] sm:$0xff]
        %v749 = vld [vmem:[%s187 + $0xf28] sm:$0xff]
        %v750 = vld [vmem:[%s187 + $0xf30] sm:$0xff]
        %v751 = vld [vmem:[%s187 + $0xf38] sm:$0xff]
        %v752 = vld [vmem:[%s187 + $0xf40] sm:$0xff]
        %v753 = vld [vmem:[%s187 + $0xf48] sm:$0xff]
        %v754 = vld [vmem:[%s187 + $0xf50] sm:$0xff]
        %v755 = vld [vmem:[%s187 + $0xf58] sm:$0xff]
        %v756 = vld [vmem:[%s187 + $0xf60] sm:$0xff]
        %v757 = vld [vmem:[%s187 + $0xf68] sm:$0xff]
        %v758 = vld [vmem:[%s187 + $0xf70] sm:$0xff]
        %v759 = vld [vmem:[%s187 + $0xf78] sm:$0xff]
        %v760 = vld [vmem:[%s187 + $0xf80] sm:$0xff]
        %v761 = vld [vmem:[%s187 + $0xf88] sm:$0xff]
        %v762 = vld [vmem:[%s187 + $0xf90] sm:$0xff]
        %v763 = vld [vmem:[%s187 + $0xf98] sm:$0xff]
        %v764 = vld [vmem:[%s187 + $0xfa0] sm:$0xff]
        %v765 = vld [vmem:[%s187 + $0xfa8] sm:$0xff]
        %v766 = vld [vmem:[%s187 + $0xfb0] sm:$0xff]
        %v767 = vld [vmem:[%s187 + $0xfb8] sm:$0xff]
        %v768 = vld [vmem:[%s187 + $0xfc0] sm:$0xff]
        %v769 = vld [vmem:[%s187 + $0xfc8] sm:$0xff]
        %v770 = vld [vmem:[%s187 + $0xfd0] sm:$0xff]
        %v771 = vld [vmem:[%s187 + $0xfd8] sm:$0xff]
        %v772 = vld [vmem:[%s187 + $0xfe0] sm:$0xff]
        %v773 = vld [vmem:[%s187 + $0xfe8] sm:$0xff]
        %v774 = vld [vmem:[%s187 + $0xff0] sm:$0xff]
        %v775 = vld [vmem:[%s187 + $0xff8] sm:$0xff]
        %v776 = vld [vmem:[%s187 + $0x1000] sm:$0xff]
        %v777 = vld [vmem:[%s187 + $0x1008] sm:$0xff]
        %v778 = vld [vmem:[%s187 + $0x1010] sm:$0xff]
        %v779 = vld [vmem:[%s187 + $0x1018] sm:$0xff]
        %v780 = vld [vmem:[%s187 + $0x1020] sm:$0xff]
        %v781 = vld [vmem:[%s187 + $0x1028] sm:$0xff]
        %v782 = vld [vmem:[%s187 + $0x1030] sm:$0xff]
        %v783 = vld [vmem:[%s187 + $0x1038] sm:$0xff]
        %v784 = vld [vmem:[%s187 + $0x1040] sm:$0xff]
        %v785 = vld [vmem:[%s187 + $0x1048] sm:$0xff]
        %v786 = vld [vmem:[%s187 + $0x1050] sm:$0xff]
        %v787 = vld [vmem:[%s187 + $0x1058] sm:$0xff]
        %v788 = vld [vmem:[%s187 + $0x1060] sm:$0xff]
        %v789 = vld [vmem:[%s187 + $0x1068] sm:$0xff]
        %v790 = vld [vmem:[%s187 + $0x1070] sm:$0xff]
        %v791 = vld [vmem:[%s187 + $0x1078] sm:$0xff]
        %v792 = vld [vmem:[%s187 + $0x1080] sm:$0xff]
        %v793 = vld [vmem:[%s187 + $0x1088] sm:$0xff]
        %v794 = vld [vmem:[%s187 + $0x1090] sm:$0xff]
        %v795 = vld [vmem:[%s187 + $0x1098] sm:$0xff]
        %v796 = vld [vmem:[%s187 + $0x10a0] sm:$0xff]
        %v797 = vld [vmem:[%s187 + $0x10a8] sm:$0xff]
        %v798 = vld [vmem:[%s187 + $0x10b0] sm:$0xff]
        %v799 = vld [vmem:[%s187 + $0x10b8] sm:$0xff]
        %v800 = vld [vmem:[%s187 + $0x10c0] sm:$0xff]
        %v801 = vld [vmem:[%s187 + $0x10c8] sm:$0xff]
        %v802 = vld [vmem:[%s187 + $0x10d0] sm:$0xff]
        %v803 = vld [vmem:[%s187 + $0x10d8] sm:$0xff]
        %v804 = vld [vmem:[%s187 + $0x10e0] sm:$0xff]
        %v805 = vld [vmem:[%s187 + $0x10e8] sm:$0xff]
        %v806 = vld [vmem:[%s187 + $0x10f0] sm:$0xff]
        %v807 = vld [vmem:[%s187 + $0x10f8] sm:$0xff]
        %v808 = vld [vmem:[%s187 + $0x1100] sm:$0xff]
        %v809 = vld [vmem:[%s187 + $0x1108] sm:$0xff]
        %v810 = vld [vmem:[%s187 + $0x1110] sm:$0xff]
        %v811 = vld [vmem:[%s187 + $0x1118] sm:$0xff]
        %v812 = vld [vmem:[%s187 + $0x1120] sm:$0xff]
        %v813 = vld [vmem:[%s187 + $0x1128] sm:$0xff]
        %v814 = vld [vmem:[%s187 + $0x1130] sm:$0xff]
        %v815 = vld [vmem:[%s187 + $0x1138] sm:$0xff]
        %v816 = vld [vmem:[%s187 + $0x1140] sm:$0xff]
        %v817 = vld [vmem:[%s187 + $0x1148] sm:$0xff]
        %v818 = vld [vmem:[%s187 + $0x1150] sm:$0xff]
        %v819 = vld [vmem:[%s187 + $0x1158] sm:$0xff]
        %v820 = vld [vmem:[%s187 + $0x1160] sm:$0xff]
        %v821 = vld [vmem:[%s187 + $0x1168] sm:$0xff]
        %v822 = vld [vmem:[%s187 + $0x1170] sm:$0xff]
        %v823 = vld [vmem:[%s187 + $0x1178] sm:$0xff]
        %v824 = vld [vmem:[%s187 + $0x1180] sm:$0xff]
        %v825 = vld [vmem:[%s187 + $0x1188] sm:$0xff]
        %v826 = vld [vmem:[%s187 + $0x1190] sm:$0xff]
        %v827 = vld [vmem:[%s187 + $0x1198] sm:$0xff]
        %v828 = vld [vmem:[%s187 + $0x11a0] sm:$0xff]
        %v829 = vld [vmem:[%s187 + $0x11a8] sm:$0xff]
        %v830 = vld [vmem:[%s187 + $0x11b0] sm:$0xff]
        %v831 = vld [vmem:[%s187 + $0x11b8] sm:$0xff]
        %v832 = vld [vmem:[%s187 + $0x11c0] sm:$0xff]
        %v833 = vld [vmem:[%s187 + $0x11c8] sm:$0xff]
        %v834 = vld [vmem:[%s187 + $0x11d0] sm:$0xff]
        %v835 = vld [vmem:[%s187 + $0x11d8] sm:$0xff]
        %v836 = vld [vmem:[%s187 + $0x11e0] sm:$0xff]
        %v837 = vld [vmem:[%s187 + $0x11e8] sm:$0xff]
        %v838 = vld [vmem:[%s187 + $0x11f0] sm:$0xff]
        %v839 = vld [vmem:[%s187 + $0x11f8] sm:$0xff]
        %v840 = vld [vmem:[%s187 + $0x1200] sm:$0xff]
        %v841 = vld [vmem:[%s187 + $0x1208] sm:$0xff]
        %v842 = vld [vmem:[%s187 + $0x1210] sm:$0xff]
        %v843 = vld [vmem:[%s187 + $0x1218] sm:$0xff]
        %v844 = vld [vmem:[%s187 + $0x1220] sm:$0xff]
        %v845 = vld [vmem:[%s187 + $0x1228] sm:$0xff]
        %v846 = vld [vmem:[%s187 + $0x1230] sm:$0xff]
        %v847 = vld [vmem:[%s187 + $0x1238] sm:$0xff]
        %v848 = vld [vmem:[%s187 + $0x1240] sm:$0xff]
        %v849 = vld [vmem:[%s187 + $0x1248] sm:$0xff]
        %v850 = vld [vmem:[%s187 + $0x1250] sm:$0xff]
        %v851 = vld [vmem:[%s187 + $0x1258] sm:$0xff]
        %v852 = vld [vmem:[%s187 + $0x1260] sm:$0xff]
        %v853 = vld [vmem:[%s187 + $0x1268] sm:$0xff]
        %v854 = vld [vmem:[%s187 + $0x1270] sm:$0xff]
        %v855 = vld [vmem:[%s187 + $0x1278] sm:$0xff]
        %v856 = vld [vmem:[%s187 + $0x1280] sm:$0xff]
        %v857 = vld [vmem:[%s187 + $0x1288] sm:$0xff]
        %v858 = vld [vmem:[%s187 + $0x1290] sm:$0xff]
        %v859 = vld [vmem:[%s187 + $0x1298] sm:$0xff]
        %v860 = vld [vmem:[%s187 + $0x12a0] sm:$0xff]
        %v861 = vld [vmem:[%s187 + $0x12a8] sm:$0xff]
        %v862 = vld [vmem:[%s187 + $0x12b0] sm:$0xff]
        %v863 = vld [vmem:[%s187 + $0x12b8] sm:$0xff]
        %v864 = vld [vmem:[%s187 + $0x12c0] sm:$0xff]
        %v865 = vld [vmem:[%s187 + $0x12c8] sm:$0xff]
        %v866 = vld [vmem:[%s187 + $0x12d0] sm:$0xff]
        %v867 = vld [vmem:[%s187 + $0x12d8] sm:$0xff]
        %v868 = vld [vmem:[%s187 + $0x12e0] sm:$0xff]
        %v869 = vld [vmem:[%s187 + $0x12e8] sm:$0xff]
        %v870 = vld [vmem:[%s187 + $0x12f0] sm:$0xff]
        %v871 = vld [vmem:[%s187 + $0x12f8] sm:$0xff]
        %v872 = vld [vmem:[%s187 + $0x1300] sm:$0xff]
        %v873 = vld [vmem:[%s187 + $0x1308] sm:$0xff]
        %v874 = vld [vmem:[%s187 + $0x1310] sm:$0xff]
        %v875 = vld [vmem:[%s187 + $0x1318] sm:$0xff]
        %v876 = vld [vmem:[%s187 + $0x1320] sm:$0xff]
        %v877 = vld [vmem:[%s187 + $0x1328] sm:$0xff]
        %v878 = vld [vmem:[%s187 + $0x1330] sm:$0xff]
        %v879 = vld [vmem:[%s187 + $0x1338] sm:$0xff]
        %v880 = vld [vmem:[%s187 + $0x1340] sm:$0xff]
        %v881 = vld [vmem:[%s187 + $0x1348] sm:$0xff]
        %v882 = vld [vmem:[%s187 + $0x1350] sm:$0xff]
        %v883 = vld [vmem:[%s187 + $0x1358] sm:$0xff]
        %v884 = vld [vmem:[%s187 + $0x1360] sm:$0xff]
        %v885 = vld [vmem:[%s187 + $0x1368] sm:$0xff]
        %v886 = vld [vmem:[%s187 + $0x1370] sm:$0xff]
        %v887 = vld [vmem:[%s187 + $0x1378] sm:$0xff]
        %v888 = vld [vmem:[%s187 + $0x1380] sm:$0xff]
        %v889 = vld [vmem:[%s187 + $0x1388] sm:$0xff]
        %v890 = vld [vmem:[%s187 + $0x1390] sm:$0xff]
        %v891 = vld [vmem:[%s187 + $0x1398] sm:$0xff]
        %v892 = vld [vmem:[%s187 + $0x13a0] sm:$0xff]
        %v893 = vld [vmem:[%s187 + $0x13a8] sm:$0xff]
        %v894 = vld [vmem:[%s187 + $0x13b0] sm:$0xff]
        %v895 = vld [vmem:[%s187 + $0x13b8] sm:$0xff]
        %v896 = vld [vmem:[%s187 + $0x13c0] sm:$0xff]
        %v897 = vld [vmem:[%s187 + $0x13c8] sm:$0xff]
        %v898 = vld [vmem:[%s187 + $0x13d0] sm:$0xff]
        %v899 = vld [vmem:[%s187 + $0x13d8] sm:$0xff]
        %v900 = vld [vmem:[%s187 + $0x13e0] sm:$0xff]
        %v901 = vld [vmem:[%s187 + $0x13e8] sm:$0xff]
        %v902 = vld [vmem:[%s187 + $0x13f0] sm:$0xff]
        %v903 = vld [vmem:[%s187 + $0x13f8] sm:$0xff]
        %v904 = vld [vmem:[%s187 + $0x1400] sm:$0xff]
        %v905 = vld [vmem:[%s187 + $0x1408] sm:$0xff]
        %v906 = vld [vmem:[%s187 + $0x1410] sm:$0xff]
        %v907 = vld [vmem:[%s187 + $0x1418] sm:$0xff]
        %v908 = vld [vmem:[%s187 + $0x1420] sm:$0xff]
        %v909 = vld [vmem:[%s187 + $0x1428] sm:$0xff]
        %v910 = vld [vmem:[%s187 + $0x1430] sm:$0xff]
        %v911 = vld [vmem:[%s187 + $0x1438] sm:$0xff]
        %v912 = vld [vmem:[%s187 + $0x1440] sm:$0xff]
        %v913 = vld [vmem:[%s187 + $0x1448] sm:$0xff]
        %v914 = vld [vmem:[%s187 + $0x1450] sm:$0xff]
        %v915 = vld [vmem:[%s187 + $0x1458] sm:$0xff]
        %v916 = vld [vmem:[%s187 + $0x1460] sm:$0xff]
        %v917 = vld [vmem:[%s187 + $0x1468] sm:$0xff]
        %v918 = vld [vmem:[%s187 + $0x1470] sm:$0xff]
        %v919 = vld [vmem:[%s187 + $0x1478] sm:$0xff]
        %v920 = vld [vmem:[%s187 + $0x1480] sm:$0xff]
        %v921 = vld [vmem:[%s187 + $0x1488] sm:$0xff]
        %v922 = vld [vmem:[%s187 + $0x1490] sm:$0xff]
        %v923 = vld [vmem:[%s187 + $0x1498] sm:$0xff]
        %v924 = vld [vmem:[%s187 + $0x14a0] sm:$0xff]
        %v925 = vld [vmem:[%s187 + $0x14a8] sm:$0xff]
        %v926 = vld [vmem:[%s187 + $0x14b0] sm:$0xff]
        %v927 = vld [vmem:[%s187 + $0x14b8] sm:$0xff]
        %v928 = vld [vmem:[%s187 + $0x14c0] sm:$0xff]
        %v929 = vld [vmem:[%s187 + $0x14c8] sm:$0xff]
        %v930 = vld [vmem:[%s187 + $0x14d0] sm:$0xff]
        %v931 = vld [vmem:[%s187 + $0x14d8] sm:$0xff]
        %v932 = vld [vmem:[%s187 + $0x14e0] sm:$0xff]
        %v933 = vld [vmem:[%s187 + $0x14e8] sm:$0xff]
        %v934 = vld [vmem:[%s187 + $0x14f0] sm:$0xff]
        %v935 = vld [vmem:[%s187 + $0x14f8] sm:$0xff]
        %v936 = vld [vmem:[%s187 + $0x1500] sm:$0xff]
        %v937 = vld [vmem:[%s187 + $0x1508] sm:$0xff]
        %v938 = vld [vmem:[%s187 + $0x1510] sm:$0xff]
        %v939 = vld [vmem:[%s187 + $0x1518] sm:$0xff]
        %v940 = vld [vmem:[%s187 + $0x1520] sm:$0xff]
        %v941 = vld [vmem:[%s187 + $0x1528] sm:$0xff]
        %v942 = vld [vmem:[%s187 + $0x1530] sm:$0xff]
        %v943 = vld [vmem:[%s187 + $0x1538] sm:$0xff]
        %v944 = vld [vmem:[%s187 + $0x1540] sm:$0xff]
        %v945 = vld [vmem:[%s187 + $0x1548] sm:$0xff]
        %v946 = vld [vmem:[%s187 + $0x1550] sm:$0xff]
        %v947 = vld [vmem:[%s187 + $0x1558] sm:$0xff]
        %v948 = vld [vmem:[%s187 + $0x1560] sm:$0xff]
        %v949 = vld [vmem:[%s187 + $0x1568] sm:$0xff]
        %v950 = vld [vmem:[%s187 + $0x1570] sm:$0xff]
        %v951 = vld [vmem:[%s187 + $0x1578] sm:$0xff]
        %v952 = vld [vmem:[%s187 + $0x1580] sm:$0xff]
        %v953 = vld [vmem:[%s187 + $0x1588] sm:$0xff]
        %v954 = vld [vmem:[%s187 + $0x1590] sm:$0xff]
        %v955 = vld [vmem:[%s187 + $0x1598] sm:$0xff]
        %v956 = vld [vmem:[%s187 + $0x15a0] sm:$0xff]
        %v957 = vld [vmem:[%s187 + $0x15a8] sm:$0xff]
        %v958 = vld [vmem:[%s187 + $0x15b0] sm:$0xff]
        %v959 = vld [vmem:[%s187 + $0x15b8] sm:$0xff]
        %v960 = vld [vmem:[%s187 + $0x15c0] sm:$0xff]
        %v961 = vld [vmem:[%s187 + $0x15c8] sm:$0xff]
        %v962 = vld [vmem:[%s187 + $0x15d0] sm:$0xff]
        %v963 = vld [vmem:[%s187 + $0x15d8] sm:$0xff]
        %v964 = vld [vmem:[%s187 + $0x15e0] sm:$0xff]
        %v965 = vld [vmem:[%s187 + $0x15e8] sm:$0xff]
        %v966 = vld [vmem:[%s187 + $0x15f0] sm:$0xff]
        %v967 = vld [vmem:[%s187 + $0x15f8] sm:$0xff]
        %v968 = vld [vmem:[%s187 + $0x1600] sm:$0xff]
        %v969 = vld [vmem:[%s187 + $0x1608] sm:$0xff]
        %v970 = vld [vmem:[%s187 + $0x1610] sm:$0xff]
        %v971 = vld [vmem:[%s187 + $0x1618] sm:$0xff]
        %v972 = vld [vmem:[%s187 + $0x1620] sm:$0xff]
        %v973 = vld [vmem:[%s187 + $0x1628] sm:$0xff]
        %v974 = vld [vmem:[%s187 + $0x1630] sm:$0xff]
        %v975 = vld [vmem:[%s187 + $0x1638] sm:$0xff]
        %v976 = vld [vmem:[%s187 + $0x1640] sm:$0xff]
        %v977 = vld [vmem:[%s187 + $0x1648] sm:$0xff]
        %v978 = vld [vmem:[%s187 + $0x1650] sm:$0xff]
        %v979 = vld [vmem:[%s187 + $0x1658] sm:$0xff]
        %v980 = vld [vmem:[%s187 + $0x1660] sm:$0xff]
        %v981 = vld [vmem:[%s187 + $0x1668] sm:$0xff]
        %v982 = vld [vmem:[%s187 + $0x1670] sm:$0xff]
        %v983 = vld [vmem:[%s187 + $0x1678] sm:$0xff]
        %v984 = vld [vmem:[%s187 + $0x1680] sm:$0xff]
        %v985 = vld [vmem:[%s187 + $0x1688] sm:$0xff]
        %v986 = vld [vmem:[%s187 + $0x1690] sm:$0xff]
        %v987 = vld [vmem:[%s187 + $0x1698] sm:$0xff]
        %v988 = vld [vmem:[%s187 + $0x16a0] sm:$0xff]
        %v989 = vld [vmem:[%s187 + $0x16a8] sm:$0xff]
        %v990 = vld [vmem:[%s187 + $0x16b0] sm:$0xff]
        %v991 = vld [vmem:[%s187 + $0x16b8] sm:$0xff]
        %v992 = vld [vmem:[%s187 + $0x16c0] sm:$0xff]
        %v993 = vld [vmem:[%s187 + $0x16c8] sm:$0xff]
        %v994 = vld [vmem:[%s187 + $0x16d0] sm:$0xff]
        %v995 = vld [vmem:[%s187 + $0x16d8] sm:$0xff]
        %v996 = vld [vmem:[%s187 + $0x16e0] sm:$0xff]
        %v997 = vld [vmem:[%s187 + $0x16e8] sm:$0xff]
        %v998 = vld [vmem:[%s187 + $0x16f0] sm:$0xff]
        %v999 = vld [vmem:[%s187 + $0x16f8] sm:$0xff]
        %v1000 = vld [vmem:[%s187 + $0x1700] sm:$0xff]
        %v1001 = vld [vmem:[%s187 + $0x1708] sm:$0xff]
        %v1002 = vld [vmem:[%s187 + $0x1710] sm:$0xff]
        %v1003 = vld [vmem:[%s187 + $0x1718] sm:$0xff]
        %v1004 = vld [vmem:[%s187 + $0x1720] sm:$0xff]
        %v1005 = vld [vmem:[%s187 + $0x1728] sm:$0xff]
        %v1006 = vld [vmem:[%s187 + $0x1730] sm:$0xff]
        %v1007 = vld [vmem:[%s187 + $0x1738] sm:$0xff]
        %v1008 = vld [vmem:[%s187 + $0x1740] sm:$0xff]
        %v1009 = vld [vmem:[%s187 + $0x1748] sm:$0xff]
        %v1010 = vld [vmem:[%s187 + $0x1750] sm:$0xff]
        %v1011 = vld [vmem:[%s187 + $0x1758] sm:$0xff]
        %v1012 = vld [vmem:[%s187 + $0x1760] sm:$0xff]
        %v1013 = vld [vmem:[%s187 + $0x1768] sm:$0xff]
        %v1014 = vld [vmem:[%s187 + $0x1770] sm:$0xff]
        %v1015 = vld [vmem:[%s187 + $0x1778] sm:$0xff]
        %v1016 = vld [vmem:[%s187 + $0x1780] sm:$0xff]
        %v1017 = vld [vmem:[%s187 + $0x1788] sm:$0xff]
        %v1018 = vld [vmem:[%s187 + $0x1790] sm:$0xff]
        %v1019 = vld [vmem:[%s187 + $0x1798] sm:$0xff]
        %v1020 = vld [vmem:[%s187 + $0x17a0] sm:$0xff]
        %v1021 = vld [vmem:[%s187 + $0x17a8] sm:$0xff]
        %v1022 = vld [vmem:[%s187 + $0x17b0] sm:$0xff]
        %v1023 = vld [vmem:[%s187 + $0x17b8] sm:$0xff]
        %v1024 = vld [vmem:[%s187 + $0x17c0] sm:$0xff]
        %v1025 = vld [vmem:[%s187 + $0x17c8] sm:$0xff]
        %v1026 = vld [vmem:[%s187 + $0x17d0] sm:$0xff]
        %v1027 = vld [vmem:[%s187 + $0x17d8] sm:$0xff]
        %v1028 = vld [vmem:[%s187 + $0x17e0] sm:$0xff]
        %v1029 = vld [vmem:[%s187 + $0x17e8] sm:$0xff]
        %v1030 = vld [vmem:[%s187 + $0x17f0] sm:$0xff]
        %v1031 = vld [vmem:[%s187 + $0x17f8] sm:$0xff]
        %v1032 = vld [vmem:[%s187 + $0x1800] sm:$0xff]
        %v1033 = vld [vmem:[%s187 + $0x1808] sm:$0xff]
        %v1034 = vld [vmem:[%s187 + $0x1810] sm:$0xff]
        %v1035 = vld [vmem:[%s187 + $0x1818] sm:$0xff]
        %v1036 = vld [vmem:[%s187 + $0x1820] sm:$0xff]
        %v1037 = vld [vmem:[%s187 + $0x1828] sm:$0xff]
        %v1038 = vld [vmem:[%s187 + $0x1830] sm:$0xff]
        %v1039 = vld [vmem:[%s187 + $0x1838] sm:$0xff]
        %v1040 = vld [vmem:[%s187 + $0x1840] sm:$0xff]
        %v1041 = vld [vmem:[%s187 + $0x1848] sm:$0xff]
        %v1042 = vld [vmem:[%s187 + $0x1850] sm:$0xff]
        %v1043 = vld [vmem:[%s187 + $0x1858] sm:$0xff]
        %v1044 = vld [vmem:[%s187 + $0x1860] sm:$0xff]
        %v1045 = vld [vmem:[%s187 + $0x1868] sm:$0xff]
        %v1046 = vld [vmem:[%s187 + $0x1870] sm:$0xff]
        %v1047 = vld [vmem:[%s187 + $0x1878] sm:$0xff]
        %v1048 = vld [vmem:[%s187 + $0x1880] sm:$0xff]
        %v1049 = vld [vmem:[%s187 + $0x1888] sm:$0xff]
        %v1050 = vld [vmem:[%s187 + $0x1890] sm:$0xff]
        %v1051 = vld [vmem:[%s187 + $0x1898] sm:$0xff]
        %v1052 = vld [vmem:[%s187 + $0x18a0] sm:$0xff]
        %v1053 = vld [vmem:[%s187 + $0x18a8] sm:$0xff]
        %v1054 = vld [vmem:[%s187 + $0x18b0] sm:$0xff]
        %v1055 = vld [vmem:[%s187 + $0x18b8] sm:$0xff]
        %v1056 = vld [vmem:[%s187 + $0x18c0] sm:$0xff]
        %v1057 = vld [vmem:[%s187 + $0x18c8] sm:$0xff]
        %v1058 = vld [vmem:[%s187 + $0x18d0] sm:$0xff]
        %v1059 = vld [vmem:[%s187 + $0x18d8] sm:$0xff]
        %v1060 = vld [vmem:[%s187 + $0x18e0] sm:$0xff]
        %v1061 = vld [vmem:[%s187 + $0x18e8] sm:$0xff]
        %v1062 = vld [vmem:[%s187 + $0x18f0] sm:$0xff]
        %v1063 = vld [vmem:[%s187 + $0x18f8] sm:$0xff]
        %v1064 = vld [vmem:[%s187 + $0x1900] sm:$0xff]
        %v1065 = vld [vmem:[%s187 + $0x1908] sm:$0xff]
        %v1066 = vld [vmem:[%s187 + $0x1910] sm:$0xff]
        %v1067 = vld [vmem:[%s187 + $0x1918] sm:$0xff]
        %v1068 = vld [vmem:[%s187 + $0x1920] sm:$0xff]
        %v1069 = vld [vmem:[%s187 + $0x1928] sm:$0xff]
        %v1070 = vld [vmem:[%s187 + $0x1930] sm:$0xff]
        %v1071 = vld [vmem:[%s187 + $0x1938] sm:$0xff]
        %v1072 = vld [vmem:[%s187 + $0x1940] sm:$0xff]
        %v1073 = vld [vmem:[%s187 + $0x1948] sm:$0xff]
        %v1074 = vld [vmem:[%s187 + $0x1950] sm:$0xff]
        %v1075 = vld [vmem:[%s187 + $0x1958] sm:$0xff]
        %v1076 = vld [vmem:[%s187 + $0x1960] sm:$0xff]
        %v1077 = vld [vmem:[%s187 + $0x1968] sm:$0xff]
        %v1078 = vld [vmem:[%s187 + $0x1970] sm:$0xff]
        %v1079 = vld [vmem:[%s187 + $0x1978] sm:$0xff]
        %v1080 = vld [vmem:[%s187 + $0x1980] sm:$0xff]
        %v1081 = vld [vmem:[%s187 + $0x1988] sm:$0xff]
        %v1082 = vld [vmem:[%s187 + $0x1990] sm:$0xff]
        %v1083 = vld [vmem:[%s187 + $0x1998] sm:$0xff]
        %v1084 = vld [vmem:[%s187 + $0x19a0] sm:$0xff]
        %v1085 = vld [vmem:[%s187 + $0x19a8] sm:$0xff]
        %v1086 = vld [vmem:[%s187 + $0x19b0] sm:$0xff]
        %v1087 = vld [vmem:[%s187 + $0x19b8] sm:$0xff]
        %v1088 = vld [vmem:[%s187 + $0x19c0] sm:$0xff]
        %v1089 = vld [vmem:[%s187 + $0x19c8] sm:$0xff]
        %v1090 = vld [vmem:[%s187 + $0x19d0] sm:$0xff]
        %v1091 = vld [vmem:[%s187 + $0x19d8] sm:$0xff]
        %v1092 = vld [vmem:[%s187 + $0x19e0] sm:$0xff]
        %v1093 = vld [vmem:[%s187 + $0x19e8] sm:$0xff]
        %v1094 = vld [vmem:[%s187 + $0x19f0] sm:$0xff]
        %v1095 = vld [vmem:[%s187 + $0x19f8] sm:$0xff]
        %v1096 = vld [vmem:[%s187 + $0x1a00] sm:$0xff]
        %v1097 = vld [vmem:[%s187 + $0x1a08] sm:$0xff]
        %v1098 = vld [vmem:[%s187 + $0x1a10] sm:$0xff]
        %v1099 = vld [vmem:[%s187 + $0x1a18] sm:$0xff]
        %v1100 = vld [vmem:[%s187 + $0x1a20] sm:$0xff]
        %v1101 = vld [vmem:[%s187 + $0x1a28] sm:$0xff]
        %v1102 = vld [vmem:[%s187 + $0x1a30] sm:$0xff]
        %v1103 = vld [vmem:[%s187 + $0x1a38] sm:$0xff]
        %v1104 = vld [vmem:[%s187 + $0x1a40] sm:$0xff]
        %v1105 = vld [vmem:[%s187 + $0x1a48] sm:$0xff]
        %v1106 = vld [vmem:[%s187 + $0x1a50] sm:$0xff]
        %v1107 = vld [vmem:[%s187 + $0x1a58] sm:$0xff]
        %v1108 = vld [vmem:[%s187 + $0x1a60] sm:$0xff]
        %v1109 = vld [vmem:[%s187 + $0x1a68] sm:$0xff]
        %v1110 = vld [vmem:[%s187 + $0x1a70] sm:$0xff]
        %v1111 = vld [vmem:[%s187 + $0x1a78] sm:$0xff]
        %v1112 = vld [vmem:[%s187 + $0x1a80] sm:$0xff]
        %v1113 = vld [vmem:[%s187 + $0x1a88] sm:$0xff]
        %v1114 = vld [vmem:[%s187 + $0x1a90] sm:$0xff]
        %v1115 = vld [vmem:[%s187 + $0x1a98] sm:$0xff]
        %v1116 = vld [vmem:[%s187 + $0x1aa0] sm:$0xff]
        %v1117 = vld [vmem:[%s187 + $0x1aa8] sm:$0xff]
        %v1118 = vld [vmem:[%s187 + $0x1ab0] sm:$0xff]
        %v1119 = vld [vmem:[%s187 + $0x1ab8] sm:$0xff]
        %v1120 = vld [vmem:[%s187 + $0x1ac0] sm:$0xff]
        %v1121 = vld [vmem:[%s187 + $0x1ac8] sm:$0xff]
        %v1122 = vld [vmem:[%s187 + $0x1ad0] sm:$0xff]
        %v1123 = vld [vmem:[%s187 + $0x1ad8] sm:$0xff]
        %v1124 = vld [vmem:[%s187 + $0x1ae0] sm:$0xff]
        %v1125 = vld [vmem:[%s187 + $0x1ae8] sm:$0xff]
        %v1126 = vld [vmem:[%s187 + $0x1af0] sm:$0xff]
        %v1127 = vld [vmem:[%s187 + $0x1af8] sm:$0xff]
        %v1128 = vld [vmem:[%s187 + $0x1b00] sm:$0xff]
        %v1129 = vld [vmem:[%s187 + $0x1b08] sm:$0xff]
        %v1130 = vld [vmem:[%s187 + $0x1b10] sm:$0xff]
        %v1131 = vld [vmem:[%s187 + $0x1b18] sm:$0xff]
        %v1132 = vld [vmem:[%s187 + $0x1b20] sm:$0xff]
        %v1133 = vld [vmem:[%s187 + $0x1b28] sm:$0xff]
        %v1134 = vld [vmem:[%s187 + $0x1b30] sm:$0xff]
        %v1135 = vld [vmem:[%s187 + $0x1b38] sm:$0xff]
        %v1136 = vld [vmem:[%s187 + $0x1b40] sm:$0xff]
        %v1137 = vld [vmem:[%s187 + $0x1b48] sm:$0xff]
        %v1138 = vld [vmem:[%s187 + $0x1b50] sm:$0xff]
        %v1139 = vld [vmem:[%s187 + $0x1b58] sm:$0xff]
        %v1140 = vld [vmem:[%s187 + $0x1b60] sm:$0xff]
        %v1141 = vld [vmem:[%s187 + $0x1b68] sm:$0xff]
        %v1142 = vld [vmem:[%s187 + $0x1b70] sm:$0xff]
        %v1143 = vld [vmem:[%s187 + $0x1b78] sm:$0xff]
        %v1144 = vld [vmem:[%s187 + $0x1b80] sm:$0xff]
        %v1145 = vld [vmem:[%s187 + $0x1b88] sm:$0xff]
        %v1146 = vld [vmem:[%s187 + $0x1b90] sm:$0xff]
        %v1147 = vld [vmem:[%s187 + $0x1b98] sm:$0xff]
        %v1148 = vld [vmem:[%s187 + $0x1ba0] sm:$0xff]
        %v1149 = vld [vmem:[%s187 + $0x1ba8] sm:$0xff]
        %v1150 = vld [vmem:[%s187 + $0x1bb0] sm:$0xff]
        %v1151 = vld [vmem:[%s187 + $0x1bb8] sm:$0xff]
        %v1152 = vld [vmem:[%s187 + $0x1bc0] sm:$0xff]
        %v1153 = vld [vmem:[%s187 + $0x1bc8] sm:$0xff]
        %v1154 = vld [vmem:[%s187 + $0x1bd0] sm:$0xff]
        %v1155 = vld [vmem:[%s187 + $0x1bd8] sm:$0xff]
        %v1156 = vld [vmem:[%s187 + $0x1be0] sm:$0xff]
        %v1157 = vld [vmem:[%s187 + $0x1be8] sm:$0xff]
        %v1158 = vld [vmem:[%s187 + $0x1bf0] sm:$0xff]
        %v1159 = vld [vmem:[%s187 + $0x1bf8] sm:$0xff]
        %v1160 = vld [vmem:[%s187 + $0x1c00] sm:$0xff]
        %v1161 = vld [vmem:[%s187 + $0x1c08] sm:$0xff]
        %v1162 = vld [vmem:[%s187 + $0x1c10] sm:$0xff]
        %v1163 = vld [vmem:[%s187 + $0x1c18] sm:$0xff]
        %v1164 = vld [vmem:[%s187 + $0x1c20] sm:$0xff]
        %v1165 = vld [vmem:[%s187 + $0x1c28] sm:$0xff]
        %v1166 = vld [vmem:[%s187 + $0x1c30] sm:$0xff]
        %v1167 = vld [vmem:[%s187 + $0x1c38] sm:$0xff]
        %v1168 = vld [vmem:[%s187 + $0x1c40] sm:$0xff]
        %v1169 = vld [vmem:[%s187 + $0x1c48] sm:$0xff]
        %v1170 = vld [vmem:[%s187 + $0x1c50] sm:$0xff]
        %v1171 = vld [vmem:[%s187 + $0x1c58] sm:$0xff]
        %v1172 = vld [vmem:[%s187 + $0x1c60] sm:$0xff]
        %v1173 = vld [vmem:[%s187 + $0x1c68] sm:$0xff]
        %v1174 = vld [vmem:[%s187 + $0x1c70] sm:$0xff]
        %v1175 = vld [vmem:[%s187 + $0x1c78] sm:$0xff]
        %v1176 = vld [vmem:[%s187 + $0x1c80] sm:$0xff]
        %v1177 = vld [vmem:[%s187 + $0x1c88] sm:$0xff]
        %v1178 = vld [vmem:[%s187 + $0x1c90] sm:$0xff]
        %v1179 = vld [vmem:[%s187 + $0x1c98] sm:$0xff]
        %v1180 = vld [vmem:[%s187 + $0x1ca0] sm:$0xff]
        %v1181 = vld [vmem:[%s187 + $0x1ca8] sm:$0xff]
        %v1182 = vld [vmem:[%s187 + $0x1cb0] sm:$0xff]
        %v1183 = vld [vmem:[%s187 + $0x1cb8] sm:$0xff]
        %v1184 = vld [vmem:[%s187 + $0x1cc0] sm:$0xff]
        %v1185 = vld [vmem:[%s187 + $0x1cc8] sm:$0xff]
        %v1186 = vld [vmem:[%s187 + $0x1cd0] sm:$0xff]
        %v1187 = vld [vmem:[%s187 + $0x1cd8] sm:$0xff]
        %v1188 = vld [vmem:[%s187 + $0x1ce0] sm:$0xff]
        %v1189 = vld [vmem:[%s187 + $0x1ce8] sm:$0xff]
        %v1190 = vld [vmem:[%s187 + $0x1cf0] sm:$0xff]
        %v1191 = vld [vmem:[%s187 + $0x1cf8] sm:$0xff]
        %v1192 = vld [vmem:[%s187 + $0x1d00] sm:$0xff]
        %v1193 = vld [vmem:[%s187 + $0x1d08] sm:$0xff]
        %v1194 = vld [vmem:[%s187 + $0x1d10] sm:$0xff]
        %v1195 = vld [vmem:[%s187 + $0x1d18] sm:$0xff]
        %v1196 = vld [vmem:[%s187 + $0x1d20] sm:$0xff]
        %v1197 = vld [vmem:[%s187 + $0x1d28] sm:$0xff]
        %v1198 = vld [vmem:[%s187 + $0x1d30] sm:$0xff]
        %v1199 = vld [vmem:[%s187 + $0x1d38] sm:$0xff]
        %v1200 = vld [vmem:[%s187 + $0x1d40] sm:$0xff]
        %v1201 = vld [vmem:[%s187 + $0x1d48] sm:$0xff]
        %v1202 = vld [vmem:[%s187 + $0x1d50] sm:$0xff]
        %v1203 = vld [vmem:[%s187 + $0x1d58] sm:$0xff]
        %v1204 = vld [vmem:[%s187 + $0x1d60] sm:$0xff]
        %v1205 = vld [vmem:[%s187 + $0x1d68] sm:$0xff]
        %v1206 = vld [vmem:[%s187 + $0x1d70] sm:$0xff]
        %v1207 = vld [vmem:[%s187 + $0x1d78] sm:$0xff]
        %v1208 = vld [vmem:[%s187 + $0x1d80] sm:$0xff]
        %v1209 = vld [vmem:[%s187 + $0x1d88] sm:$0xff]
        %v1210 = vld [vmem:[%s187 + $0x1d90] sm:$0xff]
        %v1211 = vld [vmem:[%s187 + $0x1d98] sm:$0xff]
        %v1212 = vld [vmem:[%s187 + $0x1da0] sm:$0xff]
        %v1213 = vld [vmem:[%s187 + $0x1da8] sm:$0xff]
        %v1214 = vld [vmem:[%s187 + $0x1db0] sm:$0xff]
        %v1215 = vld [vmem:[%s187 + $0x1db8] sm:$0xff]
        %v1216 = vld [vmem:[%s187 + $0x1dc0] sm:$0xff]
        %v1217 = vld [vmem:[%s187 + $0x1dc8] sm:$0xff]
        %v1218 = vld [vmem:[%s187 + $0x1dd0] sm:$0xff]
        %v1219 = vld [vmem:[%s187 + $0x1dd8] sm:$0xff]
        %v1220 = vld [vmem:[%s187 + $0x1de0] sm:$0xff]
        %v1221 = vld [vmem:[%s187 + $0x1de8] sm:$0xff]
        %v1222 = vld [vmem:[%s187 + $0x1df0] sm:$0xff]
        %v1223 = vld [vmem:[%s187 + $0x1df8] sm:$0xff]
        %v1224 = vld [vmem:[%s187 + $0x1e00] sm:$0xff]
        %v1225 = vld [vmem:[%s187 + $0x1e08] sm:$0xff]
        %v1226 = vld [vmem:[%s187 + $0x1e10] sm:$0xff]
        %v1227 = vld [vmem:[%s187 + $0x1e18] sm:$0xff]
        %v1228 = vld [vmem:[%s187 + $0x1e20] sm:$0xff]
        %v1229 = vld [vmem:[%s187 + $0x1e28] sm:$0xff]
        %v1230 = vld [vmem:[%s187 + $0x1e30] sm:$0xff]
        %v1231 = vld [vmem:[%s187 + $0x1e38] sm:$0xff]
        %v1232 = vld [vmem:[%s187 + $0x1e40] sm:$0xff]
        %v1233 = vld [vmem:[%s187 + $0x1e48] sm:$0xff]
        %v1234 = vld [vmem:[%s187 + $0x1e50] sm:$0xff]
        %v1235 = vld [vmem:[%s187 + $0x1e58] sm:$0xff]
        %v1236 = vld [vmem:[%s187 + $0x1e60] sm:$0xff]
        %v1237 = vld [vmem:[%s187 + $0x1e68] sm:$0xff]
        %v1238 = vld [vmem:[%s187 + $0x1e70] sm:$0xff]
        %v1239 = vld [vmem:[%s187 + $0x1e78] sm:$0xff]
        %v1240 = vld [vmem:[%s187 + $0x1e80] sm:$0xff]
        %v1241 = vld [vmem:[%s187 + $0x1e88] sm:$0xff]
        %v1242 = vld [vmem:[%s187 + $0x1e90] sm:$0xff]
        %v1243 = vld [vmem:[%s187 + $0x1e98] sm:$0xff]
        %v1244 = vld [vmem:[%s187 + $0x1ea0] sm:$0xff]
        %v1245 = vld [vmem:[%s187 + $0x1ea8] sm:$0xff]
        %v1246 = vld [vmem:[%s187 + $0x1eb0] sm:$0xff]
        %v1247 = vld [vmem:[%s187 + $0x1eb8] sm:$0xff]
        %v1248 = vld [vmem:[%s187 + $0x1ec0] sm:$0xff]
        %v1249 = vld [vmem:[%s187 + $0x1ec8] sm:$0xff]
        %v1250 = vld [vmem:[%s187 + $0x1ed0] sm:$0xff]
        %v1251 = vld [vmem:[%s187 + $0x1ed8] sm:$0xff]
        %v1252 = vld [vmem:[%s187 + $0x1ee0] sm:$0xff]
        %v1253 = vld [vmem:[%s187 + $0x1ee8] sm:$0xff]
        %v1254 = vld [vmem:[%s187 + $0x1ef0] sm:$0xff]
        %v1255 = vld [vmem:[%s187 + $0x1ef8] sm:$0xff]
        %v1256 = vld [vmem:[%s187 + $0x1f00] sm:$0xff]
        %v1257 = vld [vmem:[%s187 + $0x1f08] sm:$0xff]
        %v1258 = vld [vmem:[%s187 + $0x1f10] sm:$0xff]
        %v1259 = vld [vmem:[%s187 + $0x1f18] sm:$0xff]
        %v1260 = vld [vmem:[%s187 + $0x1f20] sm:$0xff]
        %v1261 = vld [vmem:[%s187 + $0x1f28] sm:$0xff]
        %v1262 = vld [vmem:[%s187 + $0x1f30] sm:$0xff]
        %v1263 = vld [vmem:[%s187 + $0x1f38] sm:$0xff]
        %v1264 = vld [vmem:[%s187 + $0x1f40] sm:$0xff]
        %v1265 = vld [vmem:[%s187 + $0x1f48] sm:$0xff]
        %v1266 = vld [vmem:[%s187 + $0x1f50] sm:$0xff]
        %v1267 = vld [vmem:[%s187 + $0x1f58] sm:$0xff]
        %v1268 = vld [vmem:[%s187 + $0x1f60] sm:$0xff]
        %v1269 = vld [vmem:[%s187 + $0x1f68] sm:$0xff]
        %v1270 = vld [vmem:[%s187 + $0x1f70] sm:$0xff]
        %v1271 = vld [vmem:[%s187 + $0x1f78] sm:$0xff]
        %v1272 = vld [vmem:[%s187 + $0x1f80] sm:$0xff]
        %v1273 = vld [vmem:[%s187 + $0x1f88] sm:$0xff]
        %v1274 = vld [vmem:[%s187 + $0x1f90] sm:$0xff]
        %v1275 = vld [vmem:[%s187 + $0x1f98] sm:$0xff]
        %v1276 = vld [vmem:[%s187 + $0x1fa0] sm:$0xff]
        %v1277 = vld [vmem:[%s187 + $0x1fa8] sm:$0xff]
        %v1278 = vld [vmem:[%s187 + $0x1fb0] sm:$0xff]
        %v1279 = vld [vmem:[%s187 + $0x1fb8] sm:$0xff]
        %v1280 = vld [vmem:[%s187 + $0x1fc0] sm:$0xff]
        %v1281 = vld [vmem:[%s187 + $0x1fc8] sm:$0xff]
        %v1282 = vld [vmem:[%s187 + $0x1fd0] sm:$0xff]
        %v1283 = vld [vmem:[%s187 + $0x1fd8] sm:$0xff]
        %v1284 = vld [vmem:[%s187 + $0x1fe0] sm:$0xff]
        %v1285 = vld [vmem:[%s187 + $0x1fe8] sm:$0xff]
        %v1286 = vld [vmem:[%s187 + $0x1ff0] sm:$0xff]
        %v1287 = vld [vmem:[%s187 + $0x1ff8] sm:$0xff]
        %v1288 = vld [vmem:[%s196] sm:$0xff]
        %v1290 = vlaneseq
        %v1291 = vshrl.u32 %v1290, 7
        %v1292 = vsub.s32 0, %v1291
        %v1293 = vrot.slane %v1288, %v1292
        %v1294 = vlaneseq
        %v1295 = vshrl.u32 %v1294, 7
        %v1296 = vsub.s32 1, %v1295
        %v1297 = vrot.slane %v1288, %v1296
        %v1298 = vlaneseq
        %v1299 = vshrl.u32 %v1298, 7
        %v1300 = vsub.s32 2, %v1299
        %v1301 = vrot.slane %v1288, %v1300
        %v1302 = vlaneseq
        %v1303 = vshrl.u32 %v1302, 7
        %v1304 = vsub.s32 3, %v1303
        %v1305 = vrot.slane %v1288, %v1304
        %v1306 = vlaneseq
        %v1307 = vshrl.u32 %v1306, 7
        %v1308 = vsub.s32 4, %v1307
        %v1309 = vrot.slane %v1288, %v1308
        %v1310 = vlaneseq
        %v1311 = vshrl.u32 %v1310, 7
        %v1312 = vsub.s32 5, %v1311
        %v1313 = vrot.slane %v1288, %v1312
        %v1314 = vlaneseq
        %v1315 = vshrl.u32 %v1314, 7
        %v1316 = vsub.s32 6, %v1315
        %v1317 = vrot.slane %v1288, %v1316
        %v1318 = vlaneseq
        %v1319 = vshrl.u32 %v1318, 7
        %v1320 = vsub.s32 7, %v1319
        %v1321 = vrot.slane %v1288, %v1320
        %v2354 = vunpack.c.l.b16 %v264
        %v2355 = vunpack.c.h.b16 %v264
        %v2356 = vunpack.c.l.b16 %v265
        %v2357 = vunpack.c.h.b16 %v265
        %v2358 = vunpack.c.l.b16 %v266
        %v2359 = vunpack.c.h.b16 %v266
        %v2360 = vunpack.c.l.b16 %v267
        %v2361 = vunpack.c.h.b16 %v267
        %v2362 = vunpack.c.l.b16 %v268
        %v2363 = vunpack.c.h.b16 %v268
        %v2364 = vunpack.c.l.b16 %v269
        %v2365 = vunpack.c.h.b16 %v269
        %v2366 = vunpack.c.l.b16 %v270
        %v2367 = vunpack.c.h.b16 %v270
        %v2368 = vunpack.c.l.b16 %v271
        %v2369 = vunpack.c.h.b16 %v271
        %v2370 = vunpack.c.l.b16 %v272
        %v2371 = vunpack.c.h.b16 %v272
        %v2372 = vunpack.c.l.b16 %v273
        %v2373 = vunpack.c.h.b16 %v273
        %v2374 = vunpack.c.l.b16 %v274
        %v2375 = vunpack.c.h.b16 %v274
        %v2376 = vunpack.c.l.b16 %v275
        %v2377 = vunpack.c.h.b16 %v275
        %v2378 = vunpack.c.l.b16 %v276
        %v2379 = vunpack.c.h.b16 %v276
        %v2380 = vunpack.c.l.b16 %v277
        %v2381 = vunpack.c.h.b16 %v277
        %v2382 = vunpack.c.l.b16 %v278
        %v2383 = vunpack.c.h.b16 %v278
        %v2384 = vunpack.c.l.b16 %v279
        %v2385 = vunpack.c.h.b16 %v279
        %v2386 = vunpack.c.l.b16 %v280
        %v2387 = vunpack.c.h.b16 %v280
        %v2388 = vunpack.c.l.b16 %v281
        %v2389 = vunpack.c.h.b16 %v281
        %v2390 = vunpack.c.l.b16 %v282
        %v2391 = vunpack.c.h.b16 %v282
        %v2392 = vunpack.c.l.b16 %v283
        %v2393 = vunpack.c.h.b16 %v283
        %v2394 = vunpack.c.l.b16 %v284
        %v2395 = vunpack.c.h.b16 %v284
        %v2396 = vunpack.c.l.b16 %v285
        %v2397 = vunpack.c.h.b16 %v285
        %v2398 = vunpack.c.l.b16 %v286
        %v2399 = vunpack.c.h.b16 %v286
        %v2400 = vunpack.c.l.b16 %v287
        %v2401 = vunpack.c.h.b16 %v287
        %v2402 = vunpack.c.l.b16 %v288
        %v2403 = vunpack.c.h.b16 %v288
        %v2404 = vunpack.c.l.b16 %v289
        %v2405 = vunpack.c.h.b16 %v289
        %v2406 = vunpack.c.l.b16 %v290
        %v2407 = vunpack.c.h.b16 %v290
        %v2408 = vunpack.c.l.b16 %v291
        %v2409 = vunpack.c.h.b16 %v291
        %v2410 = vunpack.c.l.b16 %v292
        %v2411 = vunpack.c.h.b16 %v292
        %v2412 = vunpack.c.l.b16 %v293
        %v2413 = vunpack.c.h.b16 %v293
        %v2414 = vunpack.c.l.b16 %v294
        %v2415 = vunpack.c.h.b16 %v294
        %v2416 = vunpack.c.l.b16 %v295
        %v2417 = vunpack.c.h.b16 %v295
        %v2418 = vunpack.c.l.b16 %v296
        %v2419 = vunpack.c.h.b16 %v296
        %v2420 = vunpack.c.l.b16 %v297
        %v2421 = vunpack.c.h.b16 %v297
        %v2422 = vunpack.c.l.b16 %v298
        %v2423 = vunpack.c.h.b16 %v298
        %v2424 = vunpack.c.l.b16 %v299
        %v2425 = vunpack.c.h.b16 %v299
        %v2426 = vunpack.c.l.b16 %v300
        %v2427 = vunpack.c.h.b16 %v300
        %v2428 = vunpack.c.l.b16 %v301
        %v2429 = vunpack.c.h.b16 %v301
        %v2430 = vunpack.c.l.b16 %v302
        %v2431 = vunpack.c.h.b16 %v302
        %v2432 = vunpack.c.l.b16 %v303
        %v2433 = vunpack.c.h.b16 %v303
        %v2434 = vunpack.c.l.b16 %v304
        %v2435 = vunpack.c.h.b16 %v304
        %v2436 = vunpack.c.l.b16 %v305
        %v2437 = vunpack.c.h.b16 %v305
        %v2438 = vunpack.c.l.b16 %v306
        %v2439 = vunpack.c.h.b16 %v306
        %v2440 = vunpack.c.l.b16 %v307
        %v2441 = vunpack.c.h.b16 %v307
        %v2442 = vunpack.c.l.b16 %v308
        %v2443 = vunpack.c.h.b16 %v308
        %v2444 = vunpack.c.l.b16 %v309
        %v2445 = vunpack.c.h.b16 %v309
        %v2446 = vunpack.c.l.b16 %v310
        %v2447 = vunpack.c.h.b16 %v310
        %v2448 = vunpack.c.l.b16 %v311
        %v2449 = vunpack.c.h.b16 %v311
        %v2450 = vunpack.c.l.b16 %v312
        %v2451 = vunpack.c.h.b16 %v312
        %v2452 = vunpack.c.l.b16 %v313
        %v2453 = vunpack.c.h.b16 %v313
        %v2454 = vunpack.c.l.b16 %v314
        %v2455 = vunpack.c.h.b16 %v314
        %v2456 = vunpack.c.l.b16 %v315
        %v2457 = vunpack.c.h.b16 %v315
        %v2458 = vunpack.c.l.b16 %v316
        %v2459 = vunpack.c.h.b16 %v316
        %v2460 = vunpack.c.l.b16 %v317
        %v2461 = vunpack.c.h.b16 %v317
        %v2462 = vunpack.c.l.b16 %v318
        %v2463 = vunpack.c.h.b16 %v318
        %v2464 = vunpack.c.l.b16 %v319
        %v2465 = vunpack.c.h.b16 %v319
        %v2466 = vunpack.c.l.b16 %v320
        %v2467 = vunpack.c.h.b16 %v320
        %v2468 = vunpack.c.l.b16 %v321
        %v2469 = vunpack.c.h.b16 %v321
        %v2470 = vunpack.c.l.b16 %v322
        %v2471 = vunpack.c.h.b16 %v322
        %v2472 = vunpack.c.l.b16 %v323
        %v2473 = vunpack.c.h.b16 %v323
        %v2474 = vunpack.c.l.b16 %v324
        %v2475 = vunpack.c.h.b16 %v324
        %v2476 = vunpack.c.l.b16 %v325
        %v2477 = vunpack.c.h.b16 %v325
        %v2478 = vunpack.c.l.b16 %v326
        %v2479 = vunpack.c.h.b16 %v326
        %v2480 = vunpack.c.l.b16 %v327
        %v2481 = vunpack.c.h.b16 %v327
        %v2482 = vunpack.c.l.b16 %v328
        %v2483 = vunpack.c.h.b16 %v328
        %v2484 = vunpack.c.l.b16 %v329
        %v2485 = vunpack.c.h.b16 %v329
        %v2486 = vunpack.c.l.b16 %v330
        %v2487 = vunpack.c.h.b16 %v330
        %v2488 = vunpack.c.l.b16 %v331
        %v2489 = vunpack.c.h.b16 %v331
        %v2490 = vunpack.c.l.b16 %v332
        %v2491 = vunpack.c.h.b16 %v332
        %v2492 = vunpack.c.l.b16 %v333
        %v2493 = vunpack.c.h.b16 %v333
        %v2494 = vunpack.c.l.b16 %v334
        %v2495 = vunpack.c.h.b16 %v334
        %v2496 = vunpack.c.l.b16 %v335
        %v2497 = vunpack.c.h.b16 %v335
        %v2498 = vunpack.c.l.b16 %v336
        %v2499 = vunpack.c.h.b16 %v336
        %v2500 = vunpack.c.l.b16 %v337
        %v2501 = vunpack.c.h.b16 %v337
        %v2502 = vunpack.c.l.b16 %v338
        %v2503 = vunpack.c.h.b16 %v338
        %v2504 = vunpack.c.l.b16 %v339
        %v2505 = vunpack.c.h.b16 %v339
        %v2506 = vunpack.c.l.b16 %v340
        %v2507 = vunpack.c.h.b16 %v340
        %v2508 = vunpack.c.l.b16 %v341
        %v2509 = vunpack.c.h.b16 %v341
        %v2510 = vunpack.c.l.b16 %v342
        %v2511 = vunpack.c.h.b16 %v342
        %v2512 = vunpack.c.l.b16 %v343
        %v2513 = vunpack.c.h.b16 %v343
        %v2514 = vunpack.c.l.b16 %v344
        %v2515 = vunpack.c.h.b16 %v344
        %v2516 = vunpack.c.l.b16 %v345
        %v2517 = vunpack.c.h.b16 %v345
        %v2518 = vunpack.c.l.b16 %v346
        %v2519 = vunpack.c.h.b16 %v346
        %v2520 = vunpack.c.l.b16 %v347
        %v2521 = vunpack.c.h.b16 %v347
        %v2522 = vunpack.c.l.b16 %v348
        %v2523 = vunpack.c.h.b16 %v348
        %v2524 = vunpack.c.l.b16 %v349
        %v2525 = vunpack.c.h.b16 %v349
        %v2526 = vunpack.c.l.b16 %v350
        %v2527 = vunpack.c.h.b16 %v350
        %v2528 = vunpack.c.l.b16 %v351
        %v2529 = vunpack.c.h.b16 %v351
        %v2530 = vunpack.c.l.b16 %v352
        %v2531 = vunpack.c.h.b16 %v352
        %v2532 = vunpack.c.l.b16 %v353
        %v2533 = vunpack.c.h.b16 %v353
        %v2534 = vunpack.c.l.b16 %v354
        %v2535 = vunpack.c.h.b16 %v354
        %v2536 = vunpack.c.l.b16 %v355
        %v2537 = vunpack.c.h.b16 %v355
        %v2538 = vunpack.c.l.b16 %v356
        %v2539 = vunpack.c.h.b16 %v356
        %v2540 = vunpack.c.l.b16 %v357
        %v2541 = vunpack.c.h.b16 %v357
        %v2542 = vunpack.c.l.b16 %v358
        %v2543 = vunpack.c.h.b16 %v358
        %v2544 = vunpack.c.l.b16 %v359
        %v2545 = vunpack.c.h.b16 %v359
        %v2546 = vunpack.c.l.b16 %v360
        %v2547 = vunpack.c.h.b16 %v360
        %v2548 = vunpack.c.l.b16 %v361
        %v2549 = vunpack.c.h.b16 %v361
        %v2550 = vunpack.c.l.b16 %v362
        %v2551 = vunpack.c.h.b16 %v362
        %v2552 = vunpack.c.l.b16 %v363
        %v2553 = vunpack.c.h.b16 %v363
        %v2554 = vunpack.c.l.b16 %v364
        %v2555 = vunpack.c.h.b16 %v364
        %v2556 = vunpack.c.l.b16 %v365
        %v2557 = vunpack.c.h.b16 %v365
        %v2558 = vunpack.c.l.b16 %v366
        %v2559 = vunpack.c.h.b16 %v366
        %v2560 = vunpack.c.l.b16 %v367
        %v2561 = vunpack.c.h.b16 %v367
        %v2562 = vunpack.c.l.b16 %v368
        %v2563 = vunpack.c.h.b16 %v368
        %v2564 = vunpack.c.l.b16 %v369
        %v2565 = vunpack.c.h.b16 %v369
        %v2566 = vunpack.c.l.b16 %v370
        %v2567 = vunpack.c.h.b16 %v370
        %v2568 = vunpack.c.l.b16 %v371
        %v2569 = vunpack.c.h.b16 %v371
        %v2570 = vunpack.c.l.b16 %v372
        %v2571 = vunpack.c.h.b16 %v372
        %v2572 = vunpack.c.l.b16 %v373
        %v2573 = vunpack.c.h.b16 %v373
        %v2574 = vunpack.c.l.b16 %v374
        %v2575 = vunpack.c.h.b16 %v374
        %v2576 = vunpack.c.l.b16 %v375
        %v2577 = vunpack.c.h.b16 %v375
        %v2578 = vunpack.c.l.b16 %v376
        %v2579 = vunpack.c.h.b16 %v376
        %v2580 = vunpack.c.l.b16 %v377
        %v2581 = vunpack.c.h.b16 %v377
        %v2582 = vunpack.c.l.b16 %v378
        %v2583 = vunpack.c.h.b16 %v378
        %v2584 = vunpack.c.l.b16 %v379
        %v2585 = vunpack.c.h.b16 %v379
        %v2586 = vunpack.c.l.b16 %v380
        %v2587 = vunpack.c.h.b16 %v380
        %v2588 = vunpack.c.l.b16 %v381
        %v2589 = vunpack.c.h.b16 %v381
        %v2590 = vunpack.c.l.b16 %v382
        %v2591 = vunpack.c.h.b16 %v382
        %v2592 = vunpack.c.l.b16 %v383
        %v2593 = vunpack.c.h.b16 %v383
        %v2594 = vunpack.c.l.b16 %v384
        %v2595 = vunpack.c.h.b16 %v384
        %v2596 = vunpack.c.l.b16 %v385
        %v2597 = vunpack.c.h.b16 %v385
        %v2598 = vunpack.c.l.b16 %v386
        %v2599 = vunpack.c.h.b16 %v386
        %v2600 = vunpack.c.l.b16 %v387
        %v2601 = vunpack.c.h.b16 %v387
        %v2602 = vunpack.c.l.b16 %v388
        %v2603 = vunpack.c.h.b16 %v388
        %v2604 = vunpack.c.l.b16 %v389
        %v2605 = vunpack.c.h.b16 %v389
        %v2606 = vunpack.c.l.b16 %v390
        %v2607 = vunpack.c.h.b16 %v390
        %v2608 = vunpack.c.l.b16 %v391
        %v2609 = vunpack.c.h.b16 %v391
        %v2610 = vunpack.c.l.b16 %v392
        %v2611 = vunpack.c.h.b16 %v392
        %v2612 = vunpack.c.l.b16 %v393
        %v2613 = vunpack.c.h.b16 %v393
        %v2614 = vunpack.c.l.b16 %v394
        %v2615 = vunpack.c.h.b16 %v394
        %v2616 = vunpack.c.l.b16 %v395
        %v2617 = vunpack.c.h.b16 %v395
        %v2618 = vunpack.c.l.b16 %v396
        %v2619 = vunpack.c.h.b16 %v396
        %v2620 = vunpack.c.l.b16 %v397
        %v2621 = vunpack.c.h.b16 %v397
        %v2622 = vunpack.c.l.b16 %v398
        %v2623 = vunpack.c.h.b16 %v398
        %v2624 = vunpack.c.l.b16 %v399
        %v2625 = vunpack.c.h.b16 %v399
        %v2626 = vunpack.c.l.b16 %v400
        %v2627 = vunpack.c.h.b16 %v400
        %v2628 = vunpack.c.l.b16 %v401
        %v2629 = vunpack.c.h.b16 %v401
        %v2630 = vunpack.c.l.b16 %v402
        %v2631 = vunpack.c.h.b16 %v402
        %v2632 = vunpack.c.l.b16 %v403
        %v2633 = vunpack.c.h.b16 %v403
        %v2634 = vunpack.c.l.b16 %v404
        %v2635 = vunpack.c.h.b16 %v404
        %v2636 = vunpack.c.l.b16 %v405
        %v2637 = vunpack.c.h.b16 %v405
        %v2638 = vunpack.c.l.b16 %v406
        %v2639 = vunpack.c.h.b16 %v406
        %v2640 = vunpack.c.l.b16 %v407
        %v2641 = vunpack.c.h.b16 %v407
        %v2642 = vunpack.c.l.b16 %v408
        %v2643 = vunpack.c.h.b16 %v408
        %v2644 = vunpack.c.l.b16 %v409
        %v2645 = vunpack.c.h.b16 %v409
        %v2646 = vunpack.c.l.b16 %v410
        %v2647 = vunpack.c.h.b16 %v410
        %v2648 = vunpack.c.l.b16 %v411
        %v2649 = vunpack.c.h.b16 %v411
        %v2650 = vunpack.c.l.b16 %v412
        %v2651 = vunpack.c.h.b16 %v412
        %v2652 = vunpack.c.l.b16 %v413
        %v2653 = vunpack.c.h.b16 %v413
        %v2654 = vunpack.c.l.b16 %v414
        %v2655 = vunpack.c.h.b16 %v414
        %v2656 = vunpack.c.l.b16 %v415
        %v2657 = vunpack.c.h.b16 %v415
        %v2658 = vunpack.c.l.b16 %v416
        %v2659 = vunpack.c.h.b16 %v416
        %v2660 = vunpack.c.l.b16 %v417
        %v2661 = vunpack.c.h.b16 %v417
        %v2662 = vunpack.c.l.b16 %v418
        %v2663 = vunpack.c.h.b16 %v418
        %v2664 = vunpack.c.l.b16 %v419
        %v2665 = vunpack.c.h.b16 %v419
        %v2666 = vunpack.c.l.b16 %v420
        %v2667 = vunpack.c.h.b16 %v420
        %v2668 = vunpack.c.l.b16 %v421
        %v2669 = vunpack.c.h.b16 %v421
        %v2670 = vunpack.c.l.b16 %v422
        %v2671 = vunpack.c.h.b16 %v422
        %v2672 = vunpack.c.l.b16 %v423
        %v2673 = vunpack.c.h.b16 %v423
        %v2674 = vunpack.c.l.b16 %v424
        %v2675 = vunpack.c.h.b16 %v424
        %v2676 = vunpack.c.l.b16 %v425
        %v2677 = vunpack.c.h.b16 %v425
        %v2678 = vunpack.c.l.b16 %v426
        %v2679 = vunpack.c.h.b16 %v426
        %v2680 = vunpack.c.l.b16 %v427
        %v2681 = vunpack.c.h.b16 %v427
        %v2682 = vunpack.c.l.b16 %v428
        %v2683 = vunpack.c.h.b16 %v428
        %v2684 = vunpack.c.l.b16 %v429
        %v2685 = vunpack.c.h.b16 %v429
        %v2686 = vunpack.c.l.b16 %v430
        %v2687 = vunpack.c.h.b16 %v430
        %v2688 = vunpack.c.l.b16 %v431
        %v2689 = vunpack.c.h.b16 %v431
        %v2690 = vunpack.c.l.b16 %v432
        %v2691 = vunpack.c.h.b16 %v432
        %v2692 = vunpack.c.l.b16 %v433
        %v2693 = vunpack.c.h.b16 %v433
        %v2694 = vunpack.c.l.b16 %v434
        %v2695 = vunpack.c.h.b16 %v434
        %v2696 = vunpack.c.l.b16 %v435
        %v2697 = vunpack.c.h.b16 %v435
        %v2698 = vunpack.c.l.b16 %v436
        %v2699 = vunpack.c.h.b16 %v436
        %v2700 = vunpack.c.l.b16 %v437
        %v2701 = vunpack.c.h.b16 %v437
        %v2702 = vunpack.c.l.b16 %v438
        %v2703 = vunpack.c.h.b16 %v438
        %v2704 = vunpack.c.l.b16 %v439
        %v2705 = vunpack.c.h.b16 %v439
        %v2706 = vunpack.c.l.b16 %v440
        %v2707 = vunpack.c.h.b16 %v440
        %v2708 = vunpack.c.l.b16 %v441
        %v2709 = vunpack.c.h.b16 %v441
        %v2710 = vunpack.c.l.b16 %v442
        %v2711 = vunpack.c.h.b16 %v442
        %v2712 = vunpack.c.l.b16 %v443
        %v2713 = vunpack.c.h.b16 %v443
        %v2714 = vunpack.c.l.b16 %v444
        %v2715 = vunpack.c.h.b16 %v444
        %v2716 = vunpack.c.l.b16 %v445
        %v2717 = vunpack.c.h.b16 %v445
        %v2718 = vunpack.c.l.b16 %v446
        %v2719 = vunpack.c.h.b16 %v446
        %v2720 = vunpack.c.l.b16 %v447
        %v2721 = vunpack.c.h.b16 %v447
        %v2722 = vunpack.c.l.b16 %v448
        %v2723 = vunpack.c.h.b16 %v448
        %v2724 = vunpack.c.l.b16 %v449
        %v2725 = vunpack.c.h.b16 %v449
        %v2726 = vunpack.c.l.b16 %v450
        %v2727 = vunpack.c.h.b16 %v450
        %v2728 = vunpack.c.l.b16 %v451
        %v2729 = vunpack.c.h.b16 %v451
        %v2730 = vunpack.c.l.b16 %v452
        %v2731 = vunpack.c.h.b16 %v452
        %v2732 = vunpack.c.l.b16 %v453
        %v2733 = vunpack.c.h.b16 %v453
        %v2734 = vunpack.c.l.b16 %v454
        %v2735 = vunpack.c.h.b16 %v454
        %v2736 = vunpack.c.l.b16 %v455
        %v2737 = vunpack.c.h.b16 %v455
        %v2738 = vunpack.c.l.b16 %v456
        %v2739 = vunpack.c.h.b16 %v456
        %v2740 = vunpack.c.l.b16 %v457
        %v2741 = vunpack.c.h.b16 %v457
        %v2742 = vunpack.c.l.b16 %v458
        %v2743 = vunpack.c.h.b16 %v458
        %v2744 = vunpack.c.l.b16 %v459
        %v2745 = vunpack.c.h.b16 %v459
        %v2746 = vunpack.c.l.b16 %v460
        %v2747 = vunpack.c.h.b16 %v460
        %v2748 = vunpack.c.l.b16 %v461
        %v2749 = vunpack.c.h.b16 %v461
        %v2750 = vunpack.c.l.b16 %v462
        %v2751 = vunpack.c.h.b16 %v462
        %v2752 = vunpack.c.l.b16 %v463
        %v2753 = vunpack.c.h.b16 %v463
        %v2754 = vunpack.c.l.b16 %v464
        %v2755 = vunpack.c.h.b16 %v464
        %v2756 = vunpack.c.l.b16 %v465
        %v2757 = vunpack.c.h.b16 %v465
        %v2758 = vunpack.c.l.b16 %v466
        %v2759 = vunpack.c.h.b16 %v466
        %v2760 = vunpack.c.l.b16 %v467
        %v2761 = vunpack.c.h.b16 %v467
        %v2762 = vunpack.c.l.b16 %v468
        %v2763 = vunpack.c.h.b16 %v468
        %v2764 = vunpack.c.l.b16 %v469
        %v2765 = vunpack.c.h.b16 %v469
        %v2766 = vunpack.c.l.b16 %v470
        %v2767 = vunpack.c.h.b16 %v470
        %v2768 = vunpack.c.l.b16 %v471
        %v2769 = vunpack.c.h.b16 %v471
        %v2770 = vunpack.c.l.b16 %v472
        %v2771 = vunpack.c.h.b16 %v472
        %v2772 = vunpack.c.l.b16 %v473
        %v2773 = vunpack.c.h.b16 %v473
        %v2774 = vunpack.c.l.b16 %v474
        %v2775 = vunpack.c.h.b16 %v474
        %v2776 = vunpack.c.l.b16 %v475
        %v2777 = vunpack.c.h.b16 %v475
        %v2778 = vunpack.c.l.b16 %v476
        %v2779 = vunpack.c.h.b16 %v476
        %v2780 = vunpack.c.l.b16 %v477
        %v2781 = vunpack.c.h.b16 %v477
        %v2782 = vunpack.c.l.b16 %v478
        %v2783 = vunpack.c.h.b16 %v478
        %v2784 = vunpack.c.l.b16 %v479
        %v2785 = vunpack.c.h.b16 %v479
        %v2786 = vunpack.c.l.b16 %v480
        %v2787 = vunpack.c.h.b16 %v480
        %v2788 = vunpack.c.l.b16 %v481
        %v2789 = vunpack.c.h.b16 %v481
        %v2790 = vunpack.c.l.b16 %v482
        %v2791 = vunpack.c.h.b16 %v482
        %v2792 = vunpack.c.l.b16 %v483
        %v2793 = vunpack.c.h.b16 %v483
        %v2794 = vunpack.c.l.b16 %v484
        %v2795 = vunpack.c.h.b16 %v484
        %v2796 = vunpack.c.l.b16 %v485
        %v2797 = vunpack.c.h.b16 %v485
        %v2798 = vunpack.c.l.b16 %v486
        %v2799 = vunpack.c.h.b16 %v486
        %v2800 = vunpack.c.l.b16 %v487
        %v2801 = vunpack.c.h.b16 %v487
        %v2802 = vunpack.c.l.b16 %v488
        %v2803 = vunpack.c.h.b16 %v488
        %v2804 = vunpack.c.l.b16 %v489
        %v2805 = vunpack.c.h.b16 %v489
        %v2806 = vunpack.c.l.b16 %v490
        %v2807 = vunpack.c.h.b16 %v490
        %v2808 = vunpack.c.l.b16 %v491
        %v2809 = vunpack.c.h.b16 %v491
        %v2810 = vunpack.c.l.b16 %v492
        %v2811 = vunpack.c.h.b16 %v492
        %v2812 = vunpack.c.l.b16 %v493
        %v2813 = vunpack.c.h.b16 %v493
        %v2814 = vunpack.c.l.b16 %v494
        %v2815 = vunpack.c.h.b16 %v494
        %v2816 = vunpack.c.l.b16 %v495
        %v2817 = vunpack.c.h.b16 %v495
        %v2818 = vunpack.c.l.b16 %v496
        %v2819 = vunpack.c.h.b16 %v496
        %v2820 = vunpack.c.l.b16 %v497
        %v2821 = vunpack.c.h.b16 %v497
        %v2822 = vunpack.c.l.b16 %v498
        %v2823 = vunpack.c.h.b16 %v498
        %v2824 = vunpack.c.l.b16 %v499
        %v2825 = vunpack.c.h.b16 %v499
        %v2826 = vunpack.c.l.b16 %v500
        %v2827 = vunpack.c.h.b16 %v500
        %v2828 = vunpack.c.l.b16 %v501
        %v2829 = vunpack.c.h.b16 %v501
        %v2830 = vunpack.c.l.b16 %v502
        %v2831 = vunpack.c.h.b16 %v502
        %v2832 = vunpack.c.l.b16 %v503
        %v2833 = vunpack.c.h.b16 %v503
        %v2834 = vunpack.c.l.b16 %v504
        %v2835 = vunpack.c.h.b16 %v504
        %v2836 = vunpack.c.l.b16 %v505
        %v2837 = vunpack.c.h.b16 %v505
        %v2838 = vunpack.c.l.b16 %v506
        %v2839 = vunpack.c.h.b16 %v506
        %v2840 = vunpack.c.l.b16 %v507
        %v2841 = vunpack.c.h.b16 %v507
        %v2842 = vunpack.c.l.b16 %v508
        %v2843 = vunpack.c.h.b16 %v508
        %v2844 = vunpack.c.l.b16 %v509
        %v2845 = vunpack.c.h.b16 %v509
        %v2846 = vunpack.c.l.b16 %v510
        %v2847 = vunpack.c.h.b16 %v510
        %v2848 = vunpack.c.l.b16 %v511
        %v2849 = vunpack.c.h.b16 %v511
        %v2850 = vunpack.c.l.b16 %v512
        %v2851 = vunpack.c.h.b16 %v512
        %v2852 = vunpack.c.l.b16 %v513
        %v2853 = vunpack.c.h.b16 %v513
        %v2854 = vunpack.c.l.b16 %v514
        %v2855 = vunpack.c.h.b16 %v514
        %v2856 = vunpack.c.l.b16 %v515
        %v2857 = vunpack.c.h.b16 %v515
        %v2858 = vunpack.c.l.b16 %v516
        %v2859 = vunpack.c.h.b16 %v516
        %v2860 = vunpack.c.l.b16 %v517
        %v2861 = vunpack.c.h.b16 %v517
        %v2862 = vunpack.c.l.b16 %v518
        %v2863 = vunpack.c.h.b16 %v518
        %v2864 = vunpack.c.l.b16 %v519
        %v2865 = vunpack.c.h.b16 %v519
        %v2866 = vunpack.c.l.b16 %v520
        %v2867 = vunpack.c.h.b16 %v520
        %v2868 = vunpack.c.l.b16 %v521
        %v2869 = vunpack.c.h.b16 %v521
        %v2870 = vunpack.c.l.b16 %v522
        %v2871 = vunpack.c.h.b16 %v522
        %v2872 = vunpack.c.l.b16 %v523
        %v2873 = vunpack.c.h.b16 %v523
        %v2874 = vunpack.c.l.b16 %v524
        %v2875 = vunpack.c.h.b16 %v524
        %v2876 = vunpack.c.l.b16 %v525
        %v2877 = vunpack.c.h.b16 %v525
        %v2878 = vunpack.c.l.b16 %v526
        %v2879 = vunpack.c.h.b16 %v526
        %v2880 = vunpack.c.l.b16 %v527
        %v2881 = vunpack.c.h.b16 %v527
        %v2882 = vunpack.c.l.b16 %v528
        %v2883 = vunpack.c.h.b16 %v528
        %v2884 = vunpack.c.l.b16 %v529
        %v2885 = vunpack.c.h.b16 %v529
        %v2886 = vunpack.c.l.b16 %v530
        %v2887 = vunpack.c.h.b16 %v530
        %v2888 = vunpack.c.l.b16 %v531
        %v2889 = vunpack.c.h.b16 %v531
        %v2890 = vunpack.c.l.b16 %v532
        %v2891 = vunpack.c.h.b16 %v532
        %v2892 = vunpack.c.l.b16 %v533
        %v2893 = vunpack.c.h.b16 %v533
        %v2894 = vunpack.c.l.b16 %v534
        %v2895 = vunpack.c.h.b16 %v534
        %v2896 = vunpack.c.l.b16 %v535
        %v2897 = vunpack.c.h.b16 %v535
        %v2898 = vunpack.c.l.b16 %v536
        %v2899 = vunpack.c.h.b16 %v536
        %v2900 = vunpack.c.l.b16 %v537
        %v2901 = vunpack.c.h.b16 %v537
        %v2902 = vunpack.c.l.b16 %v538
        %v2903 = vunpack.c.h.b16 %v538
        %v2904 = vunpack.c.l.b16 %v539
        %v2905 = vunpack.c.h.b16 %v539
        %v2906 = vunpack.c.l.b16 %v540
        %v2907 = vunpack.c.h.b16 %v540
        %v2908 = vunpack.c.l.b16 %v541
        %v2909 = vunpack.c.h.b16 %v541
        %v2910 = vunpack.c.l.b16 %v542
        %v2911 = vunpack.c.h.b16 %v542
        %v2912 = vunpack.c.l.b16 %v543
        %v2913 = vunpack.c.h.b16 %v543
        %v2914 = vunpack.c.l.b16 %v544
        %v2915 = vunpack.c.h.b16 %v544
        %v2916 = vunpack.c.l.b16 %v545
        %v2917 = vunpack.c.h.b16 %v545
        %v2918 = vunpack.c.l.b16 %v546
        %v2919 = vunpack.c.h.b16 %v546
        %v2920 = vunpack.c.l.b16 %v547
        %v2921 = vunpack.c.h.b16 %v547
        %v2922 = vunpack.c.l.b16 %v548
        %v2923 = vunpack.c.h.b16 %v548
        %v2924 = vunpack.c.l.b16 %v549
        %v2925 = vunpack.c.h.b16 %v549
        %v2926 = vunpack.c.l.b16 %v550
        %v2927 = vunpack.c.h.b16 %v550
        %v2928 = vunpack.c.l.b16 %v551
        %v2929 = vunpack.c.h.b16 %v551
        %v2930 = vunpack.c.l.b16 %v552
        %v2931 = vunpack.c.h.b16 %v552
        %v2932 = vunpack.c.l.b16 %v553
        %v2933 = vunpack.c.h.b16 %v553
        %v2934 = vunpack.c.l.b16 %v554
        %v2935 = vunpack.c.h.b16 %v554
        %v2936 = vunpack.c.l.b16 %v555
        %v2937 = vunpack.c.h.b16 %v555
        %v2938 = vunpack.c.l.b16 %v556
        %v2939 = vunpack.c.h.b16 %v556
        %v2940 = vunpack.c.l.b16 %v557
        %v2941 = vunpack.c.h.b16 %v557
        %v2942 = vunpack.c.l.b16 %v558
        %v2943 = vunpack.c.h.b16 %v558
        %v2944 = vunpack.c.l.b16 %v559
        %v2945 = vunpack.c.h.b16 %v559
        %v2946 = vunpack.c.l.b16 %v560
        %v2947 = vunpack.c.h.b16 %v560
        %v2948 = vunpack.c.l.b16 %v561
        %v2949 = vunpack.c.h.b16 %v561
        %v2950 = vunpack.c.l.b16 %v562
        %v2951 = vunpack.c.h.b16 %v562
        %v2952 = vunpack.c.l.b16 %v563
        %v2953 = vunpack.c.h.b16 %v563
        %v2954 = vunpack.c.l.b16 %v564
        %v2955 = vunpack.c.h.b16 %v564
        %v2956 = vunpack.c.l.b16 %v565
        %v2957 = vunpack.c.h.b16 %v565
        %v2958 = vunpack.c.l.b16 %v566
        %v2959 = vunpack.c.h.b16 %v566
        %v2960 = vunpack.c.l.b16 %v567
        %v2961 = vunpack.c.h.b16 %v567
        %v2962 = vunpack.c.l.b16 %v568
        %v2963 = vunpack.c.h.b16 %v568
        %v2964 = vunpack.c.l.b16 %v569
        %v2965 = vunpack.c.h.b16 %v569
        %v2966 = vunpack.c.l.b16 %v570
        %v2967 = vunpack.c.h.b16 %v570
        %v2968 = vunpack.c.l.b16 %v571
        %v2969 = vunpack.c.h.b16 %v571
        %v2970 = vunpack.c.l.b16 %v572
        %v2971 = vunpack.c.h.b16 %v572
        %v2972 = vunpack.c.l.b16 %v573
        %v2973 = vunpack.c.h.b16 %v573
        %v2974 = vunpack.c.l.b16 %v574
        %v2975 = vunpack.c.h.b16 %v574
        %v2976 = vunpack.c.l.b16 %v575
        %v2977 = vunpack.c.h.b16 %v575
        %v2978 = vunpack.c.l.b16 %v576
        %v2979 = vunpack.c.h.b16 %v576
        %v2980 = vunpack.c.l.b16 %v577
        %v2981 = vunpack.c.h.b16 %v577
        %v2982 = vunpack.c.l.b16 %v578
        %v2983 = vunpack.c.h.b16 %v578
        %v2984 = vunpack.c.l.b16 %v579
        %v2985 = vunpack.c.h.b16 %v579
        %v2986 = vunpack.c.l.b16 %v580
        %v2987 = vunpack.c.h.b16 %v580
        %v2988 = vunpack.c.l.b16 %v581
        %v2989 = vunpack.c.h.b16 %v581
        %v2990 = vunpack.c.l.b16 %v582
        %v2991 = vunpack.c.h.b16 %v582
        %v2992 = vunpack.c.l.b16 %v583
        %v2993 = vunpack.c.h.b16 %v583
        %v2994 = vunpack.c.l.b16 %v584
        %v2995 = vunpack.c.h.b16 %v584
        %v2996 = vunpack.c.l.b16 %v585
        %v2997 = vunpack.c.h.b16 %v585
        %v2998 = vunpack.c.l.b16 %v586
        %v2999 = vunpack.c.h.b16 %v586
        %v3000 = vunpack.c.l.b16 %v587
        %v3001 = vunpack.c.h.b16 %v587
        %v3002 = vunpack.c.l.b16 %v588
        %v3003 = vunpack.c.h.b16 %v588
        %v3004 = vunpack.c.l.b16 %v589
        %v3005 = vunpack.c.h.b16 %v589
        %v3006 = vunpack.c.l.b16 %v590
        %v3007 = vunpack.c.h.b16 %v590
        %v3008 = vunpack.c.l.b16 %v591
        %v3009 = vunpack.c.h.b16 %v591
        %v3010 = vunpack.c.l.b16 %v592
        %v3011 = vunpack.c.h.b16 %v592
        %v3012 = vunpack.c.l.b16 %v593
        %v3013 = vunpack.c.h.b16 %v593
        %v3014 = vunpack.c.l.b16 %v594
        %v3015 = vunpack.c.h.b16 %v594
        %v3016 = vunpack.c.l.b16 %v595
        %v3017 = vunpack.c.h.b16 %v595
        %v3018 = vunpack.c.l.b16 %v596
        %v3019 = vunpack.c.h.b16 %v596
        %v3020 = vunpack.c.l.b16 %v597
        %v3021 = vunpack.c.h.b16 %v597
        %v3022 = vunpack.c.l.b16 %v598
        %v3023 = vunpack.c.h.b16 %v598
        %v3024 = vunpack.c.l.b16 %v599
        %v3025 = vunpack.c.h.b16 %v599
        %v3026 = vunpack.c.l.b16 %v600
        %v3027 = vunpack.c.h.b16 %v600
        %v3028 = vunpack.c.l.b16 %v601
        %v3029 = vunpack.c.h.b16 %v601
        %v3030 = vunpack.c.l.b16 %v602
        %v3031 = vunpack.c.h.b16 %v602
        %v3032 = vunpack.c.l.b16 %v603
        %v3033 = vunpack.c.h.b16 %v603
        %v3034 = vunpack.c.l.b16 %v604
        %v3035 = vunpack.c.h.b16 %v604
        %v3036 = vunpack.c.l.b16 %v605
        %v3037 = vunpack.c.h.b16 %v605
        %v3038 = vunpack.c.l.b16 %v606
        %v3039 = vunpack.c.h.b16 %v606
        %v3040 = vunpack.c.l.b16 %v607
        %v3041 = vunpack.c.h.b16 %v607
        %v3042 = vunpack.c.l.b16 %v608
        %v3043 = vunpack.c.h.b16 %v608
        %v3044 = vunpack.c.l.b16 %v609
        %v3045 = vunpack.c.h.b16 %v609
        %v3046 = vunpack.c.l.b16 %v610
        %v3047 = vunpack.c.h.b16 %v610
        %v3048 = vunpack.c.l.b16 %v611
        %v3049 = vunpack.c.h.b16 %v611
        %v3050 = vunpack.c.l.b16 %v612
        %v3051 = vunpack.c.h.b16 %v612
        %v3052 = vunpack.c.l.b16 %v613
        %v3053 = vunpack.c.h.b16 %v613
        %v3054 = vunpack.c.l.b16 %v614
        %v3055 = vunpack.c.h.b16 %v614
        %v3056 = vunpack.c.l.b16 %v615
        %v3057 = vunpack.c.h.b16 %v615
        %v3058 = vunpack.c.l.b16 %v616
        %v3059 = vunpack.c.h.b16 %v616
        %v3060 = vunpack.c.l.b16 %v617
        %v3061 = vunpack.c.h.b16 %v617
        %v3062 = vunpack.c.l.b16 %v618
        %v3063 = vunpack.c.h.b16 %v618
        %v3064 = vunpack.c.l.b16 %v619
        %v3065 = vunpack.c.h.b16 %v619
        %v3066 = vunpack.c.l.b16 %v620
        %v3067 = vunpack.c.h.b16 %v620
        %v3068 = vunpack.c.l.b16 %v621
        %v3069 = vunpack.c.h.b16 %v621
        %v3070 = vunpack.c.l.b16 %v622
        %v3071 = vunpack.c.h.b16 %v622
        %v3072 = vunpack.c.l.b16 %v623
        %v3073 = vunpack.c.h.b16 %v623
        %v3074 = vunpack.c.l.b16 %v624
        %v3075 = vunpack.c.h.b16 %v624
        %v3076 = vunpack.c.l.b16 %v625
        %v3077 = vunpack.c.h.b16 %v625
        %v3078 = vunpack.c.l.b16 %v626
        %v3079 = vunpack.c.h.b16 %v626
        %v3080 = vunpack.c.l.b16 %v627
        %v3081 = vunpack.c.h.b16 %v627
        %v3082 = vunpack.c.l.b16 %v628
        %v3083 = vunpack.c.h.b16 %v628
        %v3084 = vunpack.c.l.b16 %v629
        %v3085 = vunpack.c.h.b16 %v629
        %v3086 = vunpack.c.l.b16 %v630
        %v3087 = vunpack.c.h.b16 %v630
        %v3088 = vunpack.c.l.b16 %v631
        %v3089 = vunpack.c.h.b16 %v631
        %v3090 = vunpack.c.l.b16 %v632
        %v3091 = vunpack.c.h.b16 %v632
        %v3092 = vunpack.c.l.b16 %v633
        %v3093 = vunpack.c.h.b16 %v633
        %v3094 = vunpack.c.l.b16 %v634
        %v3095 = vunpack.c.h.b16 %v634
        %v3096 = vunpack.c.l.b16 %v635
        %v3097 = vunpack.c.h.b16 %v635
        %v3098 = vunpack.c.l.b16 %v636
        %v3099 = vunpack.c.h.b16 %v636
        %v3100 = vunpack.c.l.b16 %v637
        %v3101 = vunpack.c.h.b16 %v637
        %v3102 = vunpack.c.l.b16 %v638
        %v3103 = vunpack.c.h.b16 %v638
        %v3104 = vunpack.c.l.b16 %v639
        %v3105 = vunpack.c.h.b16 %v639
        %v3106 = vunpack.c.l.b16 %v640
        %v3107 = vunpack.c.h.b16 %v640
        %v3108 = vunpack.c.l.b16 %v641
        %v3109 = vunpack.c.h.b16 %v641
        %v3110 = vunpack.c.l.b16 %v642
        %v3111 = vunpack.c.h.b16 %v642
        %v3112 = vunpack.c.l.b16 %v643
        %v3113 = vunpack.c.h.b16 %v643
        %v3114 = vunpack.c.l.b16 %v644
        %v3115 = vunpack.c.h.b16 %v644
        %v3116 = vunpack.c.l.b16 %v645
        %v3117 = vunpack.c.h.b16 %v645
        %v3118 = vunpack.c.l.b16 %v646
        %v3119 = vunpack.c.h.b16 %v646
        %v3120 = vunpack.c.l.b16 %v647
        %v3121 = vunpack.c.h.b16 %v647
        %v3122 = vunpack.c.l.b16 %v648
        %v3123 = vunpack.c.h.b16 %v648
        %v3124 = vunpack.c.l.b16 %v649
        %v3125 = vunpack.c.h.b16 %v649
        %v3126 = vunpack.c.l.b16 %v650
        %v3127 = vunpack.c.h.b16 %v650
        %v3128 = vunpack.c.l.b16 %v651
        %v3129 = vunpack.c.h.b16 %v651
        %v3130 = vunpack.c.l.b16 %v652
        %v3131 = vunpack.c.h.b16 %v652
        %v3132 = vunpack.c.l.b16 %v653
        %v3133 = vunpack.c.h.b16 %v653
        %v3134 = vunpack.c.l.b16 %v654
        %v3135 = vunpack.c.h.b16 %v654
        %v3136 = vunpack.c.l.b16 %v655
        %v3137 = vunpack.c.h.b16 %v655
        %v3138 = vunpack.c.l.b16 %v656
        %v3139 = vunpack.c.h.b16 %v656
        %v3140 = vunpack.c.l.b16 %v657
        %v3141 = vunpack.c.h.b16 %v657
        %v3142 = vunpack.c.l.b16 %v658
        %v3143 = vunpack.c.h.b16 %v658
        %v3144 = vunpack.c.l.b16 %v659
        %v3145 = vunpack.c.h.b16 %v659
        %v3146 = vunpack.c.l.b16 %v660
        %v3147 = vunpack.c.h.b16 %v660
        %v3148 = vunpack.c.l.b16 %v661
        %v3149 = vunpack.c.h.b16 %v661
        %v3150 = vunpack.c.l.b16 %v662
        %v3151 = vunpack.c.h.b16 %v662
        %v3152 = vunpack.c.l.b16 %v663
        %v3153 = vunpack.c.h.b16 %v663
        %v3154 = vunpack.c.l.b16 %v664
        %v3155 = vunpack.c.h.b16 %v664
        %v3156 = vunpack.c.l.b16 %v665
        %v3157 = vunpack.c.h.b16 %v665
        %v3158 = vunpack.c.l.b16 %v666
        %v3159 = vunpack.c.h.b16 %v666
        %v3160 = vunpack.c.l.b16 %v667
        %v3161 = vunpack.c.h.b16 %v667
        %v3162 = vunpack.c.l.b16 %v668
        %v3163 = vunpack.c.h.b16 %v668
        %v3164 = vunpack.c.l.b16 %v669
        %v3165 = vunpack.c.h.b16 %v669
        %v3166 = vunpack.c.l.b16 %v670
        %v3167 = vunpack.c.h.b16 %v670
        %v3168 = vunpack.c.l.b16 %v671
        %v3169 = vunpack.c.h.b16 %v671
        %v3170 = vunpack.c.l.b16 %v672
        %v3171 = vunpack.c.h.b16 %v672
        %v3172 = vunpack.c.l.b16 %v673
        %v3173 = vunpack.c.h.b16 %v673
        %v3174 = vunpack.c.l.b16 %v674
        %v3175 = vunpack.c.h.b16 %v674
        %v3176 = vunpack.c.l.b16 %v675
        %v3177 = vunpack.c.h.b16 %v675
        %v3178 = vunpack.c.l.b16 %v676
        %v3179 = vunpack.c.h.b16 %v676
        %v3180 = vunpack.c.l.b16 %v677
        %v3181 = vunpack.c.h.b16 %v677
        %v3182 = vunpack.c.l.b16 %v678
        %v3183 = vunpack.c.h.b16 %v678
        %v3184 = vunpack.c.l.b16 %v679
        %v3185 = vunpack.c.h.b16 %v679
        %v3186 = vunpack.c.l.b16 %v680
        %v3187 = vunpack.c.h.b16 %v680
        %v3188 = vunpack.c.l.b16 %v681
        %v3189 = vunpack.c.h.b16 %v681
        %v3190 = vunpack.c.l.b16 %v682
        %v3191 = vunpack.c.h.b16 %v682
        %v3192 = vunpack.c.l.b16 %v683
        %v3193 = vunpack.c.h.b16 %v683
        %v3194 = vunpack.c.l.b16 %v684
        %v3195 = vunpack.c.h.b16 %v684
        %v3196 = vunpack.c.l.b16 %v685
        %v3197 = vunpack.c.h.b16 %v685
        %v3198 = vunpack.c.l.b16 %v686
        %v3199 = vunpack.c.h.b16 %v686
        %v3200 = vunpack.c.l.b16 %v687
        %v3201 = vunpack.c.h.b16 %v687
        %v3202 = vunpack.c.l.b16 %v688
        %v3203 = vunpack.c.h.b16 %v688
        %v3204 = vunpack.c.l.b16 %v689
        %v3205 = vunpack.c.h.b16 %v689
        %v3206 = vunpack.c.l.b16 %v690
        %v3207 = vunpack.c.h.b16 %v690
        %v3208 = vunpack.c.l.b16 %v691
        %v3209 = vunpack.c.h.b16 %v691
        %v3210 = vunpack.c.l.b16 %v692
        %v3211 = vunpack.c.h.b16 %v692
        %v3212 = vunpack.c.l.b16 %v693
        %v3213 = vunpack.c.h.b16 %v693
        %v3214 = vunpack.c.l.b16 %v694
        %v3215 = vunpack.c.h.b16 %v694
        %v3216 = vunpack.c.l.b16 %v695
        %v3217 = vunpack.c.h.b16 %v695
        %v3218 = vunpack.c.l.b16 %v696
        %v3219 = vunpack.c.h.b16 %v696
        %v3220 = vunpack.c.l.b16 %v697
        %v3221 = vunpack.c.h.b16 %v697
        %v3222 = vunpack.c.l.b16 %v698
        %v3223 = vunpack.c.h.b16 %v698
        %v3224 = vunpack.c.l.b16 %v699
        %v3225 = vunpack.c.h.b16 %v699
        %v3226 = vunpack.c.l.b16 %v700
        %v3227 = vunpack.c.h.b16 %v700
        %v3228 = vunpack.c.l.b16 %v701
        %v3229 = vunpack.c.h.b16 %v701
        %v3230 = vunpack.c.l.b16 %v702
        %v3231 = vunpack.c.h.b16 %v702
        %v3232 = vunpack.c.l.b16 %v703
        %v3233 = vunpack.c.h.b16 %v703
        %v3234 = vunpack.c.l.b16 %v704
        %v3235 = vunpack.c.h.b16 %v704
        %v3236 = vunpack.c.l.b16 %v705
        %v3237 = vunpack.c.h.b16 %v705
        %v3238 = vunpack.c.l.b16 %v706
        %v3239 = vunpack.c.h.b16 %v706
        %v3240 = vunpack.c.l.b16 %v707
        %v3241 = vunpack.c.h.b16 %v707
        %v3242 = vunpack.c.l.b16 %v708
        %v3243 = vunpack.c.h.b16 %v708
        %v3244 = vunpack.c.l.b16 %v709
        %v3245 = vunpack.c.h.b16 %v709
        %v3246 = vunpack.c.l.b16 %v710
        %v3247 = vunpack.c.h.b16 %v710
        %v3248 = vunpack.c.l.b16 %v711
        %v3249 = vunpack.c.h.b16 %v711
        %v3250 = vunpack.c.l.b16 %v712
        %v3251 = vunpack.c.h.b16 %v712
        %v3252 = vunpack.c.l.b16 %v713
        %v3253 = vunpack.c.h.b16 %v713
        %v3254 = vunpack.c.l.b16 %v714
        %v3255 = vunpack.c.h.b16 %v714
        %v3256 = vunpack.c.l.b16 %v715
        %v3257 = vunpack.c.h.b16 %v715
        %v3258 = vunpack.c.l.b16 %v716
        %v3259 = vunpack.c.h.b16 %v716
        %v3260 = vunpack.c.l.b16 %v717
        %v3261 = vunpack.c.h.b16 %v717
        %v3262 = vunpack.c.l.b16 %v718
        %v3263 = vunpack.c.h.b16 %v718
        %v3264 = vunpack.c.l.b16 %v719
        %v3265 = vunpack.c.h.b16 %v719
        %v3266 = vunpack.c.l.b16 %v720
        %v3267 = vunpack.c.h.b16 %v720
        %v3268 = vunpack.c.l.b16 %v721
        %v3269 = vunpack.c.h.b16 %v721
        %v3270 = vunpack.c.l.b16 %v722
        %v3271 = vunpack.c.h.b16 %v722
        %v3272 = vunpack.c.l.b16 %v723
        %v3273 = vunpack.c.h.b16 %v723
        %v3274 = vunpack.c.l.b16 %v724
        %v3275 = vunpack.c.h.b16 %v724
        %v3276 = vunpack.c.l.b16 %v725
        %v3277 = vunpack.c.h.b16 %v725
        %v3278 = vunpack.c.l.b16 %v726
        %v3279 = vunpack.c.h.b16 %v726
        %v3280 = vunpack.c.l.b16 %v727
        %v3281 = vunpack.c.h.b16 %v727
        %v3282 = vunpack.c.l.b16 %v728
        %v3283 = vunpack.c.h.b16 %v728
        %v3284 = vunpack.c.l.b16 %v729
        %v3285 = vunpack.c.h.b16 %v729
        %v3286 = vunpack.c.l.b16 %v730
        %v3287 = vunpack.c.h.b16 %v730
        %v3288 = vunpack.c.l.b16 %v731
        %v3289 = vunpack.c.h.b16 %v731
        %v3290 = vunpack.c.l.b16 %v732
        %v3291 = vunpack.c.h.b16 %v732
        %v3292 = vunpack.c.l.b16 %v733
        %v3293 = vunpack.c.h.b16 %v733
        %v3294 = vunpack.c.l.b16 %v734
        %v3295 = vunpack.c.h.b16 %v734
        %v3296 = vunpack.c.l.b16 %v735
        %v3297 = vunpack.c.h.b16 %v735
        %v3298 = vunpack.c.l.b16 %v736
        %v3299 = vunpack.c.h.b16 %v736
        %v3300 = vunpack.c.l.b16 %v737
        %v3301 = vunpack.c.h.b16 %v737
        %v3302 = vunpack.c.l.b16 %v738
        %v3303 = vunpack.c.h.b16 %v738
        %v3304 = vunpack.c.l.b16 %v739
        %v3305 = vunpack.c.h.b16 %v739
        %v3306 = vunpack.c.l.b16 %v740
        %v3307 = vunpack.c.h.b16 %v740
        %v3308 = vunpack.c.l.b16 %v741
        %v3309 = vunpack.c.h.b16 %v741
        %v3310 = vunpack.c.l.b16 %v742
        %v3311 = vunpack.c.h.b16 %v742
        %v3312 = vunpack.c.l.b16 %v743
        %v3313 = vunpack.c.h.b16 %v743
        %v3314 = vunpack.c.l.b16 %v744
        %v3315 = vunpack.c.h.b16 %v744
        %v3316 = vunpack.c.l.b16 %v745
        %v3317 = vunpack.c.h.b16 %v745
        %v3318 = vunpack.c.l.b16 %v746
        %v3319 = vunpack.c.h.b16 %v746
        %v3320 = vunpack.c.l.b16 %v747
        %v3321 = vunpack.c.h.b16 %v747
        %v3322 = vunpack.c.l.b16 %v748
        %v3323 = vunpack.c.h.b16 %v748
        %v3324 = vunpack.c.l.b16 %v749
        %v3325 = vunpack.c.h.b16 %v749
        %v3326 = vunpack.c.l.b16 %v750
        %v3327 = vunpack.c.h.b16 %v750
        %v3328 = vunpack.c.l.b16 %v751
        %v3329 = vunpack.c.h.b16 %v751
        %v3330 = vunpack.c.l.b16 %v752
        %v3331 = vunpack.c.h.b16 %v752
        %v3332 = vunpack.c.l.b16 %v753
        %v3333 = vunpack.c.h.b16 %v753
        %v3334 = vunpack.c.l.b16 %v754
        %v3335 = vunpack.c.h.b16 %v754
        %v3336 = vunpack.c.l.b16 %v755
        %v3337 = vunpack.c.h.b16 %v755
        %v3338 = vunpack.c.l.b16 %v756
        %v3339 = vunpack.c.h.b16 %v756
        %v3340 = vunpack.c.l.b16 %v757
        %v3341 = vunpack.c.h.b16 %v757
        %v3342 = vunpack.c.l.b16 %v758
        %v3343 = vunpack.c.h.b16 %v758
        %v3344 = vunpack.c.l.b16 %v759
        %v3345 = vunpack.c.h.b16 %v759
        %v3346 = vunpack.c.l.b16 %v760
        %v3347 = vunpack.c.h.b16 %v760
        %v3348 = vunpack.c.l.b16 %v761
        %v3349 = vunpack.c.h.b16 %v761
        %v3350 = vunpack.c.l.b16 %v762
        %v3351 = vunpack.c.h.b16 %v762
        %v3352 = vunpack.c.l.b16 %v763
        %v3353 = vunpack.c.h.b16 %v763
        %v3354 = vunpack.c.l.b16 %v764
        %v3355 = vunpack.c.h.b16 %v764
        %v3356 = vunpack.c.l.b16 %v765
        %v3357 = vunpack.c.h.b16 %v765
        %v3358 = vunpack.c.l.b16 %v766
        %v3359 = vunpack.c.h.b16 %v766
        %v3360 = vunpack.c.l.b16 %v767
        %v3361 = vunpack.c.h.b16 %v767
        %v3362 = vunpack.c.l.b16 %v768
        %v3363 = vunpack.c.h.b16 %v768
        %v3364 = vunpack.c.l.b16 %v769
        %v3365 = vunpack.c.h.b16 %v769
        %v3366 = vunpack.c.l.b16 %v770
        %v3367 = vunpack.c.h.b16 %v770
        %v3368 = vunpack.c.l.b16 %v771
        %v3369 = vunpack.c.h.b16 %v771
        %v3370 = vunpack.c.l.b16 %v772
        %v3371 = vunpack.c.h.b16 %v772
        %v3372 = vunpack.c.l.b16 %v773
        %v3373 = vunpack.c.h.b16 %v773
        %v3374 = vunpack.c.l.b16 %v774
        %v3375 = vunpack.c.h.b16 %v774
        %v3376 = vunpack.c.l.b16 %v775
        %v3377 = vunpack.c.h.b16 %v775
        %v3378 = vunpack.c.l.b16 %v776
        %v3379 = vunpack.c.h.b16 %v776
        %v3380 = vunpack.c.l.b16 %v777
        %v3381 = vunpack.c.h.b16 %v777
        %v3382 = vunpack.c.l.b16 %v778
        %v3383 = vunpack.c.h.b16 %v778
        %v3384 = vunpack.c.l.b16 %v779
        %v3385 = vunpack.c.h.b16 %v779
        %v3386 = vunpack.c.l.b16 %v780
        %v3387 = vunpack.c.h.b16 %v780
        %v3388 = vunpack.c.l.b16 %v781
        %v3389 = vunpack.c.h.b16 %v781
        %v3390 = vunpack.c.l.b16 %v782
        %v3391 = vunpack.c.h.b16 %v782
        %v3392 = vunpack.c.l.b16 %v783
        %v3393 = vunpack.c.h.b16 %v783
        %v3394 = vunpack.c.l.b16 %v784
        %v3395 = vunpack.c.h.b16 %v784
        %v3396 = vunpack.c.l.b16 %v785
        %v3397 = vunpack.c.h.b16 %v785
        %v3398 = vunpack.c.l.b16 %v786
        %v3399 = vunpack.c.h.b16 %v786
        %v3400 = vunpack.c.l.b16 %v787
        %v3401 = vunpack.c.h.b16 %v787
        %v3402 = vunpack.c.l.b16 %v788
        %v3403 = vunpack.c.h.b16 %v788
        %v3404 = vunpack.c.l.b16 %v789
        %v3405 = vunpack.c.h.b16 %v789
        %v3406 = vunpack.c.l.b16 %v790
        %v3407 = vunpack.c.h.b16 %v790
        %v3408 = vunpack.c.l.b16 %v791
        %v3409 = vunpack.c.h.b16 %v791
        %v3410 = vunpack.c.l.b16 %v792
        %v3411 = vunpack.c.h.b16 %v792
        %v3412 = vunpack.c.l.b16 %v793
        %v3413 = vunpack.c.h.b16 %v793
        %v3414 = vunpack.c.l.b16 %v794
        %v3415 = vunpack.c.h.b16 %v794
        %v3416 = vunpack.c.l.b16 %v795
        %v3417 = vunpack.c.h.b16 %v795
        %v3418 = vunpack.c.l.b16 %v796
        %v3419 = vunpack.c.h.b16 %v796
        %v3420 = vunpack.c.l.b16 %v797
        %v3421 = vunpack.c.h.b16 %v797
        %v3422 = vunpack.c.l.b16 %v798
        %v3423 = vunpack.c.h.b16 %v798
        %v3424 = vunpack.c.l.b16 %v799
        %v3425 = vunpack.c.h.b16 %v799
        %v3426 = vunpack.c.l.b16 %v800
        %v3427 = vunpack.c.h.b16 %v800
        %v3428 = vunpack.c.l.b16 %v801
        %v3429 = vunpack.c.h.b16 %v801
        %v3430 = vunpack.c.l.b16 %v802
        %v3431 = vunpack.c.h.b16 %v802
        %v3432 = vunpack.c.l.b16 %v803
        %v3433 = vunpack.c.h.b16 %v803
        %v3434 = vunpack.c.l.b16 %v804
        %v3435 = vunpack.c.h.b16 %v804
        %v3436 = vunpack.c.l.b16 %v805
        %v3437 = vunpack.c.h.b16 %v805
        %v3438 = vunpack.c.l.b16 %v806
        %v3439 = vunpack.c.h.b16 %v806
        %v3440 = vunpack.c.l.b16 %v807
        %v3441 = vunpack.c.h.b16 %v807
        %v3442 = vunpack.c.l.b16 %v808
        %v3443 = vunpack.c.h.b16 %v808
        %v3444 = vunpack.c.l.b16 %v809
        %v3445 = vunpack.c.h.b16 %v809
        %v3446 = vunpack.c.l.b16 %v810
        %v3447 = vunpack.c.h.b16 %v810
        %v3448 = vunpack.c.l.b16 %v811
        %v3449 = vunpack.c.h.b16 %v811
        %v3450 = vunpack.c.l.b16 %v812
        %v3451 = vunpack.c.h.b16 %v812
        %v3452 = vunpack.c.l.b16 %v813
        %v3453 = vunpack.c.h.b16 %v813
        %v3454 = vunpack.c.l.b16 %v814
        %v3455 = vunpack.c.h.b16 %v814
        %v3456 = vunpack.c.l.b16 %v815
        %v3457 = vunpack.c.h.b16 %v815
        %v3458 = vunpack.c.l.b16 %v816
        %v3459 = vunpack.c.h.b16 %v816
        %v3460 = vunpack.c.l.b16 %v817
        %v3461 = vunpack.c.h.b16 %v817
        %v3462 = vunpack.c.l.b16 %v818
        %v3463 = vunpack.c.h.b16 %v818
        %v3464 = vunpack.c.l.b16 %v819
        %v3465 = vunpack.c.h.b16 %v819
        %v3466 = vunpack.c.l.b16 %v820
        %v3467 = vunpack.c.h.b16 %v820
        %v3468 = vunpack.c.l.b16 %v821
        %v3469 = vunpack.c.h.b16 %v821
        %v3470 = vunpack.c.l.b16 %v822
        %v3471 = vunpack.c.h.b16 %v822
        %v3472 = vunpack.c.l.b16 %v823
        %v3473 = vunpack.c.h.b16 %v823
        %v3474 = vunpack.c.l.b16 %v824
        %v3475 = vunpack.c.h.b16 %v824
        %v3476 = vunpack.c.l.b16 %v825
        %v3477 = vunpack.c.h.b16 %v825
        %v3478 = vunpack.c.l.b16 %v826
        %v3479 = vunpack.c.h.b16 %v826
        %v3480 = vunpack.c.l.b16 %v827
        %v3481 = vunpack.c.h.b16 %v827
        %v3482 = vunpack.c.l.b16 %v828
        %v3483 = vunpack.c.h.b16 %v828
        %v3484 = vunpack.c.l.b16 %v829
        %v3485 = vunpack.c.h.b16 %v829
        %v3486 = vunpack.c.l.b16 %v830
        %v3487 = vunpack.c.h.b16 %v830
        %v3488 = vunpack.c.l.b16 %v831
        %v3489 = vunpack.c.h.b16 %v831
        %v3490 = vunpack.c.l.b16 %v832
        %v3491 = vunpack.c.h.b16 %v832
        %v3492 = vunpack.c.l.b16 %v833
        %v3493 = vunpack.c.h.b16 %v833
        %v3494 = vunpack.c.l.b16 %v834
        %v3495 = vunpack.c.h.b16 %v834
        %v3496 = vunpack.c.l.b16 %v835
        %v3497 = vunpack.c.h.b16 %v835
        %v3498 = vunpack.c.l.b16 %v836
        %v3499 = vunpack.c.h.b16 %v836
        %v3500 = vunpack.c.l.b16 %v837
        %v3501 = vunpack.c.h.b16 %v837
        %v3502 = vunpack.c.l.b16 %v838
        %v3503 = vunpack.c.h.b16 %v838
        %v3504 = vunpack.c.l.b16 %v839
        %v3505 = vunpack.c.h.b16 %v839
        %v3506 = vunpack.c.l.b16 %v840
        %v3507 = vunpack.c.h.b16 %v840
        %v3508 = vunpack.c.l.b16 %v841
        %v3509 = vunpack.c.h.b16 %v841
        %v3510 = vunpack.c.l.b16 %v842
        %v3511 = vunpack.c.h.b16 %v842
        %v3512 = vunpack.c.l.b16 %v843
        %v3513 = vunpack.c.h.b16 %v843
        %v3514 = vunpack.c.l.b16 %v844
        %v3515 = vunpack.c.h.b16 %v844
        %v3516 = vunpack.c.l.b16 %v845
        %v3517 = vunpack.c.h.b16 %v845
        %v3518 = vunpack.c.l.b16 %v846
        %v3519 = vunpack.c.h.b16 %v846
        %v3520 = vunpack.c.l.b16 %v847
        %v3521 = vunpack.c.h.b16 %v847
        %v3522 = vunpack.c.l.b16 %v848
        %v3523 = vunpack.c.h.b16 %v848
        %v3524 = vunpack.c.l.b16 %v849
        %v3525 = vunpack.c.h.b16 %v849
        %v3526 = vunpack.c.l.b16 %v850
        %v3527 = vunpack.c.h.b16 %v850
        %v3528 = vunpack.c.l.b16 %v851
        %v3529 = vunpack.c.h.b16 %v851
        %v3530 = vunpack.c.l.b16 %v852
        %v3531 = vunpack.c.h.b16 %v852
        %v3532 = vunpack.c.l.b16 %v853
        %v3533 = vunpack.c.h.b16 %v853
        %v3534 = vunpack.c.l.b16 %v854
        %v3535 = vunpack.c.h.b16 %v854
        %v3536 = vunpack.c.l.b16 %v855
        %v3537 = vunpack.c.h.b16 %v855
        %v3538 = vunpack.c.l.b16 %v856
        %v3539 = vunpack.c.h.b16 %v856
        %v3540 = vunpack.c.l.b16 %v857
        %v3541 = vunpack.c.h.b16 %v857
        %v3542 = vunpack.c.l.b16 %v858
        %v3543 = vunpack.c.h.b16 %v858
        %v3544 = vunpack.c.l.b16 %v859
        %v3545 = vunpack.c.h.b16 %v859
        %v3546 = vunpack.c.l.b16 %v860
        %v3547 = vunpack.c.h.b16 %v860
        %v3548 = vunpack.c.l.b16 %v861
        %v3549 = vunpack.c.h.b16 %v861
        %v3550 = vunpack.c.l.b16 %v862
        %v3551 = vunpack.c.h.b16 %v862
        %v3552 = vunpack.c.l.b16 %v863
        %v3553 = vunpack.c.h.b16 %v863
        %v3554 = vunpack.c.l.b16 %v864
        %v3555 = vunpack.c.h.b16 %v864
        %v3556 = vunpack.c.l.b16 %v865
        %v3557 = vunpack.c.h.b16 %v865
        %v3558 = vunpack.c.l.b16 %v866
        %v3559 = vunpack.c.h.b16 %v866
        %v3560 = vunpack.c.l.b16 %v867
        %v3561 = vunpack.c.h.b16 %v867
        %v3562 = vunpack.c.l.b16 %v868
        %v3563 = vunpack.c.h.b16 %v868
        %v3564 = vunpack.c.l.b16 %v869
        %v3565 = vunpack.c.h.b16 %v869
        %v3566 = vunpack.c.l.b16 %v870
        %v3567 = vunpack.c.h.b16 %v870
        %v3568 = vunpack.c.l.b16 %v871
        %v3569 = vunpack.c.h.b16 %v871
        %v3570 = vunpack.c.l.b16 %v872
        %v3571 = vunpack.c.h.b16 %v872
        %v3572 = vunpack.c.l.b16 %v873
        %v3573 = vunpack.c.h.b16 %v873
        %v3574 = vunpack.c.l.b16 %v874
        %v3575 = vunpack.c.h.b16 %v874
        %v3576 = vunpack.c.l.b16 %v875
        %v3577 = vunpack.c.h.b16 %v875
        %v3578 = vunpack.c.l.b16 %v876
        %v3579 = vunpack.c.h.b16 %v876
        %v3580 = vunpack.c.l.b16 %v877
        %v3581 = vunpack.c.h.b16 %v877
        %v3582 = vunpack.c.l.b16 %v878
        %v3583 = vunpack.c.h.b16 %v878
        %v3584 = vunpack.c.l.b16 %v879
        %v3585 = vunpack.c.h.b16 %v879
        %v3586 = vunpack.c.l.b16 %v880
        %v3587 = vunpack.c.h.b16 %v880
        %v3588 = vunpack.c.l.b16 %v881
        %v3589 = vunpack.c.h.b16 %v881
        %v3590 = vunpack.c.l.b16 %v882
        %v3591 = vunpack.c.h.b16 %v882
        %v3592 = vunpack.c.l.b16 %v883
        %v3593 = vunpack.c.h.b16 %v883
        %v3594 = vunpack.c.l.b16 %v884
        %v3595 = vunpack.c.h.b16 %v884
        %v3596 = vunpack.c.l.b16 %v885
        %v3597 = vunpack.c.h.b16 %v885
        %v3598 = vunpack.c.l.b16 %v886
        %v3599 = vunpack.c.h.b16 %v886
        %v3600 = vunpack.c.l.b16 %v887
        %v3601 = vunpack.c.h.b16 %v887
        %v3602 = vunpack.c.l.b16 %v888
        %v3603 = vunpack.c.h.b16 %v888
        %v3604 = vunpack.c.l.b16 %v889
        %v3605 = vunpack.c.h.b16 %v889
        %v3606 = vunpack.c.l.b16 %v890
        %v3607 = vunpack.c.h.b16 %v890
        %v3608 = vunpack.c.l.b16 %v891
        %v3609 = vunpack.c.h.b16 %v891
        %v3610 = vunpack.c.l.b16 %v892
        %v3611 = vunpack.c.h.b16 %v892
        %v3612 = vunpack.c.l.b16 %v893
        %v3613 = vunpack.c.h.b16 %v893
        %v3614 = vunpack.c.l.b16 %v894
        %v3615 = vunpack.c.h.b16 %v894
        %v3616 = vunpack.c.l.b16 %v895
        %v3617 = vunpack.c.h.b16 %v895
        %v3618 = vunpack.c.l.b16 %v896
        %v3619 = vunpack.c.h.b16 %v896
        %v3620 = vunpack.c.l.b16 %v897
        %v3621 = vunpack.c.h.b16 %v897
        %v3622 = vunpack.c.l.b16 %v898
        %v3623 = vunpack.c.h.b16 %v898
        %v3624 = vunpack.c.l.b16 %v899
        %v3625 = vunpack.c.h.b16 %v899
        %v3626 = vunpack.c.l.b16 %v900
        %v3627 = vunpack.c.h.b16 %v900
        %v3628 = vunpack.c.l.b16 %v901
        %v3629 = vunpack.c.h.b16 %v901
        %v3630 = vunpack.c.l.b16 %v902
        %v3631 = vunpack.c.h.b16 %v902
        %v3632 = vunpack.c.l.b16 %v903
        %v3633 = vunpack.c.h.b16 %v903
        %v3634 = vunpack.c.l.b16 %v904
        %v3635 = vunpack.c.h.b16 %v904
        %v3636 = vunpack.c.l.b16 %v905
        %v3637 = vunpack.c.h.b16 %v905
        %v3638 = vunpack.c.l.b16 %v906
        %v3639 = vunpack.c.h.b16 %v906
        %v3640 = vunpack.c.l.b16 %v907
        %v3641 = vunpack.c.h.b16 %v907
        %v3642 = vunpack.c.l.b16 %v908
        %v3643 = vunpack.c.h.b16 %v908
        %v3644 = vunpack.c.l.b16 %v909
        %v3645 = vunpack.c.h.b16 %v909
        %v3646 = vunpack.c.l.b16 %v910
        %v3647 = vunpack.c.h.b16 %v910
        %v3648 = vunpack.c.l.b16 %v911
        %v3649 = vunpack.c.h.b16 %v911
        %v3650 = vunpack.c.l.b16 %v912
        %v3651 = vunpack.c.h.b16 %v912
        %v3652 = vunpack.c.l.b16 %v913
        %v3653 = vunpack.c.h.b16 %v913
        %v3654 = vunpack.c.l.b16 %v914
        %v3655 = vunpack.c.h.b16 %v914
        %v3656 = vunpack.c.l.b16 %v915
        %v3657 = vunpack.c.h.b16 %v915
        %v3658 = vunpack.c.l.b16 %v916
        %v3659 = vunpack.c.h.b16 %v916
        %v3660 = vunpack.c.l.b16 %v917
        %v3661 = vunpack.c.h.b16 %v917
        %v3662 = vunpack.c.l.b16 %v918
        %v3663 = vunpack.c.h.b16 %v918
        %v3664 = vunpack.c.l.b16 %v919
        %v3665 = vunpack.c.h.b16 %v919
        %v3666 = vunpack.c.l.b16 %v920
        %v3667 = vunpack.c.h.b16 %v920
        %v3668 = vunpack.c.l.b16 %v921
        %v3669 = vunpack.c.h.b16 %v921
        %v3670 = vunpack.c.l.b16 %v922
        %v3671 = vunpack.c.h.b16 %v922
        %v3672 = vunpack.c.l.b16 %v923
        %v3673 = vunpack.c.h.b16 %v923
        %v3674 = vunpack.c.l.b16 %v924
        %v3675 = vunpack.c.h.b16 %v924
        %v3676 = vunpack.c.l.b16 %v925
        %v3677 = vunpack.c.h.b16 %v925
        %v3678 = vunpack.c.l.b16 %v926
        %v3679 = vunpack.c.h.b16 %v926
        %v3680 = vunpack.c.l.b16 %v927
        %v3681 = vunpack.c.h.b16 %v927
        %v3682 = vunpack.c.l.b16 %v928
        %v3683 = vunpack.c.h.b16 %v928
        %v3684 = vunpack.c.l.b16 %v929
        %v3685 = vunpack.c.h.b16 %v929
        %v3686 = vunpack.c.l.b16 %v930
        %v3687 = vunpack.c.h.b16 %v930
        %v3688 = vunpack.c.l.b16 %v931
        %v3689 = vunpack.c.h.b16 %v931
        %v3690 = vunpack.c.l.b16 %v932
        %v3691 = vunpack.c.h.b16 %v932
        %v3692 = vunpack.c.l.b16 %v933
        %v3693 = vunpack.c.h.b16 %v933
        %v3694 = vunpack.c.l.b16 %v934
        %v3695 = vunpack.c.h.b16 %v934
        %v3696 = vunpack.c.l.b16 %v935
        %v3697 = vunpack.c.h.b16 %v935
        %v3698 = vunpack.c.l.b16 %v936
        %v3699 = vunpack.c.h.b16 %v936
        %v3700 = vunpack.c.l.b16 %v937
        %v3701 = vunpack.c.h.b16 %v937
        %v3702 = vunpack.c.l.b16 %v938
        %v3703 = vunpack.c.h.b16 %v938
        %v3704 = vunpack.c.l.b16 %v939
        %v3705 = vunpack.c.h.b16 %v939
        %v3706 = vunpack.c.l.b16 %v940
        %v3707 = vunpack.c.h.b16 %v940
        %v3708 = vunpack.c.l.b16 %v941
        %v3709 = vunpack.c.h.b16 %v941
        %v3710 = vunpack.c.l.b16 %v942
        %v3711 = vunpack.c.h.b16 %v942
        %v3712 = vunpack.c.l.b16 %v943
        %v3713 = vunpack.c.h.b16 %v943
        %v3714 = vunpack.c.l.b16 %v944
        %v3715 = vunpack.c.h.b16 %v944
        %v3716 = vunpack.c.l.b16 %v945
        %v3717 = vunpack.c.h.b16 %v945
        %v3718 = vunpack.c.l.b16 %v946
        %v3719 = vunpack.c.h.b16 %v946
        %v3720 = vunpack.c.l.b16 %v947
        %v3721 = vunpack.c.h.b16 %v947
        %v3722 = vunpack.c.l.b16 %v948
        %v3723 = vunpack.c.h.b16 %v948
        %v3724 = vunpack.c.l.b16 %v949
        %v3725 = vunpack.c.h.b16 %v949
        %v3726 = vunpack.c.l.b16 %v950
        %v3727 = vunpack.c.h.b16 %v950
        %v3728 = vunpack.c.l.b16 %v951
        %v3729 = vunpack.c.h.b16 %v951
        %v3730 = vunpack.c.l.b16 %v952
        %v3731 = vunpack.c.h.b16 %v952
        %v3732 = vunpack.c.l.b16 %v953
        %v3733 = vunpack.c.h.b16 %v953
        %v3734 = vunpack.c.l.b16 %v954
        %v3735 = vunpack.c.h.b16 %v954
        %v3736 = vunpack.c.l.b16 %v955
        %v3737 = vunpack.c.h.b16 %v955
        %v3738 = vunpack.c.l.b16 %v956
        %v3739 = vunpack.c.h.b16 %v956
        %v3740 = vunpack.c.l.b16 %v957
        %v3741 = vunpack.c.h.b16 %v957
        %v3742 = vunpack.c.l.b16 %v958
        %v3743 = vunpack.c.h.b16 %v958
        %v3744 = vunpack.c.l.b16 %v959
        %v3745 = vunpack.c.h.b16 %v959
        %v3746 = vunpack.c.l.b16 %v960
        %v3747 = vunpack.c.h.b16 %v960
        %v3748 = vunpack.c.l.b16 %v961
        %v3749 = vunpack.c.h.b16 %v961
        %v3750 = vunpack.c.l.b16 %v962
        %v3751 = vunpack.c.h.b16 %v962
        %v3752 = vunpack.c.l.b16 %v963
        %v3753 = vunpack.c.h.b16 %v963
        %v3754 = vunpack.c.l.b16 %v964
        %v3755 = vunpack.c.h.b16 %v964
        %v3756 = vunpack.c.l.b16 %v965
        %v3757 = vunpack.c.h.b16 %v965
        %v3758 = vunpack.c.l.b16 %v966
        %v3759 = vunpack.c.h.b16 %v966
        %v3760 = vunpack.c.l.b16 %v967
        %v3761 = vunpack.c.h.b16 %v967
        %v3762 = vunpack.c.l.b16 %v968
        %v3763 = vunpack.c.h.b16 %v968
        %v3764 = vunpack.c.l.b16 %v969
        %v3765 = vunpack.c.h.b16 %v969
        %v3766 = vunpack.c.l.b16 %v970
        %v3767 = vunpack.c.h.b16 %v970
        %v3768 = vunpack.c.l.b16 %v971
        %v3769 = vunpack.c.h.b16 %v971
        %v3770 = vunpack.c.l.b16 %v972
        %v3771 = vunpack.c.h.b16 %v972
        %v3772 = vunpack.c.l.b16 %v973
        %v3773 = vunpack.c.h.b16 %v973
        %v3774 = vunpack.c.l.b16 %v974
        %v3775 = vunpack.c.h.b16 %v974
        %v3776 = vunpack.c.l.b16 %v975
        %v3777 = vunpack.c.h.b16 %v975
        %v3778 = vunpack.c.l.b16 %v976
        %v3779 = vunpack.c.h.b16 %v976
        %v3780 = vunpack.c.l.b16 %v977
        %v3781 = vunpack.c.h.b16 %v977
        %v3782 = vunpack.c.l.b16 %v978
        %v3783 = vunpack.c.h.b16 %v978
        %v3784 = vunpack.c.l.b16 %v979
        %v3785 = vunpack.c.h.b16 %v979
        %v3786 = vunpack.c.l.b16 %v980
        %v3787 = vunpack.c.h.b16 %v980
        %v3788 = vunpack.c.l.b16 %v981
        %v3789 = vunpack.c.h.b16 %v981
        %v3790 = vunpack.c.l.b16 %v982
        %v3791 = vunpack.c.h.b16 %v982
        %v3792 = vunpack.c.l.b16 %v983
        %v3793 = vunpack.c.h.b16 %v983
        %v3794 = vunpack.c.l.b16 %v984
        %v3795 = vunpack.c.h.b16 %v984
        %v3796 = vunpack.c.l.b16 %v985
        %v3797 = vunpack.c.h.b16 %v985
        %v3798 = vunpack.c.l.b16 %v986
        %v3799 = vunpack.c.h.b16 %v986
        %v3800 = vunpack.c.l.b16 %v987
        %v3801 = vunpack.c.h.b16 %v987
        %v3802 = vunpack.c.l.b16 %v988
        %v3803 = vunpack.c.h.b16 %v988
        %v3804 = vunpack.c.l.b16 %v989
        %v3805 = vunpack.c.h.b16 %v989
        %v3806 = vunpack.c.l.b16 %v990
        %v3807 = vunpack.c.h.b16 %v990
        %v3808 = vunpack.c.l.b16 %v991
        %v3809 = vunpack.c.h.b16 %v991
        %v3810 = vunpack.c.l.b16 %v992
        %v3811 = vunpack.c.h.b16 %v992
        %v3812 = vunpack.c.l.b16 %v993
        %v3813 = vunpack.c.h.b16 %v993
        %v3814 = vunpack.c.l.b16 %v994
        %v3815 = vunpack.c.h.b16 %v994
        %v3816 = vunpack.c.l.b16 %v995
        %v3817 = vunpack.c.h.b16 %v995
        %v3818 = vunpack.c.l.b16 %v996
        %v3819 = vunpack.c.h.b16 %v996
        %v3820 = vunpack.c.l.b16 %v997
        %v3821 = vunpack.c.h.b16 %v997
        %v3822 = vunpack.c.l.b16 %v998
        %v3823 = vunpack.c.h.b16 %v998
        %v3824 = vunpack.c.l.b16 %v999
        %v3825 = vunpack.c.h.b16 %v999
        %v3826 = vunpack.c.l.b16 %v1000
        %v3827 = vunpack.c.h.b16 %v1000
        %v3828 = vunpack.c.l.b16 %v1001
        %v3829 = vunpack.c.h.b16 %v1001
        %v3830 = vunpack.c.l.b16 %v1002
        %v3831 = vunpack.c.h.b16 %v1002
        %v3832 = vunpack.c.l.b16 %v1003
        %v3833 = vunpack.c.h.b16 %v1003
        %v3834 = vunpack.c.l.b16 %v1004
        %v3835 = vunpack.c.h.b16 %v1004
        %v3836 = vunpack.c.l.b16 %v1005
        %v3837 = vunpack.c.h.b16 %v1005
        %v3838 = vunpack.c.l.b16 %v1006
        %v3839 = vunpack.c.h.b16 %v1006
        %v3840 = vunpack.c.l.b16 %v1007
        %v3841 = vunpack.c.h.b16 %v1007
        %v3842 = vunpack.c.l.b16 %v1008
        %v3843 = vunpack.c.h.b16 %v1008
        %v3844 = vunpack.c.l.b16 %v1009
        %v3845 = vunpack.c.h.b16 %v1009
        %v3846 = vunpack.c.l.b16 %v1010
        %v3847 = vunpack.c.h.b16 %v1010
        %v3848 = vunpack.c.l.b16 %v1011
        %v3849 = vunpack.c.h.b16 %v1011
        %v3850 = vunpack.c.l.b16 %v1012
        %v3851 = vunpack.c.h.b16 %v1012
        %v3852 = vunpack.c.l.b16 %v1013
        %v3853 = vunpack.c.h.b16 %v1013
        %v3854 = vunpack.c.l.b16 %v1014
        %v3855 = vunpack.c.h.b16 %v1014
        %v3856 = vunpack.c.l.b16 %v1015
        %v3857 = vunpack.c.h.b16 %v1015
        %v3858 = vunpack.c.l.b16 %v1016
        %v3859 = vunpack.c.h.b16 %v1016
        %v3860 = vunpack.c.l.b16 %v1017
        %v3861 = vunpack.c.h.b16 %v1017
        %v3862 = vunpack.c.l.b16 %v1018
        %v3863 = vunpack.c.h.b16 %v1018
        %v3864 = vunpack.c.l.b16 %v1019
        %v3865 = vunpack.c.h.b16 %v1019
        %v3866 = vunpack.c.l.b16 %v1020
        %v3867 = vunpack.c.h.b16 %v1020
        %v3868 = vunpack.c.l.b16 %v1021
        %v3869 = vunpack.c.h.b16 %v1021
        %v3870 = vunpack.c.l.b16 %v1022
        %v3871 = vunpack.c.h.b16 %v1022
        %v3872 = vunpack.c.l.b16 %v1023
        %v3873 = vunpack.c.h.b16 %v1023
        %v3874 = vunpack.c.l.b16 %v1024
        %v3875 = vunpack.c.h.b16 %v1024
        %v3876 = vunpack.c.l.b16 %v1025
        %v3877 = vunpack.c.h.b16 %v1025
        %v3878 = vunpack.c.l.b16 %v1026
        %v3879 = vunpack.c.h.b16 %v1026
        %v3880 = vunpack.c.l.b16 %v1027
        %v3881 = vunpack.c.h.b16 %v1027
        %v3882 = vunpack.c.l.b16 %v1028
        %v3883 = vunpack.c.h.b16 %v1028
        %v3884 = vunpack.c.l.b16 %v1029
        %v3885 = vunpack.c.h.b16 %v1029
        %v3886 = vunpack.c.l.b16 %v1030
        %v3887 = vunpack.c.h.b16 %v1030
        %v3888 = vunpack.c.l.b16 %v1031
        %v3889 = vunpack.c.h.b16 %v1031
        %v3890 = vunpack.c.l.b16 %v1032
        %v3891 = vunpack.c.h.b16 %v1032
        %v3892 = vunpack.c.l.b16 %v1033
        %v3893 = vunpack.c.h.b16 %v1033
        %v3894 = vunpack.c.l.b16 %v1034
        %v3895 = vunpack.c.h.b16 %v1034
        %v3896 = vunpack.c.l.b16 %v1035
        %v3897 = vunpack.c.h.b16 %v1035
        %v3898 = vunpack.c.l.b16 %v1036
        %v3899 = vunpack.c.h.b16 %v1036
        %v3900 = vunpack.c.l.b16 %v1037
        %v3901 = vunpack.c.h.b16 %v1037
        %v3902 = vunpack.c.l.b16 %v1038
        %v3903 = vunpack.c.h.b16 %v1038
        %v3904 = vunpack.c.l.b16 %v1039
        %v3905 = vunpack.c.h.b16 %v1039
        %v3906 = vunpack.c.l.b16 %v1040
        %v3907 = vunpack.c.h.b16 %v1040
        %v3908 = vunpack.c.l.b16 %v1041
        %v3909 = vunpack.c.h.b16 %v1041
        %v3910 = vunpack.c.l.b16 %v1042
        %v3911 = vunpack.c.h.b16 %v1042
        %v3912 = vunpack.c.l.b16 %v1043
        %v3913 = vunpack.c.h.b16 %v1043
        %v3914 = vunpack.c.l.b16 %v1044
        %v3915 = vunpack.c.h.b16 %v1044
        %v3916 = vunpack.c.l.b16 %v1045
        %v3917 = vunpack.c.h.b16 %v1045
        %v3918 = vunpack.c.l.b16 %v1046
        %v3919 = vunpack.c.h.b16 %v1046
        %v3920 = vunpack.c.l.b16 %v1047
        %v3921 = vunpack.c.h.b16 %v1047
        %v3922 = vunpack.c.l.b16 %v1048
        %v3923 = vunpack.c.h.b16 %v1048
        %v3924 = vunpack.c.l.b16 %v1049
        %v3925 = vunpack.c.h.b16 %v1049
        %v3926 = vunpack.c.l.b16 %v1050
        %v3927 = vunpack.c.h.b16 %v1050
        %v3928 = vunpack.c.l.b16 %v1051
        %v3929 = vunpack.c.h.b16 %v1051
        %v3930 = vunpack.c.l.b16 %v1052
        %v3931 = vunpack.c.h.b16 %v1052
        %v3932 = vunpack.c.l.b16 %v1053
        %v3933 = vunpack.c.h.b16 %v1053
        %v3934 = vunpack.c.l.b16 %v1054
        %v3935 = vunpack.c.h.b16 %v1054
        %v3936 = vunpack.c.l.b16 %v1055
        %v3937 = vunpack.c.h.b16 %v1055
        %v3938 = vunpack.c.l.b16 %v1056
        %v3939 = vunpack.c.h.b16 %v1056
        %v3940 = vunpack.c.l.b16 %v1057
        %v3941 = vunpack.c.h.b16 %v1057
        %v3942 = vunpack.c.l.b16 %v1058
        %v3943 = vunpack.c.h.b16 %v1058
        %v3944 = vunpack.c.l.b16 %v1059
        %v3945 = vunpack.c.h.b16 %v1059
        %v3946 = vunpack.c.l.b16 %v1060
        %v3947 = vunpack.c.h.b16 %v1060
        %v3948 = vunpack.c.l.b16 %v1061
        %v3949 = vunpack.c.h.b16 %v1061
        %v3950 = vunpack.c.l.b16 %v1062
        %v3951 = vunpack.c.h.b16 %v1062
        %v3952 = vunpack.c.l.b16 %v1063
        %v3953 = vunpack.c.h.b16 %v1063
        %v3954 = vunpack.c.l.b16 %v1064
        %v3955 = vunpack.c.h.b16 %v1064
        %v3956 = vunpack.c.l.b16 %v1065
        %v3957 = vunpack.c.h.b16 %v1065
        %v3958 = vunpack.c.l.b16 %v1066
        %v3959 = vunpack.c.h.b16 %v1066
        %v3960 = vunpack.c.l.b16 %v1067
        %v3961 = vunpack.c.h.b16 %v1067
        %v3962 = vunpack.c.l.b16 %v1068
        %v3963 = vunpack.c.h.b16 %v1068
        %v3964 = vunpack.c.l.b16 %v1069
        %v3965 = vunpack.c.h.b16 %v1069
        %v3966 = vunpack.c.l.b16 %v1070
        %v3967 = vunpack.c.h.b16 %v1070
        %v3968 = vunpack.c.l.b16 %v1071
        %v3969 = vunpack.c.h.b16 %v1071
        %v3970 = vunpack.c.l.b16 %v1072
        %v3971 = vunpack.c.h.b16 %v1072
        %v3972 = vunpack.c.l.b16 %v1073
        %v3973 = vunpack.c.h.b16 %v1073
        %v3974 = vunpack.c.l.b16 %v1074
        %v3975 = vunpack.c.h.b16 %v1074
        %v3976 = vunpack.c.l.b16 %v1075
        %v3977 = vunpack.c.h.b16 %v1075
        %v3978 = vunpack.c.l.b16 %v1076
        %v3979 = vunpack.c.h.b16 %v1076
        %v3980 = vunpack.c.l.b16 %v1077
        %v3981 = vunpack.c.h.b16 %v1077
        %v3982 = vunpack.c.l.b16 %v1078
        %v3983 = vunpack.c.h.b16 %v1078
        %v3984 = vunpack.c.l.b16 %v1079
        %v3985 = vunpack.c.h.b16 %v1079
        %v3986 = vunpack.c.l.b16 %v1080
        %v3987 = vunpack.c.h.b16 %v1080
        %v3988 = vunpack.c.l.b16 %v1081
        %v3989 = vunpack.c.h.b16 %v1081
        %v3990 = vunpack.c.l.b16 %v1082
        %v3991 = vunpack.c.h.b16 %v1082
        %v3992 = vunpack.c.l.b16 %v1083
        %v3993 = vunpack.c.h.b16 %v1083
        %v3994 = vunpack.c.l.b16 %v1084
        %v3995 = vunpack.c.h.b16 %v1084
        %v3996 = vunpack.c.l.b16 %v1085
        %v3997 = vunpack.c.h.b16 %v1085
        %v3998 = vunpack.c.l.b16 %v1086
        %v3999 = vunpack.c.h.b16 %v1086
        %v4000 = vunpack.c.l.b16 %v1087
        %v4001 = vunpack.c.h.b16 %v1087
        %v4002 = vunpack.c.l.b16 %v1088
        %v4003 = vunpack.c.h.b16 %v1088
        %v4004 = vunpack.c.l.b16 %v1089
        %v4005 = vunpack.c.h.b16 %v1089
        %v4006 = vunpack.c.l.b16 %v1090
        %v4007 = vunpack.c.h.b16 %v1090
        %v4008 = vunpack.c.l.b16 %v1091
        %v4009 = vunpack.c.h.b16 %v1091
        %v4010 = vunpack.c.l.b16 %v1092
        %v4011 = vunpack.c.h.b16 %v1092
        %v4012 = vunpack.c.l.b16 %v1093
        %v4013 = vunpack.c.h.b16 %v1093
        %v4014 = vunpack.c.l.b16 %v1094
        %v4015 = vunpack.c.h.b16 %v1094
        %v4016 = vunpack.c.l.b16 %v1095
        %v4017 = vunpack.c.h.b16 %v1095
        %v4018 = vunpack.c.l.b16 %v1096
        %v4019 = vunpack.c.h.b16 %v1096
        %v4020 = vunpack.c.l.b16 %v1097
        %v4021 = vunpack.c.h.b16 %v1097
        %v4022 = vunpack.c.l.b16 %v1098
        %v4023 = vunpack.c.h.b16 %v1098
        %v4024 = vunpack.c.l.b16 %v1099
        %v4025 = vunpack.c.h.b16 %v1099
        %v4026 = vunpack.c.l.b16 %v1100
        %v4027 = vunpack.c.h.b16 %v1100
        %v4028 = vunpack.c.l.b16 %v1101
        %v4029 = vunpack.c.h.b16 %v1101
        %v4030 = vunpack.c.l.b16 %v1102
        %v4031 = vunpack.c.h.b16 %v1102
        %v4032 = vunpack.c.l.b16 %v1103
        %v4033 = vunpack.c.h.b16 %v1103
        %v4034 = vunpack.c.l.b16 %v1104
        %v4035 = vunpack.c.h.b16 %v1104
        %v4036 = vunpack.c.l.b16 %v1105
        %v4037 = vunpack.c.h.b16 %v1105
        %v4038 = vunpack.c.l.b16 %v1106
        %v4039 = vunpack.c.h.b16 %v1106
        %v4040 = vunpack.c.l.b16 %v1107
        %v4041 = vunpack.c.h.b16 %v1107
        %v4042 = vunpack.c.l.b16 %v1108
        %v4043 = vunpack.c.h.b16 %v1108
        %v4044 = vunpack.c.l.b16 %v1109
        %v4045 = vunpack.c.h.b16 %v1109
        %v4046 = vunpack.c.l.b16 %v1110
        %v4047 = vunpack.c.h.b16 %v1110
        %v4048 = vunpack.c.l.b16 %v1111
        %v4049 = vunpack.c.h.b16 %v1111
        %v4050 = vunpack.c.l.b16 %v1112
        %v4051 = vunpack.c.h.b16 %v1112
        %v4052 = vunpack.c.l.b16 %v1113
        %v4053 = vunpack.c.h.b16 %v1113
        %v4054 = vunpack.c.l.b16 %v1114
        %v4055 = vunpack.c.h.b16 %v1114
        %v4056 = vunpack.c.l.b16 %v1115
        %v4057 = vunpack.c.h.b16 %v1115
        %v4058 = vunpack.c.l.b16 %v1116
        %v4059 = vunpack.c.h.b16 %v1116
        %v4060 = vunpack.c.l.b16 %v1117
        %v4061 = vunpack.c.h.b16 %v1117
        %v4062 = vunpack.c.l.b16 %v1118
        %v4063 = vunpack.c.h.b16 %v1118
        %v4064 = vunpack.c.l.b16 %v1119
        %v4065 = vunpack.c.h.b16 %v1119
        %v4066 = vunpack.c.l.b16 %v1120
        %v4067 = vunpack.c.h.b16 %v1120
        %v4068 = vunpack.c.l.b16 %v1121
        %v4069 = vunpack.c.h.b16 %v1121
        %v4070 = vunpack.c.l.b16 %v1122
        %v4071 = vunpack.c.h.b16 %v1122
        %v4072 = vunpack.c.l.b16 %v1123
        %v4073 = vunpack.c.h.b16 %v1123
        %v4074 = vunpack.c.l.b16 %v1124
        %v4075 = vunpack.c.h.b16 %v1124
        %v4076 = vunpack.c.l.b16 %v1125
        %v4077 = vunpack.c.h.b16 %v1125
        %v4078 = vunpack.c.l.b16 %v1126
        %v4079 = vunpack.c.h.b16 %v1126
        %v4080 = vunpack.c.l.b16 %v1127
        %v4081 = vunpack.c.h.b16 %v1127
        %v4082 = vunpack.c.l.b16 %v1128
        %v4083 = vunpack.c.h.b16 %v1128
        %v4084 = vunpack.c.l.b16 %v1129
        %v4085 = vunpack.c.h.b16 %v1129
        %v4086 = vunpack.c.l.b16 %v1130
        %v4087 = vunpack.c.h.b16 %v1130
        %v4088 = vunpack.c.l.b16 %v1131
        %v4089 = vunpack.c.h.b16 %v1131
        %v4090 = vunpack.c.l.b16 %v1132
        %v4091 = vunpack.c.h.b16 %v1132
        %v4092 = vunpack.c.l.b16 %v1133
        %v4093 = vunpack.c.h.b16 %v1133
        %v4094 = vunpack.c.l.b16 %v1134
        %v4095 = vunpack.c.h.b16 %v1134
        %v4096 = vunpack.c.l.b16 %v1135
        %v4097 = vunpack.c.h.b16 %v1135
        %v4098 = vunpack.c.l.b16 %v1136
        %v4099 = vunpack.c.h.b16 %v1136
        %v4100 = vunpack.c.l.b16 %v1137
        %v4101 = vunpack.c.h.b16 %v1137
        %v4102 = vunpack.c.l.b16 %v1138
        %v4103 = vunpack.c.h.b16 %v1138
        %v4104 = vunpack.c.l.b16 %v1139
        %v4105 = vunpack.c.h.b16 %v1139
        %v4106 = vunpack.c.l.b16 %v1140
        %v4107 = vunpack.c.h.b16 %v1140
        %v4108 = vunpack.c.l.b16 %v1141
        %v4109 = vunpack.c.h.b16 %v1141
        %v4110 = vunpack.c.l.b16 %v1142
        %v4111 = vunpack.c.h.b16 %v1142
        %v4112 = vunpack.c.l.b16 %v1143
        %v4113 = vunpack.c.h.b16 %v1143
        %v4114 = vunpack.c.l.b16 %v1144
        %v4115 = vunpack.c.h.b16 %v1144
        %v4116 = vunpack.c.l.b16 %v1145
        %v4117 = vunpack.c.h.b16 %v1145
        %v4118 = vunpack.c.l.b16 %v1146
        %v4119 = vunpack.c.h.b16 %v1146
        %v4120 = vunpack.c.l.b16 %v1147
        %v4121 = vunpack.c.h.b16 %v1147
        %v4122 = vunpack.c.l.b16 %v1148
        %v4123 = vunpack.c.h.b16 %v1148
        %v4124 = vunpack.c.l.b16 %v1149
        %v4125 = vunpack.c.h.b16 %v1149
        %v4126 = vunpack.c.l.b16 %v1150
        %v4127 = vunpack.c.h.b16 %v1150
        %v4128 = vunpack.c.l.b16 %v1151
        %v4129 = vunpack.c.h.b16 %v1151
        %v4130 = vunpack.c.l.b16 %v1152
        %v4131 = vunpack.c.h.b16 %v1152
        %v4132 = vunpack.c.l.b16 %v1153
        %v4133 = vunpack.c.h.b16 %v1153
        %v4134 = vunpack.c.l.b16 %v1154
        %v4135 = vunpack.c.h.b16 %v1154
        %v4136 = vunpack.c.l.b16 %v1155
        %v4137 = vunpack.c.h.b16 %v1155
        %v4138 = vunpack.c.l.b16 %v1156
        %v4139 = vunpack.c.h.b16 %v1156
        %v4140 = vunpack.c.l.b16 %v1157
        %v4141 = vunpack.c.h.b16 %v1157
        %v4142 = vunpack.c.l.b16 %v1158
        %v4143 = vunpack.c.h.b16 %v1158
        %v4144 = vunpack.c.l.b16 %v1159
        %v4145 = vunpack.c.h.b16 %v1159
        %v4146 = vunpack.c.l.b16 %v1160
        %v4147 = vunpack.c.h.b16 %v1160
        %v4148 = vunpack.c.l.b16 %v1161
        %v4149 = vunpack.c.h.b16 %v1161
        %v4150 = vunpack.c.l.b16 %v1162
        %v4151 = vunpack.c.h.b16 %v1162
        %v4152 = vunpack.c.l.b16 %v1163
        %v4153 = vunpack.c.h.b16 %v1163
        %v4154 = vunpack.c.l.b16 %v1164
        %v4155 = vunpack.c.h.b16 %v1164
        %v4156 = vunpack.c.l.b16 %v1165
        %v4157 = vunpack.c.h.b16 %v1165
        %v4158 = vunpack.c.l.b16 %v1166
        %v4159 = vunpack.c.h.b16 %v1166
        %v4160 = vunpack.c.l.b16 %v1167
        %v4161 = vunpack.c.h.b16 %v1167
        %v4162 = vunpack.c.l.b16 %v1168
        %v4163 = vunpack.c.h.b16 %v1168
        %v4164 = vunpack.c.l.b16 %v1169
        %v4165 = vunpack.c.h.b16 %v1169
        %v4166 = vunpack.c.l.b16 %v1170
        %v4167 = vunpack.c.h.b16 %v1170
        %v4168 = vunpack.c.l.b16 %v1171
        %v4169 = vunpack.c.h.b16 %v1171
        %v4170 = vunpack.c.l.b16 %v1172
        %v4171 = vunpack.c.h.b16 %v1172
        %v4172 = vunpack.c.l.b16 %v1173
        %v4173 = vunpack.c.h.b16 %v1173
        %v4174 = vunpack.c.l.b16 %v1174
        %v4175 = vunpack.c.h.b16 %v1174
        %v4176 = vunpack.c.l.b16 %v1175
        %v4177 = vunpack.c.h.b16 %v1175
        %v4178 = vunpack.c.l.b16 %v1176
        %v4179 = vunpack.c.h.b16 %v1176
        %v4180 = vunpack.c.l.b16 %v1177
        %v4181 = vunpack.c.h.b16 %v1177
        %v4182 = vunpack.c.l.b16 %v1178
        %v4183 = vunpack.c.h.b16 %v1178
        %v4184 = vunpack.c.l.b16 %v1179
        %v4185 = vunpack.c.h.b16 %v1179
        %v4186 = vunpack.c.l.b16 %v1180
        %v4187 = vunpack.c.h.b16 %v1180
        %v4188 = vunpack.c.l.b16 %v1181
        %v4189 = vunpack.c.h.b16 %v1181
        %v4190 = vunpack.c.l.b16 %v1182
        %v4191 = vunpack.c.h.b16 %v1182
        %v4192 = vunpack.c.l.b16 %v1183
        %v4193 = vunpack.c.h.b16 %v1183
        %v4194 = vunpack.c.l.b16 %v1184
        %v4195 = vunpack.c.h.b16 %v1184
        %v4196 = vunpack.c.l.b16 %v1185
        %v4197 = vunpack.c.h.b16 %v1185
        %v4198 = vunpack.c.l.b16 %v1186
        %v4199 = vunpack.c.h.b16 %v1186
        %v4200 = vunpack.c.l.b16 %v1187
        %v4201 = vunpack.c.h.b16 %v1187
        %v4202 = vunpack.c.l.b16 %v1188
        %v4203 = vunpack.c.h.b16 %v1188
        %v4204 = vunpack.c.l.b16 %v1189
        %v4205 = vunpack.c.h.b16 %v1189
        %v4206 = vunpack.c.l.b16 %v1190
        %v4207 = vunpack.c.h.b16 %v1190
        %v4208 = vunpack.c.l.b16 %v1191
        %v4209 = vunpack.c.h.b16 %v1191
        %v4210 = vunpack.c.l.b16 %v1192
        %v4211 = vunpack.c.h.b16 %v1192
        %v4212 = vunpack.c.l.b16 %v1193
        %v4213 = vunpack.c.h.b16 %v1193
        %v4214 = vunpack.c.l.b16 %v1194
        %v4215 = vunpack.c.h.b16 %v1194
        %v4216 = vunpack.c.l.b16 %v1195
        %v4217 = vunpack.c.h.b16 %v1195
        %v4218 = vunpack.c.l.b16 %v1196
        %v4219 = vunpack.c.h.b16 %v1196
        %v4220 = vunpack.c.l.b16 %v1197
        %v4221 = vunpack.c.h.b16 %v1197
        %v4222 = vunpack.c.l.b16 %v1198
        %v4223 = vunpack.c.h.b16 %v1198
        %v4224 = vunpack.c.l.b16 %v1199
        %v4225 = vunpack.c.h.b16 %v1199
        %v4226 = vunpack.c.l.b16 %v1200
        %v4227 = vunpack.c.h.b16 %v1200
        %v4228 = vunpack.c.l.b16 %v1201
        %v4229 = vunpack.c.h.b16 %v1201
        %v4230 = vunpack.c.l.b16 %v1202
        %v4231 = vunpack.c.h.b16 %v1202
        %v4232 = vunpack.c.l.b16 %v1203
        %v4233 = vunpack.c.h.b16 %v1203
        %v4234 = vunpack.c.l.b16 %v1204
        %v4235 = vunpack.c.h.b16 %v1204
        %v4236 = vunpack.c.l.b16 %v1205
        %v4237 = vunpack.c.h.b16 %v1205
        %v4238 = vunpack.c.l.b16 %v1206
        %v4239 = vunpack.c.h.b16 %v1206
        %v4240 = vunpack.c.l.b16 %v1207
        %v4241 = vunpack.c.h.b16 %v1207
        %v4242 = vunpack.c.l.b16 %v1208
        %v4243 = vunpack.c.h.b16 %v1208
        %v4244 = vunpack.c.l.b16 %v1209
        %v4245 = vunpack.c.h.b16 %v1209
        %v4246 = vunpack.c.l.b16 %v1210
        %v4247 = vunpack.c.h.b16 %v1210
        %v4248 = vunpack.c.l.b16 %v1211
        %v4249 = vunpack.c.h.b16 %v1211
        %v4250 = vunpack.c.l.b16 %v1212
        %v4251 = vunpack.c.h.b16 %v1212
        %v4252 = vunpack.c.l.b16 %v1213
        %v4253 = vunpack.c.h.b16 %v1213
        %v4254 = vunpack.c.l.b16 %v1214
        %v4255 = vunpack.c.h.b16 %v1214
        %v4256 = vunpack.c.l.b16 %v1215
        %v4257 = vunpack.c.h.b16 %v1215
        %v4258 = vunpack.c.l.b16 %v1216
        %v4259 = vunpack.c.h.b16 %v1216
        %v4260 = vunpack.c.l.b16 %v1217
        %v4261 = vunpack.c.h.b16 %v1217
        %v4262 = vunpack.c.l.b16 %v1218
        %v4263 = vunpack.c.h.b16 %v1218
        %v4264 = vunpack.c.l.b16 %v1219
        %v4265 = vunpack.c.h.b16 %v1219
        %v4266 = vunpack.c.l.b16 %v1220
        %v4267 = vunpack.c.h.b16 %v1220
        %v4268 = vunpack.c.l.b16 %v1221
        %v4269 = vunpack.c.h.b16 %v1221
        %v4270 = vunpack.c.l.b16 %v1222
        %v4271 = vunpack.c.h.b16 %v1222
        %v4272 = vunpack.c.l.b16 %v1223
        %v4273 = vunpack.c.h.b16 %v1223
        %v4274 = vunpack.c.l.b16 %v1224
        %v4275 = vunpack.c.h.b16 %v1224
        %v4276 = vunpack.c.l.b16 %v1225
        %v4277 = vunpack.c.h.b16 %v1225
        %v4278 = vunpack.c.l.b16 %v1226
        %v4279 = vunpack.c.h.b16 %v1226
        %v4280 = vunpack.c.l.b16 %v1227
        %v4281 = vunpack.c.h.b16 %v1227
        %v4282 = vunpack.c.l.b16 %v1228
        %v4283 = vunpack.c.h.b16 %v1228
        %v4284 = vunpack.c.l.b16 %v1229
        %v4285 = vunpack.c.h.b16 %v1229
        %v4286 = vunpack.c.l.b16 %v1230
        %v4287 = vunpack.c.h.b16 %v1230
        %v4288 = vunpack.c.l.b16 %v1231
        %v4289 = vunpack.c.h.b16 %v1231
        %v4290 = vunpack.c.l.b16 %v1232
        %v4291 = vunpack.c.h.b16 %v1232
        %v4292 = vunpack.c.l.b16 %v1233
        %v4293 = vunpack.c.h.b16 %v1233
        %v4294 = vunpack.c.l.b16 %v1234
        %v4295 = vunpack.c.h.b16 %v1234
        %v4296 = vunpack.c.l.b16 %v1235
        %v4297 = vunpack.c.h.b16 %v1235
        %v4298 = vunpack.c.l.b16 %v1236
        %v4299 = vunpack.c.h.b16 %v1236
        %v4300 = vunpack.c.l.b16 %v1237
        %v4301 = vunpack.c.h.b16 %v1237
        %v4302 = vunpack.c.l.b16 %v1238
        %v4303 = vunpack.c.h.b16 %v1238
        %v4304 = vunpack.c.l.b16 %v1239
        %v4305 = vunpack.c.h.b16 %v1239
        %v4306 = vunpack.c.l.b16 %v1240
        %v4307 = vunpack.c.h.b16 %v1240
        %v4308 = vunpack.c.l.b16 %v1241
        %v4309 = vunpack.c.h.b16 %v1241
        %v4310 = vunpack.c.l.b16 %v1242
        %v4311 = vunpack.c.h.b16 %v1242
        %v4312 = vunpack.c.l.b16 %v1243
        %v4313 = vunpack.c.h.b16 %v1243
        %v4314 = vunpack.c.l.b16 %v1244
        %v4315 = vunpack.c.h.b16 %v1244
        %v4316 = vunpack.c.l.b16 %v1245
        %v4317 = vunpack.c.h.b16 %v1245
        %v4318 = vunpack.c.l.b16 %v1246
        %v4319 = vunpack.c.h.b16 %v1246
        %v4320 = vunpack.c.l.b16 %v1247
        %v4321 = vunpack.c.h.b16 %v1247
        %v4322 = vunpack.c.l.b16 %v1248
        %v4323 = vunpack.c.h.b16 %v1248
        %v4324 = vunpack.c.l.b16 %v1249
        %v4325 = vunpack.c.h.b16 %v1249
        %v4326 = vunpack.c.l.b16 %v1250
        %v4327 = vunpack.c.h.b16 %v1250
        %v4328 = vunpack.c.l.b16 %v1251
        %v4329 = vunpack.c.h.b16 %v1251
        %v4330 = vunpack.c.l.b16 %v1252
        %v4331 = vunpack.c.h.b16 %v1252
        %v4332 = vunpack.c.l.b16 %v1253
        %v4333 = vunpack.c.h.b16 %v1253
        %v4334 = vunpack.c.l.b16 %v1254
        %v4335 = vunpack.c.h.b16 %v1254
        %v4336 = vunpack.c.l.b16 %v1255
        %v4337 = vunpack.c.h.b16 %v1255
        %v4338 = vunpack.c.l.b16 %v1256
        %v4339 = vunpack.c.h.b16 %v1256
        %v4340 = vunpack.c.l.b16 %v1257
        %v4341 = vunpack.c.h.b16 %v1257
        %v4342 = vunpack.c.l.b16 %v1258
        %v4343 = vunpack.c.h.b16 %v1258
        %v4344 = vunpack.c.l.b16 %v1259
        %v4345 = vunpack.c.h.b16 %v1259
        %v4346 = vunpack.c.l.b16 %v1260
        %v4347 = vunpack.c.h.b16 %v1260
        %v4348 = vunpack.c.l.b16 %v1261
        %v4349 = vunpack.c.h.b16 %v1261
        %v4350 = vunpack.c.l.b16 %v1262
        %v4351 = vunpack.c.h.b16 %v1262
        %v4352 = vunpack.c.l.b16 %v1263
        %v4353 = vunpack.c.h.b16 %v1263
        %v4354 = vunpack.c.l.b16 %v1264
        %v4355 = vunpack.c.h.b16 %v1264
        %v4356 = vunpack.c.l.b16 %v1265
        %v4357 = vunpack.c.h.b16 %v1265
        %v4358 = vunpack.c.l.b16 %v1266
        %v4359 = vunpack.c.h.b16 %v1266
        %v4360 = vunpack.c.l.b16 %v1267
        %v4361 = vunpack.c.h.b16 %v1267
        %v4362 = vunpack.c.l.b16 %v1268
        %v4363 = vunpack.c.h.b16 %v1268
        %v4364 = vunpack.c.l.b16 %v1269
        %v4365 = vunpack.c.h.b16 %v1269
        %v4366 = vunpack.c.l.b16 %v1270
        %v4367 = vunpack.c.h.b16 %v1270
        %v4368 = vunpack.c.l.b16 %v1271
        %v4369 = vunpack.c.h.b16 %v1271
        %v4370 = vunpack.c.l.b16 %v1272
        %v4371 = vunpack.c.h.b16 %v1272
        %v4372 = vunpack.c.l.b16 %v1273
        %v4373 = vunpack.c.h.b16 %v1273
        %v4374 = vunpack.c.l.b16 %v1274
        %v4375 = vunpack.c.h.b16 %v1274
        %v4376 = vunpack.c.l.b16 %v1275
        %v4377 = vunpack.c.h.b16 %v1275
        %v4378 = vunpack.c.l.b16 %v1276
        %v4379 = vunpack.c.h.b16 %v1276
        %v4380 = vunpack.c.l.b16 %v1277
        %v4381 = vunpack.c.h.b16 %v1277
        %v4382 = vunpack.c.l.b16 %v1278
        %v4383 = vunpack.c.h.b16 %v1278
        %v4384 = vunpack.c.l.b16 %v1279
        %v4385 = vunpack.c.h.b16 %v1279
        %v4386 = vunpack.c.l.b16 %v1280
        %v4387 = vunpack.c.h.b16 %v1280
        %v4388 = vunpack.c.l.b16 %v1281
        %v4389 = vunpack.c.h.b16 %v1281
        %v4390 = vunpack.c.l.b16 %v1282
        %v4391 = vunpack.c.h.b16 %v1282
        %v4392 = vunpack.c.l.b16 %v1283
        %v4393 = vunpack.c.h.b16 %v1283
        %v4394 = vunpack.c.l.b16 %v1284
        %v4395 = vunpack.c.h.b16 %v1284
        %v4396 = vunpack.c.l.b16 %v1285
        %v4397 = vunpack.c.h.b16 %v1285
        %v4398 = vunpack.c.l.b16 %v1286
        %v4399 = vunpack.c.h.b16 %v1286
        %v4400 = vunpack.c.l.b16 %v1287
        %v4401 = vunpack.c.h.b16 %v1287
        %v4402 = vpack.c.b16 %v2362, %v2354
        %v4403 = vpack.c.b16 %v2363, %v2355
        %v4404 = vpack.c.b16 %v2364, %v2356
        %v4405 = vpack.c.b16 %v2365, %v2357
        %v4406 = vpack.c.b16 %v2366, %v2358
        %v4407 = vpack.c.b16 %v2367, %v2359
        %v4408 = vpack.c.b16 %v2368, %v2360
        %v4409 = vpack.c.b16 %v2369, %v2361
        %v4410 = vpack.c.b16 %v2378, %v2370
        %v4411 = vpack.c.b16 %v2379, %v2371
        %v4412 = vpack.c.b16 %v2380, %v2372
        %v4413 = vpack.c.b16 %v2381, %v2373
        %v4414 = vpack.c.b16 %v2382, %v2374
        %v4415 = vpack.c.b16 %v2383, %v2375
        %v4416 = vpack.c.b16 %v2384, %v2376
        %v4417 = vpack.c.b16 %v2385, %v2377
        %v4418 = vpack.c.b16 %v2394, %v2386
        %v4419 = vpack.c.b16 %v2395, %v2387
        %v4420 = vpack.c.b16 %v2396, %v2388
        %v4421 = vpack.c.b16 %v2397, %v2389
        %v4422 = vpack.c.b16 %v2398, %v2390
        %v4423 = vpack.c.b16 %v2399, %v2391
        %v4424 = vpack.c.b16 %v2400, %v2392
        %v4425 = vpack.c.b16 %v2401, %v2393
        %v4426 = vpack.c.b16 %v2410, %v2402
        %v4427 = vpack.c.b16 %v2411, %v2403
        %v4428 = vpack.c.b16 %v2412, %v2404
        %v4429 = vpack.c.b16 %v2413, %v2405
        %v4430 = vpack.c.b16 %v2414, %v2406
        %v4431 = vpack.c.b16 %v2415, %v2407
        %v4432 = vpack.c.b16 %v2416, %v2408
        %v4433 = vpack.c.b16 %v2417, %v2409
        %v4434 = vpack.c.b16 %v2426, %v2418
        %v4435 = vpack.c.b16 %v2427, %v2419
        %v4436 = vpack.c.b16 %v2428, %v2420
        %v4437 = vpack.c.b16 %v2429, %v2421
        %v4438 = vpack.c.b16 %v2430, %v2422
        %v4439 = vpack.c.b16 %v2431, %v2423
        %v4440 = vpack.c.b16 %v2432, %v2424
        %v4441 = vpack.c.b16 %v2433, %v2425
        %v4442 = vpack.c.b16 %v2442, %v2434
        %v4443 = vpack.c.b16 %v2443, %v2435
        %v4444 = vpack.c.b16 %v2444, %v2436
        %v4445 = vpack.c.b16 %v2445, %v2437
        %v4446 = vpack.c.b16 %v2446, %v2438
        %v4447 = vpack.c.b16 %v2447, %v2439
        %v4448 = vpack.c.b16 %v2448, %v2440
        %v4449 = vpack.c.b16 %v2449, %v2441
        %v4450 = vpack.c.b16 %v2458, %v2450
        %v4451 = vpack.c.b16 %v2459, %v2451
        %v4452 = vpack.c.b16 %v2460, %v2452
        %v4453 = vpack.c.b16 %v2461, %v2453
        %v4454 = vpack.c.b16 %v2462, %v2454
        %v4455 = vpack.c.b16 %v2463, %v2455
        %v4456 = vpack.c.b16 %v2464, %v2456
        %v4457 = vpack.c.b16 %v2465, %v2457
        %v4458 = vpack.c.b16 %v2474, %v2466
        %v4459 = vpack.c.b16 %v2475, %v2467
        %v4460 = vpack.c.b16 %v2476, %v2468
        %v4461 = vpack.c.b16 %v2477, %v2469
        %v4462 = vpack.c.b16 %v2478, %v2470
        %v4463 = vpack.c.b16 %v2479, %v2471
        %v4464 = vpack.c.b16 %v2480, %v2472
        %v4465 = vpack.c.b16 %v2481, %v2473
        %v4466 = vpack.c.b16 %v2490, %v2482
        %v4467 = vpack.c.b16 %v2491, %v2483
        %v4468 = vpack.c.b16 %v2492, %v2484
        %v4469 = vpack.c.b16 %v2493, %v2485
        %v4470 = vpack.c.b16 %v2494, %v2486
        %v4471 = vpack.c.b16 %v2495, %v2487
        %v4472 = vpack.c.b16 %v2496, %v2488
        %v4473 = vpack.c.b16 %v2497, %v2489
        %v4474 = vpack.c.b16 %v2506, %v2498
        %v4475 = vpack.c.b16 %v2507, %v2499
        %v4476 = vpack.c.b16 %v2508, %v2500
        %v4477 = vpack.c.b16 %v2509, %v2501
        %v4478 = vpack.c.b16 %v2510, %v2502
        %v4479 = vpack.c.b16 %v2511, %v2503
        %v4480 = vpack.c.b16 %v2512, %v2504
        %v4481 = vpack.c.b16 %v2513, %v2505
        %v4482 = vpack.c.b16 %v2522, %v2514
        %v4483 = vpack.c.b16 %v2523, %v2515
        %v4484 = vpack.c.b16 %v2524, %v2516
        %v4485 = vpack.c.b16 %v2525, %v2517
        %v4486 = vpack.c.b16 %v2526, %v2518
        %v4487 = vpack.c.b16 %v2527, %v2519
        %v4488 = vpack.c.b16 %v2528, %v2520
        %v4489 = vpack.c.b16 %v2529, %v2521
        %v4490 = vpack.c.b16 %v2538, %v2530
        %v4491 = vpack.c.b16 %v2539, %v2531
        %v4492 = vpack.c.b16 %v2540, %v2532
        %v4493 = vpack.c.b16 %v2541, %v2533
        %v4494 = vpack.c.b16 %v2542, %v2534
        %v4495 = vpack.c.b16 %v2543, %v2535
        %v4496 = vpack.c.b16 %v2544, %v2536
        %v4497 = vpack.c.b16 %v2545, %v2537
        %v4498 = vpack.c.b16 %v2554, %v2546
        %v4499 = vpack.c.b16 %v2555, %v2547
        %v4500 = vpack.c.b16 %v2556, %v2548
        %v4501 = vpack.c.b16 %v2557, %v2549
        %v4502 = vpack.c.b16 %v2558, %v2550
        %v4503 = vpack.c.b16 %v2559, %v2551
        %v4504 = vpack.c.b16 %v2560, %v2552
        %v4505 = vpack.c.b16 %v2561, %v2553
        %v4506 = vpack.c.b16 %v2570, %v2562
        %v4507 = vpack.c.b16 %v2571, %v2563
        %v4508 = vpack.c.b16 %v2572, %v2564
        %v4509 = vpack.c.b16 %v2573, %v2565
        %v4510 = vpack.c.b16 %v2574, %v2566
        %v4511 = vpack.c.b16 %v2575, %v2567
        %v4512 = vpack.c.b16 %v2576, %v2568
        %v4513 = vpack.c.b16 %v2577, %v2569
        %v4514 = vpack.c.b16 %v2586, %v2578
        %v4515 = vpack.c.b16 %v2587, %v2579
        %v4516 = vpack.c.b16 %v2588, %v2580
        %v4517 = vpack.c.b16 %v2589, %v2581
        %v4518 = vpack.c.b16 %v2590, %v2582
        %v4519 = vpack.c.b16 %v2591, %v2583
        %v4520 = vpack.c.b16 %v2592, %v2584
        %v4521 = vpack.c.b16 %v2593, %v2585
        %v4522 = vpack.c.b16 %v2602, %v2594
        %v4523 = vpack.c.b16 %v2603, %v2595
        %v4524 = vpack.c.b16 %v2604, %v2596
        %v4525 = vpack.c.b16 %v2605, %v2597
        %v4526 = vpack.c.b16 %v2606, %v2598
        %v4527 = vpack.c.b16 %v2607, %v2599
        %v4528 = vpack.c.b16 %v2608, %v2600
        %v4529 = vpack.c.b16 %v2609, %v2601
        %v4530 = vpack.c.b16 %v2618, %v2610
        %v4531 = vpack.c.b16 %v2619, %v2611
        %v4532 = vpack.c.b16 %v2620, %v2612
        %v4533 = vpack.c.b16 %v2621, %v2613
        %v4534 = vpack.c.b16 %v2622, %v2614
        %v4535 = vpack.c.b16 %v2623, %v2615
        %v4536 = vpack.c.b16 %v2624, %v2616
        %v4537 = vpack.c.b16 %v2625, %v2617
        %v4538 = vpack.c.b16 %v2634, %v2626
        %v4539 = vpack.c.b16 %v2635, %v2627
        %v4540 = vpack.c.b16 %v2636, %v2628
        %v4541 = vpack.c.b16 %v2637, %v2629
        %v4542 = vpack.c.b16 %v2638, %v2630
        %v4543 = vpack.c.b16 %v2639, %v2631
        %v4544 = vpack.c.b16 %v2640, %v2632
        %v4545 = vpack.c.b16 %v2641, %v2633
        %v4546 = vpack.c.b16 %v2650, %v2642
        %v4547 = vpack.c.b16 %v2651, %v2643
        %v4548 = vpack.c.b16 %v2652, %v2644
        %v4549 = vpack.c.b16 %v2653, %v2645
        %v4550 = vpack.c.b16 %v2654, %v2646
        %v4551 = vpack.c.b16 %v2655, %v2647
        %v4552 = vpack.c.b16 %v2656, %v2648
        %v4553 = vpack.c.b16 %v2657, %v2649
        %v4554 = vpack.c.b16 %v2666, %v2658
        %v4555 = vpack.c.b16 %v2667, %v2659
        %v4556 = vpack.c.b16 %v2668, %v2660
        %v4557 = vpack.c.b16 %v2669, %v2661
        %v4558 = vpack.c.b16 %v2670, %v2662
        %v4559 = vpack.c.b16 %v2671, %v2663
        %v4560 = vpack.c.b16 %v2672, %v2664
        %v4561 = vpack.c.b16 %v2673, %v2665
        %v4562 = vpack.c.b16 %v2682, %v2674
        %v4563 = vpack.c.b16 %v2683, %v2675
        %v4564 = vpack.c.b16 %v2684, %v2676
        %v4565 = vpack.c.b16 %v2685, %v2677
        %v4566 = vpack.c.b16 %v2686, %v2678
        %v4567 = vpack.c.b16 %v2687, %v2679
        %v4568 = vpack.c.b16 %v2688, %v2680
        %v4569 = vpack.c.b16 %v2689, %v2681
        %v4570 = vpack.c.b16 %v2698, %v2690
        %v4571 = vpack.c.b16 %v2699, %v2691
        %v4572 = vpack.c.b16 %v2700, %v2692
        %v4573 = vpack.c.b16 %v2701, %v2693
        %v4574 = vpack.c.b16 %v2702, %v2694
        %v4575 = vpack.c.b16 %v2703, %v2695
        %v4576 = vpack.c.b16 %v2704, %v2696
        %v4577 = vpack.c.b16 %v2705, %v2697
        %v4578 = vpack.c.b16 %v2714, %v2706
        %v4579 = vpack.c.b16 %v2715, %v2707
        %v4580 = vpack.c.b16 %v2716, %v2708
        %v4581 = vpack.c.b16 %v2717, %v2709
        %v4582 = vpack.c.b16 %v2718, %v2710
        %v4583 = vpack.c.b16 %v2719, %v2711
        %v4584 = vpack.c.b16 %v2720, %v2712
        %v4585 = vpack.c.b16 %v2721, %v2713
        %v4586 = vpack.c.b16 %v2730, %v2722
        %v4587 = vpack.c.b16 %v2731, %v2723
        %v4588 = vpack.c.b16 %v2732, %v2724
        %v4589 = vpack.c.b16 %v2733, %v2725
        %v4590 = vpack.c.b16 %v2734, %v2726
        %v4591 = vpack.c.b16 %v2735, %v2727
        %v4592 = vpack.c.b16 %v2736, %v2728
        %v4593 = vpack.c.b16 %v2737, %v2729
        %v4594 = vpack.c.b16 %v2746, %v2738
        %v4595 = vpack.c.b16 %v2747, %v2739
        %v4596 = vpack.c.b16 %v2748, %v2740
        %v4597 = vpack.c.b16 %v2749, %v2741
        %v4598 = vpack.c.b16 %v2750, %v2742
        %v4599 = vpack.c.b16 %v2751, %v2743
        %v4600 = vpack.c.b16 %v2752, %v2744
        %v4601 = vpack.c.b16 %v2753, %v2745
        %v4602 = vpack.c.b16 %v2762, %v2754
        %v4603 = vpack.c.b16 %v2763, %v2755
        %v4604 = vpack.c.b16 %v2764, %v2756
        %v4605 = vpack.c.b16 %v2765, %v2757
        %v4606 = vpack.c.b16 %v2766, %v2758
        %v4607 = vpack.c.b16 %v2767, %v2759
        %v4608 = vpack.c.b16 %v2768, %v2760
        %v4609 = vpack.c.b16 %v2769, %v2761
        %v4610 = vpack.c.b16 %v2778, %v2770
        %v4611 = vpack.c.b16 %v2779, %v2771
        %v4612 = vpack.c.b16 %v2780, %v2772
        %v4613 = vpack.c.b16 %v2781, %v2773
        %v4614 = vpack.c.b16 %v2782, %v2774
        %v4615 = vpack.c.b16 %v2783, %v2775
        %v4616 = vpack.c.b16 %v2784, %v2776
        %v4617 = vpack.c.b16 %v2785, %v2777
        %v4618 = vpack.c.b16 %v2794, %v2786
        %v4619 = vpack.c.b16 %v2795, %v2787
        %v4620 = vpack.c.b16 %v2796, %v2788
        %v4621 = vpack.c.b16 %v2797, %v2789
        %v4622 = vpack.c.b16 %v2798, %v2790
        %v4623 = vpack.c.b16 %v2799, %v2791
        %v4624 = vpack.c.b16 %v2800, %v2792
        %v4625 = vpack.c.b16 %v2801, %v2793
        %v4626 = vpack.c.b16 %v2810, %v2802
        %v4627 = vpack.c.b16 %v2811, %v2803
        %v4628 = vpack.c.b16 %v2812, %v2804
        %v4629 = vpack.c.b16 %v2813, %v2805
        %v4630 = vpack.c.b16 %v2814, %v2806
        %v4631 = vpack.c.b16 %v2815, %v2807
        %v4632 = vpack.c.b16 %v2816, %v2808
        %v4633 = vpack.c.b16 %v2817, %v2809
        %v4634 = vpack.c.b16 %v2826, %v2818
        %v4635 = vpack.c.b16 %v2827, %v2819
        %v4636 = vpack.c.b16 %v2828, %v2820
        %v4637 = vpack.c.b16 %v2829, %v2821
        %v4638 = vpack.c.b16 %v2830, %v2822
        %v4639 = vpack.c.b16 %v2831, %v2823
        %v4640 = vpack.c.b16 %v2832, %v2824
        %v4641 = vpack.c.b16 %v2833, %v2825
        %v4642 = vpack.c.b16 %v2842, %v2834
        %v4643 = vpack.c.b16 %v2843, %v2835
        %v4644 = vpack.c.b16 %v2844, %v2836
        %v4645 = vpack.c.b16 %v2845, %v2837
        %v4646 = vpack.c.b16 %v2846, %v2838
        %v4647 = vpack.c.b16 %v2847, %v2839
        %v4648 = vpack.c.b16 %v2848, %v2840
        %v4649 = vpack.c.b16 %v2849, %v2841
        %v4650 = vpack.c.b16 %v2858, %v2850
        %v4651 = vpack.c.b16 %v2859, %v2851
        %v4652 = vpack.c.b16 %v2860, %v2852
        %v4653 = vpack.c.b16 %v2861, %v2853
        %v4654 = vpack.c.b16 %v2862, %v2854
        %v4655 = vpack.c.b16 %v2863, %v2855
        %v4656 = vpack.c.b16 %v2864, %v2856
        %v4657 = vpack.c.b16 %v2865, %v2857
        %v4658 = vpack.c.b16 %v2874, %v2866
        %v4659 = vpack.c.b16 %v2875, %v2867
        %v4660 = vpack.c.b16 %v2876, %v2868
        %v4661 = vpack.c.b16 %v2877, %v2869
        %v4662 = vpack.c.b16 %v2878, %v2870
        %v4663 = vpack.c.b16 %v2879, %v2871
        %v4664 = vpack.c.b16 %v2880, %v2872
        %v4665 = vpack.c.b16 %v2881, %v2873
        %v4666 = vpack.c.b16 %v2890, %v2882
        %v4667 = vpack.c.b16 %v2891, %v2883
        %v4668 = vpack.c.b16 %v2892, %v2884
        %v4669 = vpack.c.b16 %v2893, %v2885
        %v4670 = vpack.c.b16 %v2894, %v2886
        %v4671 = vpack.c.b16 %v2895, %v2887
        %v4672 = vpack.c.b16 %v2896, %v2888
        %v4673 = vpack.c.b16 %v2897, %v2889
        %v4674 = vpack.c.b16 %v2906, %v2898
        %v4675 = vpack.c.b16 %v2907, %v2899
        %v4676 = vpack.c.b16 %v2908, %v2900
        %v4677 = vpack.c.b16 %v2909, %v2901
        %v4678 = vpack.c.b16 %v2910, %v2902
        %v4679 = vpack.c.b16 %v2911, %v2903
        %v4680 = vpack.c.b16 %v2912, %v2904
        %v4681 = vpack.c.b16 %v2913, %v2905
        %v4682 = vpack.c.b16 %v2922, %v2914
        %v4683 = vpack.c.b16 %v2923, %v2915
        %v4684 = vpack.c.b16 %v2924, %v2916
        %v4685 = vpack.c.b16 %v2925, %v2917
        %v4686 = vpack.c.b16 %v2926, %v2918
        %v4687 = vpack.c.b16 %v2927, %v2919
        %v4688 = vpack.c.b16 %v2928, %v2920
        %v4689 = vpack.c.b16 %v2929, %v2921
        %v4690 = vpack.c.b16 %v2938, %v2930
        %v4691 = vpack.c.b16 %v2939, %v2931
        %v4692 = vpack.c.b16 %v2940, %v2932
        %v4693 = vpack.c.b16 %v2941, %v2933
        %v4694 = vpack.c.b16 %v2942, %v2934
        %v4695 = vpack.c.b16 %v2943, %v2935
        %v4696 = vpack.c.b16 %v2944, %v2936
        %v4697 = vpack.c.b16 %v2945, %v2937
        %v4698 = vpack.c.b16 %v2954, %v2946
        %v4699 = vpack.c.b16 %v2955, %v2947
        %v4700 = vpack.c.b16 %v2956, %v2948
        %v4701 = vpack.c.b16 %v2957, %v2949
        %v4702 = vpack.c.b16 %v2958, %v2950
        %v4703 = vpack.c.b16 %v2959, %v2951
        %v4704 = vpack.c.b16 %v2960, %v2952
        %v4705 = vpack.c.b16 %v2961, %v2953
        %v4706 = vpack.c.b16 %v2970, %v2962
        %v4707 = vpack.c.b16 %v2971, %v2963
        %v4708 = vpack.c.b16 %v2972, %v2964
        %v4709 = vpack.c.b16 %v2973, %v2965
        %v4710 = vpack.c.b16 %v2974, %v2966
        %v4711 = vpack.c.b16 %v2975, %v2967
        %v4712 = vpack.c.b16 %v2976, %v2968
        %v4713 = vpack.c.b16 %v2977, %v2969
        %v4714 = vpack.c.b16 %v2986, %v2978
        %v4715 = vpack.c.b16 %v2987, %v2979
        %v4716 = vpack.c.b16 %v2988, %v2980
        %v4717 = vpack.c.b16 %v2989, %v2981
        %v4718 = vpack.c.b16 %v2990, %v2982
        %v4719 = vpack.c.b16 %v2991, %v2983
        %v4720 = vpack.c.b16 %v2992, %v2984
        %v4721 = vpack.c.b16 %v2993, %v2985
        %v4722 = vpack.c.b16 %v3002, %v2994
        %v4723 = vpack.c.b16 %v3003, %v2995
        %v4724 = vpack.c.b16 %v3004, %v2996
        %v4725 = vpack.c.b16 %v3005, %v2997
        %v4726 = vpack.c.b16 %v3006, %v2998
        %v4727 = vpack.c.b16 %v3007, %v2999
        %v4728 = vpack.c.b16 %v3008, %v3000
        %v4729 = vpack.c.b16 %v3009, %v3001
        %v4730 = vpack.c.b16 %v3018, %v3010
        %v4731 = vpack.c.b16 %v3019, %v3011
        %v4732 = vpack.c.b16 %v3020, %v3012
        %v4733 = vpack.c.b16 %v3021, %v3013
        %v4734 = vpack.c.b16 %v3022, %v3014
        %v4735 = vpack.c.b16 %v3023, %v3015
        %v4736 = vpack.c.b16 %v3024, %v3016
        %v4737 = vpack.c.b16 %v3025, %v3017
        %v4738 = vpack.c.b16 %v3034, %v3026
        %v4739 = vpack.c.b16 %v3035, %v3027
        %v4740 = vpack.c.b16 %v3036, %v3028
        %v4741 = vpack.c.b16 %v3037, %v3029
        %v4742 = vpack.c.b16 %v3038, %v3030
        %v4743 = vpack.c.b16 %v3039, %v3031
        %v4744 = vpack.c.b16 %v3040, %v3032
        %v4745 = vpack.c.b16 %v3041, %v3033
        %v4746 = vpack.c.b16 %v3050, %v3042
        %v4747 = vpack.c.b16 %v3051, %v3043
        %v4748 = vpack.c.b16 %v3052, %v3044
        %v4749 = vpack.c.b16 %v3053, %v3045
        %v4750 = vpack.c.b16 %v3054, %v3046
        %v4751 = vpack.c.b16 %v3055, %v3047
        %v4752 = vpack.c.b16 %v3056, %v3048
        %v4753 = vpack.c.b16 %v3057, %v3049
        %v4754 = vpack.c.b16 %v3066, %v3058
        %v4755 = vpack.c.b16 %v3067, %v3059
        %v4756 = vpack.c.b16 %v3068, %v3060
        %v4757 = vpack.c.b16 %v3069, %v3061
        %v4758 = vpack.c.b16 %v3070, %v3062
        %v4759 = vpack.c.b16 %v3071, %v3063
        %v4760 = vpack.c.b16 %v3072, %v3064
        %v4761 = vpack.c.b16 %v3073, %v3065
        %v4762 = vpack.c.b16 %v3082, %v3074
        %v4763 = vpack.c.b16 %v3083, %v3075
        %v4764 = vpack.c.b16 %v3084, %v3076
        %v4765 = vpack.c.b16 %v3085, %v3077
        %v4766 = vpack.c.b16 %v3086, %v3078
        %v4767 = vpack.c.b16 %v3087, %v3079
        %v4768 = vpack.c.b16 %v3088, %v3080
        %v4769 = vpack.c.b16 %v3089, %v3081
        %v4770 = vpack.c.b16 %v3098, %v3090
        %v4771 = vpack.c.b16 %v3099, %v3091
        %v4772 = vpack.c.b16 %v3100, %v3092
        %v4773 = vpack.c.b16 %v3101, %v3093
        %v4774 = vpack.c.b16 %v3102, %v3094
        %v4775 = vpack.c.b16 %v3103, %v3095
        %v4776 = vpack.c.b16 %v3104, %v3096
        %v4777 = vpack.c.b16 %v3105, %v3097
        %v4778 = vpack.c.b16 %v3114, %v3106
        %v4779 = vpack.c.b16 %v3115, %v3107
        %v4780 = vpack.c.b16 %v3116, %v3108
        %v4781 = vpack.c.b16 %v3117, %v3109
        %v4782 = vpack.c.b16 %v3118, %v3110
        %v4783 = vpack.c.b16 %v3119, %v3111
        %v4784 = vpack.c.b16 %v3120, %v3112
        %v4785 = vpack.c.b16 %v3121, %v3113
        %v4786 = vpack.c.b16 %v3130, %v3122
        %v4787 = vpack.c.b16 %v3131, %v3123
        %v4788 = vpack.c.b16 %v3132, %v3124
        %v4789 = vpack.c.b16 %v3133, %v3125
        %v4790 = vpack.c.b16 %v3134, %v3126
        %v4791 = vpack.c.b16 %v3135, %v3127
        %v4792 = vpack.c.b16 %v3136, %v3128
        %v4793 = vpack.c.b16 %v3137, %v3129
        %v4794 = vpack.c.b16 %v3146, %v3138
        %v4795 = vpack.c.b16 %v3147, %v3139
        %v4796 = vpack.c.b16 %v3148, %v3140
        %v4797 = vpack.c.b16 %v3149, %v3141
        %v4798 = vpack.c.b16 %v3150, %v3142
        %v4799 = vpack.c.b16 %v3151, %v3143
        %v4800 = vpack.c.b16 %v3152, %v3144
        %v4801 = vpack.c.b16 %v3153, %v3145
        %v4802 = vpack.c.b16 %v3162, %v3154
        %v4803 = vpack.c.b16 %v3163, %v3155
        %v4804 = vpack.c.b16 %v3164, %v3156
        %v4805 = vpack.c.b16 %v3165, %v3157
        %v4806 = vpack.c.b16 %v3166, %v3158
        %v4807 = vpack.c.b16 %v3167, %v3159
        %v4808 = vpack.c.b16 %v3168, %v3160
        %v4809 = vpack.c.b16 %v3169, %v3161
        %v4810 = vpack.c.b16 %v3178, %v3170
        %v4811 = vpack.c.b16 %v3179, %v3171
        %v4812 = vpack.c.b16 %v3180, %v3172
        %v4813 = vpack.c.b16 %v3181, %v3173
        %v4814 = vpack.c.b16 %v3182, %v3174
        %v4815 = vpack.c.b16 %v3183, %v3175
        %v4816 = vpack.c.b16 %v3184, %v3176
        %v4817 = vpack.c.b16 %v3185, %v3177
        %v4818 = vpack.c.b16 %v3194, %v3186
        %v4819 = vpack.c.b16 %v3195, %v3187
        %v4820 = vpack.c.b16 %v3196, %v3188
        %v4821 = vpack.c.b16 %v3197, %v3189
        %v4822 = vpack.c.b16 %v3198, %v3190
        %v4823 = vpack.c.b16 %v3199, %v3191
        %v4824 = vpack.c.b16 %v3200, %v3192
        %v4825 = vpack.c.b16 %v3201, %v3193
        %v4826 = vpack.c.b16 %v3210, %v3202
        %v4827 = vpack.c.b16 %v3211, %v3203
        %v4828 = vpack.c.b16 %v3212, %v3204
        %v4829 = vpack.c.b16 %v3213, %v3205
        %v4830 = vpack.c.b16 %v3214, %v3206
        %v4831 = vpack.c.b16 %v3215, %v3207
        %v4832 = vpack.c.b16 %v3216, %v3208
        %v4833 = vpack.c.b16 %v3217, %v3209
        %v4834 = vpack.c.b16 %v3226, %v3218
        %v4835 = vpack.c.b16 %v3227, %v3219
        %v4836 = vpack.c.b16 %v3228, %v3220
        %v4837 = vpack.c.b16 %v3229, %v3221
        %v4838 = vpack.c.b16 %v3230, %v3222
        %v4839 = vpack.c.b16 %v3231, %v3223
        %v4840 = vpack.c.b16 %v3232, %v3224
        %v4841 = vpack.c.b16 %v3233, %v3225
        %v4842 = vpack.c.b16 %v3242, %v3234
        %v4843 = vpack.c.b16 %v3243, %v3235
        %v4844 = vpack.c.b16 %v3244, %v3236
        %v4845 = vpack.c.b16 %v3245, %v3237
        %v4846 = vpack.c.b16 %v3246, %v3238
        %v4847 = vpack.c.b16 %v3247, %v3239
        %v4848 = vpack.c.b16 %v3248, %v3240
        %v4849 = vpack.c.b16 %v3249, %v3241
        %v4850 = vpack.c.b16 %v3258, %v3250
        %v4851 = vpack.c.b16 %v3259, %v3251
        %v4852 = vpack.c.b16 %v3260, %v3252
        %v4853 = vpack.c.b16 %v3261, %v3253
        %v4854 = vpack.c.b16 %v3262, %v3254
        %v4855 = vpack.c.b16 %v3263, %v3255
        %v4856 = vpack.c.b16 %v3264, %v3256
        %v4857 = vpack.c.b16 %v3265, %v3257
        %v4858 = vpack.c.b16 %v3274, %v3266
        %v4859 = vpack.c.b16 %v3275, %v3267
        %v4860 = vpack.c.b16 %v3276, %v3268
        %v4861 = vpack.c.b16 %v3277, %v3269
        %v4862 = vpack.c.b16 %v3278, %v3270
        %v4863 = vpack.c.b16 %v3279, %v3271
        %v4864 = vpack.c.b16 %v3280, %v3272
        %v4865 = vpack.c.b16 %v3281, %v3273
        %v4866 = vpack.c.b16 %v3290, %v3282
        %v4867 = vpack.c.b16 %v3291, %v3283
        %v4868 = vpack.c.b16 %v3292, %v3284
        %v4869 = vpack.c.b16 %v3293, %v3285
        %v4870 = vpack.c.b16 %v3294, %v3286
        %v4871 = vpack.c.b16 %v3295, %v3287
        %v4872 = vpack.c.b16 %v3296, %v3288
        %v4873 = vpack.c.b16 %v3297, %v3289
        %v4874 = vpack.c.b16 %v3306, %v3298
        %v4875 = vpack.c.b16 %v3307, %v3299
        %v4876 = vpack.c.b16 %v3308, %v3300
        %v4877 = vpack.c.b16 %v3309, %v3301
        %v4878 = vpack.c.b16 %v3310, %v3302
        %v4879 = vpack.c.b16 %v3311, %v3303
        %v4880 = vpack.c.b16 %v3312, %v3304
        %v4881 = vpack.c.b16 %v3313, %v3305
        %v4882 = vpack.c.b16 %v3322, %v3314
        %v4883 = vpack.c.b16 %v3323, %v3315
        %v4884 = vpack.c.b16 %v3324, %v3316
        %v4885 = vpack.c.b16 %v3325, %v3317
        %v4886 = vpack.c.b16 %v3326, %v3318
        %v4887 = vpack.c.b16 %v3327, %v3319
        %v4888 = vpack.c.b16 %v3328, %v3320
        %v4889 = vpack.c.b16 %v3329, %v3321
        %v4890 = vpack.c.b16 %v3338, %v3330
        %v4891 = vpack.c.b16 %v3339, %v3331
        %v4892 = vpack.c.b16 %v3340, %v3332
        %v4893 = vpack.c.b16 %v3341, %v3333
        %v4894 = vpack.c.b16 %v3342, %v3334
        %v4895 = vpack.c.b16 %v3343, %v3335
        %v4896 = vpack.c.b16 %v3344, %v3336
        %v4897 = vpack.c.b16 %v3345, %v3337
        %v4898 = vpack.c.b16 %v3354, %v3346
        %v4899 = vpack.c.b16 %v3355, %v3347
        %v4900 = vpack.c.b16 %v3356, %v3348
        %v4901 = vpack.c.b16 %v3357, %v3349
        %v4902 = vpack.c.b16 %v3358, %v3350
        %v4903 = vpack.c.b16 %v3359, %v3351
        %v4904 = vpack.c.b16 %v3360, %v3352
        %v4905 = vpack.c.b16 %v3361, %v3353
        %v4906 = vpack.c.b16 %v3370, %v3362
        %v4907 = vpack.c.b16 %v3371, %v3363
        %v4908 = vpack.c.b16 %v3372, %v3364
        %v4909 = vpack.c.b16 %v3373, %v3365
        %v4910 = vpack.c.b16 %v3374, %v3366
        %v4911 = vpack.c.b16 %v3375, %v3367
        %v4912 = vpack.c.b16 %v3376, %v3368
        %v4913 = vpack.c.b16 %v3377, %v3369
        %v4914 = vpack.c.b16 %v3386, %v3378
        %v4915 = vpack.c.b16 %v3387, %v3379
        %v4916 = vpack.c.b16 %v3388, %v3380
        %v4917 = vpack.c.b16 %v3389, %v3381
        %v4918 = vpack.c.b16 %v3390, %v3382
        %v4919 = vpack.c.b16 %v3391, %v3383
        %v4920 = vpack.c.b16 %v3392, %v3384
        %v4921 = vpack.c.b16 %v3393, %v3385
        %v4922 = vpack.c.b16 %v3402, %v3394
        %v4923 = vpack.c.b16 %v3403, %v3395
        %v4924 = vpack.c.b16 %v3404, %v3396
        %v4925 = vpack.c.b16 %v3405, %v3397
        %v4926 = vpack.c.b16 %v3406, %v3398
        %v4927 = vpack.c.b16 %v3407, %v3399
        %v4928 = vpack.c.b16 %v3408, %v3400
        %v4929 = vpack.c.b16 %v3409, %v3401
        %v4930 = vpack.c.b16 %v3418, %v3410
        %v4931 = vpack.c.b16 %v3419, %v3411
        %v4932 = vpack.c.b16 %v3420, %v3412
        %v4933 = vpack.c.b16 %v3421, %v3413
        %v4934 = vpack.c.b16 %v3422, %v3414
        %v4935 = vpack.c.b16 %v3423, %v3415
        %v4936 = vpack.c.b16 %v3424, %v3416
        %v4937 = vpack.c.b16 %v3425, %v3417
        %v4938 = vpack.c.b16 %v3434, %v3426
        %v4939 = vpack.c.b16 %v3435, %v3427
        %v4940 = vpack.c.b16 %v3436, %v3428
        %v4941 = vpack.c.b16 %v3437, %v3429
        %v4942 = vpack.c.b16 %v3438, %v3430
        %v4943 = vpack.c.b16 %v3439, %v3431
        %v4944 = vpack.c.b16 %v3440, %v3432
        %v4945 = vpack.c.b16 %v3441, %v3433
        %v4946 = vpack.c.b16 %v3450, %v3442
        %v4947 = vpack.c.b16 %v3451, %v3443
        %v4948 = vpack.c.b16 %v3452, %v3444
        %v4949 = vpack.c.b16 %v3453, %v3445
        %v4950 = vpack.c.b16 %v3454, %v3446
        %v4951 = vpack.c.b16 %v3455, %v3447
        %v4952 = vpack.c.b16 %v3456, %v3448
        %v4953 = vpack.c.b16 %v3457, %v3449
        %v4954 = vpack.c.b16 %v3466, %v3458
        %v4955 = vpack.c.b16 %v3467, %v3459
        %v4956 = vpack.c.b16 %v3468, %v3460
        %v4957 = vpack.c.b16 %v3469, %v3461
        %v4958 = vpack.c.b16 %v3470, %v3462
        %v4959 = vpack.c.b16 %v3471, %v3463
        %v4960 = vpack.c.b16 %v3472, %v3464
        %v4961 = vpack.c.b16 %v3473, %v3465
        %v4962 = vpack.c.b16 %v3482, %v3474
        %v4963 = vpack.c.b16 %v3483, %v3475
        %v4964 = vpack.c.b16 %v3484, %v3476
        %v4965 = vpack.c.b16 %v3485, %v3477
        %v4966 = vpack.c.b16 %v3486, %v3478
        %v4967 = vpack.c.b16 %v3487, %v3479
        %v4968 = vpack.c.b16 %v3488, %v3480
        %v4969 = vpack.c.b16 %v3489, %v3481
        %v4970 = vpack.c.b16 %v3498, %v3490
        %v4971 = vpack.c.b16 %v3499, %v3491
        %v4972 = vpack.c.b16 %v3500, %v3492
        %v4973 = vpack.c.b16 %v3501, %v3493
        %v4974 = vpack.c.b16 %v3502, %v3494
        %v4975 = vpack.c.b16 %v3503, %v3495
        %v4976 = vpack.c.b16 %v3504, %v3496
        %v4977 = vpack.c.b16 %v3505, %v3497
        %v4978 = vpack.c.b16 %v3514, %v3506
        %v4979 = vpack.c.b16 %v3515, %v3507
        %v4980 = vpack.c.b16 %v3516, %v3508
        %v4981 = vpack.c.b16 %v3517, %v3509
        %v4982 = vpack.c.b16 %v3518, %v3510
        %v4983 = vpack.c.b16 %v3519, %v3511
        %v4984 = vpack.c.b16 %v3520, %v3512
        %v4985 = vpack.c.b16 %v3521, %v3513
        %v4986 = vpack.c.b16 %v3530, %v3522
        %v4987 = vpack.c.b16 %v3531, %v3523
        %v4988 = vpack.c.b16 %v3532, %v3524
        %v4989 = vpack.c.b16 %v3533, %v3525
        %v4990 = vpack.c.b16 %v3534, %v3526
        %v4991 = vpack.c.b16 %v3535, %v3527
        %v4992 = vpack.c.b16 %v3536, %v3528
        %v4993 = vpack.c.b16 %v3537, %v3529
        %v4994 = vpack.c.b16 %v3546, %v3538
        %v4995 = vpack.c.b16 %v3547, %v3539
        %v4996 = vpack.c.b16 %v3548, %v3540
        %v4997 = vpack.c.b16 %v3549, %v3541
        %v4998 = vpack.c.b16 %v3550, %v3542
        %v4999 = vpack.c.b16 %v3551, %v3543
        %v5000 = vpack.c.b16 %v3552, %v3544
        %v5001 = vpack.c.b16 %v3553, %v3545
        %v5002 = vpack.c.b16 %v3562, %v3554
        %v5003 = vpack.c.b16 %v3563, %v3555
        %v5004 = vpack.c.b16 %v3564, %v3556
        %v5005 = vpack.c.b16 %v3565, %v3557
        %v5006 = vpack.c.b16 %v3566, %v3558
        %v5007 = vpack.c.b16 %v3567, %v3559
        %v5008 = vpack.c.b16 %v3568, %v3560
        %v5009 = vpack.c.b16 %v3569, %v3561
        %v5010 = vpack.c.b16 %v3578, %v3570
        %v5011 = vpack.c.b16 %v3579, %v3571
        %v5012 = vpack.c.b16 %v3580, %v3572
        %v5013 = vpack.c.b16 %v3581, %v3573
        %v5014 = vpack.c.b16 %v3582, %v3574
        %v5015 = vpack.c.b16 %v3583, %v3575
        %v5016 = vpack.c.b16 %v3584, %v3576
        %v5017 = vpack.c.b16 %v3585, %v3577
        %v5018 = vpack.c.b16 %v3594, %v3586
        %v5019 = vpack.c.b16 %v3595, %v3587
        %v5020 = vpack.c.b16 %v3596, %v3588
        %v5021 = vpack.c.b16 %v3597, %v3589
        %v5022 = vpack.c.b16 %v3598, %v3590
        %v5023 = vpack.c.b16 %v3599, %v3591
        %v5024 = vpack.c.b16 %v3600, %v3592
        %v5025 = vpack.c.b16 %v3601, %v3593
        %v5026 = vpack.c.b16 %v3610, %v3602
        %v5027 = vpack.c.b16 %v3611, %v3603
        %v5028 = vpack.c.b16 %v3612, %v3604
        %v5029 = vpack.c.b16 %v3613, %v3605
        %v5030 = vpack.c.b16 %v3614, %v3606
        %v5031 = vpack.c.b16 %v3615, %v3607
        %v5032 = vpack.c.b16 %v3616, %v3608
        %v5033 = vpack.c.b16 %v3617, %v3609
        %v5034 = vpack.c.b16 %v3626, %v3618
        %v5035 = vpack.c.b16 %v3627, %v3619
        %v5036 = vpack.c.b16 %v3628, %v3620
        %v5037 = vpack.c.b16 %v3629, %v3621
        %v5038 = vpack.c.b16 %v3630, %v3622
        %v5039 = vpack.c.b16 %v3631, %v3623
        %v5040 = vpack.c.b16 %v3632, %v3624
        %v5041 = vpack.c.b16 %v3633, %v3625
        %v5042 = vpack.c.b16 %v3642, %v3634
        %v5043 = vpack.c.b16 %v3643, %v3635
        %v5044 = vpack.c.b16 %v3644, %v3636
        %v5045 = vpack.c.b16 %v3645, %v3637
        %v5046 = vpack.c.b16 %v3646, %v3638
        %v5047 = vpack.c.b16 %v3647, %v3639
        %v5048 = vpack.c.b16 %v3648, %v3640
        %v5049 = vpack.c.b16 %v3649, %v3641
        %v5050 = vpack.c.b16 %v3658, %v3650
        %v5051 = vpack.c.b16 %v3659, %v3651
        %v5052 = vpack.c.b16 %v3660, %v3652
        %v5053 = vpack.c.b16 %v3661, %v3653
        %v5054 = vpack.c.b16 %v3662, %v3654
        %v5055 = vpack.c.b16 %v3663, %v3655
        %v5056 = vpack.c.b16 %v3664, %v3656
        %v5057 = vpack.c.b16 %v3665, %v3657
        %v5058 = vpack.c.b16 %v3674, %v3666
        %v5059 = vpack.c.b16 %v3675, %v3667
        %v5060 = vpack.c.b16 %v3676, %v3668
        %v5061 = vpack.c.b16 %v3677, %v3669
        %v5062 = vpack.c.b16 %v3678, %v3670
        %v5063 = vpack.c.b16 %v3679, %v3671
        %v5064 = vpack.c.b16 %v3680, %v3672
        %v5065 = vpack.c.b16 %v3681, %v3673
        %v5066 = vpack.c.b16 %v3690, %v3682
        %v5067 = vpack.c.b16 %v3691, %v3683
        %v5068 = vpack.c.b16 %v3692, %v3684
        %v5069 = vpack.c.b16 %v3693, %v3685
        %v5070 = vpack.c.b16 %v3694, %v3686
        %v5071 = vpack.c.b16 %v3695, %v3687
        %v5072 = vpack.c.b16 %v3696, %v3688
        %v5073 = vpack.c.b16 %v3697, %v3689
        %v5074 = vpack.c.b16 %v3706, %v3698
        %v5075 = vpack.c.b16 %v3707, %v3699
        %v5076 = vpack.c.b16 %v3708, %v3700
        %v5077 = vpack.c.b16 %v3709, %v3701
        %v5078 = vpack.c.b16 %v3710, %v3702
        %v5079 = vpack.c.b16 %v3711, %v3703
        %v5080 = vpack.c.b16 %v3712, %v3704
        %v5081 = vpack.c.b16 %v3713, %v3705
        %v5082 = vpack.c.b16 %v3722, %v3714
        %v5083 = vpack.c.b16 %v3723, %v3715
        %v5084 = vpack.c.b16 %v3724, %v3716
        %v5085 = vpack.c.b16 %v3725, %v3717
        %v5086 = vpack.c.b16 %v3726, %v3718
        %v5087 = vpack.c.b16 %v3727, %v3719
        %v5088 = vpack.c.b16 %v3728, %v3720
        %v5089 = vpack.c.b16 %v3729, %v3721
        %v5090 = vpack.c.b16 %v3738, %v3730
        %v5091 = vpack.c.b16 %v3739, %v3731
        %v5092 = vpack.c.b16 %v3740, %v3732
        %v5093 = vpack.c.b16 %v3741, %v3733
        %v5094 = vpack.c.b16 %v3742, %v3734
        %v5095 = vpack.c.b16 %v3743, %v3735
        %v5096 = vpack.c.b16 %v3744, %v3736
        %v5097 = vpack.c.b16 %v3745, %v3737
        %v5098 = vpack.c.b16 %v3754, %v3746
        %v5099 = vpack.c.b16 %v3755, %v3747
        %v5100 = vpack.c.b16 %v3756, %v3748
        %v5101 = vpack.c.b16 %v3757, %v3749
        %v5102 = vpack.c.b16 %v3758, %v3750
        %v5103 = vpack.c.b16 %v3759, %v3751
        %v5104 = vpack.c.b16 %v3760, %v3752
        %v5105 = vpack.c.b16 %v3761, %v3753
        %v5106 = vpack.c.b16 %v3770, %v3762
        %v5107 = vpack.c.b16 %v3771, %v3763
        %v5108 = vpack.c.b16 %v3772, %v3764
        %v5109 = vpack.c.b16 %v3773, %v3765
        %v5110 = vpack.c.b16 %v3774, %v3766
        %v5111 = vpack.c.b16 %v3775, %v3767
        %v5112 = vpack.c.b16 %v3776, %v3768
        %v5113 = vpack.c.b16 %v3777, %v3769
        %v5114 = vpack.c.b16 %v3786, %v3778
        %v5115 = vpack.c.b16 %v3787, %v3779
        %v5116 = vpack.c.b16 %v3788, %v3780
        %v5117 = vpack.c.b16 %v3789, %v3781
        %v5118 = vpack.c.b16 %v3790, %v3782
        %v5119 = vpack.c.b16 %v3791, %v3783
        %v5120 = vpack.c.b16 %v3792, %v3784
        %v5121 = vpack.c.b16 %v3793, %v3785
        %v5122 = vpack.c.b16 %v3802, %v3794
        %v5123 = vpack.c.b16 %v3803, %v3795
        %v5124 = vpack.c.b16 %v3804, %v3796
        %v5125 = vpack.c.b16 %v3805, %v3797
        %v5126 = vpack.c.b16 %v3806, %v3798
        %v5127 = vpack.c.b16 %v3807, %v3799
        %v5128 = vpack.c.b16 %v3808, %v3800
        %v5129 = vpack.c.b16 %v3809, %v3801
        %v5130 = vpack.c.b16 %v3818, %v3810
        %v5131 = vpack.c.b16 %v3819, %v3811
        %v5132 = vpack.c.b16 %v3820, %v3812
        %v5133 = vpack.c.b16 %v3821, %v3813
        %v5134 = vpack.c.b16 %v3822, %v3814
        %v5135 = vpack.c.b16 %v3823, %v3815
        %v5136 = vpack.c.b16 %v3824, %v3816
        %v5137 = vpack.c.b16 %v3825, %v3817
        %v5138 = vpack.c.b16 %v3834, %v3826
        %v5139 = vpack.c.b16 %v3835, %v3827
        %v5140 = vpack.c.b16 %v3836, %v3828
        %v5141 = vpack.c.b16 %v3837, %v3829
        %v5142 = vpack.c.b16 %v3838, %v3830
        %v5143 = vpack.c.b16 %v3839, %v3831
        %v5144 = vpack.c.b16 %v3840, %v3832
        %v5145 = vpack.c.b16 %v3841, %v3833
        %v5146 = vpack.c.b16 %v3850, %v3842
        %v5147 = vpack.c.b16 %v3851, %v3843
        %v5148 = vpack.c.b16 %v3852, %v3844
        %v5149 = vpack.c.b16 %v3853, %v3845
        %v5150 = vpack.c.b16 %v3854, %v3846
        %v5151 = vpack.c.b16 %v3855, %v3847
        %v5152 = vpack.c.b16 %v3856, %v3848
        %v5153 = vpack.c.b16 %v3857, %v3849
        %v5154 = vpack.c.b16 %v3866, %v3858
        %v5155 = vpack.c.b16 %v3867, %v3859
        %v5156 = vpack.c.b16 %v3868, %v3860
        %v5157 = vpack.c.b16 %v3869, %v3861
        %v5158 = vpack.c.b16 %v3870, %v3862
        %v5159 = vpack.c.b16 %v3871, %v3863
        %v5160 = vpack.c.b16 %v3872, %v3864
        %v5161 = vpack.c.b16 %v3873, %v3865
        %v5162 = vpack.c.b16 %v3882, %v3874
        %v5163 = vpack.c.b16 %v3883, %v3875
        %v5164 = vpack.c.b16 %v3884, %v3876
        %v5165 = vpack.c.b16 %v3885, %v3877
        %v5166 = vpack.c.b16 %v3886, %v3878
        %v5167 = vpack.c.b16 %v3887, %v3879
        %v5168 = vpack.c.b16 %v3888, %v3880
        %v5169 = vpack.c.b16 %v3889, %v3881
        %v5170 = vpack.c.b16 %v3898, %v3890
        %v5171 = vpack.c.b16 %v3899, %v3891
        %v5172 = vpack.c.b16 %v3900, %v3892
        %v5173 = vpack.c.b16 %v3901, %v3893
        %v5174 = vpack.c.b16 %v3902, %v3894
        %v5175 = vpack.c.b16 %v3903, %v3895
        %v5176 = vpack.c.b16 %v3904, %v3896
        %v5177 = vpack.c.b16 %v3905, %v3897
        %v5178 = vpack.c.b16 %v3914, %v3906
        %v5179 = vpack.c.b16 %v3915, %v3907
        %v5180 = vpack.c.b16 %v3916, %v3908
        %v5181 = vpack.c.b16 %v3917, %v3909
        %v5182 = vpack.c.b16 %v3918, %v3910
        %v5183 = vpack.c.b16 %v3919, %v3911
        %v5184 = vpack.c.b16 %v3920, %v3912
        %v5185 = vpack.c.b16 %v3921, %v3913
        %v5186 = vpack.c.b16 %v3930, %v3922
        %v5187 = vpack.c.b16 %v3931, %v3923
        %v5188 = vpack.c.b16 %v3932, %v3924
        %v5189 = vpack.c.b16 %v3933, %v3925
        %v5190 = vpack.c.b16 %v3934, %v3926
        %v5191 = vpack.c.b16 %v3935, %v3927
        %v5192 = vpack.c.b16 %v3936, %v3928
        %v5193 = vpack.c.b16 %v3937, %v3929
        %v5194 = vpack.c.b16 %v3946, %v3938
        %v5195 = vpack.c.b16 %v3947, %v3939
        %v5196 = vpack.c.b16 %v3948, %v3940
        %v5197 = vpack.c.b16 %v3949, %v3941
        %v5198 = vpack.c.b16 %v3950, %v3942
        %v5199 = vpack.c.b16 %v3951, %v3943
        %v5200 = vpack.c.b16 %v3952, %v3944
        %v5201 = vpack.c.b16 %v3953, %v3945
        %v5202 = vpack.c.b16 %v3962, %v3954
        %v5203 = vpack.c.b16 %v3963, %v3955
        %v5204 = vpack.c.b16 %v3964, %v3956
        %v5205 = vpack.c.b16 %v3965, %v3957
        %v5206 = vpack.c.b16 %v3966, %v3958
        %v5207 = vpack.c.b16 %v3967, %v3959
        %v5208 = vpack.c.b16 %v3968, %v3960
        %v5209 = vpack.c.b16 %v3969, %v3961
        %v5210 = vpack.c.b16 %v3978, %v3970
        %v5211 = vpack.c.b16 %v3979, %v3971
        %v5212 = vpack.c.b16 %v3980, %v3972
        %v5213 = vpack.c.b16 %v3981, %v3973
        %v5214 = vpack.c.b16 %v3982, %v3974
        %v5215 = vpack.c.b16 %v3983, %v3975
        %v5216 = vpack.c.b16 %v3984, %v3976
        %v5217 = vpack.c.b16 %v3985, %v3977
        %v5218 = vpack.c.b16 %v3994, %v3986
        %v5219 = vpack.c.b16 %v3995, %v3987
        %v5220 = vpack.c.b16 %v3996, %v3988
        %v5221 = vpack.c.b16 %v3997, %v3989
        %v5222 = vpack.c.b16 %v3998, %v3990
        %v5223 = vpack.c.b16 %v3999, %v3991
        %v5224 = vpack.c.b16 %v4000, %v3992
        %v5225 = vpack.c.b16 %v4001, %v3993
        %v5226 = vpack.c.b16 %v4010, %v4002
        %v5227 = vpack.c.b16 %v4011, %v4003
        %v5228 = vpack.c.b16 %v4012, %v4004
        %v5229 = vpack.c.b16 %v4013, %v4005
        %v5230 = vpack.c.b16 %v4014, %v4006
        %v5231 = vpack.c.b16 %v4015, %v4007
        %v5232 = vpack.c.b16 %v4016, %v4008
        %v5233 = vpack.c.b16 %v4017, %v4009
        %v5234 = vpack.c.b16 %v4026, %v4018
        %v5235 = vpack.c.b16 %v4027, %v4019
        %v5236 = vpack.c.b16 %v4028, %v4020
        %v5237 = vpack.c.b16 %v4029, %v4021
        %v5238 = vpack.c.b16 %v4030, %v4022
        %v5239 = vpack.c.b16 %v4031, %v4023
        %v5240 = vpack.c.b16 %v4032, %v4024
        %v5241 = vpack.c.b16 %v4033, %v4025
        %v5242 = vpack.c.b16 %v4042, %v4034
        %v5243 = vpack.c.b16 %v4043, %v4035
        %v5244 = vpack.c.b16 %v4044, %v4036
        %v5245 = vpack.c.b16 %v4045, %v4037
        %v5246 = vpack.c.b16 %v4046, %v4038
        %v5247 = vpack.c.b16 %v4047, %v4039
        %v5248 = vpack.c.b16 %v4048, %v4040
        %v5249 = vpack.c.b16 %v4049, %v4041
        %v5250 = vpack.c.b16 %v4058, %v4050
        %v5251 = vpack.c.b16 %v4059, %v4051
        %v5252 = vpack.c.b16 %v4060, %v4052
        %v5253 = vpack.c.b16 %v4061, %v4053
        %v5254 = vpack.c.b16 %v4062, %v4054
        %v5255 = vpack.c.b16 %v4063, %v4055
        %v5256 = vpack.c.b16 %v4064, %v4056
        %v5257 = vpack.c.b16 %v4065, %v4057
        %v5258 = vpack.c.b16 %v4074, %v4066
        %v5259 = vpack.c.b16 %v4075, %v4067
        %v5260 = vpack.c.b16 %v4076, %v4068
        %v5261 = vpack.c.b16 %v4077, %v4069
        %v5262 = vpack.c.b16 %v4078, %v4070
        %v5263 = vpack.c.b16 %v4079, %v4071
        %v5264 = vpack.c.b16 %v4080, %v4072
        %v5265 = vpack.c.b16 %v4081, %v4073
        %v5266 = vpack.c.b16 %v4090, %v4082
        %v5267 = vpack.c.b16 %v4091, %v4083
        %v5268 = vpack.c.b16 %v4092, %v4084
        %v5269 = vpack.c.b16 %v4093, %v4085
        %v5270 = vpack.c.b16 %v4094, %v4086
        %v5271 = vpack.c.b16 %v4095, %v4087
        %v5272 = vpack.c.b16 %v4096, %v4088
        %v5273 = vpack.c.b16 %v4097, %v4089
        %v5274 = vpack.c.b16 %v4106, %v4098
        %v5275 = vpack.c.b16 %v4107, %v4099
        %v5276 = vpack.c.b16 %v4108, %v4100
        %v5277 = vpack.c.b16 %v4109, %v4101
        %v5278 = vpack.c.b16 %v4110, %v4102
        %v5279 = vpack.c.b16 %v4111, %v4103
        %v5280 = vpack.c.b16 %v4112, %v4104
        %v5281 = vpack.c.b16 %v4113, %v4105
        %v5282 = vpack.c.b16 %v4122, %v4114
        %v5283 = vpack.c.b16 %v4123, %v4115
        %v5284 = vpack.c.b16 %v4124, %v4116
        %v5285 = vpack.c.b16 %v4125, %v4117
        %v5286 = vpack.c.b16 %v4126, %v4118
        %v5287 = vpack.c.b16 %v4127, %v4119
        %v5288 = vpack.c.b16 %v4128, %v4120
        %v5289 = vpack.c.b16 %v4129, %v4121
        %v5290 = vpack.c.b16 %v4138, %v4130
        %v5291 = vpack.c.b16 %v4139, %v4131
        %v5292 = vpack.c.b16 %v4140, %v4132
        %v5293 = vpack.c.b16 %v4141, %v4133
        %v5294 = vpack.c.b16 %v4142, %v4134
        %v5295 = vpack.c.b16 %v4143, %v4135
        %v5296 = vpack.c.b16 %v4144, %v4136
        %v5297 = vpack.c.b16 %v4145, %v4137
        %v5298 = vpack.c.b16 %v4154, %v4146
        %v5299 = vpack.c.b16 %v4155, %v4147
        %v5300 = vpack.c.b16 %v4156, %v4148
        %v5301 = vpack.c.b16 %v4157, %v4149
        %v5302 = vpack.c.b16 %v4158, %v4150
        %v5303 = vpack.c.b16 %v4159, %v4151
        %v5304 = vpack.c.b16 %v4160, %v4152
        %v5305 = vpack.c.b16 %v4161, %v4153
        %v5306 = vpack.c.b16 %v4170, %v4162
        %v5307 = vpack.c.b16 %v4171, %v4163
        %v5308 = vpack.c.b16 %v4172, %v4164
        %v5309 = vpack.c.b16 %v4173, %v4165
        %v5310 = vpack.c.b16 %v4174, %v4166
        %v5311 = vpack.c.b16 %v4175, %v4167
        %v5312 = vpack.c.b16 %v4176, %v4168
        %v5313 = vpack.c.b16 %v4177, %v4169
        %v5314 = vpack.c.b16 %v4186, %v4178
        %v5315 = vpack.c.b16 %v4187, %v4179
        %v5316 = vpack.c.b16 %v4188, %v4180
        %v5317 = vpack.c.b16 %v4189, %v4181
        %v5318 = vpack.c.b16 %v4190, %v4182
        %v5319 = vpack.c.b16 %v4191, %v4183
        %v5320 = vpack.c.b16 %v4192, %v4184
        %v5321 = vpack.c.b16 %v4193, %v4185
        %v5322 = vpack.c.b16 %v4202, %v4194
        %v5323 = vpack.c.b16 %v4203, %v4195
        %v5324 = vpack.c.b16 %v4204, %v4196
        %v5325 = vpack.c.b16 %v4205, %v4197
        %v5326 = vpack.c.b16 %v4206, %v4198
        %v5327 = vpack.c.b16 %v4207, %v4199
        %v5328 = vpack.c.b16 %v4208, %v4200
        %v5329 = vpack.c.b16 %v4209, %v4201
        %v5330 = vpack.c.b16 %v4218, %v4210
        %v5331 = vpack.c.b16 %v4219, %v4211
        %v5332 = vpack.c.b16 %v4220, %v4212
        %v5333 = vpack.c.b16 %v4221, %v4213
        %v5334 = vpack.c.b16 %v4222, %v4214
        %v5335 = vpack.c.b16 %v4223, %v4215
        %v5336 = vpack.c.b16 %v4224, %v4216
        %v5337 = vpack.c.b16 %v4225, %v4217
        %v5338 = vpack.c.b16 %v4234, %v4226
        %v5339 = vpack.c.b16 %v4235, %v4227
        %v5340 = vpack.c.b16 %v4236, %v4228
        %v5341 = vpack.c.b16 %v4237, %v4229
        %v5342 = vpack.c.b16 %v4238, %v4230
        %v5343 = vpack.c.b16 %v4239, %v4231
        %v5344 = vpack.c.b16 %v4240, %v4232
        %v5345 = vpack.c.b16 %v4241, %v4233
        %v5346 = vpack.c.b16 %v4250, %v4242
        %v5347 = vpack.c.b16 %v4251, %v4243
        %v5348 = vpack.c.b16 %v4252, %v4244
        %v5349 = vpack.c.b16 %v4253, %v4245
        %v5350 = vpack.c.b16 %v4254, %v4246
        %v5351 = vpack.c.b16 %v4255, %v4247
        %v5352 = vpack.c.b16 %v4256, %v4248
        %v5353 = vpack.c.b16 %v4257, %v4249
        %v5354 = vpack.c.b16 %v4266, %v4258
        %v5355 = vpack.c.b16 %v4267, %v4259
        %v5356 = vpack.c.b16 %v4268, %v4260
        %v5357 = vpack.c.b16 %v4269, %v4261
        %v5358 = vpack.c.b16 %v4270, %v4262
        %v5359 = vpack.c.b16 %v4271, %v4263
        %v5360 = vpack.c.b16 %v4272, %v4264
        %v5361 = vpack.c.b16 %v4273, %v4265
        %v5362 = vpack.c.b16 %v4282, %v4274
        %v5363 = vpack.c.b16 %v4283, %v4275
        %v5364 = vpack.c.b16 %v4284, %v4276
        %v5365 = vpack.c.b16 %v4285, %v4277
        %v5366 = vpack.c.b16 %v4286, %v4278
        %v5367 = vpack.c.b16 %v4287, %v4279
        %v5368 = vpack.c.b16 %v4288, %v4280
        %v5369 = vpack.c.b16 %v4289, %v4281
        %v5370 = vpack.c.b16 %v4298, %v4290
        %v5371 = vpack.c.b16 %v4299, %v4291
        %v5372 = vpack.c.b16 %v4300, %v4292
        %v5373 = vpack.c.b16 %v4301, %v4293
        %v5374 = vpack.c.b16 %v4302, %v4294
        %v5375 = vpack.c.b16 %v4303, %v4295
        %v5376 = vpack.c.b16 %v4304, %v4296
        %v5377 = vpack.c.b16 %v4305, %v4297
        %v5378 = vpack.c.b16 %v4314, %v4306
        %v5379 = vpack.c.b16 %v4315, %v4307
        %v5380 = vpack.c.b16 %v4316, %v4308
        %v5381 = vpack.c.b16 %v4317, %v4309
        %v5382 = vpack.c.b16 %v4318, %v4310
        %v5383 = vpack.c.b16 %v4319, %v4311
        %v5384 = vpack.c.b16 %v4320, %v4312
        %v5385 = vpack.c.b16 %v4321, %v4313
        %v5386 = vpack.c.b16 %v4330, %v4322
        %v5387 = vpack.c.b16 %v4331, %v4323
        %v5388 = vpack.c.b16 %v4332, %v4324
        %v5389 = vpack.c.b16 %v4333, %v4325
        %v5390 = vpack.c.b16 %v4334, %v4326
        %v5391 = vpack.c.b16 %v4335, %v4327
        %v5392 = vpack.c.b16 %v4336, %v4328
        %v5393 = vpack.c.b16 %v4337, %v4329
        %v5394 = vpack.c.b16 %v4346, %v4338
        %v5395 = vpack.c.b16 %v4347, %v4339
        %v5396 = vpack.c.b16 %v4348, %v4340
        %v5397 = vpack.c.b16 %v4349, %v4341
        %v5398 = vpack.c.b16 %v4350, %v4342
        %v5399 = vpack.c.b16 %v4351, %v4343
        %v5400 = vpack.c.b16 %v4352, %v4344
        %v5401 = vpack.c.b16 %v4353, %v4345
        %v5402 = vpack.c.b16 %v4362, %v4354
        %v5403 = vpack.c.b16 %v4363, %v4355
        %v5404 = vpack.c.b16 %v4364, %v4356
        %v5405 = vpack.c.b16 %v4365, %v4357
        %v5406 = vpack.c.b16 %v4366, %v4358
        %v5407 = vpack.c.b16 %v4367, %v4359
        %v5408 = vpack.c.b16 %v4368, %v4360
        %v5409 = vpack.c.b16 %v4369, %v4361
        %v5410 = vpack.c.b16 %v4378, %v4370
        %v5411 = vpack.c.b16 %v4379, %v4371
        %v5412 = vpack.c.b16 %v4380, %v4372
        %v5413 = vpack.c.b16 %v4381, %v4373
        %v5414 = vpack.c.b16 %v4382, %v4374
        %v5415 = vpack.c.b16 %v4383, %v4375
        %v5416 = vpack.c.b16 %v4384, %v4376
        %v5417 = vpack.c.b16 %v4385, %v4377
        %v5418 = vpack.c.b16 %v4394, %v4386
        %v5419 = vpack.c.b16 %v4395, %v4387
        %v5420 = vpack.c.b16 %v4396, %v4388
        %v5421 = vpack.c.b16 %v4397, %v4389
        %v5422 = vpack.c.b16 %v4398, %v4390
        %v5423 = vpack.c.b16 %v4399, %v4391
        %v5424 = vpack.c.b16 %v4400, %v4392
        %v5425 = vpack.c.b16 %v4401, %v4393
        %6450 = vmatprep.subr.bf16.mxu0 %v4403
        %6451 = vmatpush1.bf16.msra.mxu0 %v4402
        %6452 = vmatprep.subr.bf16.mxu0 %v4411
        %6453 = vmatpush1.bf16.msra.mxu0 %v4410
        %6454 = vmatprep.subr.bf16.mxu0 %v4419
        %6455 = vmatpush1.bf16.msra.mxu0 %v4418
        %6456 = vmatprep.subr.bf16.mxu0 %v4427
        %6457 = vmatpush1.bf16.msra.mxu0 %v4426
        %6458 = vmatprep.subr.bf16.mxu0 %v4435
        %6459 = vmatpush1.bf16.msra.mxu0 %v4434
        %6460 = vmatprep.subr.bf16.mxu0 %v4443
        %6461 = vmatpush1.bf16.msra.mxu0 %v4442
        %6462 = vmatprep.subr.bf16.mxu0 %v4451
        %6463 = vmatpush1.bf16.msra.mxu0 %v4450
        %6464 = vmatprep.subr.bf16.mxu0 %v4459
        %6465 = vmatpush1.bf16.msra.mxu0 %v4458
        %6466 = vmatprep.subr.bf16.mxu0 %v4467
        %6467 = vmatpush1.bf16.msra.mxu0 %v4466
        %6468 = vmatprep.subr.bf16.mxu0 %v4475
        %6469 = vmatpush1.bf16.msra.mxu0 %v4474
        %6470 = vmatprep.subr.bf16.mxu0 %v4483
        %6471 = vmatpush1.bf16.msra.mxu0 %v4482
        %6472 = vmatprep.subr.bf16.mxu0 %v4491
        %6473 = vmatpush1.bf16.msra.mxu0 %v4490
        %6474 = vmatprep.subr.bf16.mxu0 %v4499
        %6475 = vmatpush1.bf16.msra.mxu0 %v4498
        %6476 = vmatprep.subr.bf16.mxu0 %v4507
        %6477 = vmatpush1.bf16.msra.mxu0 %v4506
        %6478 = vmatprep.subr.bf16.mxu0 %v4515
        %6479 = vmatpush1.bf16.msra.mxu0 %v4514
        %6480 = vmatprep.subr.bf16.mxu0 %v4523
        %6481 = vmatpush1.bf16.msra.mxu0 %v4522
        %6482 = vmatprep.mubr.bf16.mxu0 %v249
        %6483 = vmatmul.mubr.bf16.gmra.mrb[0].mxu0 %v248
        %v6484 = vpop.f32.mrb[0].mxu0
        %v6485 = vadd.f32 %v1293, %v6484
        %v6486 = vpop.f32.mrb[0].mxu0
        %v6487 = vadd.f32 %v1297, %v6486
        %v6488 = vpop.f32.mrb[0].mxu0
        %v6489 = vpop.f32.mrb[0].mxu0
        %6490 = vdwg.mxu0
        %6491 = vmatprep.subr.bf16.mxu0 %v4531
        %6492 = vmatpush1.bf16.msra.mxu0 %v4530
        %6493 = vmatprep.subr.bf16.mxu0 %v4539
        %6494 = vmatpush1.bf16.msra.mxu0 %v4538
        %6495 = vmatprep.subr.bf16.mxu0 %v4547
        %6496 = vmatpush1.bf16.msra.mxu0 %v4546
        %6497 = vmatprep.subr.bf16.mxu0 %v4555
        %6498 = vmatpush1.bf16.msra.mxu0 %v4554
        %6499 = vmatprep.subr.bf16.mxu0 %v4563
        %6500 = vmatpush1.bf16.msra.mxu0 %v4562
        %6501 = vmatprep.subr.bf16.mxu0 %v4571
        %6502 = vmatpush1.bf16.msra.mxu0 %v4570
        %6503 = vmatprep.subr.bf16.mxu0 %v4579
        %6504 = vmatpush1.bf16.msra.mxu0 %v4578
        %6505 = vmatprep.subr.bf16.mxu0 %v4587
        %6506 = vmatpush1.bf16.msra.mxu0 %v4586
        %6507 = vmatprep.subr.bf16.mxu0 %v4595
        %6508 = vmatpush1.bf16.msra.mxu0 %v4594
        %6509 = vmatprep.subr.bf16.mxu0 %v4603
        %6510 = vmatpush1.bf16.msra.mxu0 %v4602
        %6511 = vmatprep.subr.bf16.mxu0 %v4611
        %6512 = vmatpush1.bf16.msra.mxu0 %v4610
        %6513 = vmatprep.subr.bf16.mxu0 %v4619
        %6514 = vmatpush1.bf16.msra.mxu0 %v4618
        %6515 = vmatprep.subr.bf16.mxu0 %v4627
        %6516 = vmatpush1.bf16.msra.mxu0 %v4626
        %6517 = vmatprep.subr.bf16.mxu0 %v4635
        %6518 = vmatpush1.bf16.msra.mxu0 %v4634
        %6519 = vmatprep.subr.bf16.mxu0 %v4643
        %6520 = vmatpush1.bf16.msra.mxu0 %v4642
        %6521 = vmatprep.subr.bf16.mxu0 %v4651
        %6522 = vmatpush1.bf16.msra.mxu0 %v4650
        %6523 = vmatprep.mubr.bf16.mxu0 %v251
        %6524 = vmatmul.mubr.bf16.gmra.mrb[0].mxu0 %v250
        %v6525 = vpop.f32.mrb[0].mxu0
        %v6526 = vadd.f32 %v6485, %v6525
        %v6527 = vpop.f32.mrb[0].mxu0
        %v6528 = vadd.f32 %v6487, %v6527
        %v6529 = vpop.f32.mrb[0].mxu0
        %v6530 = vpop.f32.mrb[0].mxu0
        %6531 = vdwg.mxu0
        %6532 = vmatprep.subr.bf16.mxu0 %v4659
        %6533 = vmatpush1.bf16.msra.mxu0 %v4658
        %6534 = vmatprep.subr.bf16.mxu0 %v4667
        %6535 = vmatpush1.bf16.msra.mxu0 %v4666
        %6536 = vmatprep.subr.bf16.mxu0 %v4675
        %6537 = vmatpush1.bf16.msra.mxu0 %v4674
        %6538 = vmatprep.subr.bf16.mxu0 %v4683
        %6539 = vmatpush1.bf16.msra.mxu0 %v4682
        %6540 = vmatprep.subr.bf16.mxu0 %v4691
        %6541 = vmatpush1.bf16.msra.mxu0 %v4690
        %6542 = vmatprep.subr.bf16.mxu0 %v4699
        %6543 = vmatpush1.bf16.msra.mxu0 %v4698
        %6544 = vmatprep.subr.bf16.mxu0 %v4707
        %6545 = vmatpush1.bf16.msra.mxu0 %v4706
        %6546 = vmatprep.subr.bf16.mxu0 %v4715
        %6547 = vmatpush1.bf16.msra.mxu0 %v4714
        %6548 = vmatprep.subr.bf16.mxu0 %v4723
        %6549 = vmatpush1.bf16.msra.mxu0 %v4722
        %6550 = vmatprep.subr.bf16.mxu0 %v4731
        %6551 = vmatpush1.bf16.msra.mxu0 %v4730
        %6552 = vmatprep.subr.bf16.mxu0 %v4739
        %6553 = vmatpush1.bf16.msra.mxu0 %v4738
        %6554 = vmatprep.subr.bf16.mxu0 %v4747
        %6555 = vmatpush1.bf16.msra.mxu0 %v4746
        %6556 = vmatprep.subr.bf16.mxu0 %v4755
        %6557 = vmatpush1.bf16.msra.mxu0 %v4754
        %6558 = vmatprep.subr.bf16.mxu0 %v4763
        %6559 = vmatpush1.bf16.msra.mxu0 %v4762
        %6560 = vmatprep.subr.bf16.mxu0 %v4771
        %6561 = vmatpush1.bf16.msra.mxu0 %v4770
        %6562 = vmatprep.subr.bf16.mxu0 %v4779
        %6563 = vmatpush1.bf16.msra.mxu0 %v4778
        %6564 = vmatprep.mubr.bf16.mxu0 %v253
        %6565 = vmatmul.mubr.bf16.gmra.mrb[0].mxu0 %v252
        %v6566 = vpop.f32.mrb[0].mxu0
        %v6567 = vadd.f32 %v6526, %v6566
        %v6568 = vpop.f32.mrb[0].mxu0
        %v6569 = vadd.f32 %v6528, %v6568
        %v6570 = vpop.f32.mrb[0].mxu0
        %v6571 = vpop.f32.mrb[0].mxu0
        %6572 = vdwg.mxu0
        %6573 = vmatprep.subr.bf16.mxu0 %v4787
        %6574 = vmatpush1.bf16.msra.mxu0 %v4786
        %6575 = vmatprep.subr.bf16.mxu0 %v4795
        %6576 = vmatpush1.bf16.msra.mxu0 %v4794
        %6577 = vmatprep.subr.bf16.mxu0 %v4803
        %6578 = vmatpush1.bf16.msra.mxu0 %v4802
        %6579 = vmatprep.subr.bf16.mxu0 %v4811
        %6580 = vmatpush1.bf16.msra.mxu0 %v4810
        %6581 = vmatprep.subr.bf16.mxu0 %v4819
        %6582 = vmatpush1.bf16.msra.mxu0 %v4818
        %6583 = vmatprep.subr.bf16.mxu0 %v4827
        %6584 = vmatpush1.bf16.msra.mxu0 %v4826
        %6585 = vmatprep.subr.bf16.mxu0 %v4835
        %6586 = vmatpush1.bf16.msra.mxu0 %v4834
        %6587 = vmatprep.subr.bf16.mxu0 %v4843
        %6588 = vmatpush1.bf16.msra.mxu0 %v4842
        %6589 = vmatprep.subr.bf16.mxu0 %v4851
        %6590 = vmatpush1.bf16.msra.mxu0 %v4850
        %6591 = vmatprep.subr.bf16.mxu0 %v4859
        %6592 = vmatpush1.bf16.msra.mxu0 %v4858
        %6593 = vmatprep.subr.bf16.mxu0 %v4867
        %6594 = vmatpush1.bf16.msra.mxu0 %v4866
        %6595 = vmatprep.subr.bf16.mxu0 %v4875
        %6596 = vmatpush1.bf16.msra.mxu0 %v4874
        %6597 = vmatprep.subr.bf16.mxu0 %v4883
        %6598 = vmatpush1.bf16.msra.mxu0 %v4882
        %6599 = vmatprep.subr.bf16.mxu0 %v4891
        %6600 = vmatpush1.bf16.msra.mxu0 %v4890
        %6601 = vmatprep.subr.bf16.mxu0 %v4899
        %6602 = vmatpush1.bf16.msra.mxu0 %v4898
        %6603 = vmatprep.subr.bf16.mxu0 %v4907
        %6604 = vmatpush1.bf16.msra.mxu0 %v4906
        %6605 = vmatprep.mubr.bf16.mxu0 %v255
        %6606 = vmatmul.mubr.bf16.gmra.mrb[0].mxu0 %v254
        %v6607 = vpop.f32.mrb[0].mxu0
        %v6608 = vadd.f32 %v6567, %v6607
        %v6609 = vpop.f32.mrb[0].mxu0
        %v6610 = vadd.f32 %v6569, %v6609
        %v6611 = vpop.f32.mrb[0].mxu0
        %v6612 = vpop.f32.mrb[0].mxu0
        %6613 = vdwg.mxu0
        %6614 = vmatprep.subr.bf16.mxu0 %v4915
        %6615 = vmatpush1.bf16.msra.mxu0 %v4914
        %6616 = vmatprep.subr.bf16.mxu0 %v4923
        %6617 = vmatpush1.bf16.msra.mxu0 %v4922
        %6618 = vmatprep.subr.bf16.mxu0 %v4931
        %6619 = vmatpush1.bf16.msra.mxu0 %v4930
        %6620 = vmatprep.subr.bf16.mxu0 %v4939
        %6621 = vmatpush1.bf16.msra.mxu0 %v4938
        %6622 = vmatprep.subr.bf16.mxu0 %v4947
        %6623 = vmatpush1.bf16.msra.mxu0 %v4946
        %6624 = vmatprep.subr.bf16.mxu0 %v4955
        %6625 = vmatpush1.bf16.msra.mxu0 %v4954
        %6626 = vmatprep.subr.bf16.mxu0 %v4963
        %6627 = vmatpush1.bf16.msra.mxu0 %v4962
        %6628 = vmatprep.subr.bf16.mxu0 %v4971
        %6629 = vmatpush1.bf16.msra.mxu0 %v4970
        %6630 = vmatprep.subr.bf16.mxu0 %v4979
        %6631 = vmatpush1.bf16.msra.mxu0 %v4978
        %6632 = vmatprep.subr.bf16.mxu0 %v4987
        %6633 = vmatpush1.bf16.msra.mxu0 %v4986
        %6634 = vmatprep.subr.bf16.mxu0 %v4995
        %6635 = vmatpush1.bf16.msra.mxu0 %v4994
        %6636 = vmatprep.subr.bf16.mxu0 %v5003
        %6637 = vmatpush1.bf16.msra.mxu0 %v5002
        %6638 = vmatprep.subr.bf16.mxu0 %v5011
        %6639 = vmatpush1.bf16.msra.mxu0 %v5010
        %6640 = vmatprep.subr.bf16.mxu0 %v5019
        %6641 = vmatpush1.bf16.msra.mxu0 %v5018
        %6642 = vmatprep.subr.bf16.mxu0 %v5027
        %6643 = vmatpush1.bf16.msra.mxu0 %v5026
        %6644 = vmatprep.subr.bf16.mxu0 %v5035
        %6645 = vmatpush1.bf16.msra.mxu0 %v5034
        %6646 = vmatprep.mubr.bf16.mxu0 %v257
        %6647 = vmatmul.mubr.bf16.gmra.mrb[0].mxu0 %v256
        %v6648 = vpop.f32.mrb[0].mxu0
        %v6649 = vadd.f32 %v6608, %v6648
        %v6650 = vpop.f32.mrb[0].mxu0
        %v6651 = vadd.f32 %v6610, %v6650
        %v6652 = vpop.f32.mrb[0].mxu0
        %v6653 = vpop.f32.mrb[0].mxu0
        %6654 = vdwg.mxu0
        %6655 = vmatprep.subr.bf16.mxu0 %v5043
        %6656 = vmatpush1.bf16.msra.mxu0 %v5042
        %6657 = vmatprep.subr.bf16.mxu0 %v5051
        %6658 = vmatpush1.bf16.msra.mxu0 %v5050
        %6659 = vmatprep.subr.bf16.mxu0 %v5059
        %6660 = vmatpush1.bf16.msra.mxu0 %v5058
        %6661 = vmatprep.subr.bf16.mxu0 %v5067
        %6662 = vmatpush1.bf16.msra.mxu0 %v5066
        %6663 = vmatprep.subr.bf16.mxu0 %v5075
        %6664 = vmatpush1.bf16.msra.mxu0 %v5074
        %6665 = vmatprep.subr.bf16.mxu0 %v5083
        %6666 = vmatpush1.bf16.msra.mxu0 %v5082
        %6667 = vmatprep.subr.bf16.mxu0 %v5091
        %6668 = vmatpush1.bf16.msra.mxu0 %v5090
        %6669 = vmatprep.subr.bf16.mxu0 %v5099
        %6670 = vmatpush1.bf16.msra.mxu0 %v5098
        %6671 = vmatprep.subr.bf16.mxu0 %v5107
        %6672 = vmatpush1.bf16.msra.mxu0 %v5106
        %6673 = vmatprep.subr.bf16.mxu0 %v5115
        %6674 = vmatpush1.bf16.msra.mxu0 %v5114
        %6675 = vmatprep.subr.bf16.mxu0 %v5123
        %6676 = vmatpush1.bf16.msra.mxu0 %v5122
        %6677 = vmatprep.subr.bf16.mxu0 %v5131
        %6678 = vmatpush1.bf16.msra.mxu0 %v5130
        %6679 = vmatprep.subr.bf16.mxu0 %v5139
        %6680 = vmatpush1.bf16.msra.mxu0 %v5138
        %6681 = vmatprep.subr.bf16.mxu0 %v5147
        %6682 = vmatpush1.bf16.msra.mxu0 %v5146
        %6683 = vmatprep.subr.bf16.mxu0 %v5155
        %6684 = vmatpush1.bf16.msra.mxu0 %v5154
        %6685 = vmatprep.subr.bf16.mxu0 %v5163
        %6686 = vmatpush1.bf16.msra.mxu0 %v5162
        %6687 = vmatprep.mubr.bf16.mxu0 %v259
        %6688 = vmatmul.mubr.bf16.gmra.mrb[0].mxu0 %v258
        %v6689 = vpop.f32.mrb[0].mxu0
        %v6690 = vadd.f32 %v6649, %v6689
        %v6691 = vpop.f32.mrb[0].mxu0
        %v6692 = vadd.f32 %v6651, %v6691
        %v6693 = vpop.f32.mrb[0].mxu0
        %v6694 = vpop.f32.mrb[0].mxu0
        %6695 = vdwg.mxu0
        %6696 = vmatprep.subr.bf16.mxu0 %v5171
        %6697 = vmatpush1.bf16.msra.mxu0 %v5170
        %6698 = vmatprep.subr.bf16.mxu0 %v5179
        %6699 = vmatpush1.bf16.msra.mxu0 %v5178
        %6700 = vmatprep.subr.bf16.mxu0 %v5187
        %6701 = vmatpush1.bf16.msra.mxu0 %v5186
        %6702 = vmatprep.subr.bf16.mxu0 %v5195
        %6703 = vmatpush1.bf16.msra.mxu0 %v5194
        %6704 = vmatprep.subr.bf16.mxu0 %v5203
        %6705 = vmatpush1.bf16.msra.mxu0 %v5202
        %6706 = vmatprep.subr.bf16.mxu0 %v5211
        %6707 = vmatpush1.bf16.msra.mxu0 %v5210
        %6708 = vmatprep.subr.bf16.mxu0 %v5219
        %6709 = vmatpush1.bf16.msra.mxu0 %v5218
        %6710 = vmatprep.subr.bf16.mxu0 %v5227
        %6711 = vmatpush1.bf16.msra.mxu0 %v5226
        %6712 = vmatprep.subr.bf16.mxu0 %v5235
        %6713 = vmatpush1.bf16.msra.mxu0 %v5234
        %6714 = vmatprep.subr.bf16.mxu0 %v5243
        %6715 = vmatpush1.bf16.msra.mxu0 %v5242
        %6716 = vmatprep.subr.bf16.mxu0 %v5251
        %6717 = vmatpush1.bf16.msra.mxu0 %v5250
        %6718 = vmatprep.subr.bf16.mxu0 %v5259
        %6719 = vmatpush1.bf16.msra.mxu0 %v5258
        %6720 = vmatprep.subr.bf16.mxu0 %v5267
        %6721 = vmatpush1.bf16.msra.mxu0 %v5266
        %6722 = vmatprep.subr.bf16.mxu0 %v5275
        %6723 = vmatpush1.bf16.msra.mxu0 %v5274
        %6724 = vmatprep.subr.bf16.mxu0 %v5283
        %6725 = vmatpush1.bf16.msra.mxu0 %v5282
        %6726 = vmatprep.subr.bf16.mxu0 %v5291
        %6727 = vmatpush1.bf16.msra.mxu0 %v5290
        %6728 = vmatprep.mubr.bf16.mxu0 %v261
        %6729 = vmatmul.mubr.bf16.gmra.mrb[0].mxu0 %v260
        %v6730 = vpop.f32.mrb[0].mxu0
        %v6731 = vadd.f32 %v6690, %v6730
        %v6732 = vpop.f32.mrb[0].mxu0
        %v6733 = vadd.f32 %v6692, %v6732
        %v6734 = vpop.f32.mrb[0].mxu0
        %v6735 = vpop.f32.mrb[0].mxu0
        %6736 = vdwg.mxu0
        %6737 = vmatprep.subr.bf16.mxu0 %v5299
        %6738 = vmatpush1.bf16.msra.mxu0 %v5298
        %6739 = vmatprep.subr.bf16.mxu0 %v5307
        %6740 = vmatpush1.bf16.msra.mxu0 %v5306
        %6741 = vmatprep.subr.bf16.mxu0 %v5315
        %6742 = vmatpush1.bf16.msra.mxu0 %v5314
        %6743 = vmatprep.subr.bf16.mxu0 %v5323
        %6744 = vmatpush1.bf16.msra.mxu0 %v5322
        %6745 = vmatprep.subr.bf16.mxu0 %v5331
        %6746 = vmatpush1.bf16.msra.mxu0 %v5330
        %6747 = vmatprep.subr.bf16.mxu0 %v5339
        %6748 = vmatpush1.bf16.msra.mxu0 %v5338
        %6749 = vmatprep.subr.bf16.mxu0 %v5347
        %6750 = vmatpush1.bf16.msra.mxu0 %v5346
        %6751 = vmatprep.subr.bf16.mxu0 %v5355
        %6752 = vmatpush1.bf16.msra.mxu0 %v5354
        %6753 = vmatprep.subr.bf16.mxu0 %v5363
        %6754 = vmatpush1.bf16.msra.mxu0 %v5362
        %6755 = vmatprep.subr.bf16.mxu0 %v5371
        %6756 = vmatpush1.bf16.msra.mxu0 %v5370
        %6757 = vmatprep.subr.bf16.mxu0 %v5379
        %6758 = vmatpush1.bf16.msra.mxu0 %v5378
        %6759 = vmatprep.subr.bf16.mxu0 %v5387
        %6760 = vmatpush1.bf16.msra.mxu0 %v5386
        %6761 = vmatprep.subr.bf16.mxu0 %v5395
        %6762 = vmatpush1.bf16.msra.mxu0 %v5394
        %6763 = vmatprep.subr.bf16.mxu0 %v5403
        %6764 = vmatpush1.bf16.msra.mxu0 %v5402
        %6765 = vmatprep.subr.bf16.mxu0 %v5411
        %6766 = vmatpush1.bf16.msra.mxu0 %v5410
        %6767 = vmatprep.subr.bf16.mxu0 %v5419
        %6768 = vmatpush1.bf16.msra.mxu0 %v5418
        %6769 = vmatprep.mubr.bf16.mxu0 %v263
        %6770 = vmatmul.mubr.bf16.gmra.mrb[0].mxu0 %v262
        %v6771 = vpop.f32.mrb[0].mxu0
        %v6772 = vadd.f32 %v6731, %v6771
        %v6773 = vpop.f32.mrb[0].mxu0
        %v6774 = vadd.f32 %v6733, %v6773
        %v6775 = vpop.f32.mrb[0].mxu0
        %v6776 = vpop.f32.mrb[0].mxu0
        %6777 = vdwg.mxu0
        %6778 = vmatprep.subr.bf16.mxu0 %v4405
        %6779 = vmatpush1.bf16.msra.mxu0 %v4404
        %6780 = vmatprep.subr.bf16.mxu0 %v4413
        %6781 = vmatpush1.bf16.msra.mxu0 %v4412
        %6782 = vmatprep.subr.bf16.mxu0 %v4421
        %6783 = vmatpush1.bf16.msra.mxu0 %v4420
        %6784 = vmatprep.subr.bf16.mxu0 %v4429
        %6785 = vmatpush1.bf16.msra.mxu0 %v4428
        %6786 = vmatprep.subr.bf16.mxu0 %v4437
        %6787 = vmatpush1.bf16.msra.mxu0 %v4436
        %6788 = vmatprep.subr.bf16.mxu0 %v4445
        %6789 = vmatpush1.bf16.msra.mxu0 %v4444
        %6790 = vmatprep.subr.bf16.mxu0 %v4453
        %6791 = vmatpush1.bf16.msra.mxu0 %v4452
        %6792 = vmatprep.subr.bf16.mxu0 %v4461
        %6793 = vmatpush1.bf16.msra.mxu0 %v4460
        %6794 = vmatprep.subr.bf16.mxu0 %v4469
        %6795 = vmatpush1.bf16.msra.mxu0 %v4468
        %6796 = vmatprep.subr.bf16.mxu0 %v4477
        %6797 = vmatpush1.bf16.msra.mxu0 %v4476
        %6798 = vmatprep.subr.bf16.mxu0 %v4485
        %6799 = vmatpush1.bf16.msra.mxu0 %v4484
        %6800 = vmatprep.subr.bf16.mxu0 %v4493
        %6801 = vmatpush1.bf16.msra.mxu0 %v4492
        %6802 = vmatprep.subr.bf16.mxu0 %v4501
        %6803 = vmatpush1.bf16.msra.mxu0 %v4500
        %6804 = vmatprep.subr.bf16.mxu0 %v4509
        %6805 = vmatpush1.bf16.msra.mxu0 %v4508
        %6806 = vmatprep.subr.bf16.mxu0 %v4517
        %6807 = vmatpush1.bf16.msra.mxu0 %v4516
        %6808 = vmatprep.subr.bf16.mxu0 %v4525
        %6809 = vmatpush1.bf16.msra.mxu0 %v4524
        %6810 = vmatprep.mubr.bf16.mxu0 %v249
        %6811 = vmatmul.mubr.bf16.gmra.mrb[0].mxu0 %v248
        %v6812 = vpop.f32.mrb[0].mxu0
        %v6813 = vadd.f32 %v1301, %v6812
        %v6814 = vpop.f32.mrb[0].mxu0
        %v6815 = vadd.f32 %v1305, %v6814
        %v6816 = vpop.f32.mrb[0].mxu0
        %v6817 = vpop.f32.mrb[0].mxu0
        %6818 = vdwg.mxu0
        %6819 = vmatprep.subr.bf16.mxu0 %v4533
        %6820 = vmatpush1.bf16.msra.mxu0 %v4532
        %6821 = vmatprep.subr.bf16.mxu0 %v4541
        %6822 = vmatpush1.bf16.msra.mxu0 %v4540
        %6823 = vmatprep.subr.bf16.mxu0 %v4549
        %6824 = vmatpush1.bf16.msra.mxu0 %v4548
        %6825 = vmatprep.subr.bf16.mxu0 %v4557
        %6826 = vmatpush1.bf16.msra.mxu0 %v4556
        %6827 = vmatprep.subr.bf16.mxu0 %v4565
        %6828 = vmatpush1.bf16.msra.mxu0 %v4564
        %6829 = vmatprep.subr.bf16.mxu0 %v4573
        %6830 = vmatpush1.bf16.msra.mxu0 %v4572
        %6831 = vmatprep.subr.bf16.mxu0 %v4581
        %6832 = vmatpush1.bf16.msra.mxu0 %v4580
        %6833 = vmatprep.subr.bf16.mxu0 %v4589
        %6834 = vmatpush1.bf16.msra.mxu0 %v4588
        %6835 = vmatprep.subr.bf16.mxu0 %v4597
        %6836 = vmatpush1.bf16.msra.mxu0 %v4596
        %6837 = vmatprep.subr.bf16.mxu0 %v4605
        %6838 = vmatpush1.bf16.msra.mxu0 %v4604
        %6839 = vmatprep.subr.bf16.mxu0 %v4613
        %6840 = vmatpush1.bf16.msra.mxu0 %v4612
        %6841 = vmatprep.subr.bf16.mxu0 %v4621
        %6842 = vmatpush1.bf16.msra.mxu0 %v4620
        %6843 = vmatprep.subr.bf16.mxu0 %v4629
        %6844 = vmatpush1.bf16.msra.mxu0 %v4628
        %6845 = vmatprep.subr.bf16.mxu0 %v4637
        %6846 = vmatpush1.bf16.msra.mxu0 %v4636
        %6847 = vmatprep.subr.bf16.mxu0 %v4645
        %6848 = vmatpush1.bf16.msra.mxu0 %v4644
        %6849 = vmatprep.subr.bf16.mxu0 %v4653
        %6850 = vmatpush1.bf16.msra.mxu0 %v4652
        %6851 = vmatprep.mubr.bf16.mxu0 %v251
        %6852 = vmatmul.mubr.bf16.gmra.mrb[0].mxu0 %v250
        %v6853 = vpop.f32.mrb[0].mxu0
        %v6854 = vadd.f32 %v6813, %v6853
        %v6855 = vpop.f32.mrb[0].mxu0
        %v6856 = vadd.f32 %v6815, %v6855
        %v6857 = vpop.f32.mrb[0].mxu0
        %v6858 = vpop.f32.mrb[0].mxu0
        %6859 = vdwg.mxu0
        %6860 = vmatprep.subr.bf16.mxu0 %v4661
        %6861 = vmatpush1.bf16.msra.mxu0 %v4660
        %6862 = vmatprep.subr.bf16.mxu0 %v4669
        %6863 = vmatpush1.bf16.msra.mxu0 %v4668
        %6864 = vmatprep.subr.bf16.mxu0 %v4677
        %6865 = vmatpush1.bf16.msra.mxu0 %v4676
        %6866 = vmatprep.subr.bf16.mxu0 %v4685
        %6867 = vmatpush1.bf16.msra.mxu0 %v4684
        %6868 = vmatprep.subr.bf16.mxu0 %v4693
        %6869 = vmatpush1.bf16.msra.mxu0 %v4692
        %6870 = vmatprep.subr.bf16.mxu0 %v4701
        %6871 = vmatpush1.bf16.msra.mxu0 %v4700
        %6872 = vmatprep.subr.bf16.mxu0 %v4709
        %6873 = vmatpush1.bf16.msra.mxu0 %v4708
        %6874 = vmatprep.subr.bf16.mxu0 %v4717
        %6875 = vmatpush1.bf16.msra.mxu0 %v4716
        %6876 = vmatprep.subr.bf16.mxu0 %v4725
        %6877 = vmatpush1.bf16.msra.mxu0 %v4724
        %6878 = vmatprep.subr.bf16.mxu0 %v4733
        %6879 = vmatpush1.bf16.msra.mxu0 %v4732
        %6880 = vmatprep.subr.bf16.mxu0 %v4741
        %6881 = vmatpush1.bf16.msra.mxu0 %v4740
        %6882 = vmatprep.subr.bf16.mxu0 %v4749
        %6883 = vmatpush1.bf16.msra.mxu0 %v4748
        %6884 = vmatprep.subr.bf16.mxu0 %v4757
        %6885 = vmatpush1.bf16.msra.mxu0 %v4756
        %6886 = vmatprep.subr.bf16.mxu0 %v4765
        %6887 = vmatpush1.bf16.msra.mxu0 %v4764
        %6888 = vmatprep.subr.bf16.mxu0 %v4773
        %6889 = vmatpush1.bf16.msra.mxu0 %v4772
        %6890 = vmatprep.subr.bf16.mxu0 %v4781
        %6891 = vmatpush1.bf16.msra.mxu0 %v4780
        %6892 = vmatprep.mubr.bf16.mxu0 %v253
        %6893 = vmatmul.mubr.bf16.gmra.mrb[0].mxu0 %v252
        %v6894 = vpop.f32.mrb[0].mxu0
        %v6895 = vadd.f32 %v6854, %v6894
        %v6896 = vpop.f32.mrb[0].mxu0
        %v6897 = vadd.f32 %v6856, %v6896
        %v6898 = vpop.f32.mrb[0].mxu0
        %v6899 = vpop.f32.mrb[0].mxu0
        %6900 = vdwg.mxu0
        %6901 = vmatprep.subr.bf16.mxu0 %v4789
        %6902 = vmatpush1.bf16.msra.mxu0 %v4788
        %6903 = vmatprep.subr.bf16.mxu0 %v4797
        %6904 = vmatpush1.bf16.msra.mxu0 %v4796
        %6905 = vmatprep.subr.bf16.mxu0 %v4805
        %6906 = vmatpush1.bf16.msra.mxu0 %v4804
        %6907 = vmatprep.subr.bf16.mxu0 %v4813
        %6908 = vmatpush1.bf16.msra.mxu0 %v4812
        %6909 = vmatprep.subr.bf16.mxu0 %v4821
        %6910 = vmatpush1.bf16.msra.mxu0 %v4820
        %6911 = vmatprep.subr.bf16.mxu0 %v4829
        %6912 = vmatpush1.bf16.msra.mxu0 %v4828
        %6913 = vmatprep.subr.bf16.mxu0 %v4837
        %6914 = vmatpush1.bf16.msra.mxu0 %v4836
        %6915 = vmatprep.subr.bf16.mxu0 %v4845
        %6916 = vmatpush1.bf16.msra.mxu0 %v4844
        %6917 = vmatprep.subr.bf16.mxu0 %v4853
        %6918 = vmatpush1.bf16.msra.mxu0 %v4852
        %6919 = vmatprep.subr.bf16.mxu0 %v4861
        %6920 = vmatpush1.bf16.msra.mxu0 %v4860
        %6921 = vmatprep.subr.bf16.mxu0 %v4869
        %6922 = vmatpush1.bf16.msra.mxu0 %v4868
        %6923 = vmatprep.subr.bf16.mxu0 %v4877
        %6924 = vmatpush1.bf16.msra.mxu0 %v4876
        %6925 = vmatprep.subr.bf16.mxu0 %v4885
        %6926 = vmatpush1.bf16.msra.mxu0 %v4884
        %6927 = vmatprep.subr.bf16.mxu0 %v4893
        %6928 = vmatpush1.bf16.msra.mxu0 %v4892
        %6929 = vmatprep.subr.bf16.mxu0 %v4901
        %6930 = vmatpush1.bf16.msra.mxu0 %v4900
        %6931 = vmatprep.subr.bf16.mxu0 %v4909
        %6932 = vmatpush1.bf16.msra.mxu0 %v4908
        %6933 = vmatprep.mubr.bf16.mxu0 %v255
        %6934 = vmatmul.mubr.bf16.gmra.mrb[0].mxu0 %v254
        %v6935 = vpop.f32.mrb[0].mxu0
        %v6936 = vadd.f32 %v6895, %v6935
        %v6937 = vpop.f32.mrb[0].mxu0
        %v6938 = vadd.f32 %v6897, %v6937
        %v6939 = vpop.f32.mrb[0].mxu0
        %v6940 = vpop.f32.mrb[0].mxu0
        %6941 = vdwg.mxu0
        %6942 = vmatprep.subr.bf16.mxu0 %v4917
        %6943 = vmatpush1.bf16.msra.mxu0 %v4916
        %6944 = vmatprep.subr.bf16.mxu0 %v4925
        %6945 = vmatpush1.bf16.msra.mxu0 %v4924
        %6946 = vmatprep.subr.bf16.mxu0 %v4933
        %6947 = vmatpush1.bf16.msra.mxu0 %v4932
        %6948 = vmatprep.subr.bf16.mxu0 %v4941
        %6949 = vmatpush1.bf16.msra.mxu0 %v4940
        %6950 = vmatprep.subr.bf16.mxu0 %v4949
        %6951 = vmatpush1.bf16.msra.mxu0 %v4948
        %6952 = vmatprep.subr.bf16.mxu0 %v4957
        %6953 = vmatpush1.bf16.msra.mxu0 %v4956
        %6954 = vmatprep.subr.bf16.mxu0 %v4965
        %6955 = vmatpush1.bf16.msra.mxu0 %v4964
        %6956 = vmatprep.subr.bf16.mxu0 %v4973
        %6957 = vmatpush1.bf16.msra.mxu0 %v4972
        %6958 = vmatprep.subr.bf16.mxu0 %v4981
        %6959 = vmatpush1.bf16.msra.mxu0 %v4980
        %6960 = vmatprep.subr.bf16.mxu0 %v4989
        %6961 = vmatpush1.bf16.msra.mxu0 %v4988
        %6962 = vmatprep.subr.bf16.mxu0 %v4997
        %6963 = vmatpush1.bf16.msra.mxu0 %v4996
        %6964 = vmatprep.subr.bf16.mxu0 %v5005
        %6965 = vmatpush1.bf16.msra.mxu0 %v5004
        %6966 = vmatprep.subr.bf16.mxu0 %v5013
        %6967 = vmatpush1.bf16.msra.mxu0 %v5012
        %6968 = vmatprep.subr.bf16.mxu0 %v5021
        %6969 = vmatpush1.bf16.msra.mxu0 %v5020
        %6970 = vmatprep.subr.bf16.mxu0 %v5029
        %6971 = vmatpush1.bf16.msra.mxu0 %v5028
        %6972 = vmatprep.subr.bf16.mxu0 %v5037
        %6973 = vmatpush1.bf16.msra.mxu0 %v5036
        %6974 = vmatprep.mubr.bf16.mxu0 %v257
        %6975 = vmatmul.mubr.bf16.gmra.mrb[0].mxu0 %v256
        %v6976 = vpop.f32.mrb[0].mxu0
        %v6977 = vadd.f32 %v6936, %v6976
        %v6978 = vpop.f32.mrb[0].mxu0
        %v6979 = vadd.f32 %v6938, %v6978
        %v6980 = vpop.f32.mrb[0].mxu0
        %v6981 = vpop.f32.mrb[0].mxu0
        %6982 = vdwg.mxu0
        %6983 = vmatprep.subr.bf16.mxu0 %v5045
        %6984 = vmatpush1.bf16.msra.mxu0 %v5044
        %6985 = vmatprep.subr.bf16.mxu0 %v5053
        %6986 = vmatpush1.bf16.msra.mxu0 %v5052
        %6987 = vmatprep.subr.bf16.mxu0 %v5061
        %6988 = vmatpush1.bf16.msra.mxu0 %v5060
        %6989 = vmatprep.subr.bf16.mxu0 %v5069
        %6990 = vmatpush1.bf16.msra.mxu0 %v5068
        %6991 = vmatprep.subr.bf16.mxu0 %v5077
        %6992 = vmatpush1.bf16.msra.mxu0 %v5076
        %6993 = vmatprep.subr.bf16.mxu0 %v5085
        %6994 = vmatpush1.bf16.msra.mxu0 %v5084
        %6995 = vmatprep.subr.bf16.mxu0 %v5093
        %6996 = vmatpush1.bf16.msra.mxu0 %v5092
        %6997 = vmatprep.subr.bf16.mxu0 %v5101
        %6998 = vmatpush1.bf16.msra.mxu0 %v5100
        %6999 = vmatprep.subr.bf16.mxu0 %v5109
        %7000 = vmatpush1.bf16.msra.mxu0 %v5108
        %7001 = vmatprep.subr.bf16.mxu0 %v5117
        %7002 = vmatpush1.bf16.msra.mxu0 %v5116
        %7003 = vmatprep.subr.bf16.mxu0 %v5125
        %7004 = vmatpush1.bf16.msra.mxu0 %v5124
        %7005 = vmatprep.subr.bf16.mxu0 %v5133
        %7006 = vmatpush1.bf16.msra.mxu0 %v5132
        %7007 = vmatprep.subr.bf16.mxu0 %v5141
        %7008 = vmatpush1.bf16.msra.mxu0 %v5140
        %7009 = vmatprep.subr.bf16.mxu0 %v5149
        %7010 = vmatpush1.bf16.msra.mxu0 %v5148
        %7011 = vmatprep.subr.bf16.mxu0 %v5157
        %7012 = vmatpush1.bf16.msra.mxu0 %v5156
        %7013 = vmatprep.subr.bf16.mxu0 %v5165
        %7014 = vmatpush1.bf16.msra.mxu0 %v5164
        %7015 = vmatprep.mubr.bf16.mxu0 %v259
        %7016 = vmatmul.mubr.bf16.gmra.mrb[0].mxu0 %v258
        %v7017 = vpop.f32.mrb[0].mxu0
        %v7018 = vadd.f32 %v6977, %v7017
        %v7019 = vpop.f32.mrb[0].mxu0
        %v7020 = vadd.f32 %v6979, %v7019
        %v7021 = vpop.f32.mrb[0].mxu0
        %v7022 = vpop.f32.mrb[0].mxu0
        %7023 = vdwg.mxu0
        %7024 = vmatprep.subr.bf16.mxu0 %v5173
        %7025 = vmatpush1.bf16.msra.mxu0 %v5172
        %7026 = vmatprep.subr.bf16.mxu0 %v5181
        %7027 = vmatpush1.bf16.msra.mxu0 %v5180
        %7028 = vmatprep.subr.bf16.mxu0 %v5189
        %7029 = vmatpush1.bf16.msra.mxu0 %v5188
        %7030 = vmatprep.subr.bf16.mxu0 %v5197
        %7031 = vmatpush1.bf16.msra.mxu0 %v5196
        %7032 = vmatprep.subr.bf16.mxu0 %v5205
        %7033 = vmatpush1.bf16.msra.mxu0 %v5204
        %7034 = vmatprep.subr.bf16.mxu0 %v5213
        %7035 = vmatpush1.bf16.msra.mxu0 %v5212
        %7036 = vmatprep.subr.bf16.mxu0 %v5221
        %7037 = vmatpush1.bf16.msra.mxu0 %v5220
        %7038 = vmatprep.subr.bf16.mxu0 %v5229
        %7039 = vmatpush1.bf16.msra.mxu0 %v5228
        %7040 = vmatprep.subr.bf16.mxu0 %v5237
        %7041 = vmatpush1.bf16.msra.mxu0 %v5236
        %7042 = vmatprep.subr.bf16.mxu0 %v5245
        %7043 = vmatpush1.bf16.msra.mxu0 %v5244
        %7044 = vmatprep.subr.bf16.mxu0 %v5253
        %7045 = vmatpush1.bf16.msra.mxu0 %v5252
        %7046 = vmatprep.subr.bf16.mxu0 %v5261
        %7047 = vmatpush1.bf16.msra.mxu0 %v5260
        %7048 = vmatprep.subr.bf16.mxu0 %v5269
        %7049 = vmatpush1.bf16.msra.mxu0 %v5268
        %7050 = vmatprep.subr.bf16.mxu0 %v5277
        %7051 = vmatpush1.bf16.msra.mxu0 %v5276
        %7052 = vmatprep.subr.bf16.mxu0 %v5285
        %7053 = vmatpush1.bf16.msra.mxu0 %v5284
        %7054 = vmatprep.subr.bf16.mxu0 %v5293
        %7055 = vmatpush1.bf16.msra.mxu0 %v5292
        %7056 = vmatprep.mubr.bf16.mxu0 %v261
        %7057 = vmatmul.mubr.bf16.gmra.mrb[0].mxu0 %v260
        %v7058 = vpop.f32.mrb[0].mxu0
        %v7059 = vadd.f32 %v7018, %v7058
        %v7060 = vpop.f32.mrb[0].mxu0
        %v7061 = vadd.f32 %v7020, %v7060
        %v7062 = vpop.f32.mrb[0].mxu0
        %v7063 = vpop.f32.mrb[0].mxu0
        %7064 = vdwg.mxu0
        %7065 = vmatprep.subr.bf16.mxu0 %v5301
        %7066 = vmatpush1.bf16.msra.mxu0 %v5300
        %7067 = vmatprep.subr.bf16.mxu0 %v5309
        %7068 = vmatpush1.bf16.msra.mxu0 %v5308
        %7069 = vmatprep.subr.bf16.mxu0 %v5317
        %7070 = vmatpush1.bf16.msra.mxu0 %v5316
        %7071 = vmatprep.subr.bf16.mxu0 %v5325
        %7072 = vmatpush1.bf16.msra.mxu0 %v5324
        %7073 = vmatprep.subr.bf16.mxu0 %v5333
        %7074 = vmatpush1.bf16.msra.mxu0 %v5332
        %7075 = vmatprep.subr.bf16.mxu0 %v5341
        %7076 = vmatpush1.bf16.msra.mxu0 %v5340
        %7077 = vmatprep.subr.bf16.mxu0 %v5349
        %7078 = vmatpush1.bf16.msra.mxu0 %v5348
        %7079 = vmatprep.subr.bf16.mxu0 %v5357
        %7080 = vmatpush1.bf16.msra.mxu0 %v5356
        %7081 = vmatprep.subr.bf16.mxu0 %v5365
        %7082 = vmatpush1.bf16.msra.mxu0 %v5364
        %7083 = vmatprep.subr.bf16.mxu0 %v5373
        %7084 = vmatpush1.bf16.msra.mxu0 %v5372
        %7085 = vmatprep.subr.bf16.mxu0 %v5381
        %7086 = vmatpush1.bf16.msra.mxu0 %v5380
        %7087 = vmatprep.subr.bf16.mxu0 %v5389
        %7088 = vmatpush1.bf16.msra.mxu0 %v5388
        %7089 = vmatprep.subr.bf16.mxu0 %v5397
        %7090 = vmatpush1.bf16.msra.mxu0 %v5396
        %7091 = vmatprep.subr.bf16.mxu0 %v5405
        %7092 = vmatpush1.bf16.msra.mxu0 %v5404
        %7093 = vmatprep.subr.bf16.mxu0 %v5413
        %7094 = vmatpush1.bf16.msra.mxu0 %v5412
        %7095 = vmatprep.subr.bf16.mxu0 %v5421
        %7096 = vmatpush1.bf16.msra.mxu0 %v5420
        %7097 = vmatprep.mubr.bf16.mxu0 %v263
        %7098 = vmatmul.mubr.bf16.gmra.mrb[0].mxu0 %v262
        %v7099 = vpop.f32.mrb[0].mxu0
        %v7100 = vadd.f32 %v7059, %v7099
        %v7101 = vpop.f32.mrb[0].mxu0
        %v7102 = vadd.f32 %v7061, %v7101
        %v7103 = vpop.f32.mrb[0].mxu0
        %v7104 = vpop.f32.mrb[0].mxu0
        %7105 = vdwg.mxu0
        %7106 = vmatprep.subr.bf16.mxu0 %v4407
        %7107 = vmatpush1.bf16.msra.mxu0 %v4406
        %7108 = vmatprep.subr.bf16.mxu0 %v4415
        %7109 = vmatpush1.bf16.msra.mxu0 %v4414
        %7110 = vmatprep.subr.bf16.mxu0 %v4423
        %7111 = vmatpush1.bf16.msra.mxu0 %v4422
        %7112 = vmatprep.subr.bf16.mxu0 %v4431
        %7113 = vmatpush1.bf16.msra.mxu0 %v4430
        %7114 = vmatprep.subr.bf16.mxu0 %v4439
        %7115 = vmatpush1.bf16.msra.mxu0 %v4438
        %7116 = vmatprep.subr.bf16.mxu0 %v4447
        %7117 = vmatpush1.bf16.msra.mxu0 %v4446
        %7118 = vmatprep.subr.bf16.mxu0 %v4455
        %7119 = vmatpush1.bf16.msra.mxu0 %v4454
        %7120 = vmatprep.subr.bf16.mxu0 %v4463
        %7121 = vmatpush1.bf16.msra.mxu0 %v4462
        %7122 = vmatprep.subr.bf16.mxu0 %v4471
        %7123 = vmatpush1.bf16.msra.mxu0 %v4470
        %7124 = vmatprep.subr.bf16.mxu0 %v4479
        %7125 = vmatpush1.bf16.msra.mxu0 %v4478
        %7126 = vmatprep.subr.bf16.mxu0 %v4487
        %7127 = vmatpush1.bf16.msra.mxu0 %v4486
        %7128 = vmatprep.subr.bf16.mxu0 %v4495
        %7129 = vmatpush1.bf16.msra.mxu0 %v4494
        %7130 = vmatprep.subr.bf16.mxu0 %v4503
        %7131 = vmatpush1.bf16.msra.mxu0 %v4502
        %7132 = vmatprep.subr.bf16.mxu0 %v4511
        %7133 = vmatpush1.bf16.msra.mxu0 %v4510
        %7134 = vmatprep.subr.bf16.mxu0 %v4519
        %7135 = vmatpush1.bf16.msra.mxu0 %v4518
        %7136 = vmatprep.subr.bf16.mxu0 %v4527
        %7137 = vmatpush1.bf16.msra.mxu0 %v4526
        %7138 = vmatprep.mubr.bf16.mxu0 %v249
        %7139 = vmatmul.mubr.bf16.gmra.mrb[0].mxu0 %v248
        %v7140 = vpop.f32.mrb[0].mxu0
        %v7141 = vadd.f32 %v1309, %v7140
        %v7142 = vpop.f32.mrb[0].mxu0
        %v7143 = vadd.f32 %v1313, %v7142
        %v7144 = vpop.f32.mrb[0].mxu0
        %v7145 = vpop.f32.mrb[0].mxu0
        %7146 = vdwg.mxu0
        %7147 = vmatprep.subr.bf16.mxu0 %v4535
        %7148 = vmatpush1.bf16.msra.mxu0 %v4534
        %7149 = vmatprep.subr.bf16.mxu0 %v4543
        %7150 = vmatpush1.bf16.msra.mxu0 %v4542
        %7151 = vmatprep.subr.bf16.mxu0 %v4551
        %7152 = vmatpush1.bf16.msra.mxu0 %v4550
        %7153 = vmatprep.subr.bf16.mxu0 %v4559
        %7154 = vmatpush1.bf16.msra.mxu0 %v4558
        %7155 = vmatprep.subr.bf16.mxu0 %v4567
        %7156 = vmatpush1.bf16.msra.mxu0 %v4566
        %7157 = vmatprep.subr.bf16.mxu0 %v4575
        %7158 = vmatpush1.bf16.msra.mxu0 %v4574
        %7159 = vmatprep.subr.bf16.mxu0 %v4583
        %7160 = vmatpush1.bf16.msra.mxu0 %v4582
        %7161 = vmatprep.subr.bf16.mxu0 %v4591
        %7162 = vmatpush1.bf16.msra.mxu0 %v4590
        %7163 = vmatprep.subr.bf16.mxu0 %v4599
        %7164 = vmatpush1.bf16.msra.mxu0 %v4598
        %7165 = vmatprep.subr.bf16.mxu0 %v4607
        %7166 = vmatpush1.bf16.msra.mxu0 %v4606
        %7167 = vmatprep.subr.bf16.mxu0 %v4615
        %7168 = vmatpush1.bf16.msra.mxu0 %v4614
        %7169 = vmatprep.subr.bf16.mxu0 %v4623
        %7170 = vmatpush1.bf16.msra.mxu0 %v4622
        %7171 = vmatprep.subr.bf16.mxu0 %v4631
        %7172 = vmatpush1.bf16.msra.mxu0 %v4630
        %7173 = vmatprep.subr.bf16.mxu0 %v4639
        %7174 = vmatpush1.bf16.msra.mxu0 %v4638
        %7175 = vmatprep.subr.bf16.mxu0 %v4647
        %7176 = vmatpush1.bf16.msra.mxu0 %v4646
        %7177 = vmatprep.subr.bf16.mxu0 %v4655
        %7178 = vmatpush1.bf16.msra.mxu0 %v4654
        %7179 = vmatprep.mubr.bf16.mxu0 %v251
        %7180 = vmatmul.mubr.bf16.gmra.mrb[0].mxu0 %v250
        %v7181 = vpop.f32.mrb[0].mxu0
        %v7182 = vadd.f32 %v7141, %v7181
        %v7183 = vpop.f32.mrb[0].mxu0
        %v7184 = vadd.f32 %v7143, %v7183
        %v7185 = vpop.f32.mrb[0].mxu0
        %v7186 = vpop.f32.mrb[0].mxu0
        %7187 = vdwg.mxu0
        %7188 = vmatprep.subr.bf16.mxu0 %v4663
        %7189 = vmatpush1.bf16.msra.mxu0 %v4662
        %7190 = vmatprep.subr.bf16.mxu0 %v4671
        %7191 = vmatpush1.bf16.msra.mxu0 %v4670
        %7192 = vmatprep.subr.bf16.mxu0 %v4679
        %7193 = vmatpush1.bf16.msra.mxu0 %v4678
        %7194 = vmatprep.subr.bf16.mxu0 %v4687
        %7195 = vmatpush1.bf16.msra.mxu0 %v4686
        %7196 = vmatprep.subr.bf16.mxu0 %v4695
        %7197 = vmatpush1.bf16.msra.mxu0 %v4694
        %7198 = vmatprep.subr.bf16.mxu0 %v4703
        %7199 = vmatpush1.bf16.msra.mxu0 %v4702
        %7200 = vmatprep.subr.bf16.mxu0 %v4711
        %7201 = vmatpush1.bf16.msra.mxu0 %v4710
        %7202 = vmatprep.subr.bf16.mxu0 %v4719
        %7203 = vmatpush1.bf16.msra.mxu0 %v4718
        %7204 = vmatprep.subr.bf16.mxu0 %v4727
        %7205 = vmatpush1.bf16.msra.mxu0 %v4726
        %7206 = vmatprep.subr.bf16.mxu0 %v4735
        %7207 = vmatpush1.bf16.msra.mxu0 %v4734
        %7208 = vmatprep.subr.bf16.mxu0 %v4743
        %7209 = vmatpush1.bf16.msra.mxu0 %v4742
        %7210 = vmatprep.subr.bf16.mxu0 %v4751
        %7211 = vmatpush1.bf16.msra.mxu0 %v4750
        %7212 = vmatprep.subr.bf16.mxu0 %v4759
        %7213 = vmatpush1.bf16.msra.mxu0 %v4758
        %7214 = vmatprep.subr.bf16.mxu0 %v4767
        %7215 = vmatpush1.bf16.msra.mxu0 %v4766
        %7216 = vmatprep.subr.bf16.mxu0 %v4775
        %7217 = vmatpush1.bf16.msra.mxu0 %v4774
        %7218 = vmatprep.subr.bf16.mxu0 %v4783
        %7219 = vmatpush1.bf16.msra.mxu0 %v4782
        %7220 = vmatprep.mubr.bf16.mxu0 %v253
        %7221 = vmatmul.mubr.bf16.gmra.mrb[0].mxu0 %v252
        %v7222 = vpop.f32.mrb[0].mxu0
        %v7223 = vadd.f32 %v7182, %v7222
        %v7224 = vpop.f32.mrb[0].mxu0
        %v7225 = vadd.f32 %v7184, %v7224
        %v7226 = vpop.f32.mrb[0].mxu0
        %v7227 = vpop.f32.mrb[0].mxu0
        %7228 = vdwg.mxu0
        %7229 = vmatprep.subr.bf16.mxu0 %v4791
        %7230 = vmatpush1.bf16.msra.mxu0 %v4790
        %7231 = vmatprep.subr.bf16.mxu0 %v4799
        %7232 = vmatpush1.bf16.msra.mxu0 %v4798
        %7233 = vmatprep.subr.bf16.mxu0 %v4807
        %7234 = vmatpush1.bf16.msra.mxu0 %v4806
        %7235 = vmatprep.subr.bf16.mxu0 %v4815
        %7236 = vmatpush1.bf16.msra.mxu0 %v4814
        %7237 = vmatprep.subr.bf16.mxu0 %v4823
        %7238 = vmatpush1.bf16.msra.mxu0 %v4822
        %7239 = vmatprep.subr.bf16.mxu0 %v4831
        %7240 = vmatpush1.bf16.msra.mxu0 %v4830
        %7241 = vmatprep.subr.bf16.mxu0 %v4839
        %7242 = vmatpush1.bf16.msra.mxu0 %v4838
        %7243 = vmatprep.subr.bf16.mxu0 %v4847
        %7244 = vmatpush1.bf16.msra.mxu0 %v4846
        %7245 = vmatprep.subr.bf16.mxu0 %v4855
        %7246 = vmatpush1.bf16.msra.mxu0 %v4854
        %7247 = vmatprep.subr.bf16.mxu0 %v4863
        %7248 = vmatpush1.bf16.msra.mxu0 %v4862
        %7249 = vmatprep.subr.bf16.mxu0 %v4871
        %7250 = vmatpush1.bf16.msra.mxu0 %v4870
        %7251 = vmatprep.subr.bf16.mxu0 %v4879
        %7252 = vmatpush1.bf16.msra.mxu0 %v4878
        %7253 = vmatprep.subr.bf16.mxu0 %v4887
        %7254 = vmatpush1.bf16.msra.mxu0 %v4886
        %7255 = vmatprep.subr.bf16.mxu0 %v4895
        %7256 = vmatpush1.bf16.msra.mxu0 %v4894
        %7257 = vmatprep.subr.bf16.mxu0 %v4903
        %7258 = vmatpush1.bf16.msra.mxu0 %v4902
        %7259 = vmatprep.subr.bf16.mxu0 %v4911
        %7260 = vmatpush1.bf16.msra.mxu0 %v4910
        %7261 = vmatprep.mubr.bf16.mxu0 %v255
        %7262 = vmatmul.mubr.bf16.gmra.mrb[0].mxu0 %v254
        %v7263 = vpop.f32.mrb[0].mxu0
        %v7264 = vadd.f32 %v7223, %v7263
        %v7265 = vpop.f32.mrb[0].mxu0
        %v7266 = vadd.f32 %v7225, %v7265
        %v7267 = vpop.f32.mrb[0].mxu0
        %v7268 = vpop.f32.mrb[0].mxu0
        %7269 = vdwg.mxu0
        %7270 = vmatprep.subr.bf16.mxu0 %v4919
        %7271 = vmatpush1.bf16.msra.mxu0 %v4918
        %7272 = vmatprep.subr.bf16.mxu0 %v4927
        %7273 = vmatpush1.bf16.msra.mxu0 %v4926
        %7274 = vmatprep.subr.bf16.mxu0 %v4935
        %7275 = vmatpush1.bf16.msra.mxu0 %v4934
        %7276 = vmatprep.subr.bf16.mxu0 %v4943
        %7277 = vmatpush1.bf16.msra.mxu0 %v4942
        %7278 = vmatprep.subr.bf16.mxu0 %v4951
        %7279 = vmatpush1.bf16.msra.mxu0 %v4950
        %7280 = vmatprep.subr.bf16.mxu0 %v4959
        %7281 = vmatpush1.bf16.msra.mxu0 %v4958
        %7282 = vmatprep.subr.bf16.mxu0 %v4967
        %7283 = vmatpush1.bf16.msra.mxu0 %v4966
        %7284 = vmatprep.subr.bf16.mxu0 %v4975
        %7285 = vmatpush1.bf16.msra.mxu0 %v4974
        %7286 = vmatprep.subr.bf16.mxu0 %v4983
        %7287 = vmatpush1.bf16.msra.mxu0 %v4982
        %7288 = vmatprep.subr.bf16.mxu0 %v4991
        %7289 = vmatpush1.bf16.msra.mxu0 %v4990
        %7290 = vmatprep.subr.bf16.mxu0 %v4999
        %7291 = vmatpush1.bf16.msra.mxu0 %v4998
        %7292 = vmatprep.subr.bf16.mxu0 %v5007
        %7293 = vmatpush1.bf16.msra.mxu0 %v5006
        %7294 = vmatprep.subr.bf16.mxu0 %v5015
        %7295 = vmatpush1.bf16.msra.mxu0 %v5014
        %7296 = vmatprep.subr.bf16.mxu0 %v5023
        %7297 = vmatpush1.bf16.msra.mxu0 %v5022
        %7298 = vmatprep.subr.bf16.mxu0 %v5031
        %7299 = vmatpush1.bf16.msra.mxu0 %v5030
        %7300 = vmatprep.subr.bf16.mxu0 %v5039
        %7301 = vmatpush1.bf16.msra.mxu0 %v5038
        %7302 = vmatprep.mubr.bf16.mxu0 %v257
        %7303 = vmatmul.mubr.bf16.gmra.mrb[0].mxu0 %v256
        %v7304 = vpop.f32.mrb[0].mxu0
        %v7305 = vadd.f32 %v7264, %v7304
        %v7306 = vpop.f32.mrb[0].mxu0
        %v7307 = vadd.f32 %v7266, %v7306
        %v7308 = vpop.f32.mrb[0].mxu0
        %v7309 = vpop.f32.mrb[0].mxu0
        %7310 = vdwg.mxu0
        %7311 = vmatprep.subr.bf16.mxu0 %v5047
        %7312 = vmatpush1.bf16.msra.mxu0 %v5046
        %7313 = vmatprep.subr.bf16.mxu0 %v5055
        %7314 = vmatpush1.bf16.msra.mxu0 %v5054
        %7315 = vmatprep.subr.bf16.mxu0 %v5063
        %7316 = vmatpush1.bf16.msra.mxu0 %v5062
        %7317 = vmatprep.subr.bf16.mxu0 %v5071
        %7318 = vmatpush1.bf16.msra.mxu0 %v5070
        %7319 = vmatprep.subr.bf16.mxu0 %v5079
        %7320 = vmatpush1.bf16.msra.mxu0 %v5078
        %7321 = vmatprep.subr.bf16.mxu0 %v5087
        %7322 = vmatpush1.bf16.msra.mxu0 %v5086
        %7323 = vmatprep.subr.bf16.mxu0 %v5095
        %7324 = vmatpush1.bf16.msra.mxu0 %v5094
        %7325 = vmatprep.subr.bf16.mxu0 %v5103
        %7326 = vmatpush1.bf16.msra.mxu0 %v5102
        %7327 = vmatprep.subr.bf16.mxu0 %v5111
        %7328 = vmatpush1.bf16.msra.mxu0 %v5110
        %7329 = vmatprep.subr.bf16.mxu0 %v5119
        %7330 = vmatpush1.bf16.msra.mxu0 %v5118
        %7331 = vmatprep.subr.bf16.mxu0 %v5127
        %7332 = vmatpush1.bf16.msra.mxu0 %v5126
        %7333 = vmatprep.subr.bf16.mxu0 %v5135
        %7334 = vmatpush1.bf16.msra.mxu0 %v5134
        %7335 = vmatprep.subr.bf16.mxu0 %v5143
        %7336 = vmatpush1.bf16.msra.mxu0 %v5142
        %7337 = vmatprep.subr.bf16.mxu0 %v5151
        %7338 = vmatpush1.bf16.msra.mxu0 %v5150
        %7339 = vmatprep.subr.bf16.mxu0 %v5159
        %7340 = vmatpush1.bf16.msra.mxu0 %v5158
        %7341 = vmatprep.subr.bf16.mxu0 %v5167
        %7342 = vmatpush1.bf16.msra.mxu0 %v5166
        %7343 = vmatprep.mubr.bf16.mxu0 %v259
        %7344 = vmatmul.mubr.bf16.gmra.mrb[0].mxu0 %v258
        %v7345 = vpop.f32.mrb[0].mxu0
        %v7346 = vadd.f32 %v7305, %v7345
        %v7347 = vpop.f32.mrb[0].mxu0
        %v7348 = vadd.f32 %v7307, %v7347
        %v7349 = vpop.f32.mrb[0].mxu0
        %v7350 = vpop.f32.mrb[0].mxu0
        %7351 = vdwg.mxu0
        %7352 = vmatprep.subr.bf16.mxu0 %v5175
        %7353 = vmatpush1.bf16.msra.mxu0 %v5174
        %7354 = vmatprep.subr.bf16.mxu0 %v5183
        %7355 = vmatpush1.bf16.msra.mxu0 %v5182
        %7356 = vmatprep.subr.bf16.mxu0 %v5191
        %7357 = vmatpush1.bf16.msra.mxu0 %v5190
        %7358 = vmatprep.subr.bf16.mxu0 %v5199
        %7359 = vmatpush1.bf16.msra.mxu0 %v5198
        %7360 = vmatprep.subr.bf16.mxu0 %v5207
        %7361 = vmatpush1.bf16.msra.mxu0 %v5206
        %7362 = vmatprep.subr.bf16.mxu0 %v5215
        %7363 = vmatpush1.bf16.msra.mxu0 %v5214
        %7364 = vmatprep.subr.bf16.mxu0 %v5223
        %7365 = vmatpush1.bf16.msra.mxu0 %v5222
        %7366 = vmatprep.subr.bf16.mxu0 %v5231
        %7367 = vmatpush1.bf16.msra.mxu0 %v5230
        %7368 = vmatprep.subr.bf16.mxu0 %v5239
        %7369 = vmatpush1.bf16.msra.mxu0 %v5238
        %7370 = vmatprep.subr.bf16.mxu0 %v5247
        %7371 = vmatpush1.bf16.msra.mxu0 %v5246
        %7372 = vmatprep.subr.bf16.mxu0 %v5255
        %7373 = vmatpush1.bf16.msra.mxu0 %v5254
        %7374 = vmatprep.subr.bf16.mxu0 %v5263
        %7375 = vmatpush1.bf16.msra.mxu0 %v5262
        %7376 = vmatprep.subr.bf16.mxu0 %v5271
        %7377 = vmatpush1.bf16.msra.mxu0 %v5270
        %7378 = vmatprep.subr.bf16.mxu0 %v5279
        %7379 = vmatpush1.bf16.msra.mxu0 %v5278
        %7380 = vmatprep.subr.bf16.mxu0 %v5287
        %7381 = vmatpush1.bf16.msra.mxu0 %v5286
        %7382 = vmatprep.subr.bf16.mxu0 %v5295
        %7383 = vmatpush1.bf16.msra.mxu0 %v5294
        %7384 = vmatprep.mubr.bf16.mxu0 %v261
        %7385 = vmatmul.mubr.bf16.gmra.mrb[0].mxu0 %v260
        %v7386 = vpop.f32.mrb[0].mxu0
        %v7387 = vadd.f32 %v7346, %v7386
        %v7388 = vpop.f32.mrb[0].mxu0
        %v7389 = vadd.f32 %v7348, %v7388
        %v7390 = vpop.f32.mrb[0].mxu0
        %v7391 = vpop.f32.mrb[0].mxu0
        %7392 = vdwg.mxu0
        %7393 = vmatprep.subr.bf16.mxu0 %v5303
        %7394 = vmatpush1.bf16.msra.mxu0 %v5302
        %7395 = vmatprep.subr.bf16.mxu0 %v5311
        %7396 = vmatpush1.bf16.msra.mxu0 %v5310
        %7397 = vmatprep.subr.bf16.mxu0 %v5319
        %7398 = vmatpush1.bf16.msra.mxu0 %v5318
        %7399 = vmatprep.subr.bf16.mxu0 %v5327
        %7400 = vmatpush1.bf16.msra.mxu0 %v5326
        %7401 = vmatprep.subr.bf16.mxu0 %v5335
        %7402 = vmatpush1.bf16.msra.mxu0 %v5334
        %7403 = vmatprep.subr.bf16.mxu0 %v5343
        %7404 = vmatpush1.bf16.msra.mxu0 %v5342
        %7405 = vmatprep.subr.bf16.mxu0 %v5351
        %7406 = vmatpush1.bf16.msra.mxu0 %v5350
        %7407 = vmatprep.subr.bf16.mxu0 %v5359
        %7408 = vmatpush1.bf16.msra.mxu0 %v5358
        %7409 = vmatprep.subr.bf16.mxu0 %v5367
        %7410 = vmatpush1.bf16.msra.mxu0 %v5366
        %7411 = vmatprep.subr.bf16.mxu0 %v5375
        %7412 = vmatpush1.bf16.msra.mxu0 %v5374
        %7413 = vmatprep.subr.bf16.mxu0 %v5383
        %7414 = vmatpush1.bf16.msra.mxu0 %v5382
        %7415 = vmatprep.subr.bf16.mxu0 %v5391
        %7416 = vmatpush1.bf16.msra.mxu0 %v5390
        %7417 = vmatprep.subr.bf16.mxu0 %v5399
        %7418 = vmatpush1.bf16.msra.mxu0 %v5398
        %7419 = vmatprep.subr.bf16.mxu0 %v5407
        %7420 = vmatpush1.bf16.msra.mxu0 %v5406
        %7421 = vmatprep.subr.bf16.mxu0 %v5415
        %7422 = vmatpush1.bf16.msra.mxu0 %v5414
        %7423 = vmatprep.subr.bf16.mxu0 %v5423
        %7424 = vmatpush1.bf16.msra.mxu0 %v5422
        %7425 = vmatprep.mubr.bf16.mxu0 %v263
        %7426 = vmatmul.mubr.bf16.gmra.mrb[0].mxu0 %v262
        %v7427 = vpop.f32.mrb[0].mxu0
        %v7428 = vadd.f32 %v7387, %v7427
        %v7429 = vpop.f32.mrb[0].mxu0
        %v7430 = vadd.f32 %v7389, %v7429
        %v7431 = vpop.f32.mrb[0].mxu0
        %v7432 = vpop.f32.mrb[0].mxu0
        %7433 = vdwg.mxu0
        %7434 = vmatprep.subr.bf16.mxu0 %v4409
        %7435 = vmatpush1.bf16.msra.mxu0 %v4408
        %7436 = vmatprep.subr.bf16.mxu0 %v4417
        %7437 = vmatpush1.bf16.msra.mxu0 %v4416
        %7438 = vmatprep.subr.bf16.mxu0 %v4425
        %7439 = vmatpush1.bf16.msra.mxu0 %v4424
        %7440 = vmatprep.subr.bf16.mxu0 %v4433
        %7441 = vmatpush1.bf16.msra.mxu0 %v4432
        %7442 = vmatprep.subr.bf16.mxu0 %v4441
        %7443 = vmatpush1.bf16.msra.mxu0 %v4440
        %7444 = vmatprep.subr.bf16.mxu0 %v4449
        %7445 = vmatpush1.bf16.msra.mxu0 %v4448
        %7446 = vmatprep.subr.bf16.mxu0 %v4457
        %7447 = vmatpush1.bf16.msra.mxu0 %v4456
        %7448 = vmatprep.subr.bf16.mxu0 %v4465
        %7449 = vmatpush1.bf16.msra.mxu0 %v4464
        %7450 = vmatprep.subr.bf16.mxu0 %v4473
        %7451 = vmatpush1.bf16.msra.mxu0 %v4472
        %7452 = vmatprep.subr.bf16.mxu0 %v4481
        %7453 = vmatpush1.bf16.msra.mxu0 %v4480
        %7454 = vmatprep.subr.bf16.mxu0 %v4489
        %7455 = vmatpush1.bf16.msra.mxu0 %v4488
        %7456 = vmatprep.subr.bf16.mxu0 %v4497
        %7457 = vmatpush1.bf16.msra.mxu0 %v4496
        %7458 = vmatprep.subr.bf16.mxu0 %v4505
        %7459 = vmatpush1.bf16.msra.mxu0 %v4504
        %7460 = vmatprep.subr.bf16.mxu0 %v4513
        %7461 = vmatpush1.bf16.msra.mxu0 %v4512
        %7462 = vmatprep.subr.bf16.mxu0 %v4521
        %7463 = vmatpush1.bf16.msra.mxu0 %v4520
        %7464 = vmatprep.subr.bf16.mxu0 %v4529
        %7465 = vmatpush1.bf16.msra.mxu0 %v4528
        %7466 = vmatprep.mubr.bf16.mxu0 %v249
        %7467 = vmatmul.mubr.bf16.gmra.mrb[0].mxu0 %v248
        %v7468 = vpop.f32.mrb[0].mxu0
        %v7469 = vadd.f32 %v1317, %v7468
        %v7470 = vpop.f32.mrb[0].mxu0
        %v7471 = vadd.f32 %v1321, %v7470
        %v7472 = vpop.f32.mrb[0].mxu0
        %v7473 = vpop.f32.mrb[0].mxu0
        %7474 = vdwg.mxu0
        %7475 = vmatprep.subr.bf16.mxu0 %v4537
        %7476 = vmatpush1.bf16.msra.mxu0 %v4536
        %7477 = vmatprep.subr.bf16.mxu0 %v4545
        %7478 = vmatpush1.bf16.msra.mxu0 %v4544
        %7479 = vmatprep.subr.bf16.mxu0 %v4553
        %7480 = vmatpush1.bf16.msra.mxu0 %v4552
        %7481 = vmatprep.subr.bf16.mxu0 %v4561
        %7482 = vmatpush1.bf16.msra.mxu0 %v4560
        %7483 = vmatprep.subr.bf16.mxu0 %v4569
        %7484 = vmatpush1.bf16.msra.mxu0 %v4568
        %7485 = vmatprep.subr.bf16.mxu0 %v4577
        %7486 = vmatpush1.bf16.msra.mxu0 %v4576
        %7487 = vmatprep.subr.bf16.mxu0 %v4585
        %7488 = vmatpush1.bf16.msra.mxu0 %v4584
        %7489 = vmatprep.subr.bf16.mxu0 %v4593
        %7490 = vmatpush1.bf16.msra.mxu0 %v4592
        %7491 = vmatprep.subr.bf16.mxu0 %v4601
        %7492 = vmatpush1.bf16.msra.mxu0 %v4600
        %7493 = vmatprep.subr.bf16.mxu0 %v4609
        %7494 = vmatpush1.bf16.msra.mxu0 %v4608
        %7495 = vmatprep.subr.bf16.mxu0 %v4617
        %7496 = vmatpush1.bf16.msra.mxu0 %v4616
        %7497 = vmatprep.subr.bf16.mxu0 %v4625
        %7498 = vmatpush1.bf16.msra.mxu0 %v4624
        %7499 = vmatprep.subr.bf16.mxu0 %v4633
        %7500 = vmatpush1.bf16.msra.mxu0 %v4632
        %7501 = vmatprep.subr.bf16.mxu0 %v4641
        %7502 = vmatpush1.bf16.msra.mxu0 %v4640
        %7503 = vmatprep.subr.bf16.mxu0 %v4649
        %7504 = vmatpush1.bf16.msra.mxu0 %v4648
        %7505 = vmatprep.subr.bf16.mxu0 %v4657
        %7506 = vmatpush1.bf16.msra.mxu0 %v4656
        %7507 = vmatprep.mubr.bf16.mxu0 %v251
        %7508 = vmatmul.mubr.bf16.gmra.mrb[0].mxu0 %v250
        %v7509 = vpop.f32.mrb[0].mxu0
        %v7510 = vadd.f32 %v7469, %v7509
        %v7511 = vpop.f32.mrb[0].mxu0
        %v7512 = vadd.f32 %v7471, %v7511
        %v7513 = vpop.f32.mrb[0].mxu0
        %v7514 = vpop.f32.mrb[0].mxu0
        %7515 = vdwg.mxu0
        %7516 = vmatprep.subr.bf16.mxu0 %v4665
        %7517 = vmatpush1.bf16.msra.mxu0 %v4664
        %7518 = vmatprep.subr.bf16.mxu0 %v4673
        %7519 = vmatpush1.bf16.msra.mxu0 %v4672
        %7520 = vmatprep.subr.bf16.mxu0 %v4681
        %7521 = vmatpush1.bf16.msra.mxu0 %v4680
        %7522 = vmatprep.subr.bf16.mxu0 %v4689
        %7523 = vmatpush1.bf16.msra.mxu0 %v4688
        %7524 = vmatprep.subr.bf16.mxu0 %v4697
        %7525 = vmatpush1.bf16.msra.mxu0 %v4696
        %7526 = vmatprep.subr.bf16.mxu0 %v4705
        %7527 = vmatpush1.bf16.msra.mxu0 %v4704
        %7528 = vmatprep.subr.bf16.mxu0 %v4713
        %7529 = vmatpush1.bf16.msra.mxu0 %v4712
        %7530 = vmatprep.subr.bf16.mxu0 %v4721
        %7531 = vmatpush1.bf16.msra.mxu0 %v4720
        %7532 = vmatprep.subr.bf16.mxu0 %v4729
        %7533 = vmatpush1.bf16.msra.mxu0 %v4728
        %7534 = vmatprep.subr.bf16.mxu0 %v4737
        %7535 = vmatpush1.bf16.msra.mxu0 %v4736
        %7536 = vmatprep.subr.bf16.mxu0 %v4745
        %7537 = vmatpush1.bf16.msra.mxu0 %v4744
        %7538 = vmatprep.subr.bf16.mxu0 %v4753
        %7539 = vmatpush1.bf16.msra.mxu0 %v4752
        %7540 = vmatprep.subr.bf16.mxu0 %v4761
        %7541 = vmatpush1.bf16.msra.mxu0 %v4760
        %7542 = vmatprep.subr.bf16.mxu0 %v4769
        %7543 = vmatpush1.bf16.msra.mxu0 %v4768
        %7544 = vmatprep.subr.bf16.mxu0 %v4777
        %7545 = vmatpush1.bf16.msra.mxu0 %v4776
        %7546 = vmatprep.subr.bf16.mxu0 %v4785
        %7547 = vmatpush1.bf16.msra.mxu0 %v4784
        %7548 = vmatprep.mubr.bf16.mxu0 %v253
        %7549 = vmatmul.mubr.bf16.gmra.mrb[0].mxu0 %v252
        %v7550 = vpop.f32.mrb[0].mxu0
        %v7551 = vadd.f32 %v7510, %v7550
        %v7552 = vpop.f32.mrb[0].mxu0
        %v7553 = vadd.f32 %v7512, %v7552
        %v7554 = vpop.f32.mrb[0].mxu0
        %v7555 = vpop.f32.mrb[0].mxu0
        %7556 = vdwg.mxu0
        %7557 = vmatprep.subr.bf16.mxu0 %v4793
        %7558 = vmatpush1.bf16.msra.mxu0 %v4792
        %7559 = vmatprep.subr.bf16.mxu0 %v4801
        %7560 = vmatpush1.bf16.msra.mxu0 %v4800
        %7561 = vmatprep.subr.bf16.mxu0 %v4809
        %7562 = vmatpush1.bf16.msra.mxu0 %v4808
        %7563 = vmatprep.subr.bf16.mxu0 %v4817
        %7564 = vmatpush1.bf16.msra.mxu0 %v4816
        %7565 = vmatprep.subr.bf16.mxu0 %v4825
        %7566 = vmatpush1.bf16.msra.mxu0 %v4824
        %7567 = vmatprep.subr.bf16.mxu0 %v4833
        %7568 = vmatpush1.bf16.msra.mxu0 %v4832
        %7569 = vmatprep.subr.bf16.mxu0 %v4841
        %7570 = vmatpush1.bf16.msra.mxu0 %v4840
        %7571 = vmatprep.subr.bf16.mxu0 %v4849
        %7572 = vmatpush1.bf16.msra.mxu0 %v4848
        %7573 = vmatprep.subr.bf16.mxu0 %v4857
        %7574 = vmatpush1.bf16.msra.mxu0 %v4856
        %7575 = vmatprep.subr.bf16.mxu0 %v4865
        %7576 = vmatpush1.bf16.msra.mxu0 %v4864
        %7577 = vmatprep.subr.bf16.mxu0 %v4873
        %7578 = vmatpush1.bf16.msra.mxu0 %v4872
        %7579 = vmatprep.subr.bf16.mxu0 %v4881
        %7580 = vmatpush1.bf16.msra.mxu0 %v4880
        %7581 = vmatprep.subr.bf16.mxu0 %v4889
        %7582 = vmatpush1.bf16.msra.mxu0 %v4888
        %7583 = vmatprep.subr.bf16.mxu0 %v4897
        %7584 = vmatpush1.bf16.msra.mxu0 %v4896
        %7585 = vmatprep.subr.bf16.mxu0 %v4905
        %7586 = vmatpush1.bf16.msra.mxu0 %v4904
        %7587 = vmatprep.subr.bf16.mxu0 %v4913
        %7588 = vmatpush1.bf16.msra.mxu0 %v4912
        %7589 = vmatprep.mubr.bf16.mxu0 %v255
        %7590 = vmatmul.mubr.bf16.gmra.mrb[0].mxu0 %v254
        %v7591 = vpop.f32.mrb[0].mxu0
        %v7592 = vadd.f32 %v7551, %v7591
        %v7593 = vpop.f32.mrb[0].mxu0
        %v7594 = vadd.f32 %v7553, %v7593
        %v7595 = vpop.f32.mrb[0].mxu0
        %v7596 = vpop.f32.mrb[0].mxu0
        %7597 = vdwg.mxu0
        %7598 = vmatprep.subr.bf16.mxu0 %v4921
        %7599 = vmatpush1.bf16.msra.mxu0 %v4920
        %7600 = vmatprep.subr.bf16.mxu0 %v4929
        %7601 = vmatpush1.bf16.msra.mxu0 %v4928
        %7602 = vmatprep.subr.bf16.mxu0 %v4937
        %7603 = vmatpush1.bf16.msra.mxu0 %v4936
        %7604 = vmatprep.subr.bf16.mxu0 %v4945
        %7605 = vmatpush1.bf16.msra.mxu0 %v4944
        %7606 = vmatprep.subr.bf16.mxu0 %v4953
        %7607 = vmatpush1.bf16.msra.mxu0 %v4952
        %7608 = vmatprep.subr.bf16.mxu0 %v4961
        %7609 = vmatpush1.bf16.msra.mxu0 %v4960
        %7610 = vmatprep.subr.bf16.mxu0 %v4969
        %7611 = vmatpush1.bf16.msra.mxu0 %v4968
        %7612 = vmatprep.subr.bf16.mxu0 %v4977
        %7613 = vmatpush1.bf16.msra.mxu0 %v4976
        %7614 = vmatprep.subr.bf16.mxu0 %v4985
        %7615 = vmatpush1.bf16.msra.mxu0 %v4984
        %7616 = vmatprep.subr.bf16.mxu0 %v4993
        %7617 = vmatpush1.bf16.msra.mxu0 %v4992
        %7618 = vmatprep.subr.bf16.mxu0 %v5001
        %7619 = vmatpush1.bf16.msra.mxu0 %v5000
        %7620 = vmatprep.subr.bf16.mxu0 %v5009
        %7621 = vmatpush1.bf16.msra.mxu0 %v5008
        %7622 = vmatprep.subr.bf16.mxu0 %v5017
        %7623 = vmatpush1.bf16.msra.mxu0 %v5016
        %7624 = vmatprep.subr.bf16.mxu0 %v5025
        %7625 = vmatpush1.bf16.msra.mxu0 %v5024
        %7626 = vmatprep.subr.bf16.mxu0 %v5033
        %7627 = vmatpush1.bf16.msra.mxu0 %v5032
        %7628 = vmatprep.subr.bf16.mxu0 %v5041
        %7629 = vmatpush1.bf16.msra.mxu0 %v5040
        %7630 = vmatprep.mubr.bf16.mxu0 %v257
        %7631 = vmatmul.mubr.bf16.gmra.mrb[0].mxu0 %v256
        %v7632 = vpop.f32.mrb[0].mxu0
        %v7633 = vadd.f32 %v7592, %v7632
        %v7634 = vpop.f32.mrb[0].mxu0
        %v7635 = vadd.f32 %v7594, %v7634
        %v7636 = vpop.f32.mrb[0].mxu0
        %v7637 = vpop.f32.mrb[0].mxu0
        %7638 = vdwg.mxu0
        %7639 = vmatprep.subr.bf16.mxu0 %v5049
        %7640 = vmatpush1.bf16.msra.mxu0 %v5048
        %7641 = vmatprep.subr.bf16.mxu0 %v5057
        %7642 = vmatpush1.bf16.msra.mxu0 %v5056
        %7643 = vmatprep.subr.bf16.mxu0 %v5065
        %7644 = vmatpush1.bf16.msra.mxu0 %v5064
        %7645 = vmatprep.subr.bf16.mxu0 %v5073
        %7646 = vmatpush1.bf16.msra.mxu0 %v5072
        %7647 = vmatprep.subr.bf16.mxu0 %v5081
        %7648 = vmatpush1.bf16.msra.mxu0 %v5080
        %7649 = vmatprep.subr.bf16.mxu0 %v5089
        %7650 = vmatpush1.bf16.msra.mxu0 %v5088
        %7651 = vmatprep.subr.bf16.mxu0 %v5097
        %7652 = vmatpush1.bf16.msra.mxu0 %v5096
        %7653 = vmatprep.subr.bf16.mxu0 %v5105
        %7654 = vmatpush1.bf16.msra.mxu0 %v5104
        %7655 = vmatprep.subr.bf16.mxu0 %v5113
        %7656 = vmatpush1.bf16.msra.mxu0 %v5112
        %7657 = vmatprep.subr.bf16.mxu0 %v5121
        %7658 = vmatpush1.bf16.msra.mxu0 %v5120
        %7659 = vmatprep.subr.bf16.mxu0 %v5129
        %7660 = vmatpush1.bf16.msra.mxu0 %v5128
        %7661 = vmatprep.subr.bf16.mxu0 %v5137
        %7662 = vmatpush1.bf16.msra.mxu0 %v5136
        %7663 = vmatprep.subr.bf16.mxu0 %v5145
        %7664 = vmatpush1.bf16.msra.mxu0 %v5144
        %7665 = vmatprep.subr.bf16.mxu0 %v5153
        %7666 = vmatpush1.bf16.msra.mxu0 %v5152
        %7667 = vmatprep.subr.bf16.mxu0 %v5161
        %7668 = vmatpush1.bf16.msra.mxu0 %v5160
        %7669 = vmatprep.subr.bf16.mxu0 %v5169
        %7670 = vmatpush1.bf16.msra.mxu0 %v5168
        %7671 = vmatprep.mubr.bf16.mxu0 %v259
        %7672 = vmatmul.mubr.bf16.gmra.mrb[0].mxu0 %v258
        %v7673 = vpop.f32.mrb[0].mxu0
        %v7674 = vadd.f32 %v7633, %v7673
        %v7675 = vpop.f32.mrb[0].mxu0
        %v7676 = vadd.f32 %v7635, %v7675
        %v7677 = vpop.f32.mrb[0].mxu0
        %v7678 = vpop.f32.mrb[0].mxu0
        %7679 = vdwg.mxu0
        %7680 = vmatprep.subr.bf16.mxu0 %v5177
        %7681 = vmatpush1.bf16.msra.mxu0 %v5176
        %7682 = vmatprep.subr.bf16.mxu0 %v5185
        %7683 = vmatpush1.bf16.msra.mxu0 %v5184
        %7684 = vmatprep.subr.bf16.mxu0 %v5193
        %7685 = vmatpush1.bf16.msra.mxu0 %v5192
        %7686 = vmatprep.subr.bf16.mxu0 %v5201
        %7687 = vmatpush1.bf16.msra.mxu0 %v5200
        %7688 = vmatprep.subr.bf16.mxu0 %v5209
        %7689 = vmatpush1.bf16.msra.mxu0 %v5208
        %7690 = vmatprep.subr.bf16.mxu0 %v5217
        %7691 = vmatpush1.bf16.msra.mxu0 %v5216
        %7692 = vmatprep.subr.bf16.mxu0 %v5225
        %7693 = vmatpush1.bf16.msra.mxu0 %v5224
        %7694 = vmatprep.subr.bf16.mxu0 %v5233
        %7695 = vmatpush1.bf16.msra.mxu0 %v5232
        %7696 = vmatprep.subr.bf16.mxu0 %v5241
        %7697 = vmatpush1.bf16.msra.mxu0 %v5240
        %7698 = vmatprep.subr.bf16.mxu0 %v5249
        %7699 = vmatpush1.bf16.msra.mxu0 %v5248
        %7700 = vmatprep.subr.bf16.mxu0 %v5257
        %7701 = vmatpush1.bf16.msra.mxu0 %v5256
        %7702 = vmatprep.subr.bf16.mxu0 %v5265
        %7703 = vmatpush1.bf16.msra.mxu0 %v5264
        %7704 = vmatprep.subr.bf16.mxu0 %v5273
        %7705 = vmatpush1.bf16.msra.mxu0 %v5272
        %7706 = vmatprep.subr.bf16.mxu0 %v5281
        %7707 = vmatpush1.bf16.msra.mxu0 %v5280
        %7708 = vmatprep.subr.bf16.mxu0 %v5289
        %7709 = vmatpush1.bf16.msra.mxu0 %v5288
        %7710 = vmatprep.subr.bf16.mxu0 %v5297
        %7711 = vmatpush1.bf16.msra.mxu0 %v5296
        %7712 = vmatprep.mubr.bf16.mxu0 %v261
        %7713 = vmatmul.mubr.bf16.gmra.mrb[0].mxu0 %v260
        %v7714 = vpop.f32.mrb[0].mxu0
        %v7715 = vadd.f32 %v7674, %v7714
        %v7716 = vpop.f32.mrb[0].mxu0
        %v7717 = vadd.f32 %v7676, %v7716
        %v7718 = vpop.f32.mrb[0].mxu0
        %v7719 = vpop.f32.mrb[0].mxu0
        %7720 = vdwg.mxu0
        %7721 = vmatprep.subr.bf16.mxu0 %v5305
        %7722 = vmatpush1.bf16.msra.mxu0 %v5304
        %7723 = vmatprep.subr.bf16.mxu0 %v5313
        %7724 = vmatpush1.bf16.msra.mxu0 %v5312
        %7725 = vmatprep.subr.bf16.mxu0 %v5321
        %7726 = vmatpush1.bf16.msra.mxu0 %v5320
        %7727 = vmatprep.subr.bf16.mxu0 %v5329
        %7728 = vmatpush1.bf16.msra.mxu0 %v5328
        %7729 = vmatprep.subr.bf16.mxu0 %v5337
        %7730 = vmatpush1.bf16.msra.mxu0 %v5336
        %7731 = vmatprep.subr.bf16.mxu0 %v5345
        %7732 = vmatpush1.bf16.msra.mxu0 %v5344
        %7733 = vmatprep.subr.bf16.mxu0 %v5353
        %7734 = vmatpush1.bf16.msra.mxu0 %v5352
        %7735 = vmatprep.subr.bf16.mxu0 %v5361
        %7736 = vmatpush1.bf16.msra.mxu0 %v5360
        %7737 = vmatprep.subr.bf16.mxu0 %v5369
        %7738 = vmatpush1.bf16.msra.mxu0 %v5368
        %7739 = vmatprep.subr.bf16.mxu0 %v5377
        %7740 = vmatpush1.bf16.msra.mxu0 %v5376
        %7741 = vmatprep.subr.bf16.mxu0 %v5385
        %7742 = vmatpush1.bf16.msra.mxu0 %v5384
        %7743 = vmatprep.subr.bf16.mxu0 %v5393
        %7744 = vmatpush1.bf16.msra.mxu0 %v5392
        %7745 = vmatprep.subr.bf16.mxu0 %v5401
        %7746 = vmatpush1.bf16.msra.mxu0 %v5400
        %7747 = vmatprep.subr.bf16.mxu0 %v5409
        %7748 = vmatpush1.bf16.msra.mxu0 %v5408
        %7749 = vmatprep.subr.bf16.mxu0 %v5417
        %7750 = vmatpush1.bf16.msra.mxu0 %v5416
        %7751 = vmatprep.subr.bf16.mxu0 %v5425
        %7752 = vmatpush1.bf16.msra.mxu0 %v5424
        %7753 = vmatprep.mubr.bf16.mxu0 %v263
        %7754 = vmatmul.mubr.bf16.gmra.mrb[0].mxu0 %v262
        %v7755 = vpop.f32.mrb[0].mxu0
        %v7756 = vadd.f32 %v7715, %v7755
        %v7757 = vpop.f32.mrb[0].mxu0
        %v7758 = vadd.f32 %v7717, %v7757
        %v7759 = vpop.f32.mrb[0].mxu0
        %v7760 = vpop.f32.mrb[0].mxu0
        %7761 = vdwg.mxu0
        %p7762 = scmp.eq.s32.totalorder %s20, 0
        // Predicated region
        $region41: #{drj_forward.2} parent=31 // pred_check
          %p7763 = pneg %p7762
        $region42: #{drj_forward.2} parent=31 // pred_check_branch
          %7765 = sbr.rel (%p7763) target = $region44
        $region43: #{drj_forward.2} parent=31 // pred_region
          %7766 = vst [vmem:[%s230] sm:$0xff] %v6772
          %7767 = vst [vmem:[%s230 + $0x8] sm:$0xff] %v6774
          %7768 = vst [vmem:[%s230 + $0x10] sm:$0xff] %v7100
          %7769 = vst [vmem:[%s230 + $0x18] sm:$0xff] %v7102
          %7770 = vst [vmem:[%s230 + $0x20] sm:$0xff] %v7428
          %7771 = vst [vmem:[%s230 + $0x28] sm:$0xff] %v7430
          %7772 = vst [vmem:[%s230 + $0x30] sm:$0xff] %v7756
          %7773 = vst [vmem:[%s230 + $0x38] sm:$0xff] %v7758
        $region44: #{drj_forward.2} parent=31 // pred_fallthru
          _
        %p7774 = scmp.gt.s32.totalorder %s20, 0
        // Predicated region
        $region45: #{drj_forward.2} parent=31 // pred_check
          %p7775 = pneg %p7774
        $region46: #{drj_forward.2} parent=31 // pred_check_branch
          %7777 = sbr.rel (%p7775) target = $region48
        $region47: #{drj_forward.2} parent=31 // pred_region
          %v7778 = vmax.f32 %v6772, 0.0
          %v7779 = vmax.f32 %v6774, 0.0
          %v7780 = vmax.f32 %v7100, 0.0
          %v7781 = vmax.f32 %v7102, 0.0
          %v7782 = vmax.f32 %v7428, 0.0
          %v7783 = vmax.f32 %v7430, 0.0
          %v7784 = vmax.f32 %v7756, 0.0
          %v7785 = vmax.f32 %v7758, 0.0
          %7786 = vst [vmem:[%s230] sm:$0xff] %v7778
          %7787 = vst [vmem:[%s230 + $0x8] sm:$0xff] %v7779
          %7788 = vst [vmem:[%s230 + $0x10] sm:$0xff] %v7780
          %7789 = vst [vmem:[%s230 + $0x18] sm:$0xff] %v7781
          %7790 = vst [vmem:[%s230 + $0x20] sm:$0xff] %v7782
          %7791 = vst [vmem:[%s230 + $0x28] sm:$0xff] %v7783
          %7792 = vst [vmem:[%s230 + $0x30] sm:$0xff] %v7784
          %7793 = vst [vmem:[%s230 + $0x38] sm:$0xff] %v7785
        $region48: #{drj_forward.2} parent=31 // pred_fallthru
          _
        %s7794 = smul.u32 8, %s20
        %p7795 = scmp.lt.s32.totalorder %s7794, 15
        %s7796 = scalar_select %p7795, %s7794, 15
        %s7797 = smul.addr %s7796, 8
        %s7798 = scalar_lea.vmem %s3, %s7797
        // Predicated region
        $region49: #{drj_forward.2} parent=31 // pred_check
          %p7799 = pneg %p111
        $region50: #{drj_forward.2} parent=31 // pred_check_branch
          %7801 = sbr.rel (%p7799) target = $region52
        $region51: #{drj_forward.2} parent=31 // pred_region
          %s7802 = smul.u32 8, %s20
        $region52: #{drj_forward.2} parent=31 // pred_fallthru
          _
      $region32: #{drj_forward.2} parent=5 // pred_fallthru
        _
      %p7803 = scmp.le.s32.totalorder 2, %s15
      // Predicated region
      $region53: #{drj_forward.2} parent=5 // pred_check
        %p7804 = pneg %p7803
      $region54: #{drj_forward.2} parent=5 // pred_check_branch
        %7806 = sbr.rel (%p7804) target = $region56
      $region55: #{drj_forward.2} parent=5 // pred_region
        %s7807 = ssub.s32 %s15, 2
        // Predicated region
        $region57: #{drj_forward.2} parent=55 // pred_check
          %p7808 = pneg %p117
        $region58: #{drj_forward.2} parent=55 // pred_check_branch
          %7810 = sbr.rel (%p7808) target = $region60
        $region59: #{drj_forward.2} parent=55 // pred_region
          %s7811 = smul.u32 8, %s21
          %p7812 = scmp.lt.s32.totalorder %s7811, 15
          %s7813 = scalar_select %p7812, %s7811, 15
          %s7814 = smul.addr %s7813, 8
          %s7815 = scalar_lea.vmem %s3, %s7814
        $region60: #{drj_forward.2} parent=55 // pred_fallthru
          _
      $region56: #{drj_forward.2} parent=5 // pred_fallthru
        _
    $region6: #{drj_forward.2} parent=1 // loop_footer
      %s19 = sadd.s32 1, %s15
    $region7: #{drj_forward.2} parent=1 // loop_footer_branch
      %14 = sbr.rel target = $region3
    $region8: #{drj_forward.2} parent=1 // loop_exit
      _
    %7816 = vsyncpa [#allocation3], 1
    %s7817 = scalar_lea.sflag [#allocation3], 1
    %7818 = vsyncpa %s7817, 1
    %7819 = vsyncpa [#allocation5], 1
    %s7820 = scalar_lea.sflag [#allocation5], 1
    %7821 = vsyncpa %s7820, 1

</llo_original>
